<compile_context>
chip_gen: v7x
topology: tpu7x:2x2x1
jax: 0.10.0
libtpu: 0.0.40
codegen_flags: <defaults>
</compile_context>

<pallas_src>
import functools

import jax
import jax.numpy as jnp
from jax.experimental import pallas as pl
from jax.experimental.pallas import tpu as pltpu

BN_EPS = 1e-5
CP, CV = 32, 3          # policy / value head conv channels
CH = CP + CV            # merged head-conv output channels


# ---------------------------------------------------------------------------
# In-kernel helpers
# ---------------------------------------------------------------------------
def _batchnorm(acc, gamma, beta):
    """BatchNorm2d (training mode): biased batch stats over the N*H*W rows.

    Single pass: sum + sum-of-squares, then y = acc * scale + shift.
    """
    inv_n = 1.0 / acc.shape[0]
    s = jnp.sum(acc, axis=0, keepdims=True)
    ss = jnp.sum(acc * acc, axis=0, keepdims=True)
    mean = s * inv_n
    var = jnp.maximum(ss * inv_n - mean * mean, 0.0)
    scale = gamma * jax.lax.rsqrt(var + BN_EPS)
    return acc * scale + (beta - mean * scale)


# ---------------------------------------------------------------------------
# Kernel 1: fused backbone (start conv + all residual blocks + merged head conv)
# ---------------------------------------------------------------------------
def _backbone_kernel(x_ref, *refs, N, H, W, hidden, num_blocks):
    """All conv+BN+ReLU layers of the network in a single kernel invocation.

    refs layout:
      [3*i : 3*i+3]            -> (w9, gamma, beta) for conv layer i
      then feat_ref, heads_ref        (outputs)
      then xpad_ref, patch_ref        (VMEM scratch)
    """
    n_conv = 1 + 2 * num_blocks + 1          # start + tower + merged heads
    conv = [refs[3 * i: 3 * i + 3] for i in range(n_conv)]
    feat_ref, heads_ref, xpad_ref, patch_ref = refs[3 * n_conv:]
    M = N * H * W

    # Zero the padded-activation scratch once; the 1-pixel border stays zero
    # for every layer (all convs are 3x3, padding=1).
    xpad_ref[...] = jnp.zeros_like(xpad_ref)

    def conv3x3(x_f32, w_ref):
        # 3x3 "same" conv as ONE im2col matmul: write the activation into the
        # zero-bordered scratch, assemble the (M, 9*hidden) bf16 patch matrix
        # in VMEM, then a single K=9*hidden MXU dot (bf16 operands, f32 acc).
        xpad_ref[:, 1:H + 1, 1:W + 1, :] = x_f32.reshape(N, H, W, hidden)
        for ky in range(3):
            for kx in range(3):
                t = ky * 3 + kx
                patch_ref[:, t * hidden:(t + 1) * hidden] = (
                    xpad_ref[:, ky:ky + H, kx:kx + W, :]
                    .reshape(M, hidden).astype(jnp.bfloat16))
        return jnp.dot(patch_ref[...], w_ref[...],
                       preferred_element_type=jnp.float32)

    # Start block: its im2col (Cin=3) was done once in the wrapper, so it is
    # a plain matmul here.  Conv bias is omitted everywhere: a bias right
    # before training-mode BatchNorm is cancelled by the mean subtraction.
    w, g, b = conv[0]
    x = jnp.maximum(
        _batchnorm(jnp.dot(x_ref[...], w[...],
                           preferred_element_type=jnp.float32),
                   g[...], b[...]), 0.0)

    # Residual tower — activations stay in VMEM / vregs, no HBM round trips.
    ci = 1
    for _ in range(num_blocks):
        w1, g1, b1 = conv[ci]
        w2, g2, b2 = conv[ci + 1]
        ci += 2
        h = jnp.maximum(_batchnorm(conv3x3(x, w1), g1[...], b1[...]), 0.0)
        y = _batchnorm(conv3x3(h, w2), g2[...], b2[...])
        x = jnp.maximum(y + x, 0.0)

    # Merged head convolution (hidden -> 32 policy + 3 value channels):
    # per-channel BN on the merged output is identical to two separate BNs.
    wh, gh, bh = conv[ci]
    hv = jnp.maximum(_batchnorm(conv3x3(x, wh), gh[...], bh[...]), 0.0)

    feat_ref[...] = x                          # backbone output, (M, hidden) f32
    heads_ref[...] = hv.astype(jnp.bfloat16)   # (M, 35) head-FC operand


# ---------------------------------------------------------------------------
# Kernel 2: merged policy+value heads (one lane-dense matmul, fused tanh)
# ---------------------------------------------------------------------------
def _heads_kernel(f_ref, w_ref, b_ref, o_ref, *, value_col):
    y = jnp.dot(f_ref[...], w_ref[...],
                preferred_element_type=jnp.float32) + b_ref[...]
    col = jax.lax.broadcasted_iota(jnp.int32, y.shape, 1)
    o_ref[...] = jnp.where(col == value_col, jnp.tanh(y), y)


# ---------------------------------------------------------------------------
# Parameter construction (deterministic, in-script)
# ---------------------------------------------------------------------------
def _conv_bn_params(key, cin, cout):
    # Conv bias omitted on purpose: it is exactly cancelled by the batch-mean
    # subtraction of the BatchNorm that always follows it.
    w = 0.1 * jax.random.normal(key, (3, 3, cin, cout), jnp.float32)  # HWIO
    return dict(w=w,
                gamma=jnp.ones((cout,), jnp.float32),
                beta=jnp.zeros((cout,), jnp.float32))


def _linear_params(key, fin, fout):
    k1, k2 = jax.random.split(key)
    return dict(w=0.1 * jax.random.normal(k1, (fin, fout), jnp.float32),
                b=0.1 * jax.random.normal(k2, (fout,), jnp.float32))


def init_resnet_params(key, num_res_blocks, num_hidden, rows, cols, action_size):
    keys = jax.random.split(key, 5 + 2 * num_res_blocks)
    params = {
        "start": _conv_bn_params(keys[0], 3, num_hidden),
        "blocks": [
            {"c1": _conv_bn_params(keys[1 + 2 * i], num_hidden, num_hidden),
             "c2": _conv_bn_params(keys[2 + 2 * i], num_hidden, num_hidden)}
            for i in range(num_res_blocks)
        ],
        "policy_conv": _conv_bn_params(keys[1 + 2 * num_res_blocks], num_hidden, CP),
        "policy_fc": _linear_params(keys[2 + 2 * num_res_blocks],
                                    CP * rows * cols, action_size),
        "value_conv": _conv_bn_params(keys[3 + 2 * num_res_blocks], num_hidden, CV),
        "value_fc": _linear_params(keys[4 + 2 * num_res_blocks],
                                   CV * rows * cols, 1),
    }
    return params


def pack_params(params, rows, cols, num_hidden, action_size):
    """Convert torch-layout params into flat kernel operands (done once)."""
    H, W, A = rows, cols, action_size

    def conv_w9(p):
        cin, cout = p["w"].shape[2], p["w"].shape[3]
        # HWIO (3,3,Cin,Cout) -> (9*Cin, Cout); row order (ky, kx, cin) matches
        # the im2col patch layout built in the kernels.
        return p["w"].reshape(9 * cin, cout)

    def conv_ops(p):
        cout = p["w"].shape[3]
        return [conv_w9(p).astype(jnp.bfloat16),
                p["gamma"].reshape(1, cout).astype(jnp.float32),
                p["beta"].reshape(1, cout).astype(jnp.float32)]

    ops = []
    ops += conv_ops(params["start"])
    for blk in params["blocks"]:
        ops += conv_ops(blk["c1"])
        ops += conv_ops(blk["c2"])

    # Merge policy-head + value-head convolutions into one hidden->(32+3) conv
    # (BatchNorm is per-channel, so one merged BN is exact).
    w_heads = jnp.concatenate([conv_w9(params["policy_conv"]),
                               conv_w9(params["value_conv"])], axis=-1)
    g_heads = jnp.concatenate([params["policy_conv"]["gamma"],
                               params["value_conv"]["gamma"]]).reshape(1, CH)
    b_heads = jnp.concatenate([params["policy_conv"]["beta"],
                               params["value_conv"]["beta"]]).reshape(1, CH)
    ops += [w_heads.astype(jnp.bfloat16),
            g_heads.astype(jnp.float32),
            b_heads.astype(jnp.float32)]

    # Heads FC: fold torch's NCHW-Flatten ordering into the FC weight rows and
    # merge policy + value into one lane-dense (F, 128) block matrix.
    def nchw_rows_to_nhwc(w, c):
        perm = jnp.arange(c * H * W).reshape(c, H, W).transpose(1, 2, 0).reshape(-1)
        return w[perm, :]

    wp = nchw_rows_to_nhwc(params["policy_fc"]["w"], CP)   # (H*W*32, A)
    wv = nchw_rows_to_nhwc(params["value_fc"]["w"], CV)    # (H*W*3, 1)
    fp, fv = CP * H * W, CV * H * W
    opad = ((A + 1 + 127) // 128) * 128
    wh = jnp.zeros((fp + fv, opad), jnp.float32)
    wh = wh.at[:fp, :A].set(wp)
    wh = wh.at[fp:, A].set(wv[:, 0])
    bh = jnp.zeros((opad,), jnp.float32)
    bh = bh.at[:A].set(params["policy_fc"]["b"])
    bh = bh.at[A].set(params["value_fc"]["b"][0])
    return ops, wh.astype(jnp.bfloat16), bh.reshape(1, opad)


# ---------------------------------------------------------------------------
# Forward pass
# ---------------------------------------------------------------------------
def make_forward(rows, cols, num_hidden, num_blocks, action_size):
    H, W, hidden, A = rows, cols, num_hidden, action_size
    opad = ((A + 1 + 127) // 128) * 128
    n_conv = 1 + 2 * num_blocks + 1
    vmem = pl.BlockSpec(memory_space=pltpu.MemorySpace.VMEM)

    @jax.jit
    def forward(ops, wh, bh, x_nchw):
        N, cin = x_nchw.shape[0], x_nchw.shape[1]
        M = N * H * W

        # NCHW -> NHWC, spatial zero-pad and im2col for the first layer only
        # (its Cin=3 does not match the shared in-kernel scratch width).
        x = jnp.transpose(x_nchw, (0, 2, 3, 1)).astype(jnp.float32)
        xp = jnp.pad(x, ((0, 0), (1, 1), (1, 1), (0, 0)))
        taps = [xp[:, ky:ky + H, kx:kx + W, :]
                for ky in range(3) for kx in range(3)]
        x_patches = (jnp.concatenate(taps, axis=-1)
                     .reshape(M, 9 * cin).astype(jnp.bfloat16))

        # -------- fused backbone + merged head conv: one pallas_call ---------
        cins = [cin] + [hidden] * (2 * num_blocks + 1)
        couts = [hidden] * (1 + 2 * num_blocks) + [CH]
        flops = int(sum(2 * M * 9 * ci * co for ci, co in zip(cins, couts)))
        in_bytes = int(sum(a.size * a.dtype.itemsize
                           for a in [x_patches] + list(ops)))
        out_bytes = M * hidden * 4 + M * CH * 2

        kernel = functools.partial(_backbone_kernel, N=N, H=H, W=W,
                                   hidden=hidden, num_blocks=num_blocks)
        feat2d, heads_act = pl.pallas_call(
            kernel,
            out_shape=(jax.ShapeDtypeStruct((M, hidden), jnp.float32),
                       jax.ShapeDtypeStruct((M, CH), jnp.bfloat16)),
            in_specs=[vmem] * (1 + 3 * n_conv),
            out_specs=(vmem, vmem),
            scratch_shapes=[
                pltpu.VMEM((N, H + 2, W + 2, hidden), jnp.float32),  # padded act
                pltpu.VMEM((M, 9 * hidden), jnp.bfloat16),           # im2col patches
            ],
            cost_estimate=pl.CostEstimate(
                flops=flops,
                transcendentals=int(sum(couts)),
                bytes_accessed=in_bytes + out_bytes),
        )(x_patches, *ops)

        # -------- merged policy/value heads: one lane-dense matmul ----------
        # NHWC flatten (the NCHW Flatten permutation is folded into wh's rows).
        p_feat = heads_act[:, :CP].reshape(N, H * W * CP)
        v_feat = heads_act[:, CP:].reshape(N, H * W * CV)
        feats = jnp.concatenate([p_feat, v_feat], axis=-1)
        Fh = feats.shape[-1]
        heads = pl.pallas_call(
            functools.partial(_heads_kernel, value_col=A),
            out_shape=jax.ShapeDtypeStruct((N, opad), jnp.float32),
            in_specs=[vmem] * 3,
            out_specs=vmem,
            cost_estimate=pl.CostEstimate(
                flops=int(2 * N * Fh * opad),
                transcendentals=int(N * opad),
                bytes_accessed=int(feats.size * 2 + wh.size * 2
                                   + bh.size * 4 + N * opad * 4)),
        )(feats, wh, bh)

        policy = heads[:, :A]
        value = heads[:, A:A + 1]
        feat = feat2d.reshape(N, H, W, hidden).transpose(0, 3, 1, 2)  # NCHW
        return policy, value, feat

    return forward


# ---------------------------------------------------------------------------
if __name__ == "__main__":
    # Small "game": 8x8 board, action_size = 65, 2 res blocks, 32 hidden chans.
    batch, rows, cols = 2, 8, 8
    num_hidden, num_res_blocks, action_size = 32, 2, 65

    key = jax.random.PRNGKey(0)
    k_params, k_x = jax.random.split(key)
    params = init_resnet_params(k_params, num_res_blocks, num_hidden,
                                rows, cols, action_size)
    ops, wh, bh = pack_params(params, rows, cols, num_hidden, action_size)
    forward = make_forward(rows, cols, num_hidden, num_res_blocks, action_size)

    x = jax.random.normal(k_x, (batch, 3, rows, cols), jnp.float32)

    policy, value, feat = forward(ops, wh, bh, x)
    jax.block_until_ready((policy, value, feat))

    assert policy.shape == (batch, action_size)
    assert value.shape == (batch, 1)
    assert feat.shape == (batch, num_hidden, rows, cols)
    assert bool(jnp.isfinite(policy).all())
    assert bool(jnp.isfinite(value).all())
    assert bool(jnp.isfinite(feat).all())
    print("KERNEL_OK")
</pallas_src>

<mosaic_0001>
module attributes {stable_mosaic.version = 11 : i64} {
  func.func @_backbone_kernel(%arg0: memref<128x27xbf16, #tpu.memory_space<vmem>>, %arg1: memref<27x32xbf16, #tpu.memory_space<vmem>>, %arg2: memref<1x32xf32, #tpu.memory_space<vmem>>, %arg3: memref<1x32xf32, #tpu.memory_space<vmem>>, %arg4: memref<288x32xbf16, #tpu.memory_space<vmem>>, %arg5: memref<1x32xf32, #tpu.memory_space<vmem>>, %arg6: memref<1x32xf32, #tpu.memory_space<vmem>>, %arg7: memref<288x32xbf16, #tpu.memory_space<vmem>>, %arg8: memref<1x32xf32, #tpu.memory_space<vmem>>, %arg9: memref<1x32xf32, #tpu.memory_space<vmem>>, %arg10: memref<288x32xbf16, #tpu.memory_space<vmem>>, %arg11: memref<1x32xf32, #tpu.memory_space<vmem>>, %arg12: memref<1x32xf32, #tpu.memory_space<vmem>>, %arg13: memref<288x32xbf16, #tpu.memory_space<vmem>>, %arg14: memref<1x32xf32, #tpu.memory_space<vmem>>, %arg15: memref<1x32xf32, #tpu.memory_space<vmem>>, %arg16: memref<288x35xbf16, #tpu.memory_space<vmem>>, %arg17: memref<1x35xf32, #tpu.memory_space<vmem>>, %arg18: memref<1x35xf32, #tpu.memory_space<vmem>>, %arg19: memref<128x32xf32, #tpu.memory_space<vmem>>, %arg20: memref<128x35xbf16, #tpu.memory_space<vmem>>, %arg21: memref<2x10x10x32xf32, #tpu.memory_space<vmem>>, %arg22: memref<128x288xbf16, #tpu.memory_space<vmem>>) attributes {dimension_semantics = [], scalar_prefetch = 0 : i64, scratch_operands = 2 : i64, tpu.core_type = #tpu.core_type<tc>} {
    %cst = arith.constant 0.000000e+00 : f32
    %0 = vector.broadcast %cst : f32 to vector<2x10x10x32xf32>
    %c0 = arith.constant 0 : index
    %c0_0 = arith.constant 0 : index
    %c0_1 = arith.constant 0 : index
    %c0_2 = arith.constant 0 : index
    %1 = vector.load %arg21[%c0, %c0_0, %c0_1, %c0_2] : memref<2x10x10x32xf32, #tpu.memory_space<vmem>>, vector<2x10x10x32xf32>
    tpu.vector_store %arg21[%c0, %c0_0, %c0_1, %c0_2], %0 {strides = array<i32>} : memref<2x10x10x32xf32, #tpu.memory_space<vmem>>, vector<2x10x10x32xf32>,
    %c0_3 = arith.constant 0 : index
    %c0_4 = arith.constant 0 : index
    %2 = vector.load %arg0[%c0_3, %c0_4] : memref<128x27xbf16, #tpu.memory_space<vmem>>, vector<128x27xbf16>
    %c0_5 = arith.constant 0 : index
    %c0_6 = arith.constant 0 : index
    %3 = vector.load %arg1[%c0_5, %c0_6] : memref<27x32xbf16, #tpu.memory_space<vmem>>, vector<27x32xbf16>
    %cst_7 = arith.constant dense<0.000000e+00> : vector<128x32xf32>
    %4 = tpu.matmul %2, %3, %cst_7 {dimension_numbers = #tpu.dot_dimension_numbers<[1], [0], [0], [1], [0, 0, 1, 1], [], []>} : vector<128x27xbf16>, vector<27x32xbf16>, vector<128x32xf32> -> vector<128x32xf32>
    %c0_8 = arith.constant 0 : index
    %c0_9 = arith.constant 0 : index
    %5 = vector.load %arg2[%c0_8, %c0_9] : memref<1x32xf32, #tpu.memory_space<vmem>>, vector<1x32xf32>
    %c0_10 = arith.constant 0 : index
    %c0_11 = arith.constant 0 : index
    %6 = vector.load %arg3[%c0_10, %c0_11] : memref<1x32xf32, #tpu.memory_space<vmem>>, vector<1x32xf32>
    %cst_12 = arith.constant dense<0.000000e+00> : vector<32xf32>
    %7 = vector.multi_reduction <add>, %4, %cst_12 [0] : vector<128x32xf32> to vector<32xf32>
    %8 = vector.shape_cast %7 : vector<32xf32> to vector<1x32xf32>
    %9 = arith.mulf %4, %4 : vector<128x32xf32>
    %cst_13 = arith.constant dense<0.000000e+00> : vector<32xf32>
    %10 = vector.multi_reduction <add>, %9, %cst_13 [0] : vector<128x32xf32> to vector<32xf32>
    %11 = vector.shape_cast %10 : vector<32xf32> to vector<1x32xf32>
    %cst_14 = arith.constant 7.812500e-03 : f32
    %12 = vector.broadcast %cst_14 : f32 to vector<1x32xf32>
    %13 = arith.mulf %8, %12 : vector<1x32xf32>
    %cst_15 = arith.constant 7.812500e-03 : f32
    %14 = vector.broadcast %cst_15 : f32 to vector<1x32xf32>
    %15 = arith.mulf %11, %14 : vector<1x32xf32>
    %16 = arith.mulf %13, %13 : vector<1x32xf32>
    %17 = arith.subf %15, %16 : vector<1x32xf32>
    %cst_16 = arith.constant 0.000000e+00 : f32
    %18 = vector.broadcast %cst_16 : f32 to vector<1x32xf32>
    %19 = arith.maximumf %17, %18 : vector<1x32xf32>
    %cst_17 = arith.constant 9.99999974E-6 : f32
    %20 = vector.broadcast %cst_17 : f32 to vector<1x32xf32>
    %21 = arith.addf %19, %20 : vector<1x32xf32>
    %22 = math.rsqrt %21 : vector<1x32xf32>
    %23 = arith.mulf %5, %22 : vector<1x32xf32>
    %24 = vector.broadcast %23 : vector<1x32xf32> to vector<128x32xf32>
    %25 = arith.mulf %4, %24 : vector<128x32xf32>
    %26 = arith.mulf %13, %23 : vector<1x32xf32>
    %27 = arith.subf %6, %26 : vector<1x32xf32>
    %28 = vector.broadcast %27 : vector<1x32xf32> to vector<128x32xf32>
    %29 = arith.addf %25, %28 : vector<128x32xf32>
    %cst_18 = arith.constant 0.000000e+00 : f32
    %30 = vector.broadcast %cst_18 : f32 to vector<128x32xf32>
    %31 = arith.maximumf %29, %30 : vector<128x32xf32>
    %32 = vector.shape_cast %31 : vector<128x32xf32> to vector<2x8x8x32xf32>
    %c0_19 = arith.constant 0 : index
    %c1 = arith.constant 1 : index
    %c1_20 = arith.constant 1 : index
    %c0_21 = arith.constant 0 : index
    %33 = vector.load %arg21[%c0_19, %c1, %c1_20, %c0_21] : memref<2x10x10x32xf32, #tpu.memory_space<vmem>>, vector<2x8x8x32xf32>
    tpu.vector_store %arg21[%c0_19, %c1, %c1_20, %c0_21], %32 {strides = array<i32>} : memref<2x10x10x32xf32, #tpu.memory_space<vmem>>, vector<2x8x8x32xf32>,
    %c0_22 = arith.constant 0 : index
    %c0_23 = arith.constant 0 : index
    %c0_24 = arith.constant 0 : index
    %c0_25 = arith.constant 0 : index
    %34 = vector.load %arg21[%c0_22, %c0_23, %c0_24, %c0_25] : memref<2x10x10x32xf32, #tpu.memory_space<vmem>>, vector<2x8x8x32xf32>
    %35 = vector.shape_cast %34 : vector<2x8x8x32xf32> to vector<128x32xf32>
    %36 = arith.truncf %35 : vector<128x32xf32> to vector<128x32xbf16>
    %c0_26 = arith.constant 0 : index
    %c0_27 = arith.constant 0 : index
    %37 = vector.load %arg22[%c0_26, %c0_27] : memref<128x288xbf16, #tpu.memory_space<vmem>>, vector<128x32xbf16>
    tpu.vector_store %arg22[%c0_26, %c0_27], %36 {strides = array<i32>} : memref<128x288xbf16, #tpu.memory_space<vmem>>, vector<128x32xbf16>,
    %c0_28 = arith.constant 0 : index
    %c0_29 = arith.constant 0 : index
    %c1_30 = arith.constant 1 : index
    %c0_31 = arith.constant 0 : index
    %38 = vector.load %arg21[%c0_28, %c0_29, %c1_30, %c0_31] : memref<2x10x10x32xf32, #tpu.memory_space<vmem>>, vector<2x8x8x32xf32>
    %39 = vector.shape_cast %38 : vector<2x8x8x32xf32> to vector<128x32xf32>
    %40 = arith.truncf %39 : vector<128x32xf32> to vector<128x32xbf16>
    %c0_32 = arith.constant 0 : index
    %c32 = arith.constant 32 : index
    %41 = vector.load %arg22[%c0_32, %c32] : memref<128x288xbf16, #tpu.memory_space<vmem>>, vector<128x32xbf16>
    tpu.vector_store %arg22[%c0_32, %c32], %40 {strides = array<i32>} : memref<128x288xbf16, #tpu.memory_space<vmem>>, vector<128x32xbf16>,
    %c0_33 = arith.constant 0 : index
    %c0_34 = arith.constant 0 : index
    %c2 = arith.constant 2 : index
    %c0_35 = arith.constant 0 : index
    %42 = vector.load %arg21[%c0_33, %c0_34, %c2, %c0_35] : memref<2x10x10x32xf32, #tpu.memory_space<vmem>>, vector<2x8x8x32xf32>
    %43 = vector.shape_cast %42 : vector<2x8x8x32xf32> to vector<128x32xf32>
    %44 = arith.truncf %43 : vector<128x32xf32> to vector<128x32xbf16>
    %c0_36 = arith.constant 0 : index
    %c64 = arith.constant 64 : index
    %45 = vector.load %arg22[%c0_36, %c64] : memref<128x288xbf16, #tpu.memory_space<vmem>>, vector<128x32xbf16>
    tpu.vector_store %arg22[%c0_36, %c64], %44 {strides = array<i32>} : memref<128x288xbf16, #tpu.memory_space<vmem>>, vector<128x32xbf16>,
    %c0_37 = arith.constant 0 : index
    %c1_38 = arith.constant 1 : index
    %c0_39 = arith.constant 0 : index
    %c0_40 = arith.constant 0 : index
    %46 = vector.load %arg21[%c0_37, %c1_38, %c0_39, %c0_40] : memref<2x10x10x32xf32, #tpu.memory_space<vmem>>, vector<2x8x8x32xf32>
    %47 = vector.shape_cast %46 : vector<2x8x8x32xf32> to vector<128x32xf32>
    %48 = arith.truncf %47 : vector<128x32xf32> to vector<128x32xbf16>
    %c0_41 = arith.constant 0 : index
    %c96 = arith.constant 96 : index
    %49 = vector.load %arg22[%c0_41, %c96] : memref<128x288xbf16, #tpu.memory_space<vmem>>, vector<128x32xbf16>
    tpu.vector_store %arg22[%c0_41, %c96], %48 {strides = array<i32>} : memref<128x288xbf16, #tpu.memory_space<vmem>>, vector<128x32xbf16>,
    %c0_42 = arith.constant 0 : index
    %c1_43 = arith.constant 1 : index
    %c1_44 = arith.constant 1 : index
    %c0_45 = arith.constant 0 : index
    %50 = vector.load %arg21[%c0_42, %c1_43, %c1_44, %c0_45] : memref<2x10x10x32xf32, #tpu.memory_space<vmem>>, vector<2x8x8x32xf32>
    %51 = vector.shape_cast %50 : vector<2x8x8x32xf32> to vector<128x32xf32>
    %52 = arith.truncf %51 : vector<128x32xf32> to vector<128x32xbf16>
    %c0_46 = arith.constant 0 : index
    %c128 = arith.constant 128 : index
    %53 = vector.load %arg22[%c0_46, %c128] : memref<128x288xbf16, #tpu.memory_space<vmem>>, vector<128x32xbf16>
    tpu.vector_store %arg22[%c0_46, %c128], %52 {strides = array<i32>} : memref<128x288xbf16, #tpu.memory_space<vmem>>, vector<128x32xbf16>,
    %c0_47 = arith.constant 0 : index
    %c1_48 = arith.constant 1 : index
    %c2_49 = arith.constant 2 : index
    %c0_50 = arith.constant 0 : index
    %54 = vector.load %arg21[%c0_47, %c1_48, %c2_49, %c0_50] : memref<2x10x10x32xf32, #tpu.memory_space<vmem>>, vector<2x8x8x32xf32>
    %55 = vector.shape_cast %54 : vector<2x8x8x32xf32> to vector<128x32xf32>
    %56 = arith.truncf %55 : vector<128x32xf32> to vector<128x32xbf16>
    %c0_51 = arith.constant 0 : index
    %c160 = arith.constant 160 : index
    %57 = vector.load %arg22[%c0_51, %c160] : memref<128x288xbf16, #tpu.memory_space<vmem>>, vector<128x32xbf16>
    tpu.vector_store %arg22[%c0_51, %c160], %56 {strides = array<i32>} : memref<128x288xbf16, #tpu.memory_space<vmem>>, vector<128x32xbf16>,
    %c0_52 = arith.constant 0 : index
    %c2_53 = arith.constant 2 : index
    %c0_54 = arith.constant 0 : index
    %c0_55 = arith.constant 0 : index
    %58 = vector.load %arg21[%c0_52, %c2_53, %c0_54, %c0_55] : memref<2x10x10x32xf32, #tpu.memory_space<vmem>>, vector<2x8x8x32xf32>
    %59 = vector.shape_cast %58 : vector<2x8x8x32xf32> to vector<128x32xf32>
    %60 = arith.truncf %59 : vector<128x32xf32> to vector<128x32xbf16>
    %c0_56 = arith.constant 0 : index
    %c192 = arith.constant 192 : index
    %61 = vector.load %arg22[%c0_56, %c192] : memref<128x288xbf16, #tpu.memory_space<vmem>>, vector<128x32xbf16>
    tpu.vector_store %arg22[%c0_56, %c192], %60 {strides = array<i32>} : memref<128x288xbf16, #tpu.memory_space<vmem>>, vector<128x32xbf16>,
    %c0_57 = arith.constant 0 : index
    %c2_58 = arith.constant 2 : index
    %c1_59 = arith.constant 1 : index
    %c0_60 = arith.constant 0 : index
    %62 = vector.load %arg21[%c0_57, %c2_58, %c1_59, %c0_60] : memref<2x10x10x32xf32, #tpu.memory_space<vmem>>, vector<2x8x8x32xf32>
    %63 = vector.shape_cast %62 : vector<2x8x8x32xf32> to vector<128x32xf32>
    %64 = arith.truncf %63 : vector<128x32xf32> to vector<128x32xbf16>
    %c0_61 = arith.constant 0 : index
    %c224 = arith.constant 224 : index
    %65 = vector.load %arg22[%c0_61, %c224] : memref<128x288xbf16, #tpu.memory_space<vmem>>, vector<128x32xbf16>
    tpu.vector_store %arg22[%c0_61, %c224], %64 {strides = array<i32>} : memref<128x288xbf16, #tpu.memory_space<vmem>>, vector<128x32xbf16>,
    %c0_62 = arith.constant 0 : index
    %c2_63 = arith.constant 2 : index
    %c2_64 = arith.constant 2 : index
    %c0_65 = arith.constant 0 : index
    %66 = vector.load %arg21[%c0_62, %c2_63, %c2_64, %c0_65] : memref<2x10x10x32xf32, #tpu.memory_space<vmem>>, vector<2x8x8x32xf32>
    %67 = vector.shape_cast %66 : vector<2x8x8x32xf32> to vector<128x32xf32>
    %68 = arith.truncf %67 : vector<128x32xf32> to vector<128x32xbf16>
    %c0_66 = arith.constant 0 : index
    %c256 = arith.constant 256 : index
    %69 = vector.load %arg22[%c0_66, %c256] : memref<128x288xbf16, #tpu.memory_space<vmem>>, vector<128x32xbf16>
    tpu.vector_store %arg22[%c0_66, %c256], %68 {strides = array<i32>} : memref<128x288xbf16, #tpu.memory_space<vmem>>, vector<128x32xbf16>,
    %c0_67 = arith.constant 0 : index
    %c0_68 = arith.constant 0 : index
    %70 = vector.load %arg22[%c0_67, %c0_68] : memref<128x288xbf16, #tpu.memory_space<vmem>>, vector<128x288xbf16>
    %c0_69 = arith.constant 0 : index
    %c0_70 = arith.constant 0 : index
    %71 = vector.load %arg4[%c0_69, %c0_70] : memref<288x32xbf16, #tpu.memory_space<vmem>>, vector<288x32xbf16>
    %cst_71 = arith.constant dense<0.000000e+00> : vector<128x32xf32>
    %72 = tpu.matmul %70, %71, %cst_71 {dimension_numbers = #tpu.dot_dimension_numbers<[1], [0], [0], [1], [0, 0, 1, 1], [], []>} : vector<128x288xbf16>, vector<288x32xbf16>, vector<128x32xf32> -> vector<128x32xf32>
    %c0_72 = arith.constant 0 : index
    %c0_73 = arith.constant 0 : index
    %73 = vector.load %arg5[%c0_72, %c0_73] : memref<1x32xf32, #tpu.memory_space<vmem>>, vector<1x32xf32>
    %c0_74 = arith.constant 0 : index
    %c0_75 = arith.constant 0 : index
    %74 = vector.load %arg6[%c0_74, %c0_75] : memref<1x32xf32, #tpu.memory_space<vmem>>, vector<1x32xf32>
    %cst_76 = arith.constant dense<0.000000e+00> : vector<32xf32>
    %75 = vector.multi_reduction <add>, %72, %cst_76 [0] : vector<128x32xf32> to vector<32xf32>
    %76 = vector.shape_cast %75 : vector<32xf32> to vector<1x32xf32>
    %77 = arith.mulf %72, %72 : vector<128x32xf32>
    %cst_77 = arith.constant dense<0.000000e+00> : vector<32xf32>
    %78 = vector.multi_reduction <add>, %77, %cst_77 [0] : vector<128x32xf32> to vector<32xf32>
    %79 = vector.shape_cast %78 : vector<32xf32> to vector<1x32xf32>
    %cst_78 = arith.constant 7.812500e-03 : f32
    %80 = vector.broadcast %cst_78 : f32 to vector<1x32xf32>
    %81 = arith.mulf %76, %80 : vector<1x32xf32>
    %cst_79 = arith.constant 7.812500e-03 : f32
    %82 = vector.broadcast %cst_79 : f32 to vector<1x32xf32>
    %83 = arith.mulf %79, %82 : vector<1x32xf32>
    %84 = arith.mulf %81, %81 : vector<1x32xf32>
    %85 = arith.subf %83, %84 : vector<1x32xf32>
    %cst_80 = arith.constant 0.000000e+00 : f32
    %86 = vector.broadcast %cst_80 : f32 to vector<1x32xf32>
    %87 = arith.maximumf %85, %86 : vector<1x32xf32>
    %cst_81 = arith.constant 9.99999974E-6 : f32
    %88 = vector.broadcast %cst_81 : f32 to vector<1x32xf32>
    %89 = arith.addf %87, %88 : vector<1x32xf32>
    %90 = math.rsqrt %89 : vector<1x32xf32>
    %91 = arith.mulf %73, %90 : vector<1x32xf32>
    %92 = vector.broadcast %91 : vector<1x32xf32> to vector<128x32xf32>
    %93 = arith.mulf %72, %92 : vector<128x32xf32>
    %94 = arith.mulf %81, %91 : vector<1x32xf32>
    %95 = arith.subf %74, %94 : vector<1x32xf32>
    %96 = vector.broadcast %95 : vector<1x32xf32> to vector<128x32xf32>
    %97 = arith.addf %93, %96 : vector<128x32xf32>
    %cst_82 = arith.constant 0.000000e+00 : f32
    %98 = vector.broadcast %cst_82 : f32 to vector<128x32xf32>
    %99 = arith.maximumf %97, %98 : vector<128x32xf32>
    %100 = vector.shape_cast %99 : vector<128x32xf32> to vector<2x8x8x32xf32>
    %c0_83 = arith.constant 0 : index
    %c1_84 = arith.constant 1 : index
    %c1_85 = arith.constant 1 : index
    %c0_86 = arith.constant 0 : index
    %101 = vector.load %arg21[%c0_83, %c1_84, %c1_85, %c0_86] : memref<2x10x10x32xf32, #tpu.memory_space<vmem>>, vector<2x8x8x32xf32>
    tpu.vector_store %arg21[%c0_83, %c1_84, %c1_85, %c0_86], %100 {strides = array<i32>} : memref<2x10x10x32xf32, #tpu.memory_space<vmem>>, vector<2x8x8x32xf32>,
    %c0_87 = arith.constant 0 : index
    %c0_88 = arith.constant 0 : index
    %c0_89 = arith.constant 0 : index
    %c0_90 = arith.constant 0 : index
    %102 = vector.load %arg21[%c0_87, %c0_88, %c0_89, %c0_90] : memref<2x10x10x32xf32, #tpu.memory_space<vmem>>, vector<2x8x8x32xf32>
    %103 = vector.shape_cast %102 : vector<2x8x8x32xf32> to vector<128x32xf32>
    %104 = arith.truncf %103 : vector<128x32xf32> to vector<128x32xbf16>
    %c0_91 = arith.constant 0 : index
    %c0_92 = arith.constant 0 : index
    %105 = vector.load %arg22[%c0_91, %c0_92] : memref<128x288xbf16, #tpu.memory_space<vmem>>, vector<128x32xbf16>
    tpu.vector_store %arg22[%c0_91, %c0_92], %104 {strides = array<i32>} : memref<128x288xbf16, #tpu.memory_space<vmem>>, vector<128x32xbf16>,
    %c0_93 = arith.constant 0 : index
    %c0_94 = arith.constant 0 : index
    %c1_95 = arith.constant 1 : index
    %c0_96 = arith.constant 0 : index
    %106 = vector.load %arg21[%c0_93, %c0_94, %c1_95, %c0_96] : memref<2x10x10x32xf32, #tpu.memory_space<vmem>>, vector<2x8x8x32xf32>
    %107 = vector.shape_cast %106 : vector<2x8x8x32xf32> to vector<128x32xf32>
    %108 = arith.truncf %107 : vector<128x32xf32> to vector<128x32xbf16>
    %c0_97 = arith.constant 0 : index
    %c32_98 = arith.constant 32 : index
    %109 = vector.load %arg22[%c0_97, %c32_98] : memref<128x288xbf16, #tpu.memory_space<vmem>>, vector<128x32xbf16>
    tpu.vector_store %arg22[%c0_97, %c32_98], %108 {strides = array<i32>} : memref<128x288xbf16, #tpu.memory_space<vmem>>, vector<128x32xbf16>,
    %c0_99 = arith.constant 0 : index
    %c0_100 = arith.constant 0 : index
    %c2_101 = arith.constant 2 : index
    %c0_102 = arith.constant 0 : index
    %110 = vector.load %arg21[%c0_99, %c0_100, %c2_101, %c0_102] : memref<2x10x10x32xf32, #tpu.memory_space<vmem>>, vector<2x8x8x32xf32>
    %111 = vector.shape_cast %110 : vector<2x8x8x32xf32> to vector<128x32xf32>
    %112 = arith.truncf %111 : vector<128x32xf32> to vector<128x32xbf16>
    %c0_103 = arith.constant 0 : index
    %c64_104 = arith.constant 64 : index
    %113 = vector.load %arg22[%c0_103, %c64_104] : memref<128x288xbf16, #tpu.memory_space<vmem>>, vector<128x32xbf16>
    tpu.vector_store %arg22[%c0_103, %c64_104], %112 {strides = array<i32>} : memref<128x288xbf16, #tpu.memory_space<vmem>>, vector<128x32xbf16>,
    %c0_105 = arith.constant 0 : index
    %c1_106 = arith.constant 1 : index
    %c0_107 = arith.constant 0 : index
    %c0_108 = arith.constant 0 : index
    %114 = vector.load %arg21[%c0_105, %c1_106, %c0_107, %c0_108] : memref<2x10x10x32xf32, #tpu.memory_space<vmem>>, vector<2x8x8x32xf32>
    %115 = vector.shape_cast %114 : vector<2x8x8x32xf32> to vector<128x32xf32>
    %116 = arith.truncf %115 : vector<128x32xf32> to vector<128x32xbf16>
    %c0_109 = arith.constant 0 : index
    %c96_110 = arith.constant 96 : index
    %117 = vector.load %arg22[%c0_109, %c96_110] : memref<128x288xbf16, #tpu.memory_space<vmem>>, vector<128x32xbf16>
    tpu.vector_store %arg22[%c0_109, %c96_110], %116 {strides = array<i32>} : memref<128x288xbf16, #tpu.memory_space<vmem>>, vector<128x32xbf16>,
    %c0_111 = arith.constant 0 : index
    %c1_112 = arith.constant 1 : index
    %c1_113 = arith.constant 1 : index
    %c0_114 = arith.constant 0 : index
    %118 = vector.load %arg21[%c0_111, %c1_112, %c1_113, %c0_114] : memref<2x10x10x32xf32, #tpu.memory_space<vmem>>, vector<2x8x8x32xf32>
    %119 = vector.shape_cast %118 : vector<2x8x8x32xf32> to vector<128x32xf32>
    %120 = arith.truncf %119 : vector<128x32xf32> to vector<128x32xbf16>
    %c0_115 = arith.constant 0 : index
    %c128_116 = arith.constant 128 : index
    %121 = vector.load %arg22[%c0_115, %c128_116] : memref<128x288xbf16, #tpu.memory_space<vmem>>, vector<128x32xbf16>
    tpu.vector_store %arg22[%c0_115, %c128_116], %120 {strides = array<i32>} : memref<128x288xbf16, #tpu.memory_space<vmem>>, vector<128x32xbf16>,
    %c0_117 = arith.constant 0 : index
    %c1_118 = arith.constant 1 : index
    %c2_119 = arith.constant 2 : index
    %c0_120 = arith.constant 0 : index
    %122 = vector.load %arg21[%c0_117, %c1_118, %c2_119, %c0_120] : memref<2x10x10x32xf32, #tpu.memory_space<vmem>>, vector<2x8x8x32xf32>
    %123 = vector.shape_cast %122 : vector<2x8x8x32xf32> to vector<128x32xf32>
    %124 = arith.truncf %123 : vector<128x32xf32> to vector<128x32xbf16>
    %c0_121 = arith.constant 0 : index
    %c160_122 = arith.constant 160 : index
    %125 = vector.load %arg22[%c0_121, %c160_122] : memref<128x288xbf16, #tpu.memory_space<vmem>>, vector<128x32xbf16>
    tpu.vector_store %arg22[%c0_121, %c160_122], %124 {strides = array<i32>} : memref<128x288xbf16, #tpu.memory_space<vmem>>, vector<128x32xbf16>,
    %c0_123 = arith.constant 0 : index
    %c2_124 = arith.constant 2 : index
    %c0_125 = arith.constant 0 : index
    %c0_126 = arith.constant 0 : index
    %126 = vector.load %arg21[%c0_123, %c2_124, %c0_125, %c0_126] : memref<2x10x10x32xf32, #tpu.memory_space<vmem>>, vector<2x8x8x32xf32>
    %127 = vector.shape_cast %126 : vector<2x8x8x32xf32> to vector<128x32xf32>
    %128 = arith.truncf %127 : vector<128x32xf32> to vector<128x32xbf16>
    %c0_127 = arith.constant 0 : index
    %c192_128 = arith.constant 192 : index
    %129 = vector.load %arg22[%c0_127, %c192_128] : memref<128x288xbf16, #tpu.memory_space<vmem>>, vector<128x32xbf16>
    tpu.vector_store %arg22[%c0_127, %c192_128], %128 {strides = array<i32>} : memref<128x288xbf16, #tpu.memory_space<vmem>>, vector<128x32xbf16>,
    %c0_129 = arith.constant 0 : index
    %c2_130 = arith.constant 2 : index
    %c1_131 = arith.constant 1 : index
    %c0_132 = arith.constant 0 : index
    %130 = vector.load %arg21[%c0_129, %c2_130, %c1_131, %c0_132] : memref<2x10x10x32xf32, #tpu.memory_space<vmem>>, vector<2x8x8x32xf32>
    %131 = vector.shape_cast %130 : vector<2x8x8x32xf32> to vector<128x32xf32>
    %132 = arith.truncf %131 : vector<128x32xf32> to vector<128x32xbf16>
    %c0_133 = arith.constant 0 : index
    %c224_134 = arith.constant 224 : index
    %133 = vector.load %arg22[%c0_133, %c224_134] : memref<128x288xbf16, #tpu.memory_space<vmem>>, vector<128x32xbf16>
    tpu.vector_store %arg22[%c0_133, %c224_134], %132 {strides = array<i32>} : memref<128x288xbf16, #tpu.memory_space<vmem>>, vector<128x32xbf16>,
    %c0_135 = arith.constant 0 : index
    %c2_136 = arith.constant 2 : index
    %c2_137 = arith.constant 2 : index
    %c0_138 = arith.constant 0 : index
    %134 = vector.load %arg21[%c0_135, %c2_136, %c2_137, %c0_138] : memref<2x10x10x32xf32, #tpu.memory_space<vmem>>, vector<2x8x8x32xf32>
    %135 = vector.shape_cast %134 : vector<2x8x8x32xf32> to vector<128x32xf32>
    %136 = arith.truncf %135 : vector<128x32xf32> to vector<128x32xbf16>
    %c0_139 = arith.constant 0 : index
    %c256_140 = arith.constant 256 : index
    %137 = vector.load %arg22[%c0_139, %c256_140] : memref<128x288xbf16, #tpu.memory_space<vmem>>, vector<128x32xbf16>
    tpu.vector_store %arg22[%c0_139, %c256_140], %136 {strides = array<i32>} : memref<128x288xbf16, #tpu.memory_space<vmem>>, vector<128x32xbf16>,
    %c0_141 = arith.constant 0 : index
    %c0_142 = arith.constant 0 : index
    %138 = vector.load %arg22[%c0_141, %c0_142] : memref<128x288xbf16, #tpu.memory_space<vmem>>, vector<128x288xbf16>
    %c0_143 = arith.constant 0 : index
    %c0_144 = arith.constant 0 : index
    %139 = vector.load %arg7[%c0_143, %c0_144] : memref<288x32xbf16, #tpu.memory_space<vmem>>, vector<288x32xbf16>
    %cst_145 = arith.constant dense<0.000000e+00> : vector<128x32xf32>
    %140 = tpu.matmul %138, %139, %cst_145 {dimension_numbers = #tpu.dot_dimension_numbers<[1], [0], [0], [1], [0, 0, 1, 1], [], []>} : vector<128x288xbf16>, vector<288x32xbf16>, vector<128x32xf32> -> vector<128x32xf32>
    %c0_146 = arith.constant 0 : index
    %c0_147 = arith.constant 0 : index
    %141 = vector.load %arg8[%c0_146, %c0_147] : memref<1x32xf32, #tpu.memory_space<vmem>>, vector<1x32xf32>
    %c0_148 = arith.constant 0 : index
    %c0_149 = arith.constant 0 : index
    %142 = vector.load %arg9[%c0_148, %c0_149] : memref<1x32xf32, #tpu.memory_space<vmem>>, vector<1x32xf32>
    %cst_150 = arith.constant dense<0.000000e+00> : vector<32xf32>
    %143 = vector.multi_reduction <add>, %140, %cst_150 [0] : vector<128x32xf32> to vector<32xf32>
    %144 = vector.shape_cast %143 : vector<32xf32> to vector<1x32xf32>
    %145 = arith.mulf %140, %140 : vector<128x32xf32>
    %cst_151 = arith.constant dense<0.000000e+00> : vector<32xf32>
    %146 = vector.multi_reduction <add>, %145, %cst_151 [0] : vector<128x32xf32> to vector<32xf32>
    %147 = vector.shape_cast %146 : vector<32xf32> to vector<1x32xf32>
    %cst_152 = arith.constant 7.812500e-03 : f32
    %148 = vector.broadcast %cst_152 : f32 to vector<1x32xf32>
    %149 = arith.mulf %144, %148 : vector<1x32xf32>
    %cst_153 = arith.constant 7.812500e-03 : f32
    %150 = vector.broadcast %cst_153 : f32 to vector<1x32xf32>
    %151 = arith.mulf %147, %150 : vector<1x32xf32>
    %152 = arith.mulf %149, %149 : vector<1x32xf32>
    %153 = arith.subf %151, %152 : vector<1x32xf32>
    %cst_154 = arith.constant 0.000000e+00 : f32
    %154 = vector.broadcast %cst_154 : f32 to vector<1x32xf32>
    %155 = arith.maximumf %153, %154 : vector<1x32xf32>
    %cst_155 = arith.constant 9.99999974E-6 : f32
    %156 = vector.broadcast %cst_155 : f32 to vector<1x32xf32>
    %157 = arith.addf %155, %156 : vector<1x32xf32>
    %158 = math.rsqrt %157 : vector<1x32xf32>
    %159 = arith.mulf %141, %158 : vector<1x32xf32>
    %160 = vector.broadcast %159 : vector<1x32xf32> to vector<128x32xf32>
    %161 = arith.mulf %140, %160 : vector<128x32xf32>
    %162 = arith.mulf %149, %159 : vector<1x32xf32>
    %163 = arith.subf %142, %162 : vector<1x32xf32>
    %164 = vector.broadcast %163 : vector<1x32xf32> to vector<128x32xf32>
    %165 = arith.addf %161, %164 : vector<128x32xf32>
    %166 = arith.addf %165, %31 : vector<128x32xf32>
    %cst_156 = arith.constant 0.000000e+00 : f32
    %167 = vector.broadcast %cst_156 : f32 to vector<128x32xf32>
    %168 = arith.maximumf %166, %167 : vector<128x32xf32>
    %169 = vector.shape_cast %168 : vector<128x32xf32> to vector<2x8x8x32xf32>
    %c0_157 = arith.constant 0 : index
    %c1_158 = arith.constant 1 : index
    %c1_159 = arith.constant 1 : index
    %c0_160 = arith.constant 0 : index
    %170 = vector.load %arg21[%c0_157, %c1_158, %c1_159, %c0_160] : memref<2x10x10x32xf32, #tpu.memory_space<vmem>>, vector<2x8x8x32xf32>
    tpu.vector_store %arg21[%c0_157, %c1_158, %c1_159, %c0_160], %169 {strides = array<i32>} : memref<2x10x10x32xf32, #tpu.memory_space<vmem>>, vector<2x8x8x32xf32>,
    %c0_161 = arith.constant 0 : index
    %c0_162 = arith.constant 0 : index
    %c0_163 = arith.constant 0 : index
    %c0_164 = arith.constant 0 : index
    %171 = vector.load %arg21[%c0_161, %c0_162, %c0_163, %c0_164] : memref<2x10x10x32xf32, #tpu.memory_space<vmem>>, vector<2x8x8x32xf32>
    %172 = vector.shape_cast %171 : vector<2x8x8x32xf32> to vector<128x32xf32>
    %173 = arith.truncf %172 : vector<128x32xf32> to vector<128x32xbf16>
    %c0_165 = arith.constant 0 : index
    %c0_166 = arith.constant 0 : index
    %174 = vector.load %arg22[%c0_165, %c0_166] : memref<128x288xbf16, #tpu.memory_space<vmem>>, vector<128x32xbf16>
    tpu.vector_store %arg22[%c0_165, %c0_166], %173 {strides = array<i32>} : memref<128x288xbf16, #tpu.memory_space<vmem>>, vector<128x32xbf16>,
    %c0_167 = arith.constant 0 : index
    %c0_168 = arith.constant 0 : index
    %c1_169 = arith.constant 1 : index
    %c0_170 = arith.constant 0 : index
    %175 = vector.load %arg21[%c0_167, %c0_168, %c1_169, %c0_170] : memref<2x10x10x32xf32, #tpu.memory_space<vmem>>, vector<2x8x8x32xf32>
    %176 = vector.shape_cast %175 : vector<2x8x8x32xf32> to vector<128x32xf32>
    %177 = arith.truncf %176 : vector<128x32xf32> to vector<128x32xbf16>
    %c0_171 = arith.constant 0 : index
    %c32_172 = arith.constant 32 : index
    %178 = vector.load %arg22[%c0_171, %c32_172] : memref<128x288xbf16, #tpu.memory_space<vmem>>, vector<128x32xbf16>
    tpu.vector_store %arg22[%c0_171, %c32_172], %177 {strides = array<i32>} : memref<128x288xbf16, #tpu.memory_space<vmem>>, vector<128x32xbf16>,
    %c0_173 = arith.constant 0 : index
    %c0_174 = arith.constant 0 : index
    %c2_175 = arith.constant 2 : index
    %c0_176 = arith.constant 0 : index
    %179 = vector.load %arg21[%c0_173, %c0_174, %c2_175, %c0_176] : memref<2x10x10x32xf32, #tpu.memory_space<vmem>>, vector<2x8x8x32xf32>
    %180 = vector.shape_cast %179 : vector<2x8x8x32xf32> to vector<128x32xf32>
    %181 = arith.truncf %180 : vector<128x32xf32> to vector<128x32xbf16>
    %c0_177 = arith.constant 0 : index
    %c64_178 = arith.constant 64 : index
    %182 = vector.load %arg22[%c0_177, %c64_178] : memref<128x288xbf16, #tpu.memory_space<vmem>>, vector<128x32xbf16>
    tpu.vector_store %arg22[%c0_177, %c64_178], %181 {strides = array<i32>} : memref<128x288xbf16, #tpu.memory_space<vmem>>, vector<128x32xbf16>,
    %c0_179 = arith.constant 0 : index
    %c1_180 = arith.constant 1 : index
    %c0_181 = arith.constant 0 : index
    %c0_182 = arith.constant 0 : index
    %183 = vector.load %arg21[%c0_179, %c1_180, %c0_181, %c0_182] : memref<2x10x10x32xf32, #tpu.memory_space<vmem>>, vector<2x8x8x32xf32>
    %184 = vector.shape_cast %183 : vector<2x8x8x32xf32> to vector<128x32xf32>
    %185 = arith.truncf %184 : vector<128x32xf32> to vector<128x32xbf16>
    %c0_183 = arith.constant 0 : index
    %c96_184 = arith.constant 96 : index
    %186 = vector.load %arg22[%c0_183, %c96_184] : memref<128x288xbf16, #tpu.memory_space<vmem>>, vector<128x32xbf16>
    tpu.vector_store %arg22[%c0_183, %c96_184], %185 {strides = array<i32>} : memref<128x288xbf16, #tpu.memory_space<vmem>>, vector<128x32xbf16>,
    %c0_185 = arith.constant 0 : index
    %c1_186 = arith.constant 1 : index
    %c1_187 = arith.constant 1 : index
    %c0_188 = arith.constant 0 : index
    %187 = vector.load %arg21[%c0_185, %c1_186, %c1_187, %c0_188] : memref<2x10x10x32xf32, #tpu.memory_space<vmem>>, vector<2x8x8x32xf32>
    %188 = vector.shape_cast %187 : vector<2x8x8x32xf32> to vector<128x32xf32>
    %189 = arith.truncf %188 : vector<128x32xf32> to vector<128x32xbf16>
    %c0_189 = arith.constant 0 : index
    %c128_190 = arith.constant 128 : index
    %190 = vector.load %arg22[%c0_189, %c128_190] : memref<128x288xbf16, #tpu.memory_space<vmem>>, vector<128x32xbf16>
    tpu.vector_store %arg22[%c0_189, %c128_190], %189 {strides = array<i32>} : memref<128x288xbf16, #tpu.memory_space<vmem>>, vector<128x32xbf16>,
    %c0_191 = arith.constant 0 : index
    %c1_192 = arith.constant 1 : index
    %c2_193 = arith.constant 2 : index
    %c0_194 = arith.constant 0 : index
    %191 = vector.load %arg21[%c0_191, %c1_192, %c2_193, %c0_194] : memref<2x10x10x32xf32, #tpu.memory_space<vmem>>, vector<2x8x8x32xf32>
    %192 = vector.shape_cast %191 : vector<2x8x8x32xf32> to vector<128x32xf32>
    %193 = arith.truncf %192 : vector<128x32xf32> to vector<128x32xbf16>
    %c0_195 = arith.constant 0 : index
    %c160_196 = arith.constant 160 : index
    %194 = vector.load %arg22[%c0_195, %c160_196] : memref<128x288xbf16, #tpu.memory_space<vmem>>, vector<128x32xbf16>
    tpu.vector_store %arg22[%c0_195, %c160_196], %193 {strides = array<i32>} : memref<128x288xbf16, #tpu.memory_space<vmem>>, vector<128x32xbf16>,
    %c0_197 = arith.constant 0 : index
    %c2_198 = arith.constant 2 : index
    %c0_199 = arith.constant 0 : index
    %c0_200 = arith.constant 0 : index
    %195 = vector.load %arg21[%c0_197, %c2_198, %c0_199, %c0_200] : memref<2x10x10x32xf32, #tpu.memory_space<vmem>>, vector<2x8x8x32xf32>
    %196 = vector.shape_cast %195 : vector<2x8x8x32xf32> to vector<128x32xf32>
    %197 = arith.truncf %196 : vector<128x32xf32> to vector<128x32xbf16>
    %c0_201 = arith.constant 0 : index
    %c192_202 = arith.constant 192 : index
    %198 = vector.load %arg22[%c0_201, %c192_202] : memref<128x288xbf16, #tpu.memory_space<vmem>>, vector<128x32xbf16>
    tpu.vector_store %arg22[%c0_201, %c192_202], %197 {strides = array<i32>} : memref<128x288xbf16, #tpu.memory_space<vmem>>, vector<128x32xbf16>,
    %c0_203 = arith.constant 0 : index
    %c2_204 = arith.constant 2 : index
    %c1_205 = arith.constant 1 : index
    %c0_206 = arith.constant 0 : index
    %199 = vector.load %arg21[%c0_203, %c2_204, %c1_205, %c0_206] : memref<2x10x10x32xf32, #tpu.memory_space<vmem>>, vector<2x8x8x32xf32>
    %200 = vector.shape_cast %199 : vector<2x8x8x32xf32> to vector<128x32xf32>
    %201 = arith.truncf %200 : vector<128x32xf32> to vector<128x32xbf16>
    %c0_207 = arith.constant 0 : index
    %c224_208 = arith.constant 224 : index
    %202 = vector.load %arg22[%c0_207, %c224_208] : memref<128x288xbf16, #tpu.memory_space<vmem>>, vector<128x32xbf16>
    tpu.vector_store %arg22[%c0_207, %c224_208], %201 {strides = array<i32>} : memref<128x288xbf16, #tpu.memory_space<vmem>>, vector<128x32xbf16>,
    %c0_209 = arith.constant 0 : index
    %c2_210 = arith.constant 2 : index
    %c2_211 = arith.constant 2 : index
    %c0_212 = arith.constant 0 : index
    %203 = vector.load %arg21[%c0_209, %c2_210, %c2_211, %c0_212] : memref<2x10x10x32xf32, #tpu.memory_space<vmem>>, vector<2x8x8x32xf32>
    %204 = vector.shape_cast %203 : vector<2x8x8x32xf32> to vector<128x32xf32>
    %205 = arith.truncf %204 : vector<128x32xf32> to vector<128x32xbf16>
    %c0_213 = arith.constant 0 : index
    %c256_214 = arith.constant 256 : index
    %206 = vector.load %arg22[%c0_213, %c256_214] : memref<128x288xbf16, #tpu.memory_space<vmem>>, vector<128x32xbf16>
    tpu.vector_store %arg22[%c0_213, %c256_214], %205 {strides = array<i32>} : memref<128x288xbf16, #tpu.memory_space<vmem>>, vector<128x32xbf16>,
    %c0_215 = arith.constant 0 : index
    %c0_216 = arith.constant 0 : index
    %207 = vector.load %arg22[%c0_215, %c0_216] : memref<128x288xbf16, #tpu.memory_space<vmem>>, vector<128x288xbf16>
    %c0_217 = arith.constant 0 : index
    %c0_218 = arith.constant 0 : index
    %208 = vector.load %arg10[%c0_217, %c0_218] : memref<288x32xbf16, #tpu.memory_space<vmem>>, vector<288x32xbf16>
    %cst_219 = arith.constant dense<0.000000e+00> : vector<128x32xf32>
    %209 = tpu.matmul %207, %208, %cst_219 {dimension_numbers = #tpu.dot_dimension_numbers<[1], [0], [0], [1], [0, 0, 1, 1], [], []>} : vector<128x288xbf16>, vector<288x32xbf16>, vector<128x32xf32> -> vector<128x32xf32>
    %c0_220 = arith.constant 0 : index
    %c0_221 = arith.constant 0 : index
    %210 = vector.load %arg11[%c0_220, %c0_221] : memref<1x32xf32, #tpu.memory_space<vmem>>, vector<1x32xf32>
    %c0_222 = arith.constant 0 : index
    %c0_223 = arith.constant 0 : index
    %211 = vector.load %arg12[%c0_222, %c0_223] : memref<1x32xf32, #tpu.memory_space<vmem>>, vector<1x32xf32>
    %cst_224 = arith.constant dense<0.000000e+00> : vector<32xf32>
    %212 = vector.multi_reduction <add>, %209, %cst_224 [0] : vector<128x32xf32> to vector<32xf32>
    %213 = vector.shape_cast %212 : vector<32xf32> to vector<1x32xf32>
    %214 = arith.mulf %209, %209 : vector<128x32xf32>
    %cst_225 = arith.constant dense<0.000000e+00> : vector<32xf32>
    %215 = vector.multi_reduction <add>, %214, %cst_225 [0] : vector<128x32xf32> to vector<32xf32>
    %216 = vector.shape_cast %215 : vector<32xf32> to vector<1x32xf32>
    %cst_226 = arith.constant 7.812500e-03 : f32
    %217 = vector.broadcast %cst_226 : f32 to vector<1x32xf32>
    %218 = arith.mulf %213, %217 : vector<1x32xf32>
    %cst_227 = arith.constant 7.812500e-03 : f32
    %219 = vector.broadcast %cst_227 : f32 to vector<1x32xf32>
    %220 = arith.mulf %216, %219 : vector<1x32xf32>
    %221 = arith.mulf %218, %218 : vector<1x32xf32>
    %222 = arith.subf %220, %221 : vector<1x32xf32>
    %cst_228 = arith.constant 0.000000e+00 : f32
    %223 = vector.broadcast %cst_228 : f32 to vector<1x32xf32>
    %224 = arith.maximumf %222, %223 : vector<1x32xf32>
    %cst_229 = arith.constant 9.99999974E-6 : f32
    %225 = vector.broadcast %cst_229 : f32 to vector<1x32xf32>
    %226 = arith.addf %224, %225 : vector<1x32xf32>
    %227 = math.rsqrt %226 : vector<1x32xf32>
    %228 = arith.mulf %210, %227 : vector<1x32xf32>
    %229 = vector.broadcast %228 : vector<1x32xf32> to vector<128x32xf32>
    %230 = arith.mulf %209, %229 : vector<128x32xf32>
    %231 = arith.mulf %218, %228 : vector<1x32xf32>
    %232 = arith.subf %211, %231 : vector<1x32xf32>
    %233 = vector.broadcast %232 : vector<1x32xf32> to vector<128x32xf32>
    %234 = arith.addf %230, %233 : vector<128x32xf32>
    %cst_230 = arith.constant 0.000000e+00 : f32
    %235 = vector.broadcast %cst_230 : f32 to vector<128x32xf32>
    %236 = arith.maximumf %234, %235 : vector<128x32xf32>
    %237 = vector.shape_cast %236 : vector<128x32xf32> to vector<2x8x8x32xf32>
    %c0_231 = arith.constant 0 : index
    %c1_232 = arith.constant 1 : index
    %c1_233 = arith.constant 1 : index
    %c0_234 = arith.constant 0 : index
    %238 = vector.load %arg21[%c0_231, %c1_232, %c1_233, %c0_234] : memref<2x10x10x32xf32, #tpu.memory_space<vmem>>, vector<2x8x8x32xf32>
    tpu.vector_store %arg21[%c0_231, %c1_232, %c1_233, %c0_234], %237 {strides = array<i32>} : memref<2x10x10x32xf32, #tpu.memory_space<vmem>>, vector<2x8x8x32xf32>,
    %c0_235 = arith.constant 0 : index
    %c0_236 = arith.constant 0 : index
    %c0_237 = arith.constant 0 : index
    %c0_238 = arith.constant 0 : index
    %239 = vector.load %arg21[%c0_235, %c0_236, %c0_237, %c0_238] : memref<2x10x10x32xf32, #tpu.memory_space<vmem>>, vector<2x8x8x32xf32>
    %240 = vector.shape_cast %239 : vector<2x8x8x32xf32> to vector<128x32xf32>
    %241 = arith.truncf %240 : vector<128x32xf32> to vector<128x32xbf16>
    %c0_239 = arith.constant 0 : index
    %c0_240 = arith.constant 0 : index
    %242 = vector.load %arg22[%c0_239, %c0_240] : memref<128x288xbf16, #tpu.memory_space<vmem>>, vector<128x32xbf16>
    tpu.vector_store %arg22[%c0_239, %c0_240], %241 {strides = array<i32>} : memref<128x288xbf16, #tpu.memory_space<vmem>>, vector<128x32xbf16>,
    %c0_241 = arith.constant 0 : index
    %c0_242 = arith.constant 0 : index
    %c1_243 = arith.constant 1 : index
    %c0_244 = arith.constant 0 : index
    %243 = vector.load %arg21[%c0_241, %c0_242, %c1_243, %c0_244] : memref<2x10x10x32xf32, #tpu.memory_space<vmem>>, vector<2x8x8x32xf32>
    %244 = vector.shape_cast %243 : vector<2x8x8x32xf32> to vector<128x32xf32>
    %245 = arith.truncf %244 : vector<128x32xf32> to vector<128x32xbf16>
    %c0_245 = arith.constant 0 : index
    %c32_246 = arith.constant 32 : index
    %246 = vector.load %arg22[%c0_245, %c32_246] : memref<128x288xbf16, #tpu.memory_space<vmem>>, vector<128x32xbf16>
    tpu.vector_store %arg22[%c0_245, %c32_246], %245 {strides = array<i32>} : memref<128x288xbf16, #tpu.memory_space<vmem>>, vector<128x32xbf16>,
    %c0_247 = arith.constant 0 : index
    %c0_248 = arith.constant 0 : index
    %c2_249 = arith.constant 2 : index
    %c0_250 = arith.constant 0 : index
    %247 = vector.load %arg21[%c0_247, %c0_248, %c2_249, %c0_250] : memref<2x10x10x32xf32, #tpu.memory_space<vmem>>, vector<2x8x8x32xf32>
    %248 = vector.shape_cast %247 : vector<2x8x8x32xf32> to vector<128x32xf32>
    %249 = arith.truncf %248 : vector<128x32xf32> to vector<128x32xbf16>
    %c0_251 = arith.constant 0 : index
    %c64_252 = arith.constant 64 : index
    %250 = vector.load %arg22[%c0_251, %c64_252] : memref<128x288xbf16, #tpu.memory_space<vmem>>, vector<128x32xbf16>
    tpu.vector_store %arg22[%c0_251, %c64_252], %249 {strides = array<i32>} : memref<128x288xbf16, #tpu.memory_space<vmem>>, vector<128x32xbf16>,
    %c0_253 = arith.constant 0 : index
    %c1_254 = arith.constant 1 : index
    %c0_255 = arith.constant 0 : index
    %c0_256 = arith.constant 0 : index
    %251 = vector.load %arg21[%c0_253, %c1_254, %c0_255, %c0_256] : memref<2x10x10x32xf32, #tpu.memory_space<vmem>>, vector<2x8x8x32xf32>
    %252 = vector.shape_cast %251 : vector<2x8x8x32xf32> to vector<128x32xf32>
    %253 = arith.truncf %252 : vector<128x32xf32> to vector<128x32xbf16>
    %c0_257 = arith.constant 0 : index
    %c96_258 = arith.constant 96 : index
    %254 = vector.load %arg22[%c0_257, %c96_258] : memref<128x288xbf16, #tpu.memory_space<vmem>>, vector<128x32xbf16>
    tpu.vector_store %arg22[%c0_257, %c96_258], %253 {strides = array<i32>} : memref<128x288xbf16, #tpu.memory_space<vmem>>, vector<128x32xbf16>,
    %c0_259 = arith.constant 0 : index
    %c1_260 = arith.constant 1 : index
    %c1_261 = arith.constant 1 : index
    %c0_262 = arith.constant 0 : index
    %255 = vector.load %arg21[%c0_259, %c1_260, %c1_261, %c0_262] : memref<2x10x10x32xf32, #tpu.memory_space<vmem>>, vector<2x8x8x32xf32>
    %256 = vector.shape_cast %255 : vector<2x8x8x32xf32> to vector<128x32xf32>
    %257 = arith.truncf %256 : vector<128x32xf32> to vector<128x32xbf16>
    %c0_263 = arith.constant 0 : index
    %c128_264 = arith.constant 128 : index
    %258 = vector.load %arg22[%c0_263, %c128_264] : memref<128x288xbf16, #tpu.memory_space<vmem>>, vector<128x32xbf16>
    tpu.vector_store %arg22[%c0_263, %c128_264], %257 {strides = array<i32>} : memref<128x288xbf16, #tpu.memory_space<vmem>>, vector<128x32xbf16>,
    %c0_265 = arith.constant 0 : index
    %c1_266 = arith.constant 1 : index
    %c2_267 = arith.constant 2 : index
    %c0_268 = arith.constant 0 : index
    %259 = vector.load %arg21[%c0_265, %c1_266, %c2_267, %c0_268] : memref<2x10x10x32xf32, #tpu.memory_space<vmem>>, vector<2x8x8x32xf32>
    %260 = vector.shape_cast %259 : vector<2x8x8x32xf32> to vector<128x32xf32>
    %261 = arith.truncf %260 : vector<128x32xf32> to vector<128x32xbf16>
    %c0_269 = arith.constant 0 : index
    %c160_270 = arith.constant 160 : index
    %262 = vector.load %arg22[%c0_269, %c160_270] : memref<128x288xbf16, #tpu.memory_space<vmem>>, vector<128x32xbf16>
    tpu.vector_store %arg22[%c0_269, %c160_270], %261 {strides = array<i32>} : memref<128x288xbf16, #tpu.memory_space<vmem>>, vector<128x32xbf16>,
    %c0_271 = arith.constant 0 : index
    %c2_272 = arith.constant 2 : index
    %c0_273 = arith.constant 0 : index
    %c0_274 = arith.constant 0 : index
    %263 = vector.load %arg21[%c0_271, %c2_272, %c0_273, %c0_274] : memref<2x10x10x32xf32, #tpu.memory_space<vmem>>, vector<2x8x8x32xf32>
    %264 = vector.shape_cast %263 : vector<2x8x8x32xf32> to vector<128x32xf32>
    %265 = arith.truncf %264 : vector<128x32xf32> to vector<128x32xbf16>
    %c0_275 = arith.constant 0 : index
    %c192_276 = arith.constant 192 : index
    %266 = vector.load %arg22[%c0_275, %c192_276] : memref<128x288xbf16, #tpu.memory_space<vmem>>, vector<128x32xbf16>
    tpu.vector_store %arg22[%c0_275, %c192_276], %265 {strides = array<i32>} : memref<128x288xbf16, #tpu.memory_space<vmem>>, vector<128x32xbf16>,
    %c0_277 = arith.constant 0 : index
    %c2_278 = arith.constant 2 : index
    %c1_279 = arith.constant 1 : index
    %c0_280 = arith.constant 0 : index
    %267 = vector.load %arg21[%c0_277, %c2_278, %c1_279, %c0_280] : memref<2x10x10x32xf32, #tpu.memory_space<vmem>>, vector<2x8x8x32xf32>
    %268 = vector.shape_cast %267 : vector<2x8x8x32xf32> to vector<128x32xf32>
    %269 = arith.truncf %268 : vector<128x32xf32> to vector<128x32xbf16>
    %c0_281 = arith.constant 0 : index
    %c224_282 = arith.constant 224 : index
    %270 = vector.load %arg22[%c0_281, %c224_282] : memref<128x288xbf16, #tpu.memory_space<vmem>>, vector<128x32xbf16>
    tpu.vector_store %arg22[%c0_281, %c224_282], %269 {strides = array<i32>} : memref<128x288xbf16, #tpu.memory_space<vmem>>, vector<128x32xbf16>,
    %c0_283 = arith.constant 0 : index
    %c2_284 = arith.constant 2 : index
    %c2_285 = arith.constant 2 : index
    %c0_286 = arith.constant 0 : index
    %271 = vector.load %arg21[%c0_283, %c2_284, %c2_285, %c0_286] : memref<2x10x10x32xf32, #tpu.memory_space<vmem>>, vector<2x8x8x32xf32>
    %272 = vector.shape_cast %271 : vector<2x8x8x32xf32> to vector<128x32xf32>
    %273 = arith.truncf %272 : vector<128x32xf32> to vector<128x32xbf16>
    %c0_287 = arith.constant 0 : index
    %c256_288 = arith.constant 256 : index
    %274 = vector.load %arg22[%c0_287, %c256_288] : memref<128x288xbf16, #tpu.memory_space<vmem>>, vector<128x32xbf16>
    tpu.vector_store %arg22[%c0_287, %c256_288], %273 {strides = array<i32>} : memref<128x288xbf16, #tpu.memory_space<vmem>>, vector<128x32xbf16>,
    %c0_289 = arith.constant 0 : index
    %c0_290 = arith.constant 0 : index
    %275 = vector.load %arg22[%c0_289, %c0_290] : memref<128x288xbf16, #tpu.memory_space<vmem>>, vector<128x288xbf16>
    %c0_291 = arith.constant 0 : index
    %c0_292 = arith.constant 0 : index
    %276 = vector.load %arg13[%c0_291, %c0_292] : memref<288x32xbf16, #tpu.memory_space<vmem>>, vector<288x32xbf16>
    %cst_293 = arith.constant dense<0.000000e+00> : vector<128x32xf32>
    %277 = tpu.matmul %275, %276, %cst_293 {dimension_numbers = #tpu.dot_dimension_numbers<[1], [0], [0], [1], [0, 0, 1, 1], [], []>} : vector<128x288xbf16>, vector<288x32xbf16>, vector<128x32xf32> -> vector<128x32xf32>
    %c0_294 = arith.constant 0 : index
    %c0_295 = arith.constant 0 : index
    %278 = vector.load %arg14[%c0_294, %c0_295] : memref<1x32xf32, #tpu.memory_space<vmem>>, vector<1x32xf32>
    %c0_296 = arith.constant 0 : index
    %c0_297 = arith.constant 0 : index
    %279 = vector.load %arg15[%c0_296, %c0_297] : memref<1x32xf32, #tpu.memory_space<vmem>>, vector<1x32xf32>
    %cst_298 = arith.constant dense<0.000000e+00> : vector<32xf32>
    %280 = vector.multi_reduction <add>, %277, %cst_298 [0] : vector<128x32xf32> to vector<32xf32>
    %281 = vector.shape_cast %280 : vector<32xf32> to vector<1x32xf32>
    %282 = arith.mulf %277, %277 : vector<128x32xf32>
    %cst_299 = arith.constant dense<0.000000e+00> : vector<32xf32>
    %283 = vector.multi_reduction <add>, %282, %cst_299 [0] : vector<128x32xf32> to vector<32xf32>
    %284 = vector.shape_cast %283 : vector<32xf32> to vector<1x32xf32>
    %cst_300 = arith.constant 7.812500e-03 : f32
    %285 = vector.broadcast %cst_300 : f32 to vector<1x32xf32>
    %286 = arith.mulf %281, %285 : vector<1x32xf32>
    %cst_301 = arith.constant 7.812500e-03 : f32
    %287 = vector.broadcast %cst_301 : f32 to vector<1x32xf32>
    %288 = arith.mulf %284, %287 : vector<1x32xf32>
    %289 = arith.mulf %286, %286 : vector<1x32xf32>
    %290 = arith.subf %288, %289 : vector<1x32xf32>
    %cst_302 = arith.constant 0.000000e+00 : f32
    %291 = vector.broadcast %cst_302 : f32 to vector<1x32xf32>
    %292 = arith.maximumf %290, %291 : vector<1x32xf32>
    %cst_303 = arith.constant 9.99999974E-6 : f32
    %293 = vector.broadcast %cst_303 : f32 to vector<1x32xf32>
    %294 = arith.addf %292, %293 : vector<1x32xf32>
    %295 = math.rsqrt %294 : vector<1x32xf32>
    %296 = arith.mulf %278, %295 : vector<1x32xf32>
    %297 = vector.broadcast %296 : vector<1x32xf32> to vector<128x32xf32>
    %298 = arith.mulf %277, %297 : vector<128x32xf32>
    %299 = arith.mulf %286, %296 : vector<1x32xf32>
    %300 = arith.subf %279, %299 : vector<1x32xf32>
    %301 = vector.broadcast %300 : vector<1x32xf32> to vector<128x32xf32>
    %302 = arith.addf %298, %301 : vector<128x32xf32>
    %303 = arith.addf %302, %168 : vector<128x32xf32>
    %cst_304 = arith.constant 0.000000e+00 : f32
    %304 = vector.broadcast %cst_304 : f32 to vector<128x32xf32>
    %305 = arith.maximumf %303, %304 : vector<128x32xf32>
    %306 = vector.shape_cast %305 : vector<128x32xf32> to vector<2x8x8x32xf32>
    %c0_305 = arith.constant 0 : index
    %c1_306 = arith.constant 1 : index
    %c1_307 = arith.constant 1 : index
    %c0_308 = arith.constant 0 : index
    %307 = vector.load %arg21[%c0_305, %c1_306, %c1_307, %c0_308] : memref<2x10x10x32xf32, #tpu.memory_space<vmem>>, vector<2x8x8x32xf32>
    tpu.vector_store %arg21[%c0_305, %c1_306, %c1_307, %c0_308], %306 {strides = array<i32>} : memref<2x10x10x32xf32, #tpu.memory_space<vmem>>, vector<2x8x8x32xf32>,
    %c0_309 = arith.constant 0 : index
    %c0_310 = arith.constant 0 : index
    %c0_311 = arith.constant 0 : index
    %c0_312 = arith.constant 0 : index
    %308 = vector.load %arg21[%c0_309, %c0_310, %c0_311, %c0_312] : memref<2x10x10x32xf32, #tpu.memory_space<vmem>>, vector<2x8x8x32xf32>
    %309 = vector.shape_cast %308 : vector<2x8x8x32xf32> to vector<128x32xf32>
    %310 = arith.truncf %309 : vector<128x32xf32> to vector<128x32xbf16>
    %c0_313 = arith.constant 0 : index
    %c0_314 = arith.constant 0 : index
    %311 = vector.load %arg22[%c0_313, %c0_314] : memref<128x288xbf16, #tpu.memory_space<vmem>>, vector<128x32xbf16>
    tpu.vector_store %arg22[%c0_313, %c0_314], %310 {strides = array<i32>} : memref<128x288xbf16, #tpu.memory_space<vmem>>, vector<128x32xbf16>,
    %c0_315 = arith.constant 0 : index
    %c0_316 = arith.constant 0 : index
    %c1_317 = arith.constant 1 : index
    %c0_318 = arith.constant 0 : index
    %312 = vector.load %arg21[%c0_315, %c0_316, %c1_317, %c0_318] : memref<2x10x10x32xf32, #tpu.memory_space<vmem>>, vector<2x8x8x32xf32>
    %313 = vector.shape_cast %312 : vector<2x8x8x32xf32> to vector<128x32xf32>
    %314 = arith.truncf %313 : vector<128x32xf32> to vector<128x32xbf16>
    %c0_319 = arith.constant 0 : index
    %c32_320 = arith.constant 32 : index
    %315 = vector.load %arg22[%c0_319, %c32_320] : memref<128x288xbf16, #tpu.memory_space<vmem>>, vector<128x32xbf16>
    tpu.vector_store %arg22[%c0_319, %c32_320], %314 {strides = array<i32>} : memref<128x288xbf16, #tpu.memory_space<vmem>>, vector<128x32xbf16>,
    %c0_321 = arith.constant 0 : index
    %c0_322 = arith.constant 0 : index
    %c2_323 = arith.constant 2 : index
    %c0_324 = arith.constant 0 : index
    %316 = vector.load %arg21[%c0_321, %c0_322, %c2_323, %c0_324] : memref<2x10x10x32xf32, #tpu.memory_space<vmem>>, vector<2x8x8x32xf32>
    %317 = vector.shape_cast %316 : vector<2x8x8x32xf32> to vector<128x32xf32>
    %318 = arith.truncf %317 : vector<128x32xf32> to vector<128x32xbf16>
    %c0_325 = arith.constant 0 : index
    %c64_326 = arith.constant 64 : index
    %319 = vector.load %arg22[%c0_325, %c64_326] : memref<128x288xbf16, #tpu.memory_space<vmem>>, vector<128x32xbf16>
    tpu.vector_store %arg22[%c0_325, %c64_326], %318 {strides = array<i32>} : memref<128x288xbf16, #tpu.memory_space<vmem>>, vector<128x32xbf16>,
    %c0_327 = arith.constant 0 : index
    %c1_328 = arith.constant 1 : index
    %c0_329 = arith.constant 0 : index
    %c0_330 = arith.constant 0 : index
    %320 = vector.load %arg21[%c0_327, %c1_328, %c0_329, %c0_330] : memref<2x10x10x32xf32, #tpu.memory_space<vmem>>, vector<2x8x8x32xf32>
    %321 = vector.shape_cast %320 : vector<2x8x8x32xf32> to vector<128x32xf32>
    %322 = arith.truncf %321 : vector<128x32xf32> to vector<128x32xbf16>
    %c0_331 = arith.constant 0 : index
    %c96_332 = arith.constant 96 : index
    %323 = vector.load %arg22[%c0_331, %c96_332] : memref<128x288xbf16, #tpu.memory_space<vmem>>, vector<128x32xbf16>
    tpu.vector_store %arg22[%c0_331, %c96_332], %322 {strides = array<i32>} : memref<128x288xbf16, #tpu.memory_space<vmem>>, vector<128x32xbf16>,
    %c0_333 = arith.constant 0 : index
    %c1_334 = arith.constant 1 : index
    %c1_335 = arith.constant 1 : index
    %c0_336 = arith.constant 0 : index
    %324 = vector.load %arg21[%c0_333, %c1_334, %c1_335, %c0_336] : memref<2x10x10x32xf32, #tpu.memory_space<vmem>>, vector<2x8x8x32xf32>
    %325 = vector.shape_cast %324 : vector<2x8x8x32xf32> to vector<128x32xf32>
    %326 = arith.truncf %325 : vector<128x32xf32> to vector<128x32xbf16>
    %c0_337 = arith.constant 0 : index
    %c128_338 = arith.constant 128 : index
    %327 = vector.load %arg22[%c0_337, %c128_338] : memref<128x288xbf16, #tpu.memory_space<vmem>>, vector<128x32xbf16>
    tpu.vector_store %arg22[%c0_337, %c128_338], %326 {strides = array<i32>} : memref<128x288xbf16, #tpu.memory_space<vmem>>, vector<128x32xbf16>,
    %c0_339 = arith.constant 0 : index
    %c1_340 = arith.constant 1 : index
    %c2_341 = arith.constant 2 : index
    %c0_342 = arith.constant 0 : index
    %328 = vector.load %arg21[%c0_339, %c1_340, %c2_341, %c0_342] : memref<2x10x10x32xf32, #tpu.memory_space<vmem>>, vector<2x8x8x32xf32>
    %329 = vector.shape_cast %328 : vector<2x8x8x32xf32> to vector<128x32xf32>
    %330 = arith.truncf %329 : vector<128x32xf32> to vector<128x32xbf16>
    %c0_343 = arith.constant 0 : index
    %c160_344 = arith.constant 160 : index
    %331 = vector.load %arg22[%c0_343, %c160_344] : memref<128x288xbf16, #tpu.memory_space<vmem>>, vector<128x32xbf16>
    tpu.vector_store %arg22[%c0_343, %c160_344], %330 {strides = array<i32>} : memref<128x288xbf16, #tpu.memory_space<vmem>>, vector<128x32xbf16>,
    %c0_345 = arith.constant 0 : index
    %c2_346 = arith.constant 2 : index
    %c0_347 = arith.constant 0 : index
    %c0_348 = arith.constant 0 : index
    %332 = vector.load %arg21[%c0_345, %c2_346, %c0_347, %c0_348] : memref<2x10x10x32xf32, #tpu.memory_space<vmem>>, vector<2x8x8x32xf32>
    %333 = vector.shape_cast %332 : vector<2x8x8x32xf32> to vector<128x32xf32>
    %334 = arith.truncf %333 : vector<128x32xf32> to vector<128x32xbf16>
    %c0_349 = arith.constant 0 : index
    %c192_350 = arith.constant 192 : index
    %335 = vector.load %arg22[%c0_349, %c192_350] : memref<128x288xbf16, #tpu.memory_space<vmem>>, vector<128x32xbf16>
    tpu.vector_store %arg22[%c0_349, %c192_350], %334 {strides = array<i32>} : memref<128x288xbf16, #tpu.memory_space<vmem>>, vector<128x32xbf16>,
    %c0_351 = arith.constant 0 : index
    %c2_352 = arith.constant 2 : index
    %c1_353 = arith.constant 1 : index
    %c0_354 = arith.constant 0 : index
    %336 = vector.load %arg21[%c0_351, %c2_352, %c1_353, %c0_354] : memref<2x10x10x32xf32, #tpu.memory_space<vmem>>, vector<2x8x8x32xf32>
    %337 = vector.shape_cast %336 : vector<2x8x8x32xf32> to vector<128x32xf32>
    %338 = arith.truncf %337 : vector<128x32xf32> to vector<128x32xbf16>
    %c0_355 = arith.constant 0 : index
    %c224_356 = arith.constant 224 : index
    %339 = vector.load %arg22[%c0_355, %c224_356] : memref<128x288xbf16, #tpu.memory_space<vmem>>, vector<128x32xbf16>
    tpu.vector_store %arg22[%c0_355, %c224_356], %338 {strides = array<i32>} : memref<128x288xbf16, #tpu.memory_space<vmem>>, vector<128x32xbf16>,
    %c0_357 = arith.constant 0 : index
    %c2_358 = arith.constant 2 : index
    %c2_359 = arith.constant 2 : index
    %c0_360 = arith.constant 0 : index
    %340 = vector.load %arg21[%c0_357, %c2_358, %c2_359, %c0_360] : memref<2x10x10x32xf32, #tpu.memory_space<vmem>>, vector<2x8x8x32xf32>
    %341 = vector.shape_cast %340 : vector<2x8x8x32xf32> to vector<128x32xf32>
    %342 = arith.truncf %341 : vector<128x32xf32> to vector<128x32xbf16>
    %c0_361 = arith.constant 0 : index
    %c256_362 = arith.constant 256 : index
    %343 = vector.load %arg22[%c0_361, %c256_362] : memref<128x288xbf16, #tpu.memory_space<vmem>>, vector<128x32xbf16>
    tpu.vector_store %arg22[%c0_361, %c256_362], %342 {strides = array<i32>} : memref<128x288xbf16, #tpu.memory_space<vmem>>, vector<128x32xbf16>,
    %c0_363 = arith.constant 0 : index
    %c0_364 = arith.constant 0 : index
    %344 = vector.load %arg22[%c0_363, %c0_364] : memref<128x288xbf16, #tpu.memory_space<vmem>>, vector<128x288xbf16>
    %c0_365 = arith.constant 0 : index
    %c0_366 = arith.constant 0 : index
    %345 = vector.load %arg16[%c0_365, %c0_366] : memref<288x35xbf16, #tpu.memory_space<vmem>>, vector<288x35xbf16>
    %cst_367 = arith.constant dense<0.000000e+00> : vector<128x35xf32>
    %346 = tpu.matmul %344, %345, %cst_367 {dimension_numbers = #tpu.dot_dimension_numbers<[1], [0], [0], [1], [0, 0, 1, 1], [], []>} : vector<128x288xbf16>, vector<288x35xbf16>, vector<128x35xf32> -> vector<128x35xf32>
    %c0_368 = arith.constant 0 : index
    %c0_369 = arith.constant 0 : index
    %347 = vector.load %arg17[%c0_368, %c0_369] : memref<1x35xf32, #tpu.memory_space<vmem>>, vector<1x35xf32>
    %c0_370 = arith.constant 0 : index
    %c0_371 = arith.constant 0 : index
    %348 = vector.load %arg18[%c0_370, %c0_371] : memref<1x35xf32, #tpu.memory_space<vmem>>, vector<1x35xf32>
    %cst_372 = arith.constant dense<0.000000e+00> : vector<35xf32>
    %349 = vector.multi_reduction <add>, %346, %cst_372 [0] : vector<128x35xf32> to vector<35xf32>
    %350 = vector.shape_cast %349 : vector<35xf32> to vector<1x35xf32>
    %351 = arith.mulf %346, %346 : vector<128x35xf32>
    %cst_373 = arith.constant dense<0.000000e+00> : vector<35xf32>
    %352 = vector.multi_reduction <add>, %351, %cst_373 [0] : vector<128x35xf32> to vector<35xf32>
    %353 = vector.shape_cast %352 : vector<35xf32> to vector<1x35xf32>
    %cst_374 = arith.constant 7.812500e-03 : f32
    %354 = vector.broadcast %cst_374 : f32 to vector<1x35xf32>
    %355 = arith.mulf %350, %354 : vector<1x35xf32>
    %cst_375 = arith.constant 7.812500e-03 : f32
    %356 = vector.broadcast %cst_375 : f32 to vector<1x35xf32>
    %357 = arith.mulf %353, %356 : vector<1x35xf32>
    %358 = arith.mulf %355, %355 : vector<1x35xf32>
    %359 = arith.subf %357, %358 : vector<1x35xf32>
    %cst_376 = arith.constant 0.000000e+00 : f32
    %360 = vector.broadcast %cst_376 : f32 to vector<1x35xf32>
    %361 = arith.maximumf %359, %360 : vector<1x35xf32>
    %cst_377 = arith.constant 9.99999974E-6 : f32
    %362 = vector.broadcast %cst_377 : f32 to vector<1x35xf32>
    %363 = arith.addf %361, %362 : vector<1x35xf32>
    %364 = math.rsqrt %363 : vector<1x35xf32>
    %365 = arith.mulf %347, %364 : vector<1x35xf32>
    %366 = vector.broadcast %365 : vector<1x35xf32> to vector<128x35xf32>
    %367 = arith.mulf %346, %366 : vector<128x35xf32>
    %368 = arith.mulf %355, %365 : vector<1x35xf32>
    %369 = arith.subf %348, %368 : vector<1x35xf32>
    %370 = vector.broadcast %369 : vector<1x35xf32> to vector<128x35xf32>
    %371 = arith.addf %367, %370 : vector<128x35xf32>
    %cst_378 = arith.constant 0.000000e+00 : f32
    %372 = vector.broadcast %cst_378 : f32 to vector<128x35xf32>
    %373 = arith.maximumf %371, %372 : vector<128x35xf32>
    %c0_379 = arith.constant 0 : index
    %c0_380 = arith.constant 0 : index
    %374 = vector.load %arg19[%c0_379, %c0_380] : memref<128x32xf32, #tpu.memory_space<vmem>>, vector<128x32xf32>
    tpu.vector_store %arg19[%c0_379, %c0_380], %305 {strides = array<i32>} : memref<128x32xf32, #tpu.memory_space<vmem>>, vector<128x32xf32>,
    %375 = arith.truncf %373 : vector<128x35xf32> to vector<128x35xbf16>
    %c0_381 = arith.constant 0 : index
    %c0_382 = arith.constant 0 : index
    %376 = vector.load %arg20[%c0_381, %c0_382] : memref<128x35xbf16, #tpu.memory_space<vmem>>, vector<128x35xbf16>
    tpu.vector_store %arg20[%c0_381, %c0_382], %375 {strides = array<i32>} : memref<128x35xbf16, #tpu.memory_space<vmem>>, vector<128x35xbf16>,
    return
  }
}

module attributes {stable_mosaic.version = 11 : i64} {
  func.func @_heads_kernel(%arg0: memref<2x2240xbf16, #tpu.memory_space<vmem>>, %arg1: memref<2240x128xbf16, #tpu.memory_space<vmem>>, %arg2: memref<1x128xf32, #tpu.memory_space<vmem>>, %arg3: memref<2x128xf32, #tpu.memory_space<vmem>>) attributes {dimension_semantics = [], scalar_prefetch = 0 : i64, scratch_operands = 0 : i64, tpu.core_type = #tpu.core_type<tc>} {
    %c0 = arith.constant 0 : index
    %c0_0 = arith.constant 0 : index
    %0 = vector.load %arg0[%c0, %c0_0] : memref<2x2240xbf16, #tpu.memory_space<vmem>>, vector<2x2240xbf16>
    %c0_1 = arith.constant 0 : index
    %c0_2 = arith.constant 0 : index
    %1 = vector.load %arg1[%c0_1, %c0_2] : memref<2240x128xbf16, #tpu.memory_space<vmem>>, vector<2240x128xbf16>
    %cst = arith.constant dense<0.000000e+00> : vector<2x128xf32>
    %2 = tpu.matmul %0, %1, %cst {dimension_numbers = #tpu.dot_dimension_numbers<[1], [0], [0], [1], [0, 0, 1, 1], [], []>} : vector<2x2240xbf16>, vector<2240x128xbf16>, vector<2x128xf32> -> vector<2x128xf32>
    %c0_3 = arith.constant 0 : index
    %c0_4 = arith.constant 0 : index
    %3 = vector.load %arg2[%c0_3, %c0_4] : memref<1x128xf32, #tpu.memory_space<vmem>>, vector<1x128xf32>
    %4 = vector.broadcast %3 : vector<1x128xf32> to vector<2x128xf32>
    %5 = arith.addf %2, %4 : vector<2x128xf32>
    %6 = tpu.iota {dimensions = array<i32: 1>} : vector<2x128xi32>
    %c65_i32 = arith.constant 65 : i32
    %7 = vector.broadcast %c65_i32 : i32 to vector<2x128xi32>
    %8 = arith.cmpi eq, %6, %7 : vector<2x128xi32>
    %9 = math.tanh %5 : vector<2x128xf32>
    %10 = arith.select %8, %9, %5 : vector<2x128xi1>, vector<2x128xf32>
    %c0_5 = arith.constant 0 : index
    %c0_6 = arith.constant 0 : index
    %11 = vector.load %arg3[%c0_5, %c0_6] : memref<2x128xf32, #tpu.memory_space<vmem>>, vector<2x128xf32>
    tpu.vector_store %arg3[%c0_5, %c0_6], %10 {strides = array<i32>} : memref<2x128xf32, #tpu.memory_space<vmem>>, vector<2x128xf32>,
    return
  }
}

</mosaic_0001>

<llo_original>
// kernel: forward.3
$region0: #{forward.3}
  #allocation0 [shape = 'u32[]', space=smem, size = 0x4, offset = 0x4, fixed_abs, tag = 'smem constant byte address 0x4 - core index']
  #allocation1 [shape = 'u32[144,128]{1,0:T(1,128)}', space=vmem, size = 0x12000, scoped, tag = 'internal scratch']
  %s0 = inlined_call_operand.vmem [shape: bf16[2,2240], index: 0, kind: input, shape index: {}]
  %s1 = inlined_call_operand.vmem [shape: bf16[2240,128], index: 1, kind: input, shape index: {}]
  %s2 = inlined_call_operand.vmem [shape: f32[1,128], index: 2, kind: input, shape index: {}]
  %s3 = inlined_call_operand.vmem [shape: f32[2,128], index: 3, kind: output, shape index: {}]
  %s4 = sld [smem:[#allocation0]]
  $region22: #{forward.3} parent=0
    _
  %s6 = ssub.s32 1, %s4
  %s7 = scalar_select 0, %s6, %s4
  // Predicated region
  $region2: #{forward.3} parent=0 // pred_check
    _
  $region3: #{forward.3} parent=0 // pred_check_branch
    %9 = sbr.rel (0) target = $region5
  $region4: #{forward.3} parent=0 // pred_region
    _
  $region5: #{forward.3} parent=0 // pred_fallthru
    _
  // Predicated region
  $region6: #{forward.3} parent=0 // pred_check
    _
  $region7: #{forward.3} parent=0 // pred_check_branch
    %11 = sbr.rel (0) target = $region9
  $region8: #{forward.3} parent=0 // pred_region
    _
  $region9: #{forward.3} parent=0 // pred_fallthru
    _
  // Predicated region
  $region10: #{forward.3} parent=0 // pred_check
    _
  $region11: #{forward.3} parent=0 // pred_check_branch
    %13 = sbr.rel (0) target = $region13
  $region12: #{forward.3} parent=0 // pred_region
    _
  $region13: #{forward.3} parent=0 // pred_fallthru
    _
  %v15 = vld [vmem:[%s0] sm:$0xff]
  %v16 = vld [vmem:[%s0 + $0x8] sm:$0xff]
  %v17 = vld [vmem:[%s0 + $0x10] sm:$0x3]
  %v18 = vld [vmem:[%s1] sm:$0xf]
  %v19 = vld [vmem:[%s1 + $0x4] sm:$0xf]
  %v20 = vld [vmem:[%s1 + $0x8] sm:$0xf]
  %v21 = vld [vmem:[%s1 + $0xc] sm:$0xf]
  %v22 = vld [vmem:[%s1 + $0x10] sm:$0xf]
  %v23 = vld [vmem:[%s1 + $0x14] sm:$0xf]
  %v24 = vld [vmem:[%s1 + $0x18] sm:$0xf]
  %v25 = vld [vmem:[%s1 + $0x1c] sm:$0xf]
  %v26 = vld [vmem:[%s1 + $0x20] sm:$0xf]
  %v27 = vld [vmem:[%s1 + $0x24] sm:$0xf]
  %v28 = vld [vmem:[%s1 + $0x28] sm:$0xf]
  %v29 = vld [vmem:[%s1 + $0x2c] sm:$0xf]
  %v30 = vld [vmem:[%s1 + $0x30] sm:$0xf]
  %v31 = vld [vmem:[%s1 + $0x34] sm:$0xf]
  %v32 = vld [vmem:[%s1 + $0x38] sm:$0xf]
  %v33 = vld [vmem:[%s1 + $0x3c] sm:$0xf]
  %v34 = vld [vmem:[%s1 + $0x40] sm:$0xf]
  %v35 = vld [vmem:[%s1 + $0x44] sm:$0xf]
  %v36 = vld [vmem:[%s1 + $0x48] sm:$0xf]
  %v37 = vld [vmem:[%s1 + $0x4c] sm:$0xf]
  %v38 = vld [vmem:[%s1 + $0x50] sm:$0xf]
  %v39 = vld [vmem:[%s1 + $0x54] sm:$0xf]
  %v40 = vld [vmem:[%s1 + $0x58] sm:$0xf]
  %v41 = vld [vmem:[%s1 + $0x5c] sm:$0xf]
  %v42 = vld [vmem:[%s1 + $0x60] sm:$0xf]
  %v43 = vld [vmem:[%s1 + $0x64] sm:$0xf]
  %v44 = vld [vmem:[%s1 + $0x68] sm:$0xf]
  %v45 = vld [vmem:[%s1 + $0x6c] sm:$0xf]
  %v46 = vld [vmem:[%s1 + $0x70] sm:$0xf]
  %v47 = vld [vmem:[%s1 + $0x74] sm:$0xf]
  %v48 = vld [vmem:[%s1 + $0x78] sm:$0xf]
  %v49 = vld [vmem:[%s1 + $0x7c] sm:$0xf]
  %v50 = vld [vmem:[%s1 + $0x80] sm:$0xf]
  %v51 = vld [vmem:[%s1 + $0x84] sm:$0xf]
  %v52 = vld [vmem:[%s1 + $0x88] sm:$0xf]
  %v53 = vld [vmem:[%s1 + $0x8c] sm:$0xf]
  %v54 = vld [vmem:[%s1 + $0x90] sm:$0xf]
  %v55 = vld [vmem:[%s1 + $0x94] sm:$0xf]
  %v56 = vld [vmem:[%s1 + $0x98] sm:$0xf]
  %v57 = vld [vmem:[%s1 + $0x9c] sm:$0xf]
  %v58 = vld [vmem:[%s1 + $0xa0] sm:$0xf]
  %v59 = vld [vmem:[%s1 + $0xa4] sm:$0xf]
  %v60 = vld [vmem:[%s1 + $0xa8] sm:$0xf]
  %v61 = vld [vmem:[%s1 + $0xac] sm:$0xf]
  %v62 = vld [vmem:[%s1 + $0xb0] sm:$0xf]
  %v63 = vld [vmem:[%s1 + $0xb4] sm:$0xf]
  %v64 = vld [vmem:[%s1 + $0xb8] sm:$0xf]
  %v65 = vld [vmem:[%s1 + $0xbc] sm:$0xf]
  %v66 = vld [vmem:[%s1 + $0xc0] sm:$0xf]
  %v67 = vld [vmem:[%s1 + $0xc4] sm:$0xf]
  %v68 = vld [vmem:[%s1 + $0xc8] sm:$0xf]
  %v69 = vld [vmem:[%s1 + $0xcc] sm:$0xf]
  %v70 = vld [vmem:[%s1 + $0xd0] sm:$0xf]
  %v71 = vld [vmem:[%s1 + $0xd4] sm:$0xf]
  %v72 = vld [vmem:[%s1 + $0xd8] sm:$0xf]
  %v73 = vld [vmem:[%s1 + $0xdc] sm:$0xf]
  %v74 = vld [vmem:[%s1 + $0xe0] sm:$0xf]
  %v75 = vld [vmem:[%s1 + $0xe4] sm:$0xf]
  %v76 = vld [vmem:[%s1 + $0xe8] sm:$0xf]
  %v77 = vld [vmem:[%s1 + $0xec] sm:$0xf]
  %v78 = vld [vmem:[%s1 + $0xf0] sm:$0xf]
  %v79 = vld [vmem:[%s1 + $0xf4] sm:$0xf]
  %v80 = vld [vmem:[%s1 + $0xf8] sm:$0xf]
  %v81 = vld [vmem:[%s1 + $0xfc] sm:$0xf]
  %v82 = vld [vmem:[%s1 + $0x100] sm:$0xf]
  %v83 = vld [vmem:[%s1 + $0x104] sm:$0xf]
  %v84 = vld [vmem:[%s1 + $0x108] sm:$0xf]
  %v85 = vld [vmem:[%s1 + $0x10c] sm:$0xf]
  %v86 = vld [vmem:[%s1 + $0x110] sm:$0xf]
  %v87 = vld [vmem:[%s1 + $0x114] sm:$0xf]
  %v88 = vld [vmem:[%s1 + $0x118] sm:$0xf]
  %v89 = vld [vmem:[%s1 + $0x11c] sm:$0xf]
  %v90 = vld [vmem:[%s1 + $0x120] sm:$0xf]
  %v91 = vld [vmem:[%s1 + $0x124] sm:$0xf]
  %v92 = vld [vmem:[%s1 + $0x128] sm:$0xf]
  %v93 = vld [vmem:[%s1 + $0x12c] sm:$0xf]
  %v94 = vld [vmem:[%s1 + $0x130] sm:$0xf]
  %v95 = vld [vmem:[%s1 + $0x134] sm:$0xf]
  %v96 = vld [vmem:[%s1 + $0x138] sm:$0xf]
  %v97 = vld [vmem:[%s1 + $0x13c] sm:$0xf]
  %v98 = vld [vmem:[%s1 + $0x140] sm:$0xf]
  %v99 = vld [vmem:[%s1 + $0x144] sm:$0xf]
  %v100 = vld [vmem:[%s1 + $0x148] sm:$0xf]
  %v101 = vld [vmem:[%s1 + $0x14c] sm:$0xf]
  %v102 = vld [vmem:[%s1 + $0x150] sm:$0xf]
  %v103 = vld [vmem:[%s1 + $0x154] sm:$0xf]
  %v104 = vld [vmem:[%s1 + $0x158] sm:$0xf]
  %v105 = vld [vmem:[%s1 + $0x15c] sm:$0xf]
  %v106 = vld [vmem:[%s1 + $0x160] sm:$0xf]
  %v107 = vld [vmem:[%s1 + $0x164] sm:$0xf]
  %v108 = vld [vmem:[%s1 + $0x168] sm:$0xf]
  %v109 = vld [vmem:[%s1 + $0x16c] sm:$0xf]
  %v110 = vld [vmem:[%s1 + $0x170] sm:$0xf]
  %v111 = vld [vmem:[%s1 + $0x174] sm:$0xf]
  %v112 = vld [vmem:[%s1 + $0x178] sm:$0xf]
  %v113 = vld [vmem:[%s1 + $0x17c] sm:$0xf]
  %v114 = vld [vmem:[%s1 + $0x180] sm:$0xf]
  %v115 = vld [vmem:[%s1 + $0x184] sm:$0xf]
  %v116 = vld [vmem:[%s1 + $0x188] sm:$0xf]
  %v117 = vld [vmem:[%s1 + $0x18c] sm:$0xf]
  %v118 = vld [vmem:[%s1 + $0x190] sm:$0xf]
  %v119 = vld [vmem:[%s1 + $0x194] sm:$0xf]
  %v120 = vld [vmem:[%s1 + $0x198] sm:$0xf]
  %v121 = vld [vmem:[%s1 + $0x19c] sm:$0xf]
  %v122 = vld [vmem:[%s1 + $0x1a0] sm:$0xf]
  %v123 = vld [vmem:[%s1 + $0x1a4] sm:$0xf]
  %v124 = vld [vmem:[%s1 + $0x1a8] sm:$0xf]
  %v125 = vld [vmem:[%s1 + $0x1ac] sm:$0xf]
  %v126 = vld [vmem:[%s1 + $0x1b0] sm:$0xf]
  %v127 = vld [vmem:[%s1 + $0x1b4] sm:$0xf]
  %v128 = vld [vmem:[%s1 + $0x1b8] sm:$0xf]
  %v129 = vld [vmem:[%s1 + $0x1bc] sm:$0xf]
  %v130 = vld [vmem:[%s1 + $0x1c0] sm:$0xf]
  %v131 = vld [vmem:[%s1 + $0x1c4] sm:$0xf]
  %v132 = vld [vmem:[%s1 + $0x1c8] sm:$0xf]
  %v133 = vld [vmem:[%s1 + $0x1cc] sm:$0xf]
  %v134 = vld [vmem:[%s1 + $0x1d0] sm:$0xf]
  %v135 = vld [vmem:[%s1 + $0x1d4] sm:$0xf]
  %v136 = vld [vmem:[%s1 + $0x1d8] sm:$0xf]
  %v137 = vld [vmem:[%s1 + $0x1dc] sm:$0xf]
  %v138 = vld [vmem:[%s1 + $0x1e0] sm:$0xf]
  %v139 = vld [vmem:[%s1 + $0x1e4] sm:$0xf]
  %v140 = vld [vmem:[%s1 + $0x1e8] sm:$0xf]
  %v141 = vld [vmem:[%s1 + $0x1ec] sm:$0xf]
  %v142 = vld [vmem:[%s1 + $0x1f0] sm:$0xf]
  %v143 = vld [vmem:[%s1 + $0x1f4] sm:$0xf]
  %v144 = vld [vmem:[%s1 + $0x1f8] sm:$0xf]
  %v145 = vld [vmem:[%s1 + $0x1fc] sm:$0xf]
  %v146 = vld [vmem:[%s1 + $0x200] sm:$0xf]
  %v147 = vld [vmem:[%s1 + $0x204] sm:$0xf]
  %v148 = vld [vmem:[%s1 + $0x208] sm:$0xf]
  %v149 = vld [vmem:[%s1 + $0x20c] sm:$0xf]
  %v150 = vld [vmem:[%s1 + $0x210] sm:$0xf]
  %v151 = vld [vmem:[%s1 + $0x214] sm:$0xf]
  %v152 = vld [vmem:[%s1 + $0x218] sm:$0xf]
  %v153 = vld [vmem:[%s1 + $0x21c] sm:$0xf]
  %v154 = vld [vmem:[%s1 + $0x220] sm:$0xf]
  %v155 = vld [vmem:[%s1 + $0x224] sm:$0xf]
  %v156 = vld [vmem:[%s1 + $0x228] sm:$0xf]
  %v157 = vld [vmem:[%s1 + $0x22c] sm:$0xf]
  %v158 = vld [vmem:[%s1 + $0x230] sm:$0xf]
  %v159 = vld [vmem:[%s1 + $0x234] sm:$0xf]
  %v160 = vld [vmem:[%s1 + $0x238] sm:$0xf]
  %v161 = vld [vmem:[%s1 + $0x23c] sm:$0xf]
  %v162 = vld [vmem:[%s1 + $0x240] sm:$0xf]
  %v163 = vld [vmem:[%s1 + $0x244] sm:$0xf]
  %v164 = vld [vmem:[%s1 + $0x248] sm:$0xf]
  %v165 = vld [vmem:[%s1 + $0x24c] sm:$0xf]
  %v166 = vld [vmem:[%s1 + $0x250] sm:$0xf]
  %v167 = vld [vmem:[%s1 + $0x254] sm:$0xf]
  %v168 = vld [vmem:[%s1 + $0x258] sm:$0xf]
  %v169 = vld [vmem:[%s1 + $0x25c] sm:$0xf]
  %v170 = vld [vmem:[%s1 + $0x260] sm:$0xf]
  %v171 = vld [vmem:[%s1 + $0x264] sm:$0xf]
  %v172 = vld [vmem:[%s1 + $0x268] sm:$0xf]
  %v173 = vld [vmem:[%s1 + $0x26c] sm:$0xf]
  %v174 = vld [vmem:[%s1 + $0x270] sm:$0xf]
  %v175 = vld [vmem:[%s1 + $0x274] sm:$0xf]
  %v176 = vld [vmem:[%s1 + $0x278] sm:$0xf]
  %v177 = vld [vmem:[%s1 + $0x27c] sm:$0xf]
  %v178 = vld [vmem:[%s1 + $0x280] sm:$0xf]
  %v179 = vld [vmem:[%s1 + $0x284] sm:$0xf]
  %v180 = vld [vmem:[%s1 + $0x288] sm:$0xf]
  %v181 = vld [vmem:[%s1 + $0x28c] sm:$0xf]
  %v182 = vld [vmem:[%s1 + $0x290] sm:$0xf]
  %v183 = vld [vmem:[%s1 + $0x294] sm:$0xf]
  %v184 = vld [vmem:[%s1 + $0x298] sm:$0xf]
  %v185 = vld [vmem:[%s1 + $0x29c] sm:$0xf]
  %v186 = vld [vmem:[%s1 + $0x2a0] sm:$0xf]
  %v187 = vld [vmem:[%s1 + $0x2a4] sm:$0xf]
  %v188 = vld [vmem:[%s1 + $0x2a8] sm:$0xf]
  %v189 = vld [vmem:[%s1 + $0x2ac] sm:$0xf]
  %v190 = vld [vmem:[%s1 + $0x2b0] sm:$0xf]
  %v191 = vld [vmem:[%s1 + $0x2b4] sm:$0xf]
  %v192 = vld [vmem:[%s1 + $0x2b8] sm:$0xf]
  %v193 = vld [vmem:[%s1 + $0x2bc] sm:$0xf]
  %v194 = vld [vmem:[%s1 + $0x2c0] sm:$0xf]
  %v195 = vld [vmem:[%s1 + $0x2c4] sm:$0xf]
  %v196 = vld [vmem:[%s1 + $0x2c8] sm:$0xf]
  %v197 = vld [vmem:[%s1 + $0x2cc] sm:$0xf]
  %v198 = vld [vmem:[%s1 + $0x2d0] sm:$0xf]
  %v199 = vld [vmem:[%s1 + $0x2d4] sm:$0xf]
  %v200 = vld [vmem:[%s1 + $0x2d8] sm:$0xf]
  %v201 = vld [vmem:[%s1 + $0x2dc] sm:$0xf]
  %v202 = vld [vmem:[%s1 + $0x2e0] sm:$0xf]
  %v203 = vld [vmem:[%s1 + $0x2e4] sm:$0xf]
  %v204 = vld [vmem:[%s1 + $0x2e8] sm:$0xf]
  %v205 = vld [vmem:[%s1 + $0x2ec] sm:$0xf]
  %v206 = vld [vmem:[%s1 + $0x2f0] sm:$0xf]
  %v207 = vld [vmem:[%s1 + $0x2f4] sm:$0xf]
  %v208 = vld [vmem:[%s1 + $0x2f8] sm:$0xf]
  %v209 = vld [vmem:[%s1 + $0x2fc] sm:$0xf]
  %v210 = vld [vmem:[%s1 + $0x300] sm:$0xf]
  %v211 = vld [vmem:[%s1 + $0x304] sm:$0xf]
  %v212 = vld [vmem:[%s1 + $0x308] sm:$0xf]
  %v213 = vld [vmem:[%s1 + $0x30c] sm:$0xf]
  %v214 = vld [vmem:[%s1 + $0x310] sm:$0xf]
  %v215 = vld [vmem:[%s1 + $0x314] sm:$0xf]
  %v216 = vld [vmem:[%s1 + $0x318] sm:$0xf]
  %v217 = vld [vmem:[%s1 + $0x31c] sm:$0xf]
  %v218 = vld [vmem:[%s1 + $0x320] sm:$0xf]
  %v219 = vld [vmem:[%s1 + $0x324] sm:$0xf]
  %v220 = vld [vmem:[%s1 + $0x328] sm:$0xf]
  %v221 = vld [vmem:[%s1 + $0x32c] sm:$0xf]
  %v222 = vld [vmem:[%s1 + $0x330] sm:$0xf]
  %v223 = vld [vmem:[%s1 + $0x334] sm:$0xf]
  %v224 = vld [vmem:[%s1 + $0x338] sm:$0xf]
  %v225 = vld [vmem:[%s1 + $0x33c] sm:$0xf]
  %v226 = vld [vmem:[%s1 + $0x340] sm:$0xf]
  %v227 = vld [vmem:[%s1 + $0x344] sm:$0xf]
  %v228 = vld [vmem:[%s1 + $0x348] sm:$0xf]
  %v229 = vld [vmem:[%s1 + $0x34c] sm:$0xf]
  %v230 = vld [vmem:[%s1 + $0x350] sm:$0xf]
  %v231 = vld [vmem:[%s1 + $0x354] sm:$0xf]
  %v232 = vld [vmem:[%s1 + $0x358] sm:$0xf]
  %v233 = vld [vmem:[%s1 + $0x35c] sm:$0xf]
  %v234 = vld [vmem:[%s1 + $0x360] sm:$0xf]
  %v235 = vld [vmem:[%s1 + $0x364] sm:$0xf]
  %v236 = vld [vmem:[%s1 + $0x368] sm:$0xf]
  %v237 = vld [vmem:[%s1 + $0x36c] sm:$0xf]
  %v238 = vld [vmem:[%s1 + $0x370] sm:$0xf]
  %v239 = vld [vmem:[%s1 + $0x374] sm:$0xf]
  %v240 = vld [vmem:[%s1 + $0x378] sm:$0xf]
  %v241 = vld [vmem:[%s1 + $0x37c] sm:$0xf]
  %v242 = vld [vmem:[%s1 + $0x380] sm:$0xf]
  %v243 = vld [vmem:[%s1 + $0x384] sm:$0xf]
  %v244 = vld [vmem:[%s1 + $0x388] sm:$0xf]
  %v245 = vld [vmem:[%s1 + $0x38c] sm:$0xf]
  %v246 = vld [vmem:[%s1 + $0x390] sm:$0xf]
  %v247 = vld [vmem:[%s1 + $0x394] sm:$0xf]
  %v248 = vld [vmem:[%s1 + $0x398] sm:$0xf]
  %v249 = vld [vmem:[%s1 + $0x39c] sm:$0xf]
  %v250 = vld [vmem:[%s1 + $0x3a0] sm:$0xf]
  %v251 = vld [vmem:[%s1 + $0x3a4] sm:$0xf]
  %v252 = vld [vmem:[%s1 + $0x3a8] sm:$0xf]
  %v253 = vld [vmem:[%s1 + $0x3ac] sm:$0xf]
  %v254 = vld [vmem:[%s1 + $0x3b0] sm:$0xf]
  %v255 = vld [vmem:[%s1 + $0x3b4] sm:$0xf]
  %v256 = vld [vmem:[%s1 + $0x3b8] sm:$0xf]
  %v257 = vld [vmem:[%s1 + $0x3bc] sm:$0xf]
  %v258 = vld [vmem:[%s1 + $0x3c0] sm:$0xf]
  %v259 = vld [vmem:[%s1 + $0x3c4] sm:$0xf]
  %v260 = vld [vmem:[%s1 + $0x3c8] sm:$0xf]
  %v261 = vld [vmem:[%s1 + $0x3cc] sm:$0xf]
  %v262 = vld [vmem:[%s1 + $0x3d0] sm:$0xf]
  %v263 = vld [vmem:[%s1 + $0x3d4] sm:$0xf]
  %v264 = vld [vmem:[%s1 + $0x3d8] sm:$0xf]
  %v265 = vld [vmem:[%s1 + $0x3dc] sm:$0xf]
  %v266 = vld [vmem:[%s1 + $0x3e0] sm:$0xf]
  %v267 = vld [vmem:[%s1 + $0x3e4] sm:$0xf]
  %v268 = vld [vmem:[%s1 + $0x3e8] sm:$0xf]
  %v269 = vld [vmem:[%s1 + $0x3ec] sm:$0xf]
  %v270 = vld [vmem:[%s1 + $0x3f0] sm:$0xf]
  %v271 = vld [vmem:[%s1 + $0x3f4] sm:$0xf]
  %v272 = vld [vmem:[%s1 + $0x3f8] sm:$0xf]
  %v273 = vld [vmem:[%s1 + $0x3fc] sm:$0xf]
  %v274 = vld [vmem:[%s1 + $0x400] sm:$0xf]
  %v275 = vld [vmem:[%s1 + $0x404] sm:$0xf]
  %v276 = vld [vmem:[%s1 + $0x408] sm:$0xf]
  %v277 = vld [vmem:[%s1 + $0x40c] sm:$0xf]
  %v278 = vld [vmem:[%s1 + $0x410] sm:$0xf]
  %v279 = vld [vmem:[%s1 + $0x414] sm:$0xf]
  %v280 = vld [vmem:[%s1 + $0x418] sm:$0xf]
  %v281 = vld [vmem:[%s1 + $0x41c] sm:$0xf]
  %v282 = vld [vmem:[%s1 + $0x420] sm:$0xf]
  %v283 = vld [vmem:[%s1 + $0x424] sm:$0xf]
  %v284 = vld [vmem:[%s1 + $0x428] sm:$0xf]
  %v285 = vld [vmem:[%s1 + $0x42c] sm:$0xf]
  %v286 = vld [vmem:[%s1 + $0x430] sm:$0xf]
  %v287 = vld [vmem:[%s1 + $0x434] sm:$0xf]
  %v288 = vld [vmem:[%s1 + $0x438] sm:$0xf]
  %v289 = vld [vmem:[%s1 + $0x43c] sm:$0xf]
  %v290 = vld [vmem:[%s1 + $0x440] sm:$0xf]
  %v291 = vld [vmem:[%s1 + $0x444] sm:$0xf]
  %v292 = vld [vmem:[%s1 + $0x448] sm:$0xf]
  %v293 = vld [vmem:[%s1 + $0x44c] sm:$0xf]
  %v294 = vld [vmem:[%s1 + $0x450] sm:$0xf]
  %v295 = vld [vmem:[%s1 + $0x454] sm:$0xf]
  %v296 = vld [vmem:[%s1 + $0x458] sm:$0xf]
  %v297 = vld [vmem:[%s1 + $0x45c] sm:$0xf]
  %v298 = vld [vmem:[%s2] sm:$0x1]
  %v300 = vlaneseq
  %v301 = vshrl.u32 %v300, 7
  %v302 = vsub.s32 0, %v301
  %v303 = vrot.slane %v298, %v302
  %v308 = vcombine.high %v15, %v15
  %v310 = vunpack.c.l.s4 1966171168
  %v311 = vunpack.c.0.s8 %v310
  %v312 = vlaneseq
  %v313 = vshrl.u32 %v312, 7
  %v314 = vsub.s32 %v311, %v313
  %v315 = vrot.slane %v15, %v314
  %v317 = vunpack.c.l.s4 1966171168
  %v318 = vunpack.c.0.s8 %v317
  %v319 = vlaneseq
  %v320 = vshrl.u32 %v319, 7
  %v321 = vsub.s32 %v318, %v320
  %v322 = vrot.slane %v308, %v321
  %v323 = vcombine.high %v315, %v315
  %v324 = vcombine.high %v322, %v322
  %v326 = vunpack.c.l.s4 1966171168
  %v327 = vunpack.c.0.s8 %v326
  %v328 = vlaneseq
  %v329 = vshrl.u32 %v328, 7
  %v330 = vsub.s32 %v327, %v329
  %v331 = vrot.slane %v315, %v330
  %v333 = vunpack.c.l.s4 1966171168
  %v334 = vunpack.c.0.s8 %v333
  %v335 = vlaneseq
  %v336 = vshrl.u32 %v335, 7
  %v337 = vsub.s32 %v334, %v336
  %v338 = vrot.slane %v322, %v337
  %v340 = vunpack.c.l.s4 1966171168
  %v341 = vunpack.c.0.s8 %v340
  %v342 = vlaneseq
  %v343 = vshrl.u32 %v342, 7
  %v344 = vsub.s32 %v341, %v343
  %v345 = vrot.slane %v323, %v344
  %v347 = vunpack.c.l.s4 1966171168
  %v348 = vunpack.c.0.s8 %v347
  %v349 = vlaneseq
  %v350 = vshrl.u32 %v349, 7
  %v351 = vsub.s32 %v348, %v350
  %v352 = vrot.slane %v324, %v351
  %v353 = vcombine.high %v331, %v331
  %v354 = vcombine.high %v338, %v338
  %v355 = vcombine.high %v345, %v345
  %v356 = vcombine.high %v352, %v352
  %v357 = vcombine.high %v16, %v16
  %v359 = vunpack.c.l.s4 1966171168
  %v360 = vunpack.c.0.s8 %v359
  %v361 = vlaneseq
  %v362 = vshrl.u32 %v361, 7
  %v363 = vsub.s32 %v360, %v362
  %v364 = vrot.slane %v16, %v363
  %v366 = vunpack.c.l.s4 1966171168
  %v367 = vunpack.c.0.s8 %v366
  %v368 = vlaneseq
  %v369 = vshrl.u32 %v368, 7
  %v370 = vsub.s32 %v367, %v369
  %v371 = vrot.slane %v357, %v370
  %v372 = vcombine.high %v364, %v364
  %v373 = vcombine.high %v371, %v371
  %v375 = vunpack.c.l.s4 1966171168
  %v376 = vunpack.c.0.s8 %v375
  %v377 = vlaneseq
  %v378 = vshrl.u32 %v377, 7
  %v379 = vsub.s32 %v376, %v378
  %v380 = vrot.slane %v364, %v379
  %v382 = vunpack.c.l.s4 1966171168
  %v383 = vunpack.c.0.s8 %v382
  %v384 = vlaneseq
  %v385 = vshrl.u32 %v384, 7
  %v386 = vsub.s32 %v383, %v385
  %v387 = vrot.slane %v371, %v386
  %v389 = vunpack.c.l.s4 1966171168
  %v390 = vunpack.c.0.s8 %v389
  %v391 = vlaneseq
  %v392 = vshrl.u32 %v391, 7
  %v393 = vsub.s32 %v390, %v392
  %v394 = vrot.slane %v372, %v393
  %v396 = vunpack.c.l.s4 1966171168
  %v397 = vunpack.c.0.s8 %v396
  %v398 = vlaneseq
  %v399 = vshrl.u32 %v398, 7
  %v400 = vsub.s32 %v397, %v399
  %v401 = vrot.slane %v373, %v400
  %v402 = vcombine.high %v380, %v380
  %v403 = vcombine.high %v387, %v387
  %v404 = vcombine.high %v394, %v394
  %v405 = vcombine.high %v401, %v401
  %v407 = vunpack.c.l.s4 1966171168
  %v408 = vunpack.c.0.s8 %v407
  %v409 = vlaneseq
  %v410 = vshrl.u32 %v409, 7
  %v411 = vsub.s32 %v408, %v410
  %v412 = vrot.slane %v17, %v411
  %v413 = vcombine.high %v412, %v412
  %v415 = vunpack.c.l.s4 1966171168
  %v416 = vunpack.c.0.s8 %v415
  %v417 = vlaneseq
  %v418 = vshrl.u32 %v417, 7
  %v419 = vsub.s32 %v416, %v418
  %v420 = vrot.slane %v412, %v419
  %v422 = vunpack.c.l.s4 1966171168
  %v423 = vunpack.c.0.s8 %v422
  %v424 = vlaneseq
  %v425 = vshrl.u32 %v424, 7
  %v426 = vsub.s32 %v423, %v425
  %v427 = vrot.slane %v413, %v426
  %v725 = vunpack.c.l.b16 %v18
  %v726 = vunpack.c.l.b16 %v19
  %v727 = vunpack.c.l.b16 %v20
  %v728 = vunpack.c.l.b16 %v21
  %v729 = vunpack.c.l.b16 %v22
  %v730 = vunpack.c.l.b16 %v23
  %v731 = vunpack.c.l.b16 %v24
  %v732 = vunpack.c.l.b16 %v25
  %v733 = vunpack.c.l.b16 %v26
  %v734 = vunpack.c.l.b16 %v27
  %v735 = vunpack.c.l.b16 %v28
  %v736 = vunpack.c.l.b16 %v29
  %v737 = vunpack.c.l.b16 %v30
  %v738 = vunpack.c.l.b16 %v31
  %v739 = vunpack.c.l.b16 %v32
  %v740 = vunpack.c.l.b16 %v33
  %v741 = vunpack.c.l.b16 %v34
  %v742 = vunpack.c.l.b16 %v35
  %v743 = vunpack.c.l.b16 %v36
  %v744 = vunpack.c.l.b16 %v37
  %v745 = vunpack.c.l.b16 %v38
  %v746 = vunpack.c.l.b16 %v39
  %v747 = vunpack.c.l.b16 %v40
  %v748 = vunpack.c.l.b16 %v41
  %v749 = vunpack.c.l.b16 %v42
  %v750 = vunpack.c.l.b16 %v43
  %v751 = vunpack.c.l.b16 %v44
  %v752 = vunpack.c.l.b16 %v45
  %v753 = vunpack.c.l.b16 %v46
  %v754 = vunpack.c.l.b16 %v47
  %v755 = vunpack.c.l.b16 %v48
  %v756 = vunpack.c.l.b16 %v49
  %v757 = vunpack.c.l.b16 %v50
  %v758 = vunpack.c.l.b16 %v51
  %v759 = vunpack.c.l.b16 %v52
  %v760 = vunpack.c.l.b16 %v53
  %v761 = vunpack.c.l.b16 %v54
  %v762 = vunpack.c.l.b16 %v55
  %v763 = vunpack.c.l.b16 %v56
  %v764 = vunpack.c.l.b16 %v57
  %v765 = vunpack.c.l.b16 %v58
  %v766 = vunpack.c.l.b16 %v59
  %v767 = vunpack.c.l.b16 %v60
  %v768 = vunpack.c.l.b16 %v61
  %v769 = vunpack.c.l.b16 %v62
  %v770 = vunpack.c.l.b16 %v63
  %v771 = vunpack.c.l.b16 %v64
  %v772 = vunpack.c.l.b16 %v65
  %v773 = vunpack.c.l.b16 %v66
  %v774 = vunpack.c.l.b16 %v67
  %v775 = vunpack.c.l.b16 %v68
  %v776 = vunpack.c.l.b16 %v69
  %v777 = vunpack.c.l.b16 %v70
  %v778 = vunpack.c.l.b16 %v71
  %v779 = vunpack.c.l.b16 %v72
  %v780 = vunpack.c.l.b16 %v73
  %v781 = vunpack.c.l.b16 %v74
  %v782 = vunpack.c.l.b16 %v75
  %v783 = vunpack.c.l.b16 %v76
  %v784 = vunpack.c.l.b16 %v77
  %v785 = vunpack.c.l.b16 %v78
  %v786 = vunpack.c.l.b16 %v79
  %v787 = vunpack.c.l.b16 %v80
  %v788 = vunpack.c.l.b16 %v81
  %v789 = vunpack.c.l.b16 %v82
  %v790 = vunpack.c.l.b16 %v83
  %v791 = vunpack.c.l.b16 %v84
  %v792 = vunpack.c.l.b16 %v85
  %v793 = vunpack.c.l.b16 %v86
  %v794 = vunpack.c.l.b16 %v87
  %v795 = vunpack.c.l.b16 %v88
  %v796 = vunpack.c.l.b16 %v89
  %v797 = vunpack.c.l.b16 %v90
  %v798 = vunpack.c.l.b16 %v91
  %v799 = vunpack.c.l.b16 %v92
  %v800 = vunpack.c.l.b16 %v93
  %v801 = vunpack.c.l.b16 %v94
  %v802 = vunpack.c.l.b16 %v95
  %v803 = vunpack.c.l.b16 %v96
  %v804 = vunpack.c.l.b16 %v97
  %v805 = vunpack.c.l.b16 %v98
  %v806 = vunpack.c.l.b16 %v99
  %v807 = vunpack.c.l.b16 %v100
  %v808 = vunpack.c.l.b16 %v101
  %v809 = vunpack.c.l.b16 %v102
  %v810 = vunpack.c.l.b16 %v103
  %v811 = vunpack.c.l.b16 %v104
  %v812 = vunpack.c.l.b16 %v105
  %v813 = vunpack.c.l.b16 %v106
  %v814 = vunpack.c.l.b16 %v107
  %v815 = vunpack.c.l.b16 %v108
  %v816 = vunpack.c.l.b16 %v109
  %v817 = vunpack.c.l.b16 %v110
  %v818 = vunpack.c.l.b16 %v111
  %v819 = vunpack.c.l.b16 %v112
  %v820 = vunpack.c.l.b16 %v113
  %v821 = vunpack.c.l.b16 %v114
  %v822 = vunpack.c.l.b16 %v115
  %v823 = vunpack.c.l.b16 %v116
  %v824 = vunpack.c.l.b16 %v117
  %v825 = vunpack.c.l.b16 %v118
  %v826 = vunpack.c.l.b16 %v119
  %v827 = vunpack.c.l.b16 %v120
  %v828 = vunpack.c.l.b16 %v121
  %v829 = vunpack.c.l.b16 %v122
  %v830 = vunpack.c.l.b16 %v123
  %v831 = vunpack.c.l.b16 %v124
  %v832 = vunpack.c.l.b16 %v125
  %v833 = vunpack.c.l.b16 %v126
  %v834 = vunpack.c.l.b16 %v127
  %v835 = vunpack.c.l.b16 %v128
  %v836 = vunpack.c.l.b16 %v129
  %v837 = vunpack.c.l.b16 %v130
  %v838 = vunpack.c.l.b16 %v131
  %v839 = vunpack.c.l.b16 %v132
  %v840 = vunpack.c.l.b16 %v133
  %v841 = vunpack.c.l.b16 %v134
  %v842 = vunpack.c.l.b16 %v135
  %v843 = vunpack.c.l.b16 %v136
  %v844 = vunpack.c.l.b16 %v137
  %v845 = vunpack.c.l.b16 %v138
  %v846 = vunpack.c.l.b16 %v139
  %v847 = vunpack.c.l.b16 %v140
  %v848 = vunpack.c.l.b16 %v141
  %v849 = vunpack.c.l.b16 %v142
  %v850 = vunpack.c.l.b16 %v143
  %v851 = vunpack.c.l.b16 %v144
  %v852 = vunpack.c.l.b16 %v145
  %v853 = vunpack.c.l.b16 %v146
  %v854 = vunpack.c.l.b16 %v147
  %v855 = vunpack.c.l.b16 %v148
  %v856 = vunpack.c.l.b16 %v149
  %v857 = vunpack.c.l.b16 %v150
  %v858 = vunpack.c.l.b16 %v151
  %v859 = vunpack.c.l.b16 %v152
  %v860 = vunpack.c.l.b16 %v153
  %v861 = vunpack.c.l.b16 %v154
  %v862 = vunpack.c.l.b16 %v155
  %v863 = vunpack.c.l.b16 %v156
  %v864 = vunpack.c.l.b16 %v157
  %v865 = vunpack.c.l.b16 %v158
  %v866 = vunpack.c.l.b16 %v159
  %v867 = vunpack.c.l.b16 %v160
  %v868 = vunpack.c.l.b16 %v161
  %v869 = vunpack.c.l.b16 %v162
  %v870 = vunpack.c.l.b16 %v163
  %v871 = vunpack.c.l.b16 %v164
  %v872 = vunpack.c.l.b16 %v165
  %v873 = vunpack.c.l.b16 %v166
  %v874 = vunpack.c.l.b16 %v167
  %v875 = vunpack.c.l.b16 %v168
  %v876 = vunpack.c.l.b16 %v169
  %v877 = vunpack.c.l.b16 %v170
  %v878 = vunpack.c.l.b16 %v171
  %v879 = vunpack.c.l.b16 %v172
  %v880 = vunpack.c.l.b16 %v173
  %v881 = vunpack.c.l.b16 %v174
  %v882 = vunpack.c.l.b16 %v175
  %v883 = vunpack.c.l.b16 %v176
  %v884 = vunpack.c.l.b16 %v177
  %v885 = vunpack.c.l.b16 %v178
  %v886 = vunpack.c.l.b16 %v179
  %v887 = vunpack.c.l.b16 %v180
  %v888 = vunpack.c.l.b16 %v181
  %v889 = vunpack.c.l.b16 %v182
  %v890 = vunpack.c.l.b16 %v183
  %v891 = vunpack.c.l.b16 %v184
  %v892 = vunpack.c.l.b16 %v185
  %v893 = vunpack.c.l.b16 %v186
  %v894 = vunpack.c.l.b16 %v187
  %v895 = vunpack.c.l.b16 %v188
  %v896 = vunpack.c.l.b16 %v189
  %v897 = vunpack.c.l.b16 %v190
  %v898 = vunpack.c.l.b16 %v191
  %v899 = vunpack.c.l.b16 %v192
  %v900 = vunpack.c.l.b16 %v193
  %v901 = vunpack.c.l.b16 %v194
  %v902 = vunpack.c.l.b16 %v195
  %v903 = vunpack.c.l.b16 %v196
  %v904 = vunpack.c.l.b16 %v197
  %v905 = vunpack.c.l.b16 %v198
  %v906 = vunpack.c.l.b16 %v199
  %v907 = vunpack.c.l.b16 %v200
  %v908 = vunpack.c.l.b16 %v201
  %v909 = vunpack.c.l.b16 %v202
  %v910 = vunpack.c.l.b16 %v203
  %v911 = vunpack.c.l.b16 %v204
  %v912 = vunpack.c.l.b16 %v205
  %v913 = vunpack.c.l.b16 %v206
  %v914 = vunpack.c.l.b16 %v207
  %v915 = vunpack.c.l.b16 %v208
  %v916 = vunpack.c.l.b16 %v209
  %v917 = vunpack.c.l.b16 %v210
  %v918 = vunpack.c.l.b16 %v211
  %v919 = vunpack.c.l.b16 %v212
  %v920 = vunpack.c.l.b16 %v213
  %v921 = vunpack.c.l.b16 %v214
  %v922 = vunpack.c.l.b16 %v215
  %v923 = vunpack.c.l.b16 %v216
  %v924 = vunpack.c.l.b16 %v217
  %v925 = vunpack.c.l.b16 %v218
  %v926 = vunpack.c.l.b16 %v219
  %v927 = vunpack.c.l.b16 %v220
  %v928 = vunpack.c.l.b16 %v221
  %v929 = vunpack.c.l.b16 %v222
  %v930 = vunpack.c.l.b16 %v223
  %v931 = vunpack.c.l.b16 %v224
  %v932 = vunpack.c.l.b16 %v225
  %v933 = vunpack.c.l.b16 %v226
  %v934 = vunpack.c.l.b16 %v227
  %v935 = vunpack.c.l.b16 %v228
  %v936 = vunpack.c.l.b16 %v229
  %v937 = vunpack.c.l.b16 %v230
  %v938 = vunpack.c.l.b16 %v231
  %v939 = vunpack.c.l.b16 %v232
  %v940 = vunpack.c.l.b16 %v233
  %v941 = vunpack.c.l.b16 %v234
  %v942 = vunpack.c.l.b16 %v235
  %v943 = vunpack.c.l.b16 %v236
  %v944 = vunpack.c.l.b16 %v237
  %v945 = vunpack.c.l.b16 %v238
  %v946 = vunpack.c.l.b16 %v239
  %v947 = vunpack.c.l.b16 %v240
  %v948 = vunpack.c.l.b16 %v241
  %v949 = vunpack.c.l.b16 %v242
  %v950 = vunpack.c.l.b16 %v243
  %v951 = vunpack.c.l.b16 %v244
  %v952 = vunpack.c.l.b16 %v245
  %v953 = vunpack.c.l.b16 %v246
  %v954 = vunpack.c.l.b16 %v247
  %v955 = vunpack.c.l.b16 %v248
  %v956 = vunpack.c.l.b16 %v249
  %v957 = vunpack.c.l.b16 %v250
  %v958 = vunpack.c.l.b16 %v251
  %v959 = vunpack.c.l.b16 %v252
  %v960 = vunpack.c.l.b16 %v253
  %v961 = vunpack.c.l.b16 %v254
  %v962 = vunpack.c.l.b16 %v255
  %v963 = vunpack.c.l.b16 %v256
  %v964 = vunpack.c.l.b16 %v257
  %v965 = vunpack.c.l.b16 %v258
  %v966 = vunpack.c.l.b16 %v259
  %v967 = vunpack.c.l.b16 %v260
  %v968 = vunpack.c.l.b16 %v261
  %v969 = vunpack.c.l.b16 %v262
  %v970 = vunpack.c.l.b16 %v263
  %v971 = vunpack.c.l.b16 %v264
  %v972 = vunpack.c.l.b16 %v265
  %v973 = vunpack.c.l.b16 %v266
  %v974 = vunpack.c.l.b16 %v267
  %v975 = vunpack.c.l.b16 %v268
  %v976 = vunpack.c.l.b16 %v269
  %v977 = vunpack.c.l.b16 %v270
  %v978 = vunpack.c.l.b16 %v271
  %v979 = vunpack.c.l.b16 %v272
  %v980 = vunpack.c.l.b16 %v273
  %v981 = vunpack.c.l.b16 %v274
  %v982 = vunpack.c.l.b16 %v275
  %v983 = vunpack.c.l.b16 %v276
  %v984 = vunpack.c.l.b16 %v277
  %v985 = vunpack.c.l.b16 %v278
  %v986 = vunpack.c.l.b16 %v279
  %v987 = vunpack.c.l.b16 %v280
  %v988 = vunpack.c.l.b16 %v281
  %v989 = vunpack.c.l.b16 %v282
  %v990 = vunpack.c.l.b16 %v283
  %v991 = vunpack.c.l.b16 %v284
  %v992 = vunpack.c.l.b16 %v285
  %v993 = vunpack.c.l.b16 %v286
  %v994 = vunpack.c.l.b16 %v287
  %v995 = vunpack.c.l.b16 %v288
  %v996 = vunpack.c.l.b16 %v289
  %v997 = vunpack.c.l.b16 %v290
  %v998 = vunpack.c.l.b16 %v291
  %v999 = vunpack.c.l.b16 %v292
  %v1000 = vunpack.c.l.b16 %v293
  %v1001 = vunpack.c.l.b16 %v294
  %v1002 = vunpack.c.l.b16 %v295
  %v1003 = vunpack.c.l.b16 %v296
  %v1004 = vunpack.c.l.b16 %v297
  %v1005 = vpack.c.b16 %v726, %v725
  %v1006 = vpack.c.b16 %v728, %v727
  %v1007 = vpack.c.b16 %v730, %v729
  %v1008 = vpack.c.b16 %v732, %v731
  %v1009 = vpack.c.b16 %v734, %v733
  %v1010 = vpack.c.b16 %v736, %v735
  %v1011 = vpack.c.b16 %v738, %v737
  %v1012 = vpack.c.b16 %v740, %v739
  %v1013 = vpack.c.b16 %v742, %v741
  %v1014 = vpack.c.b16 %v744, %v743
  %v1015 = vpack.c.b16 %v746, %v745
  %v1016 = vpack.c.b16 %v748, %v747
  %v1017 = vpack.c.b16 %v750, %v749
  %v1018 = vpack.c.b16 %v752, %v751
  %v1019 = vpack.c.b16 %v754, %v753
  %v1020 = vpack.c.b16 %v756, %v755
  %v1021 = vpack.c.b16 %v758, %v757
  %v1022 = vpack.c.b16 %v760, %v759
  %v1023 = vpack.c.b16 %v762, %v761
  %v1024 = vpack.c.b16 %v764, %v763
  %v1025 = vpack.c.b16 %v766, %v765
  %v1026 = vpack.c.b16 %v768, %v767
  %v1027 = vpack.c.b16 %v770, %v769
  %v1028 = vpack.c.b16 %v772, %v771
  %v1029 = vpack.c.b16 %v774, %v773
  %v1030 = vpack.c.b16 %v776, %v775
  %v1031 = vpack.c.b16 %v778, %v777
  %v1032 = vpack.c.b16 %v780, %v779
  %v1033 = vpack.c.b16 %v782, %v781
  %v1034 = vpack.c.b16 %v784, %v783
  %v1035 = vpack.c.b16 %v786, %v785
  %v1036 = vpack.c.b16 %v788, %v787
  %v1037 = vpack.c.b16 %v790, %v789
  %v1038 = vpack.c.b16 %v792, %v791
  %v1039 = vpack.c.b16 %v794, %v793
  %v1040 = vpack.c.b16 %v796, %v795
  %v1041 = vpack.c.b16 %v798, %v797
  %v1042 = vpack.c.b16 %v800, %v799
  %v1043 = vpack.c.b16 %v802, %v801
  %v1044 = vpack.c.b16 %v804, %v803
  %v1045 = vpack.c.b16 %v806, %v805
  %v1046 = vpack.c.b16 %v808, %v807
  %v1047 = vpack.c.b16 %v810, %v809
  %v1048 = vpack.c.b16 %v812, %v811
  %v1049 = vpack.c.b16 %v814, %v813
  %v1050 = vpack.c.b16 %v816, %v815
  %v1051 = vpack.c.b16 %v818, %v817
  %v1052 = vpack.c.b16 %v820, %v819
  %v1053 = vpack.c.b16 %v822, %v821
  %v1054 = vpack.c.b16 %v824, %v823
  %v1055 = vpack.c.b16 %v826, %v825
  %v1056 = vpack.c.b16 %v828, %v827
  %v1057 = vpack.c.b16 %v830, %v829
  %v1058 = vpack.c.b16 %v832, %v831
  %v1059 = vpack.c.b16 %v834, %v833
  %v1060 = vpack.c.b16 %v836, %v835
  %v1061 = vpack.c.b16 %v838, %v837
  %v1062 = vpack.c.b16 %v840, %v839
  %v1063 = vpack.c.b16 %v842, %v841
  %v1064 = vpack.c.b16 %v844, %v843
  %v1065 = vpack.c.b16 %v846, %v845
  %v1066 = vpack.c.b16 %v848, %v847
  %v1067 = vpack.c.b16 %v850, %v849
  %v1068 = vpack.c.b16 %v852, %v851
  %v1069 = vpack.c.b16 %v854, %v853
  %v1070 = vpack.c.b16 %v856, %v855
  %v1071 = vpack.c.b16 %v858, %v857
  %v1072 = vpack.c.b16 %v860, %v859
  %v1073 = vpack.c.b16 %v862, %v861
  %v1074 = vpack.c.b16 %v864, %v863
  %v1075 = vpack.c.b16 %v866, %v865
  %v1076 = vpack.c.b16 %v868, %v867
  %v1077 = vpack.c.b16 %v870, %v869
  %v1078 = vpack.c.b16 %v872, %v871
  %v1079 = vpack.c.b16 %v874, %v873
  %v1080 = vpack.c.b16 %v876, %v875
  %v1081 = vpack.c.b16 %v878, %v877
  %v1082 = vpack.c.b16 %v880, %v879
  %v1083 = vpack.c.b16 %v882, %v881
  %v1084 = vpack.c.b16 %v884, %v883
  %v1085 = vpack.c.b16 %v886, %v885
  %v1086 = vpack.c.b16 %v888, %v887
  %v1087 = vpack.c.b16 %v890, %v889
  %v1088 = vpack.c.b16 %v892, %v891
  %v1089 = vpack.c.b16 %v894, %v893
  %v1090 = vpack.c.b16 %v896, %v895
  %v1091 = vpack.c.b16 %v898, %v897
  %v1092 = vpack.c.b16 %v900, %v899
  %v1093 = vpack.c.b16 %v902, %v901
  %v1094 = vpack.c.b16 %v904, %v903
  %v1095 = vpack.c.b16 %v906, %v905
  %v1096 = vpack.c.b16 %v908, %v907
  %v1097 = vpack.c.b16 %v910, %v909
  %v1098 = vpack.c.b16 %v912, %v911
  %v1099 = vpack.c.b16 %v914, %v913
  %v1100 = vpack.c.b16 %v916, %v915
  %v1101 = vpack.c.b16 %v918, %v917
  %v1102 = vpack.c.b16 %v920, %v919
  %v1103 = vpack.c.b16 %v922, %v921
  %v1104 = vpack.c.b16 %v924, %v923
  %v1105 = vpack.c.b16 %v926, %v925
  %v1106 = vpack.c.b16 %v928, %v927
  %v1107 = vpack.c.b16 %v930, %v929
  %v1108 = vpack.c.b16 %v932, %v931
  %v1109 = vpack.c.b16 %v934, %v933
  %v1110 = vpack.c.b16 %v936, %v935
  %v1111 = vpack.c.b16 %v938, %v937
  %v1112 = vpack.c.b16 %v940, %v939
  %v1113 = vpack.c.b16 %v942, %v941
  %v1114 = vpack.c.b16 %v944, %v943
  %v1115 = vpack.c.b16 %v946, %v945
  %v1116 = vpack.c.b16 %v948, %v947
  %v1117 = vpack.c.b16 %v950, %v949
  %v1118 = vpack.c.b16 %v952, %v951
  %v1119 = vpack.c.b16 %v954, %v953
  %v1120 = vpack.c.b16 %v956, %v955
  %v1121 = vpack.c.b16 %v958, %v957
  %v1122 = vpack.c.b16 %v960, %v959
  %v1123 = vpack.c.b16 %v962, %v961
  %v1124 = vpack.c.b16 %v964, %v963
  %v1125 = vpack.c.b16 %v966, %v965
  %v1126 = vpack.c.b16 %v968, %v967
  %v1127 = vpack.c.b16 %v970, %v969
  %v1128 = vpack.c.b16 %v972, %v971
  %v1129 = vpack.c.b16 %v974, %v973
  %v1130 = vpack.c.b16 %v976, %v975
  %v1131 = vpack.c.b16 %v978, %v977
  %v1132 = vpack.c.b16 %v980, %v979
  %v1133 = vpack.c.b16 %v982, %v981
  %v1134 = vpack.c.b16 %v984, %v983
  %v1135 = vpack.c.b16 %v986, %v985
  %v1136 = vpack.c.b16 %v988, %v987
  %v1137 = vpack.c.b16 %v990, %v989
  %v1138 = vpack.c.b16 %v992, %v991
  %v1139 = vpack.c.b16 %v994, %v993
  %v1140 = vpack.c.b16 %v996, %v995
  %v1141 = vpack.c.b16 %v998, %v997
  %v1142 = vpack.c.b16 %v1000, %v999
  %v1143 = vpack.c.b16 %v1002, %v1001
  %v1144 = vpack.c.b16 %v1004, %v1003
  %vm1285 = vcmask 523264
  %v1287 = vsel %vm1285, %v427, 0
  %1289 = vmatprep.subr.bf16.mxu0 0
  %1290 = vmatpush1.bf16.msra.mxu0 %v1005
  %1291 = vmatprep.subr.bf16.mxu0 0
  %1292 = vmatpush1.bf16.msra.mxu0 %v1006
  %1293 = vmatprep.subr.bf16.mxu0 0
  %1294 = vmatpush1.bf16.msra.mxu0 %v1007
  %1295 = vmatprep.subr.bf16.mxu0 0
  %1296 = vmatpush1.bf16.msra.mxu0 %v1008
  %1297 = vmatprep.subr.bf16.mxu0 0
  %1298 = vmatpush1.bf16.msra.mxu0 %v1009
  %1299 = vmatprep.subr.bf16.mxu0 0
  %1300 = vmatpush1.bf16.msra.mxu0 %v1010
  %1301 = vmatprep.subr.bf16.mxu0 0
  %1302 = vmatpush1.bf16.msra.mxu0 %v1011
  %1303 = vmatprep.subr.bf16.mxu0 0
  %1304 = vmatpush1.bf16.msra.mxu0 %v1012
  %1305 = vmatprep.subr.bf16.mxu0 0
  %1306 = vmatpush1.bf16.msra.mxu0 %v1013
  %1307 = vmatprep.subr.bf16.mxu0 0
  %1308 = vmatpush1.bf16.msra.mxu0 %v1014
  %1309 = vmatprep.subr.bf16.mxu0 0
  %1310 = vmatpush1.bf16.msra.mxu0 %v1015
  %1311 = vmatprep.subr.bf16.mxu0 0
  %1312 = vmatpush1.bf16.msra.mxu0 %v1016
  %1313 = vmatprep.subr.bf16.mxu0 0
  %1314 = vmatpush1.bf16.msra.mxu0 %v1017
  %1315 = vmatprep.subr.bf16.mxu0 0
  %1316 = vmatpush1.bf16.msra.mxu0 %v1018
  %1317 = vmatprep.subr.bf16.mxu0 0
  %1318 = vmatpush1.bf16.msra.mxu0 %v1019
  %1319 = vmatprep.subr.bf16.mxu0 0
  %1320 = vmatpush1.bf16.msra.mxu0 %v1020
  %1321 = vmatprep.mubr.bf16.mxu0 %v345
  %1322 = vmatmul.mubr.bf16.gmra.mrb[0].mxu0 %v331
  %v1323 = vpop.f32.mrb[0].mxu0
  %v1324 = vadd.f32 %v303, %v1323
  %v1325 = vpop.f32.mrb[0].mxu0
  %v1326 = vpop.f32.mrb[0].mxu0
  %v1327 = vpop.f32.mrb[0].mxu0
  %1328 = vdwg.mxu0
  %1329 = vmatprep.subr.bf16.mxu0 0
  %1330 = vmatpush1.bf16.msra.mxu0 %v1021
  %1331 = vmatprep.subr.bf16.mxu0 0
  %1332 = vmatpush1.bf16.msra.mxu0 %v1022
  %1333 = vmatprep.subr.bf16.mxu0 0
  %1334 = vmatpush1.bf16.msra.mxu0 %v1023
  %1335 = vmatprep.subr.bf16.mxu0 0
  %1336 = vmatpush1.bf16.msra.mxu0 %v1024
  %1337 = vmatprep.subr.bf16.mxu0 0
  %1338 = vmatpush1.bf16.msra.mxu0 %v1025
  %1339 = vmatprep.subr.bf16.mxu0 0
  %1340 = vmatpush1.bf16.msra.mxu0 %v1026
  %1341 = vmatprep.subr.bf16.mxu0 0
  %1342 = vmatpush1.bf16.msra.mxu0 %v1027
  %1343 = vmatprep.subr.bf16.mxu0 0
  %1344 = vmatpush1.bf16.msra.mxu0 %v1028
  %1345 = vmatprep.subr.bf16.mxu0 0
  %1346 = vmatpush1.bf16.msra.mxu0 %v1029
  %1347 = vmatprep.subr.bf16.mxu0 0
  %1348 = vmatpush1.bf16.msra.mxu0 %v1030
  %1349 = vmatprep.subr.bf16.mxu0 0
  %1350 = vmatpush1.bf16.msra.mxu0 %v1031
  %1351 = vmatprep.subr.bf16.mxu0 0
  %1352 = vmatpush1.bf16.msra.mxu0 %v1032
  %1353 = vmatprep.subr.bf16.mxu0 0
  %1354 = vmatpush1.bf16.msra.mxu0 %v1033
  %1355 = vmatprep.subr.bf16.mxu0 0
  %1356 = vmatpush1.bf16.msra.mxu0 %v1034
  %1357 = vmatprep.subr.bf16.mxu0 0
  %1358 = vmatpush1.bf16.msra.mxu0 %v1035
  %1359 = vmatprep.subr.bf16.mxu0 0
  %1360 = vmatpush1.bf16.msra.mxu0 %v1036
  %1361 = vmatprep.mubr.bf16.mxu0 %v355
  %1362 = vmatmul.mubr.bf16.gmra.mrb[0].mxu0 %v353
  %v1363 = vpop.f32.mrb[0].mxu0
  %v1364 = vadd.f32 %v1324, %v1363
  %v1365 = vpop.f32.mrb[0].mxu0
  %v1366 = vpop.f32.mrb[0].mxu0
  %v1367 = vpop.f32.mrb[0].mxu0
  %1368 = vdwg.mxu0
  %1369 = vmatprep.subr.bf16.mxu0 0
  %1370 = vmatpush1.bf16.msra.mxu0 %v1037
  %1371 = vmatprep.subr.bf16.mxu0 0
  %1372 = vmatpush1.bf16.msra.mxu0 %v1038
  %1373 = vmatprep.subr.bf16.mxu0 0
  %1374 = vmatpush1.bf16.msra.mxu0 %v1039
  %1375 = vmatprep.subr.bf16.mxu0 0
  %1376 = vmatpush1.bf16.msra.mxu0 %v1040
  %1377 = vmatprep.subr.bf16.mxu0 0
  %1378 = vmatpush1.bf16.msra.mxu0 %v1041
  %1379 = vmatprep.subr.bf16.mxu0 0
  %1380 = vmatpush1.bf16.msra.mxu0 %v1042
  %1381 = vmatprep.subr.bf16.mxu0 0
  %1382 = vmatpush1.bf16.msra.mxu0 %v1043
  %1383 = vmatprep.subr.bf16.mxu0 0
  %1384 = vmatpush1.bf16.msra.mxu0 %v1044
  %1385 = vmatprep.subr.bf16.mxu0 0
  %1386 = vmatpush1.bf16.msra.mxu0 %v1045
  %1387 = vmatprep.subr.bf16.mxu0 0
  %1388 = vmatpush1.bf16.msra.mxu0 %v1046
  %1389 = vmatprep.subr.bf16.mxu0 0
  %1390 = vmatpush1.bf16.msra.mxu0 %v1047
  %1391 = vmatprep.subr.bf16.mxu0 0
  %1392 = vmatpush1.bf16.msra.mxu0 %v1048
  %1393 = vmatprep.subr.bf16.mxu0 0
  %1394 = vmatpush1.bf16.msra.mxu0 %v1049
  %1395 = vmatprep.subr.bf16.mxu0 0
  %1396 = vmatpush1.bf16.msra.mxu0 %v1050
  %1397 = vmatprep.subr.bf16.mxu0 0
  %1398 = vmatpush1.bf16.msra.mxu0 %v1051
  %1399 = vmatprep.subr.bf16.mxu0 0
  %1400 = vmatpush1.bf16.msra.mxu0 %v1052
  %1401 = vmatprep.mubr.bf16.mxu0 %v352
  %1402 = vmatmul.mubr.bf16.gmra.mrb[0].mxu0 %v338
  %v1403 = vpop.f32.mrb[0].mxu0
  %v1404 = vadd.f32 %v1364, %v1403
  %v1405 = vpop.f32.mrb[0].mxu0
  %v1406 = vpop.f32.mrb[0].mxu0
  %v1407 = vpop.f32.mrb[0].mxu0
  %1408 = vdwg.mxu0
  %1409 = vmatprep.subr.bf16.mxu0 0
  %1410 = vmatpush1.bf16.msra.mxu0 %v1053
  %1411 = vmatprep.subr.bf16.mxu0 0
  %1412 = vmatpush1.bf16.msra.mxu0 %v1054
  %1413 = vmatprep.subr.bf16.mxu0 0
  %1414 = vmatpush1.bf16.msra.mxu0 %v1055
  %1415 = vmatprep.subr.bf16.mxu0 0
  %1416 = vmatpush1.bf16.msra.mxu0 %v1056
  %1417 = vmatprep.subr.bf16.mxu0 0
  %1418 = vmatpush1.bf16.msra.mxu0 %v1057
  %1419 = vmatprep.subr.bf16.mxu0 0
  %1420 = vmatpush1.bf16.msra.mxu0 %v1058
  %1421 = vmatprep.subr.bf16.mxu0 0
  %1422 = vmatpush1.bf16.msra.mxu0 %v1059
  %1423 = vmatprep.subr.bf16.mxu0 0
  %1424 = vmatpush1.bf16.msra.mxu0 %v1060
  %1425 = vmatprep.subr.bf16.mxu0 0
  %1426 = vmatpush1.bf16.msra.mxu0 %v1061
  %1427 = vmatprep.subr.bf16.mxu0 0
  %1428 = vmatpush1.bf16.msra.mxu0 %v1062
  %1429 = vmatprep.subr.bf16.mxu0 0
  %1430 = vmatpush1.bf16.msra.mxu0 %v1063
  %1431 = vmatprep.subr.bf16.mxu0 0
  %1432 = vmatpush1.bf16.msra.mxu0 %v1064
  %1433 = vmatprep.subr.bf16.mxu0 0
  %1434 = vmatpush1.bf16.msra.mxu0 %v1065
  %1435 = vmatprep.subr.bf16.mxu0 0
  %1436 = vmatpush1.bf16.msra.mxu0 %v1066
  %1437 = vmatprep.subr.bf16.mxu0 0
  %1438 = vmatpush1.bf16.msra.mxu0 %v1067
  %1439 = vmatprep.subr.bf16.mxu0 0
  %1440 = vmatpush1.bf16.msra.mxu0 %v1068
  %1441 = vmatprep.mubr.bf16.mxu0 %v356
  %1442 = vmatmul.mubr.bf16.gmra.mrb[0].mxu0 %v354
  %v1443 = vpop.f32.mrb[0].mxu0
  %v1444 = vadd.f32 %v1404, %v1443
  %v1445 = vpop.f32.mrb[0].mxu0
  %v1446 = vpop.f32.mrb[0].mxu0
  %v1447 = vpop.f32.mrb[0].mxu0
  %1448 = vdwg.mxu0
  %1449 = vmatprep.subr.bf16.mxu0 0
  %1450 = vmatpush1.bf16.msra.mxu0 %v1069
  %1451 = vmatprep.subr.bf16.mxu0 0
  %1452 = vmatpush1.bf16.msra.mxu0 %v1070
  %1453 = vmatprep.subr.bf16.mxu0 0
  %1454 = vmatpush1.bf16.msra.mxu0 %v1071
  %1455 = vmatprep.subr.bf16.mxu0 0
  %1456 = vmatpush1.bf16.msra.mxu0 %v1072
  %1457 = vmatprep.subr.bf16.mxu0 0
  %1458 = vmatpush1.bf16.msra.mxu0 %v1073
  %1459 = vmatprep.subr.bf16.mxu0 0
  %1460 = vmatpush1.bf16.msra.mxu0 %v1074
  %1461 = vmatprep.subr.bf16.mxu0 0
  %1462 = vmatpush1.bf16.msra.mxu0 %v1075
  %1463 = vmatprep.subr.bf16.mxu0 0
  %1464 = vmatpush1.bf16.msra.mxu0 %v1076
  %1465 = vmatprep.subr.bf16.mxu0 0
  %1466 = vmatpush1.bf16.msra.mxu0 %v1077
  %1467 = vmatprep.subr.bf16.mxu0 0
  %1468 = vmatpush1.bf16.msra.mxu0 %v1078
  %1469 = vmatprep.subr.bf16.mxu0 0
  %1470 = vmatpush1.bf16.msra.mxu0 %v1079
  %1471 = vmatprep.subr.bf16.mxu0 0
  %1472 = vmatpush1.bf16.msra.mxu0 %v1080
  %1473 = vmatprep.subr.bf16.mxu0 0
  %1474 = vmatpush1.bf16.msra.mxu0 %v1081
  %1475 = vmatprep.subr.bf16.mxu0 0
  %1476 = vmatpush1.bf16.msra.mxu0 %v1082
  %1477 = vmatprep.subr.bf16.mxu0 0
  %1478 = vmatpush1.bf16.msra.mxu0 %v1083
  %1479 = vmatprep.subr.bf16.mxu0 0
  %1480 = vmatpush1.bf16.msra.mxu0 %v1084
  %1481 = vmatprep.mubr.bf16.mxu0 %v394
  %1482 = vmatmul.mubr.bf16.gmra.mrb[0].mxu0 %v380
  %v1483 = vpop.f32.mrb[0].mxu0
  %v1484 = vadd.f32 %v1444, %v1483
  %v1485 = vpop.f32.mrb[0].mxu0
  %v1486 = vpop.f32.mrb[0].mxu0
  %v1487 = vpop.f32.mrb[0].mxu0
  %1488 = vdwg.mxu0
  %1489 = vmatprep.subr.bf16.mxu0 0
  %1490 = vmatpush1.bf16.msra.mxu0 %v1085
  %1491 = vmatprep.subr.bf16.mxu0 0
  %1492 = vmatpush1.bf16.msra.mxu0 %v1086
  %1493 = vmatprep.subr.bf16.mxu0 0
  %1494 = vmatpush1.bf16.msra.mxu0 %v1087
  %1495 = vmatprep.subr.bf16.mxu0 0
  %1496 = vmatpush1.bf16.msra.mxu0 %v1088
  %1497 = vmatprep.subr.bf16.mxu0 0
  %1498 = vmatpush1.bf16.msra.mxu0 %v1089
  %1499 = vmatprep.subr.bf16.mxu0 0
  %1500 = vmatpush1.bf16.msra.mxu0 %v1090
  %1501 = vmatprep.subr.bf16.mxu0 0
  %1502 = vmatpush1.bf16.msra.mxu0 %v1091
  %1503 = vmatprep.subr.bf16.mxu0 0
  %1504 = vmatpush1.bf16.msra.mxu0 %v1092
  %1505 = vmatprep.subr.bf16.mxu0 0
  %1506 = vmatpush1.bf16.msra.mxu0 %v1093
  %1507 = vmatprep.subr.bf16.mxu0 0
  %1508 = vmatpush1.bf16.msra.mxu0 %v1094
  %1509 = vmatprep.subr.bf16.mxu0 0
  %1510 = vmatpush1.bf16.msra.mxu0 %v1095
  %1511 = vmatprep.subr.bf16.mxu0 0
  %1512 = vmatpush1.bf16.msra.mxu0 %v1096
  %1513 = vmatprep.subr.bf16.mxu0 0
  %1514 = vmatpush1.bf16.msra.mxu0 %v1097
  %1515 = vmatprep.subr.bf16.mxu0 0
  %1516 = vmatpush1.bf16.msra.mxu0 %v1098
  %1517 = vmatprep.subr.bf16.mxu0 0
  %1518 = vmatpush1.bf16.msra.mxu0 %v1099
  %1519 = vmatprep.subr.bf16.mxu0 0
  %1520 = vmatpush1.bf16.msra.mxu0 %v1100
  %1521 = vmatprep.mubr.bf16.mxu0 %v404
  %1522 = vmatmul.mubr.bf16.gmra.mrb[0].mxu0 %v402
  %v1523 = vpop.f32.mrb[0].mxu0
  %v1524 = vadd.f32 %v1484, %v1523
  %v1525 = vpop.f32.mrb[0].mxu0
  %v1526 = vpop.f32.mrb[0].mxu0
  %v1527 = vpop.f32.mrb[0].mxu0
  %1528 = vdwg.mxu0
  %1529 = vmatprep.subr.bf16.mxu0 0
  %1530 = vmatpush1.bf16.msra.mxu0 %v1101
  %1531 = vmatprep.subr.bf16.mxu0 0
  %1532 = vmatpush1.bf16.msra.mxu0 %v1102
  %1533 = vmatprep.subr.bf16.mxu0 0
  %1534 = vmatpush1.bf16.msra.mxu0 %v1103
  %1535 = vmatprep.subr.bf16.mxu0 0
  %1536 = vmatpush1.bf16.msra.mxu0 %v1104
  %1537 = vmatprep.subr.bf16.mxu0 0
  %1538 = vmatpush1.bf16.msra.mxu0 %v1105
  %1539 = vmatprep.subr.bf16.mxu0 0
  %1540 = vmatpush1.bf16.msra.mxu0 %v1106
  %1541 = vmatprep.subr.bf16.mxu0 0
  %1542 = vmatpush1.bf16.msra.mxu0 %v1107
  %1543 = vmatprep.subr.bf16.mxu0 0
  %1544 = vmatpush1.bf16.msra.mxu0 %v1108
  %1545 = vmatprep.subr.bf16.mxu0 0
  %1546 = vmatpush1.bf16.msra.mxu0 %v1109
  %1547 = vmatprep.subr.bf16.mxu0 0
  %1548 = vmatpush1.bf16.msra.mxu0 %v1110
  %1549 = vmatprep.subr.bf16.mxu0 0
  %1550 = vmatpush1.bf16.msra.mxu0 %v1111
  %1551 = vmatprep.subr.bf16.mxu0 0
  %1552 = vmatpush1.bf16.msra.mxu0 %v1112
  %1553 = vmatprep.subr.bf16.mxu0 0
  %1554 = vmatpush1.bf16.msra.mxu0 %v1113
  %1555 = vmatprep.subr.bf16.mxu0 0
  %1556 = vmatpush1.bf16.msra.mxu0 %v1114
  %1557 = vmatprep.subr.bf16.mxu0 0
  %1558 = vmatpush1.bf16.msra.mxu0 %v1115
  %1559 = vmatprep.subr.bf16.mxu0 0
  %1560 = vmatpush1.bf16.msra.mxu0 %v1116
  %1561 = vmatprep.mubr.bf16.mxu0 %v401
  %1562 = vmatmul.mubr.bf16.gmra.mrb[0].mxu0 %v387
  %v1563 = vpop.f32.mrb[0].mxu0
  %v1564 = vadd.f32 %v1524, %v1563
  %v1565 = vpop.f32.mrb[0].mxu0
  %v1566 = vpop.f32.mrb[0].mxu0
  %v1567 = vpop.f32.mrb[0].mxu0
  %1568 = vdwg.mxu0
  %1569 = vmatprep.subr.bf16.mxu0 0
  %1570 = vmatpush1.bf16.msra.mxu0 %v1117
  %1571 = vmatprep.subr.bf16.mxu0 0
  %1572 = vmatpush1.bf16.msra.mxu0 %v1118
  %1573 = vmatprep.subr.bf16.mxu0 0
  %1574 = vmatpush1.bf16.msra.mxu0 %v1119
  %1575 = vmatprep.subr.bf16.mxu0 0
  %1576 = vmatpush1.bf16.msra.mxu0 %v1120
  %1577 = vmatprep.subr.bf16.mxu0 0
  %1578 = vmatpush1.bf16.msra.mxu0 %v1121
  %1579 = vmatprep.subr.bf16.mxu0 0
  %1580 = vmatpush1.bf16.msra.mxu0 %v1122
  %1581 = vmatprep.subr.bf16.mxu0 0
  %1582 = vmatpush1.bf16.msra.mxu0 %v1123
  %1583 = vmatprep.subr.bf16.mxu0 0
  %1584 = vmatpush1.bf16.msra.mxu0 %v1124
  %1585 = vmatprep.subr.bf16.mxu0 0
  %1586 = vmatpush1.bf16.msra.mxu0 %v1125
  %1587 = vmatprep.subr.bf16.mxu0 0
  %1588 = vmatpush1.bf16.msra.mxu0 %v1126
  %1589 = vmatprep.subr.bf16.mxu0 0
  %1590 = vmatpush1.bf16.msra.mxu0 %v1127
  %1591 = vmatprep.subr.bf16.mxu0 0
  %1592 = vmatpush1.bf16.msra.mxu0 %v1128
  %1593 = vmatprep.subr.bf16.mxu0 0
  %1594 = vmatpush1.bf16.msra.mxu0 %v1129
  %1595 = vmatprep.subr.bf16.mxu0 0
  %1596 = vmatpush1.bf16.msra.mxu0 %v1130
  %1597 = vmatprep.subr.bf16.mxu0 0
  %1598 = vmatpush1.bf16.msra.mxu0 %v1131
  %1599 = vmatprep.subr.bf16.mxu0 0
  %1600 = vmatpush1.bf16.msra.mxu0 %v1132
  %1601 = vmatprep.mubr.bf16.mxu0 %v405
  %1602 = vmatmul.mubr.bf16.gmra.mrb[0].mxu0 %v403
  %v1603 = vpop.f32.mrb[0].mxu0
  %v1604 = vadd.f32 %v1564, %v1603
  %v1605 = vpop.f32.mrb[0].mxu0
  %v1606 = vpop.f32.mrb[0].mxu0
  %v1607 = vpop.f32.mrb[0].mxu0
  %1608 = vdwg.mxu0
  %1609 = vmatprep.subr.bf16.mxu0 0
  %1610 = vmatpush1.bf16.msra.mxu0 %v1133
  %1611 = vmatprep.subr.bf16.mxu0 0
  %1612 = vmatpush1.bf16.msra.mxu0 %v1134
  %1613 = vmatprep.subr.bf16.mxu0 0
  %1614 = vmatpush1.bf16.msra.mxu0 %v1135
  %1615 = vmatprep.subr.bf16.mxu0 0
  %1616 = vmatpush1.bf16.msra.mxu0 %v1136
  %1617 = vmatprep.subr.bf16.mxu0 0
  %1618 = vmatpush1.bf16.msra.mxu0 %v1137
  %1619 = vmatprep.subr.bf16.mxu0 0
  %1620 = vmatpush1.bf16.msra.mxu0 %v1138
  %1621 = vmatprep.subr.bf16.mxu0 0
  %1622 = vmatpush1.bf16.msra.mxu0 %v1139
  %1623 = vmatprep.subr.bf16.mxu0 0
  %1624 = vmatpush1.bf16.msra.mxu0 %v1140
  %1625 = vmatprep.subr.bf16.mxu0 0
  %1626 = vmatpush1.bf16.msra.mxu0 %v1141
  %1627 = vmatprep.subr.bf16.mxu0 0
  %1628 = vmatpush1.bf16.msra.mxu0 %v1142
  %1629 = vmatprep.subr.bf16.mxu0 0
  %1630 = vmatpush1.bf16.msra.mxu0 %v1143
  %1631 = vmatprep.subr.bf16.mxu0 0
  %1632 = vmatpush1.bf16.msra.mxu0 %v1144
  %1633 = vmatprep.subr.bf16.mxu0 0
  %1634 = vmatpush1.bf16.msra.mxu0 0
  %1635 = vmatprep.subr.bf16.mxu0 0
  %1636 = vmatpush1.bf16.msra.mxu0 0
  %1637 = vmatprep.subr.bf16.mxu0 0
  %1638 = vmatpush1.bf16.msra.mxu0 0
  %1639 = vmatprep.subr.bf16.mxu0 0
  %1640 = vmatpush1.bf16.msra.mxu0 0
  %1641 = vmatprep.mubr.bf16.mxu0 %v1287
  %1642 = vmatmul.mubr.bf16.gmra.mrb[0].mxu0 %v420
  %v1643 = vpop.f32.mrb[0].mxu0
  %v1644 = vadd.f32 %v1604, %v1643
  %v1645 = vpop.f32.mrb[0].mxu0
  %v1646 = vpop.f32.mrb[0].mxu0
  %v1647 = vpop.f32.mrb[0].mxu0
  %1648 = vdwg.mxu0
  %v1649 = vlaneseq
  %v1650 = vand.u32 %v1649, 127
  %vm1651 = vcmp.eq.s32.totalorder %v1650, 65
  %v1652 = vtanh.pop %v1644
  %v1653 = vsel %vm1651, %v1652, %v1644
  %1654 = vst [vmem:[%s3] sm:$0x3] %v1653
  // Predicated region
  $region14: #{forward.3} parent=0 // pred_check
    _
  $region15: #{forward.3} parent=0 // pred_check_branch
    %1656 = sbr.rel (0) target = $region17
  $region16: #{forward.3} parent=0 // pred_region
    _
  $region17: #{forward.3} parent=0 // pred_fallthru
    _
  // Predicated region
  $region18: #{forward.3} parent=0 // pred_check
    _
  $region19: #{forward.3} parent=0 // pred_check_branch
    %1658 = sbr.rel (0) target = $region21
  $region20: #{forward.3} parent=0 // pred_region
    _
  $region21: #{forward.3} parent=0 // pred_fallthru
    _

// kernel: forward.2
$region0: #{forward.2}
  #allocation0 [shape = 'u32[]', space=smem, size = 0x4, offset = 0x4, fixed_abs, tag = 'smem constant byte address 0x4 - core index']
  #allocation1 [shape = 'u32[144,128]{1,0:T(1,128)}', space=vmem, size = 0x12000, scoped, tag = 'internal scratch']
  #allocation2 [shape = 'f32[2,10,10,32]{3,2,1,0:T(8,128)}', space=vmem, size = 0x28000, scoped, tag = 'scratch operand']
  #allocation3 [shape = 'bf16[128,288]{1,0:T(16,128)(2,1)}', space=vmem, size = 0x18000, scoped, tag = 'scratch operand']
  %s0 = inlined_call_operand.vmem [shape: bf16[128,27], index: 0, kind: input, shape index: {}]
  %s1 = inlined_call_operand.vmem [shape: bf16[27,32], index: 1, kind: input, shape index: {}]
  %s2 = inlined_call_operand.vmem [shape: f32[1,32], index: 2, kind: input, shape index: {}]
  %s3 = inlined_call_operand.vmem [shape: f32[1,32], index: 3, kind: input, shape index: {}]
  %s4 = inlined_call_operand.vmem [shape: bf16[288,32], index: 4, kind: input, shape index: {}]
  %s5 = inlined_call_operand.vmem [shape: f32[1,32], index: 5, kind: input, shape index: {}]
  %s6 = inlined_call_operand.vmem [shape: f32[1,32], index: 6, kind: input, shape index: {}]
  %s7 = inlined_call_operand.vmem [shape: bf16[288,32], index: 7, kind: input, shape index: {}]
  %s8 = inlined_call_operand.vmem [shape: f32[1,32], index: 8, kind: input, shape index: {}]
  %s9 = inlined_call_operand.vmem [shape: f32[1,32], index: 9, kind: input, shape index: {}]
  %s10 = inlined_call_operand.vmem [shape: bf16[288,32], index: 10, kind: input, shape index: {}]
  %s11 = inlined_call_operand.vmem [shape: f32[1,32], index: 11, kind: input, shape index: {}]
  %s12 = inlined_call_operand.vmem [shape: f32[1,32], index: 12, kind: input, shape index: {}]
  %s13 = inlined_call_operand.vmem [shape: bf16[288,32], index: 13, kind: input, shape index: {}]
  %s14 = inlined_call_operand.vmem [shape: f32[1,32], index: 14, kind: input, shape index: {}]
  %s15 = inlined_call_operand.vmem [shape: f32[1,32], index: 15, kind: input, shape index: {}]
  %s16 = inlined_call_operand.vmem [shape: bf16[288,35], index: 16, kind: input, shape index: {}]
  %s17 = inlined_call_operand.vmem [shape: f32[1,35], index: 17, kind: input, shape index: {}]
  %s18 = inlined_call_operand.vmem [shape: f32[1,35], index: 18, kind: input, shape index: {}]
  %s19 = inlined_call_operand.hbm [shape: f32[128,32], index: 19, kind: output, shape index: {0}]
  %s20 = inlined_call_operand.vmem [shape: bf16[128,35], index: 20, kind: output, shape index: {1}]
  %21 = xla_tuple %s19, %s20
  %s22 = sld [smem:[#allocation0]]
  $region94: #{forward.2} parent=0
    _
  %s24 = ssub.s32 1, %s22
  %s25 = scalar_select 0, %s24, %s22
  $region1: #{forward.2} parent=0
    #allocation4 [shape = 'u8[65536]{0}', space=vmem, size = 0x10000, scoped, tag = 'output window, operand 0, single buffered']
    #allocation5 [shape = 's32[1]{0}', space=sflag, size = 0x4, scoped, tag = 'scoped memory for forward.2']
    %26 = vsyncpa [#allocation5], 0
    // Predicated region
    $region2: #{forward.2} parent=1 // pred_check
      _
    $region3: #{forward.2} parent=1 // pred_check_branch
      %28 = sbr.rel (0) target = $region5
    $region4: #{forward.2} parent=1 // pred_region
      _
    $region5: #{forward.2} parent=1 // pred_fallthru
      _
    // Predicated region
    $region6: #{forward.2} parent=1 // pred_check
      _
    $region7: #{forward.2} parent=1 // pred_check_branch
      %30 = sbr.rel (0) target = $region9
    $region8: #{forward.2} parent=1 // pred_region
      _
    $region9: #{forward.2} parent=1 // pred_fallthru
      _
    // Predicated region
    $region10: #{forward.2} parent=1 // pred_check
      _
    $region11: #{forward.2} parent=1 // pred_check_branch
      %32 = sbr.rel (0) target = $region13
    $region12: #{forward.2} parent=1 // pred_region
      _
    $region13: #{forward.2} parent=1 // pred_fallthru
      _
    // Predicated region
    $region14: #{forward.2} parent=1 // pred_check
      _
    $region15: #{forward.2} parent=1 // pred_check_branch
      %34 = sbr.rel (0) target = $region17
    $region16: #{forward.2} parent=1 // pred_region
      _
    $region17: #{forward.2} parent=1 // pred_fallthru
      _
    // Predicated region
    $region18: #{forward.2} parent=1 // pred_check
      _
    $region19: #{forward.2} parent=1 // pred_check_branch
      %36 = sbr.rel (0) target = $region21
    $region20: #{forward.2} parent=1 // pred_region
      _
    $region21: #{forward.2} parent=1 // pred_fallthru
      _
    // Predicated region
    $region22: #{forward.2} parent=1 // pred_check
      _
    $region23: #{forward.2} parent=1 // pred_check_branch
      %38 = sbr.rel (0) target = $region25
    $region24: #{forward.2} parent=1 // pred_region
      _
    $region25: #{forward.2} parent=1 // pred_fallthru
      _
    // Predicated region
    $region26: #{forward.2} parent=1 // pred_check
      _
    $region27: #{forward.2} parent=1 // pred_check_branch
      %40 = sbr.rel (0) target = $region29
    $region28: #{forward.2} parent=1 // pred_region
      _
    $region29: #{forward.2} parent=1 // pred_fallthru
      _
    // Predicated region
    $region30: #{forward.2} parent=1 // pred_check
      _
    $region31: #{forward.2} parent=1 // pred_check_branch
      %42 = sbr.rel (0) target = $region33
    $region32: #{forward.2} parent=1 // pred_region
      _
    $region33: #{forward.2} parent=1 // pred_fallthru
      _
    // Predicated region
    $region34: #{forward.2} parent=1 // pred_check
      _
    $region35: #{forward.2} parent=1 // pred_check_branch
      %44 = sbr.rel (0) target = $region37
    $region36: #{forward.2} parent=1 // pred_region
      _
    $region37: #{forward.2} parent=1 // pred_fallthru
      _
    // Predicated region
    $region38: #{forward.2} parent=1 // pred_check
      _
    $region39: #{forward.2} parent=1 // pred_check_branch
      %46 = sbr.rel (0) target = $region41
    $region40: #{forward.2} parent=1 // pred_region
      _
    $region41: #{forward.2} parent=1 // pred_fallthru
      _
    // Predicated region
    $region42: #{forward.2} parent=1 // pred_check
      _
    $region43: #{forward.2} parent=1 // pred_check_branch
      %48 = sbr.rel (0) target = $region45
    $region44: #{forward.2} parent=1 // pred_region
      _
    $region45: #{forward.2} parent=1 // pred_fallthru
      _
    // Predicated region
    $region46: #{forward.2} parent=1 // pred_check
      _
    $region47: #{forward.2} parent=1 // pred_check_branch
      %50 = sbr.rel (0) target = $region49
    $region48: #{forward.2} parent=1 // pred_region
      _
    $region49: #{forward.2} parent=1 // pred_fallthru
      _
    // Predicated region
    $region50: #{forward.2} parent=1 // pred_check
      _
    $region51: #{forward.2} parent=1 // pred_check_branch
      %52 = sbr.rel (0) target = $region53
    $region52: #{forward.2} parent=1 // pred_region
      _
    $region53: #{forward.2} parent=1 // pred_fallthru
      _
    // Predicated region
    $region54: #{forward.2} parent=1 // pred_check
      _
    $region55: #{forward.2} parent=1 // pred_check_branch
      %54 = sbr.rel (0) target = $region57
    $region56: #{forward.2} parent=1 // pred_region
      _
    $region57: #{forward.2} parent=1 // pred_fallthru
      _
    // Predicated region
    $region58: #{forward.2} parent=1 // pred_check
      _
    $region59: #{forward.2} parent=1 // pred_check_branch
      %56 = sbr.rel (0) target = $region61
    $region60: #{forward.2} parent=1 // pred_region
      _
    $region61: #{forward.2} parent=1 // pred_fallthru
      _
    // Predicated region
    $region62: #{forward.2} parent=1 // pred_check
      _
    $region63: #{forward.2} parent=1 // pred_check_branch
      %58 = sbr.rel (0) target = $region65
    $region64: #{forward.2} parent=1 // pred_region
      _
    $region65: #{forward.2} parent=1 // pred_fallthru
      _
    // Predicated region
    $region66: #{forward.2} parent=1 // pred_check
      _
    $region67: #{forward.2} parent=1 // pred_check_branch
      %60 = sbr.rel (0) target = $region69
    $region68: #{forward.2} parent=1 // pred_region
      _
    $region69: #{forward.2} parent=1 // pred_fallthru
      _
    // Predicated region
    $region70: #{forward.2} parent=1 // pred_check
      _
    $region71: #{forward.2} parent=1 // pred_check_branch
      %62 = sbr.rel (0) target = $region73
    $region72: #{forward.2} parent=1 // pred_region
      _
    $region73: #{forward.2} parent=1 // pred_fallthru
      _
    // Predicated region
    $region74: #{forward.2} parent=1 // pred_check
      _
    $region75: #{forward.2} parent=1 // pred_check_branch
      %64 = sbr.rel (0) target = $region77
    $region76: #{forward.2} parent=1 // pred_region
      _
    $region77: #{forward.2} parent=1 // pred_fallthru
      _
    %vm66 = vcmask 261120
    %67 = vst.msk [vmem:[#allocation2] sm:$0xff] %vm66, 0.0
    %vm68 = vcmask 254976
    %69 = vst.msk [vmem:[#allocation2 + $0x8] sm:$0x3] %vm68, 0.0
    %70 = vst.msk [vmem:[#allocation2 + $0x10] sm:$0xff] %vm66, 0.0
    %71 = vst.msk [vmem:[#allocation2 + $0x18] sm:$0x3] %vm68, 0.0
    %72 = vst.msk [vmem:[#allocation2 + $0x20] sm:$0xff] %vm66, 0.0
    %73 = vst.msk [vmem:[#allocation2 + $0x28] sm:$0x3] %vm68, 0.0
    %74 = vst.msk [vmem:[#allocation2 + $0x30] sm:$0xff] %vm66, 0.0
    %75 = vst.msk [vmem:[#allocation2 + $0x38] sm:$0x3] %vm68, 0.0
    %76 = vst.msk [vmem:[#allocation2 + $0x40] sm:$0xff] %vm66, 0.0
    %77 = vst.msk [vmem:[#allocation2 + $0x48] sm:$0x3] %vm68, 0.0
    %78 = vst.msk [vmem:[#allocation2 + $0x50] sm:$0xff] %vm66, 0.0
    %79 = vst.msk [vmem:[#allocation2 + $0x58] sm:$0x3] %vm68, 0.0
    %80 = vst.msk [vmem:[#allocation2 + $0x60] sm:$0xff] %vm66, 0.0
    %81 = vst.msk [vmem:[#allocation2 + $0x68] sm:$0x3] %vm68, 0.0
    %82 = vst.msk [vmem:[#allocation2 + $0x70] sm:$0xff] %vm66, 0.0
    %83 = vst.msk [vmem:[#allocation2 + $0x78] sm:$0x3] %vm68, 0.0
    %84 = vst.msk [vmem:[#allocation2 + $0x80] sm:$0xff] %vm66, 0.0
    %85 = vst.msk [vmem:[#allocation2 + $0x88] sm:$0x3] %vm68, 0.0
    %86 = vst.msk [vmem:[#allocation2 + $0x90] sm:$0xff] %vm66, 0.0
    %87 = vst.msk [vmem:[#allocation2 + $0x98] sm:$0x3] %vm68, 0.0
    %88 = vst.msk [vmem:[#allocation2 + $0xa0] sm:$0xff] %vm66, 0.0
    %89 = vst.msk [vmem:[#allocation2 + $0xa8] sm:$0x3] %vm68, 0.0
    %90 = vst.msk [vmem:[#allocation2 + $0xb0] sm:$0xff] %vm66, 0.0
    %91 = vst.msk [vmem:[#allocation2 + $0xb8] sm:$0x3] %vm68, 0.0
    %92 = vst.msk [vmem:[#allocation2 + $0xc0] sm:$0xff] %vm66, 0.0
    %93 = vst.msk [vmem:[#allocation2 + $0xc8] sm:$0x3] %vm68, 0.0
    %94 = vst.msk [vmem:[#allocation2 + $0xd0] sm:$0xff] %vm66, 0.0
    %95 = vst.msk [vmem:[#allocation2 + $0xd8] sm:$0x3] %vm68, 0.0
    %96 = vst.msk [vmem:[#allocation2 + $0xe0] sm:$0xff] %vm66, 0.0
    %97 = vst.msk [vmem:[#allocation2 + $0xe8] sm:$0x3] %vm68, 0.0
    %98 = vst.msk [vmem:[#allocation2 + $0xf0] sm:$0xff] %vm66, 0.0
    %99 = vst.msk [vmem:[#allocation2 + $0xf8] sm:$0x3] %vm68, 0.0
    %100 = vst.msk [vmem:[#allocation2 + $0x100] sm:$0xff] %vm66, 0.0
    %101 = vst.msk [vmem:[#allocation2 + $0x108] sm:$0x3] %vm68, 0.0
    %102 = vst.msk [vmem:[#allocation2 + $0x110] sm:$0xff] %vm66, 0.0
    %103 = vst.msk [vmem:[#allocation2 + $0x118] sm:$0x3] %vm68, 0.0
    %104 = vst.msk [vmem:[#allocation2 + $0x120] sm:$0xff] %vm66, 0.0
    %105 = vst.msk [vmem:[#allocation2 + $0x128] sm:$0x3] %vm68, 0.0
    %106 = vst.msk [vmem:[#allocation2 + $0x130] sm:$0xff] %vm66, 0.0
    %107 = vst.msk [vmem:[#allocation2 + $0x138] sm:$0x3] %vm68, 0.0
    %v108 = vld [vmem:[%s0] sm:$0xf]
    %v109 = vld [vmem:[%s0 + $0x4] sm:$0xf]
    %v110 = vld [vmem:[%s0 + $0x8] sm:$0xf]
    %v111 = vld [vmem:[%s0 + $0xc] sm:$0xf]
    %v112 = vld [vmem:[%s0 + $0x10] sm:$0xf]
    %v113 = vld [vmem:[%s0 + $0x14] sm:$0xf]
    %v114 = vld [vmem:[%s0 + $0x18] sm:$0xf]
    %v115 = vld [vmem:[%s0 + $0x1c] sm:$0xf]
    %v116 = vld [vmem:[%s0 + $0x20] sm:$0xf]
    %v117 = vld [vmem:[%s0 + $0x24] sm:$0xf]
    %v118 = vld [vmem:[%s0 + $0x28] sm:$0xf]
    %v119 = vld [vmem:[%s0 + $0x2c] sm:$0xf]
    %v120 = vld [vmem:[%s0 + $0x30] sm:$0xf]
    %v121 = vld [vmem:[%s0 + $0x34] sm:$0xf]
    %v122 = vld [vmem:[%s0 + $0x38] sm:$0xf]
    %v123 = vld [vmem:[%s0 + $0x3c] sm:$0xf]
    %v124 = vld [vmem:[%s1] sm:$0xf]
    %v125 = vld [vmem:[%s1 + $0x4] sm:$0xf]
    %v126 = vld [vmem:[%s1 + $0x8] sm:$0xf]
    %v127 = vld [vmem:[%s1 + $0xc] sm:$0x3]
    %v144 = vunpack.c.l.b16 %v108
    %v145 = vunpack.c.l.b16 %v109
    %v146 = vunpack.c.l.b16 %v110
    %v147 = vunpack.c.l.b16 %v111
    %v148 = vunpack.c.l.b16 %v112
    %v149 = vunpack.c.l.b16 %v113
    %v150 = vunpack.c.l.b16 %v114
    %v151 = vunpack.c.l.b16 %v115
    %v152 = vunpack.c.l.b16 %v116
    %v153 = vunpack.c.l.b16 %v117
    %v154 = vunpack.c.l.b16 %v118
    %v155 = vunpack.c.l.b16 %v119
    %v156 = vunpack.c.l.b16 %v120
    %v157 = vunpack.c.l.b16 %v121
    %v158 = vunpack.c.l.b16 %v122
    %v159 = vunpack.c.l.b16 %v123
    %v160 = vpack.c.b16 %v145, %v144
    %v161 = vpack.c.b16 %v147, %v146
    %v162 = vpack.c.b16 %v149, %v148
    %v163 = vpack.c.b16 %v151, %v150
    %v164 = vpack.c.b16 %v153, %v152
    %v165 = vpack.c.b16 %v155, %v154
    %v166 = vpack.c.b16 %v157, %v156
    %v167 = vpack.c.b16 %v159, %v158
    %v172 = vunpack.c.l.b16 %v124
    %v173 = vunpack.c.l.b16 %v125
    %v174 = vunpack.c.l.b16 %v126
    %v175 = vunpack.c.l.b16 %v127
    %v176 = vpack.c.b16 %v173, %v172
    %v177 = vpack.c.b16 %v175, %v174
    %vm179 = vcmask 220160
    %v181 = vsel %vm179, %v160, 0
    %v184 = vsel %vm179, %v161, 0
    %v187 = vsel %vm179, %v162, 0
    %v190 = vsel %vm179, %v163, 0
    %v193 = vsel %vm179, %v164, 0
    %v196 = vsel %vm179, %v165, 0
    %v199 = vsel %vm179, %v166, 0
    %v202 = vsel %vm179, %v167, 0
    %vm204 = vcmask 1044480
    %vm205 = vcmask 1045504
    %v206 = vsel %vm204, 4294967295, 65535
    %v207 = vsel %vm205, %v206, 0
    %v209 = vand.u32 %v177, %v207
    %211 = vmatprep.subr.bf16.mxu0 0
    %212 = vmatpush1.bf16.msra.mxu0 %v176
    %213 = vmatprep.subr.bf16.mxu0 0
    %214 = vmatpush1.bf16.msra.mxu0 %v209
    %215 = vmatprep.subr.bf16.mxu0 0
    %216 = vmatpush1.bf16.msra.mxu0 0
    %217 = vmatprep.subr.bf16.mxu0 0
    %218 = vmatpush1.bf16.msra.mxu0 0
    %219 = vmatprep.subr.bf16.mxu0 0
    %220 = vmatpush1.bf16.msra.mxu0 0
    %221 = vmatprep.subr.bf16.mxu0 0
    %222 = vmatpush1.bf16.msra.mxu0 0
    %223 = vmatprep.subr.bf16.mxu0 0
    %224 = vmatpush1.bf16.msra.mxu0 0
    %225 = vmatprep.subr.bf16.mxu0 0
    %226 = vmatpush1.bf16.msra.mxu0 0
    %227 = vmatprep.subr.bf16.mxu0 0
    %228 = vmatpush1.bf16.msra.mxu0 0
    %229 = vmatprep.subr.bf16.mxu0 0
    %230 = vmatpush1.bf16.msra.mxu0 0
    %231 = vmatprep.subr.bf16.mxu0 0
    %232 = vmatpush1.bf16.msra.mxu0 0
    %233 = vmatprep.subr.bf16.mxu0 0
    %234 = vmatpush1.bf16.msra.mxu0 0
    %235 = vmatprep.subr.bf16.mxu0 0
    %236 = vmatpush1.bf16.msra.mxu0 0
    %237 = vmatprep.subr.bf16.mxu0 0
    %238 = vmatpush1.bf16.msra.mxu0 0
    %239 = vmatprep.subr.bf16.mxu0 0
    %240 = vmatpush1.bf16.msra.mxu0 0
    %241 = vmatprep.subr.bf16.mxu0 0
    %242 = vmatpush1.bf16.msra.mxu0 0
    %243 = vmatprep.mubr.bf16.mxu0 0
    %244 = vmatmul.mubr.bf16.gmra.mrb[0].mxu0 %v181
    %v245 = vpop.f32.mrb[0].mxu0
    %v246 = vadd.f32 0.0, %v245
    %v247 = vpop.f32.mrb[0].mxu0
    %v248 = vpop.f32.mrb[0].mxu0
    %v249 = vadd.f32 0.0, %v248
    %v250 = vpop.f32.mrb[0].mxu0
    %251 = vmatprep.mubr.bf16.mxu0 0
    %252 = vmatmul.mubr.bf16.gmra.mrb[0].mxu0 %v184
    %v253 = vpop.f32.mrb[0].mxu0
    %v254 = vadd.f32 0.0, %v253
    %v255 = vpop.f32.mrb[0].mxu0
    %v256 = vpop.f32.mrb[0].mxu0
    %v257 = vadd.f32 0.0, %v256
    %v258 = vpop.f32.mrb[0].mxu0
    %259 = vmatprep.mubr.bf16.mxu0 0
    %260 = vmatmul.mubr.bf16.gmra.mrb[0].mxu0 %v187
    %v261 = vpop.f32.mrb[0].mxu0
    %v262 = vadd.f32 0.0, %v261
    %v263 = vpop.f32.mrb[0].mxu0
    %v264 = vpop.f32.mrb[0].mxu0
    %v265 = vadd.f32 0.0, %v264
    %v266 = vpop.f32.mrb[0].mxu0
    %267 = vmatprep.mubr.bf16.mxu0 0
    %268 = vmatmul.mubr.bf16.gmra.mrb[0].mxu0 %v190
    %v269 = vpop.f32.mrb[0].mxu0
    %v270 = vadd.f32 0.0, %v269
    %v271 = vpop.f32.mrb[0].mxu0
    %v272 = vpop.f32.mrb[0].mxu0
    %v273 = vadd.f32 0.0, %v272
    %v274 = vpop.f32.mrb[0].mxu0
    %275 = vmatprep.mubr.bf16.mxu0 0
    %276 = vmatmul.mubr.bf16.gmra.mrb[0].mxu0 %v193
    %v277 = vpop.f32.mrb[0].mxu0
    %v278 = vadd.f32 0.0, %v277
    %v279 = vpop.f32.mrb[0].mxu0
    %v280 = vpop.f32.mrb[0].mxu0
    %v281 = vadd.f32 0.0, %v280
    %v282 = vpop.f32.mrb[0].mxu0
    %283 = vmatprep.mubr.bf16.mxu0 0
    %284 = vmatmul.mubr.bf16.gmra.mrb[0].mxu0 %v196
    %v285 = vpop.f32.mrb[0].mxu0
    %v286 = vadd.f32 0.0, %v285
    %v287 = vpop.f32.mrb[0].mxu0
    %v288 = vpop.f32.mrb[0].mxu0
    %v289 = vadd.f32 0.0, %v288
    %v290 = vpop.f32.mrb[0].mxu0
    %291 = vmatprep.mubr.bf16.mxu0 0
    %292 = vmatmul.mubr.bf16.gmra.mrb[0].mxu0 %v199
    %v293 = vpop.f32.mrb[0].mxu0
    %v294 = vadd.f32 0.0, %v293
    %v295 = vpop.f32.mrb[0].mxu0
    %v296 = vpop.f32.mrb[0].mxu0
    %v297 = vadd.f32 0.0, %v296
    %v298 = vpop.f32.mrb[0].mxu0
    %299 = vmatprep.mubr.bf16.mxu0 0
    %300 = vmatmul.mubr.bf16.gmra.mrb[0].mxu0 %v202
    %v301 = vpop.f32.mrb[0].mxu0
    %v302 = vadd.f32 0.0, %v301
    %v303 = vpop.f32.mrb[0].mxu0
    %v304 = vpop.f32.mrb[0].mxu0
    %v305 = vadd.f32 0.0, %v304
    %v306 = vpop.f32.mrb[0].mxu0
    %307 = vdwg.mxu0
    %v308 = vld [vmem:[%s2] sm:$0x1]
    %v309 = vld [vmem:[%s3] sm:$0x1]
    %v310 = vsel %vm66, %v246, 0.0
    %v311 = vsel %vm66, %v249, 0.0
    %v312 = vadd.f32 %v310, %v311
    %v313 = vsel %vm66, %v254, 0.0
    %v314 = vadd.f32 %v312, %v313
    %v315 = vsel %vm66, %v257, 0.0
    %v316 = vadd.f32 %v314, %v315
    %v317 = vsel %vm66, %v262, 0.0
    %v318 = vadd.f32 %v316, %v317
    %v319 = vsel %vm66, %v265, 0.0
    %v320 = vadd.f32 %v318, %v319
    %v321 = vsel %vm66, %v270, 0.0
    %v322 = vadd.f32 %v320, %v321
    %v323 = vsel %vm66, %v273, 0.0
    %v324 = vadd.f32 %v322, %v323
    %v325 = vsel %vm66, %v278, 0.0
    %v326 = vadd.f32 %v324, %v325
    %v327 = vsel %vm66, %v281, 0.0
    %v328 = vadd.f32 %v326, %v327
    %v329 = vsel %vm66, %v286, 0.0
    %v330 = vadd.f32 %v328, %v329
    %v331 = vsel %vm66, %v289, 0.0
    %v332 = vadd.f32 %v330, %v331
    %v333 = vsel %vm66, %v294, 0.0
    %v334 = vadd.f32 %v332, %v333
    %v335 = vsel %vm66, %v297, 0.0
    %v336 = vadd.f32 %v334, %v335
    %v337 = vsel %vm66, %v302, 0.0
    %v338 = vadd.f32 %v336, %v337
    %v339 = vsel %vm66, %v305, 0.0
    %v340 = vadd.f32 %v338, %v339
    %v341 = vrot.slane %v340, 4
    %v342 = vadd.f32 %v340, %v341
    %v343 = vrot.slane %v342, 2
    %v344 = vadd.f32 %v342, %v343
    %v345 = vrot.slane %v344, 1
    %v346 = vadd.f32 %v344, %v345
    %v347 = vmul.f32 %v246, %v246
    %v348 = vmul.f32 %v249, %v249
    %v349 = vmul.f32 %v254, %v254
    %v350 = vmul.f32 %v257, %v257
    %v351 = vmul.f32 %v262, %v262
    %v352 = vmul.f32 %v265, %v265
    %v353 = vmul.f32 %v270, %v270
    %v354 = vmul.f32 %v273, %v273
    %v355 = vmul.f32 %v278, %v278
    %v356 = vmul.f32 %v281, %v281
    %v357 = vmul.f32 %v286, %v286
    %v358 = vmul.f32 %v289, %v289
    %v359 = vmul.f32 %v294, %v294
    %v360 = vmul.f32 %v297, %v297
    %v361 = vmul.f32 %v302, %v302
    %v362 = vmul.f32 %v305, %v305
    %v363 = vsel %vm66, %v347, 0.0
    %v364 = vsel %vm66, %v348, 0.0
    %v365 = vadd.f32 %v363, %v364
    %v366 = vsel %vm66, %v349, 0.0
    %v367 = vadd.f32 %v365, %v366
    %v368 = vsel %vm66, %v350, 0.0
    %v369 = vadd.f32 %v367, %v368
    %v370 = vsel %vm66, %v351, 0.0
    %v371 = vadd.f32 %v369, %v370
    %v372 = vsel %vm66, %v352, 0.0
    %v373 = vadd.f32 %v371, %v372
    %v374 = vsel %vm66, %v353, 0.0
    %v375 = vadd.f32 %v373, %v374
    %v376 = vsel %vm66, %v354, 0.0
    %v377 = vadd.f32 %v375, %v376
    %v378 = vsel %vm66, %v355, 0.0
    %v379 = vadd.f32 %v377, %v378
    %v380 = vsel %vm66, %v356, 0.0
    %v381 = vadd.f32 %v379, %v380
    %v382 = vsel %vm66, %v357, 0.0
    %v383 = vadd.f32 %v381, %v382
    %v384 = vsel %vm66, %v358, 0.0
    %v385 = vadd.f32 %v383, %v384
    %v386 = vsel %vm66, %v359, 0.0
    %v387 = vadd.f32 %v385, %v386
    %v388 = vsel %vm66, %v360, 0.0
    %v389 = vadd.f32 %v387, %v388
    %v390 = vsel %vm66, %v361, 0.0
    %v391 = vadd.f32 %v389, %v390
    %v392 = vsel %vm66, %v362, 0.0
    %v393 = vadd.f32 %v391, %v392
    %v394 = vrot.slane %v393, 4
    %v395 = vadd.f32 %v393, %v394
    %v396 = vrot.slane %v395, 2
    %v397 = vadd.f32 %v395, %v396
    %v398 = vrot.slane %v397, 1
    %v399 = vadd.f32 %v397, %v398
    %v400 = vmul.f32 %v346, 0.0078125
    %v401 = vmul.f32 %v399, 0.0078125
    %v402 = vmul.f32 %v400, %v400
    %v403 = vsub.f32 %v401, %v402
    %v404 = vmax.f32 %v403, 0.0
    %v405 = vadd.f32 %v404, 1e-05
    %v406 = vrsqrt.pop %v405
    %v407 = vmul.f32 %v308, %v406
    %v409 = vlaneseq
    %v410 = vshrl.u32 %v409, 7
    %v411 = vsub.s32 0, %v410
    %v412 = vrot.slane %v407, %v411
    %v414 = vmul.f32 %v246, %v412
    %v415 = vmul.f32 %v249, %v412
    %v416 = vmul.f32 %v254, %v412
    %v417 = vmul.f32 %v257, %v412
    %v418 = vmul.f32 %v262, %v412
    %v419 = vmul.f32 %v265, %v412
    %v420 = vmul.f32 %v270, %v412
    %v421 = vmul.f32 %v273, %v412
    %v422 = vmul.f32 %v278, %v412
    %v423 = vmul.f32 %v281, %v412
    %v424 = vmul.f32 %v286, %v412
    %v425 = vmul.f32 %v289, %v412
    %v426 = vmul.f32 %v294, %v412
    %v427 = vmul.f32 %v297, %v412
    %v428 = vmul.f32 %v302, %v412
    %v429 = vmul.f32 %v305, %v412
    %v430 = vmul.f32 %v400, %v407
    %v431 = vsub.f32 %v309, %v430
    %v433 = vlaneseq
    %v434 = vshrl.u32 %v433, 7
    %v435 = vsub.s32 0, %v434
    %v436 = vrot.slane %v431, %v435
    %v438 = vadd.f32 %v414, %v436
    %v439 = vadd.f32 %v415, %v436
    %v440 = vadd.f32 %v416, %v436
    %v441 = vadd.f32 %v417, %v436
    %v442 = vadd.f32 %v418, %v436
    %v443 = vadd.f32 %v419, %v436
    %v444 = vadd.f32 %v420, %v436
    %v445 = vadd.f32 %v421, %v436
    %v446 = vadd.f32 %v422, %v436
    %v447 = vadd.f32 %v423, %v436
    %v448 = vadd.f32 %v424, %v436
    %v449 = vadd.f32 %v425, %v436
    %v450 = vadd.f32 %v426, %v436
    %v451 = vadd.f32 %v427, %v436
    %v452 = vadd.f32 %v428, %v436
    %v453 = vadd.f32 %v429, %v436
    %v454 = vmax.f32 %v438, 0.0
    %v455 = vmax.f32 %v439, 0.0
    %v456 = vmax.f32 %v440, 0.0
    %v457 = vmax.f32 %v441, 0.0
    %v458 = vmax.f32 %v442, 0.0
    %v459 = vmax.f32 %v443, 0.0
    %v460 = vmax.f32 %v444, 0.0
    %v461 = vmax.f32 %v445, 0.0
    %v462 = vmax.f32 %v446, 0.0
    %v463 = vmax.f32 %v447, 0.0
    %v464 = vmax.f32 %v448, 0.0
    %v465 = vmax.f32 %v449, 0.0
    %v466 = vmax.f32 %v450, 0.0
    %v467 = vmax.f32 %v451, 0.0
    %v468 = vmax.f32 %v452, 0.0
    %v469 = vmax.f32 %v453, 0.0
    %s470 = scalar_lea.vmem [#allocation2], 16
    %471 = vst.msk [vmem:[%s470 + $0x1] sm:$0xff] %vm66, %v454
    %472 = vst.msk [vmem:[%s470 + $0x11] sm:$0xff] %vm66, %v455
    %473 = vst.msk [vmem:[%s470 + $0x21] sm:$0xff] %vm66, %v456
    %474 = vst.msk [vmem:[%s470 + $0x31] sm:$0xff] %vm66, %v457
    %475 = vst.msk [vmem:[%s470 + $0x41] sm:$0xff] %vm66, %v458
    %476 = vst.msk [vmem:[%s470 + $0x51] sm:$0xff] %vm66, %v459
    %477 = vst.msk [vmem:[%s470 + $0x61] sm:$0xff] %vm66, %v460
    %478 = vst.msk [vmem:[%s470 + $0x71] sm:$0xff] %vm66, %v461
    %479 = vst.msk [vmem:[%s470 + $0xa1] sm:$0xff] %vm66, %v462
    %480 = vst.msk [vmem:[%s470 + $0xb1] sm:$0xff] %vm66, %v463
    %481 = vst.msk [vmem:[%s470 + $0xc1] sm:$0xff] %vm66, %v464
    %482 = vst.msk [vmem:[%s470 + $0xd1] sm:$0xff] %vm66, %v465
    %483 = vst.msk [vmem:[%s470 + $0xe1] sm:$0xff] %vm66, %v466
    %484 = vst.msk [vmem:[%s470 + $0xf1] sm:$0xff] %vm66, %v467
    %485 = vst.msk [vmem:[%s470 + $0x101] sm:$0xff] %vm66, %v468
    %486 = vst.msk [vmem:[%s470 + $0x111] sm:$0xff] %vm66, %v469
    %v487 = vld [vmem:[#allocation2] sm:$0xff]
    %v488 = vld [vmem:[#allocation2 + $0x10] sm:$0xff]
    %v489 = vld [vmem:[#allocation2 + $0x20] sm:$0xff]
    %v490 = vld [vmem:[#allocation2 + $0x30] sm:$0xff]
    %v491 = vld [vmem:[#allocation2 + $0x40] sm:$0xff]
    %v492 = vld [vmem:[#allocation2 + $0x50] sm:$0xff]
    %v493 = vld [vmem:[#allocation2 + $0x60] sm:$0xff]
    %v494 = vld [vmem:[#allocation2 + $0x70] sm:$0xff]
    %v495 = vld [vmem:[#allocation2 + $0xa0] sm:$0xff]
    %v496 = vld [vmem:[#allocation2 + $0xb0] sm:$0xff]
    %v497 = vld [vmem:[#allocation2 + $0xc0] sm:$0xff]
    %v498 = vld [vmem:[#allocation2 + $0xd0] sm:$0xff]
    %v499 = vld [vmem:[#allocation2 + $0xe0] sm:$0xff]
    %v500 = vld [vmem:[#allocation2 + $0xf0] sm:$0xff]
    %v501 = vld [vmem:[#allocation2 + $0x100] sm:$0xff]
    %v502 = vld [vmem:[#allocation2 + $0x110] sm:$0xff]
    %v503 = vpack.c.bf16 %v488, %v487
    %v504 = vpack.c.bf16 %v490, %v489
    %v505 = vpack.c.bf16 %v492, %v491
    %v506 = vpack.c.bf16 %v494, %v493
    %v507 = vpack.c.bf16 %v496, %v495
    %v508 = vpack.c.bf16 %v498, %v497
    %v509 = vpack.c.bf16 %v500, %v499
    %v510 = vpack.c.bf16 %v502, %v501
    %511 = vst.msk [vmem:[#allocation3] sm:$0xff] %vm66, %v503
    %512 = vst.msk [vmem:[#allocation3 + $0x18] sm:$0xff] %vm66, %v504
    %513 = vst.msk [vmem:[#allocation3 + $0x30] sm:$0xff] %vm66, %v505
    %514 = vst.msk [vmem:[#allocation3 + $0x48] sm:$0xff] %vm66, %v506
    %515 = vst.msk [vmem:[#allocation3 + $0x60] sm:$0xff] %vm66, %v507
    %516 = vst.msk [vmem:[#allocation3 + $0x78] sm:$0xff] %vm66, %v508
    %517 = vst.msk [vmem:[#allocation3 + $0x90] sm:$0xff] %vm66, %v509
    %518 = vst.msk [vmem:[#allocation3 + $0xa8] sm:$0xff] %vm66, %v510
    %v519 = vld [vmem:[#allocation2 + $0x1] sm:$0xff]
    %v520 = vld [vmem:[#allocation2 + $0x11] sm:$0xff]
    %v521 = vld [vmem:[#allocation2 + $0x21] sm:$0xff]
    %v522 = vld [vmem:[#allocation2 + $0x31] sm:$0xff]
    %v523 = vld [vmem:[#allocation2 + $0x41] sm:$0xff]
    %v524 = vld [vmem:[#allocation2 + $0x51] sm:$0xff]
    %v525 = vld [vmem:[#allocation2 + $0x61] sm:$0xff]
    %v526 = vld [vmem:[#allocation2 + $0x71] sm:$0xff]
    %v527 = vld [vmem:[#allocation2 + $0xa1] sm:$0xff]
    %v528 = vld [vmem:[#allocation2 + $0xb1] sm:$0xff]
    %v529 = vld [vmem:[#allocation2 + $0xc1] sm:$0xff]
    %v530 = vld [vmem:[#allocation2 + $0xd1] sm:$0xff]
    %v531 = vld [vmem:[#allocation2 + $0xe1] sm:$0xff]
    %v532 = vld [vmem:[#allocation2 + $0xf1] sm:$0xff]
    %v533 = vld [vmem:[#allocation2 + $0x101] sm:$0xff]
    %v534 = vld [vmem:[#allocation2 + $0x111] sm:$0xff]
    %v535 = vpack.c.bf16 %v520, %v519
    %v536 = vpack.c.bf16 %v522, %v521
    %v537 = vpack.c.bf16 %v524, %v523
    %v538 = vpack.c.bf16 %v526, %v525
    %v539 = vpack.c.bf16 %v528, %v527
    %v540 = vpack.c.bf16 %v530, %v529
    %v541 = vpack.c.bf16 %v532, %v531
    %v542 = vpack.c.bf16 %v534, %v533
    %551 = vrot.lane.b32.xlu0 %v535, 32
    %v552 = vpop.permute.xlu0 %551
    %553 = vrot.lane.b32.xlu0 %v536, 32
    %v554 = vpop.permute.xlu0 %553
    %555 = vrot.lane.b32.xlu0 %v537, 32
    %v556 = vpop.permute.xlu0 %555
    %557 = vrot.lane.b32.xlu0 %v538, 32
    %v558 = vpop.permute.xlu0 %557
    %559 = vrot.lane.b32.xlu0 %v539, 32
    %v560 = vpop.permute.xlu0 %559
    %561 = vrot.lane.b32.xlu0 %v540, 32
    %v562 = vpop.permute.xlu0 %561
    %563 = vrot.lane.b32.xlu0 %v541, 32
    %v564 = vpop.permute.xlu0 %563
    %565 = vrot.lane.b32.xlu0 %v542, 32
    %v566 = vpop.permute.xlu0 %565
    %vm575 = vcmask 523520
    %576 = vst.msk [vmem:[#allocation3] sm:$0xff] %vm575, %v552
    %577 = vst.msk [vmem:[#allocation3 + $0x18] sm:$0xff] %vm575, %v554
    %578 = vst.msk [vmem:[#allocation3 + $0x30] sm:$0xff] %vm575, %v556
    %579 = vst.msk [vmem:[#allocation3 + $0x48] sm:$0xff] %vm575, %v558
    %580 = vst.msk [vmem:[#allocation3 + $0x60] sm:$0xff] %vm575, %v560
    %581 = vst.msk [vmem:[#allocation3 + $0x78] sm:$0xff] %vm575, %v562
    %582 = vst.msk [vmem:[#allocation3 + $0x90] sm:$0xff] %vm575, %v564
    %583 = vst.msk [vmem:[#allocation3 + $0xa8] sm:$0xff] %vm575, %v566
    %v584 = vld [vmem:[#allocation2 + $0x2] sm:$0xff]
    %v585 = vld [vmem:[#allocation2 + $0x12] sm:$0xff]
    %v586 = vld [vmem:[#allocation2 + $0x22] sm:$0xff]
    %v587 = vld [vmem:[#allocation2 + $0x32] sm:$0xff]
    %v588 = vld [vmem:[#allocation2 + $0x42] sm:$0xff]
    %v589 = vld [vmem:[#allocation2 + $0x52] sm:$0xff]
    %v590 = vld [vmem:[#allocation2 + $0x62] sm:$0xff]
    %v591 = vld [vmem:[#allocation2 + $0x72] sm:$0xff]
    %v592 = vld [vmem:[#allocation2 + $0xa2] sm:$0xff]
    %v593 = vld [vmem:[#allocation2 + $0xb2] sm:$0xff]
    %v594 = vld [vmem:[#allocation2 + $0xc2] sm:$0xff]
    %v595 = vld [vmem:[#allocation2 + $0xd2] sm:$0xff]
    %v596 = vld [vmem:[#allocation2 + $0xe2] sm:$0xff]
    %v597 = vld [vmem:[#allocation2 + $0xf2] sm:$0xff]
    %v598 = vld [vmem:[#allocation2 + $0x102] sm:$0xff]
    %v599 = vld [vmem:[#allocation2 + $0x112] sm:$0xff]
    %v600 = vpack.c.bf16 %v585, %v584
    %v601 = vpack.c.bf16 %v587, %v586
    %v602 = vpack.c.bf16 %v589, %v588
    %v603 = vpack.c.bf16 %v591, %v590
    %v604 = vpack.c.bf16 %v593, %v592
    %v605 = vpack.c.bf16 %v595, %v594
    %v606 = vpack.c.bf16 %v597, %v596
    %v607 = vpack.c.bf16 %v599, %v598
    %616 = vrot.lane.b32.xlu0 %v600, 64
    %v617 = vpop.permute.xlu0 %616
    %618 = vrot.lane.b32.xlu0 %v601, 64
    %v619 = vpop.permute.xlu0 %618
    %620 = vrot.lane.b32.xlu0 %v602, 64
    %v621 = vpop.permute.xlu0 %620
    %622 = vrot.lane.b32.xlu0 %v603, 64
    %v623 = vpop.permute.xlu0 %622
    %624 = vrot.lane.b32.xlu0 %v604, 64
    %v625 = vpop.permute.xlu0 %624
    %626 = vrot.lane.b32.xlu0 %v605, 64
    %v627 = vpop.permute.xlu0 %626
    %628 = vrot.lane.b32.xlu0 %v606, 64
    %v629 = vpop.permute.xlu0 %628
    %630 = vrot.lane.b32.xlu0 %v607, 64
    %v631 = vpop.permute.xlu0 %630
    %vm640 = vcmask 785920
    %641 = vst.msk [vmem:[#allocation3] sm:$0xff] %vm640, %v617
    %642 = vst.msk [vmem:[#allocation3 + $0x18] sm:$0xff] %vm640, %v619
    %643 = vst.msk [vmem:[#allocation3 + $0x30] sm:$0xff] %vm640, %v621
    %644 = vst.msk [vmem:[#allocation3 + $0x48] sm:$0xff] %vm640, %v623
    %645 = vst.msk [vmem:[#allocation3 + $0x60] sm:$0xff] %vm640, %v625
    %646 = vst.msk [vmem:[#allocation3 + $0x78] sm:$0xff] %vm640, %v627
    %647 = vst.msk [vmem:[#allocation3 + $0x90] sm:$0xff] %vm640, %v629
    %648 = vst.msk [vmem:[#allocation3 + $0xa8] sm:$0xff] %vm640, %v631
    %v649 = vld [vmem:[%s470] sm:$0xff]
    %v650 = vld [vmem:[%s470 + $0x10] sm:$0xff]
    %v651 = vld [vmem:[%s470 + $0x20] sm:$0xff]
    %v652 = vld [vmem:[%s470 + $0x30] sm:$0xff]
    %v653 = vld [vmem:[%s470 + $0x40] sm:$0xff]
    %v654 = vld [vmem:[%s470 + $0x50] sm:$0xff]
    %v655 = vld [vmem:[%s470 + $0x60] sm:$0xff]
    %v656 = vld [vmem:[%s470 + $0x70] sm:$0xff]
    %v657 = vld [vmem:[%s470 + $0xa0] sm:$0xff]
    %v658 = vld [vmem:[%s470 + $0xb0] sm:$0xff]
    %v659 = vld [vmem:[%s470 + $0xc0] sm:$0xff]
    %v660 = vld [vmem:[%s470 + $0xd0] sm:$0xff]
    %v661 = vld [vmem:[%s470 + $0xe0] sm:$0xff]
    %v662 = vld [vmem:[%s470 + $0xf0] sm:$0xff]
    %v663 = vld [vmem:[%s470 + $0x100] sm:$0xff]
    %v664 = vld [vmem:[%s470 + $0x110] sm:$0xff]
    %v665 = vpack.c.bf16 %v650, %v649
    %v666 = vpack.c.bf16 %v652, %v651
    %v667 = vpack.c.bf16 %v654, %v653
    %v668 = vpack.c.bf16 %v656, %v655
    %v669 = vpack.c.bf16 %v658, %v657
    %v670 = vpack.c.bf16 %v660, %v659
    %v671 = vpack.c.bf16 %v662, %v661
    %v672 = vpack.c.bf16 %v664, %v663
    %681 = vrot.lane.b32.xlu0 %v665, 96
    %v682 = vpop.permute.xlu0 %681
    %683 = vrot.lane.b32.xlu0 %v666, 96
    %v684 = vpop.permute.xlu0 %683
    %685 = vrot.lane.b32.xlu0 %v667, 96
    %v686 = vpop.permute.xlu0 %685
    %687 = vrot.lane.b32.xlu0 %v668, 96
    %v688 = vpop.permute.xlu0 %687
    %689 = vrot.lane.b32.xlu0 %v669, 96
    %v690 = vpop.permute.xlu0 %689
    %691 = vrot.lane.b32.xlu0 %v670, 96
    %v692 = vpop.permute.xlu0 %691
    %693 = vrot.lane.b32.xlu0 %v671, 96
    %v694 = vpop.permute.xlu0 %693
    %695 = vrot.lane.b32.xlu0 %v672, 96
    %v696 = vpop.permute.xlu0 %695
    %vm705 = vcmask 1048320
    %706 = vst.msk [vmem:[#allocation3] sm:$0xff] %vm705, %v682
    %707 = vst.msk [vmem:[#allocation3 + $0x18] sm:$0xff] %vm705, %v684
    %708 = vst.msk [vmem:[#allocation3 + $0x30] sm:$0xff] %vm705, %v686
    %709 = vst.msk [vmem:[#allocation3 + $0x48] sm:$0xff] %vm705, %v688
    %710 = vst.msk [vmem:[#allocation3 + $0x60] sm:$0xff] %vm705, %v690
    %711 = vst.msk [vmem:[#allocation3 + $0x78] sm:$0xff] %vm705, %v692
    %712 = vst.msk [vmem:[#allocation3 + $0x90] sm:$0xff] %vm705, %v694
    %713 = vst.msk [vmem:[#allocation3 + $0xa8] sm:$0xff] %vm705, %v696
    %v714 = vld [vmem:[%s470 + $0x1] sm:$0xff]
    %v715 = vld [vmem:[%s470 + $0x11] sm:$0xff]
    %v716 = vld [vmem:[%s470 + $0x21] sm:$0xff]
    %v717 = vld [vmem:[%s470 + $0x31] sm:$0xff]
    %v718 = vld [vmem:[%s470 + $0x41] sm:$0xff]
    %v719 = vld [vmem:[%s470 + $0x51] sm:$0xff]
    %v720 = vld [vmem:[%s470 + $0x61] sm:$0xff]
    %v721 = vld [vmem:[%s470 + $0x71] sm:$0xff]
    %v722 = vld [vmem:[%s470 + $0xa1] sm:$0xff]
    %v723 = vld [vmem:[%s470 + $0xb1] sm:$0xff]
    %v724 = vld [vmem:[%s470 + $0xc1] sm:$0xff]
    %v725 = vld [vmem:[%s470 + $0xd1] sm:$0xff]
    %v726 = vld [vmem:[%s470 + $0xe1] sm:$0xff]
    %v727 = vld [vmem:[%s470 + $0xf1] sm:$0xff]
    %v728 = vld [vmem:[%s470 + $0x101] sm:$0xff]
    %v729 = vld [vmem:[%s470 + $0x111] sm:$0xff]
    %v730 = vpack.c.bf16 %v715, %v714
    %v731 = vpack.c.bf16 %v717, %v716
    %v732 = vpack.c.bf16 %v719, %v718
    %v733 = vpack.c.bf16 %v721, %v720
    %v734 = vpack.c.bf16 %v723, %v722
    %v735 = vpack.c.bf16 %v725, %v724
    %v736 = vpack.c.bf16 %v727, %v726
    %v737 = vpack.c.bf16 %v729, %v728
    %738 = vst.msk [vmem:[#allocation3 + $0x8] sm:$0xff] %vm66, %v730
    %739 = vst.msk [vmem:[#allocation3 + $0x20] sm:$0xff] %vm66, %v731
    %740 = vst.msk [vmem:[#allocation3 + $0x38] sm:$0xff] %vm66, %v732
    %741 = vst.msk [vmem:[#allocation3 + $0x50] sm:$0xff] %vm66, %v733
    %742 = vst.msk [vmem:[#allocation3 + $0x68] sm:$0xff] %vm66, %v734
    %743 = vst.msk [vmem:[#allocation3 + $0x80] sm:$0xff] %vm66, %v735
    %744 = vst.msk [vmem:[#allocation3 + $0x98] sm:$0xff] %vm66, %v736
    %745 = vst.msk [vmem:[#allocation3 + $0xb0] sm:$0xff] %vm66, %v737
    %v746 = vld [vmem:[%s470 + $0x2] sm:$0xff]
    %v747 = vld [vmem:[%s470 + $0x12] sm:$0xff]
    %v748 = vld [vmem:[%s470 + $0x22] sm:$0xff]
    %v749 = vld [vmem:[%s470 + $0x32] sm:$0xff]
    %v750 = vld [vmem:[%s470 + $0x42] sm:$0xff]
    %v751 = vld [vmem:[%s470 + $0x52] sm:$0xff]
    %v752 = vld [vmem:[%s470 + $0x62] sm:$0xff]
    %v753 = vld [vmem:[%s470 + $0x72] sm:$0xff]
    %v754 = vld [vmem:[%s470 + $0xa2] sm:$0xff]
    %v755 = vld [vmem:[%s470 + $0xb2] sm:$0xff]
    %v756 = vld [vmem:[%s470 + $0xc2] sm:$0xff]
    %v757 = vld [vmem:[%s470 + $0xd2] sm:$0xff]
    %v758 = vld [vmem:[%s470 + $0xe2] sm:$0xff]
    %v759 = vld [vmem:[%s470 + $0xf2] sm:$0xff]
    %v760 = vld [vmem:[%s470 + $0x102] sm:$0xff]
    %v761 = vld [vmem:[%s470 + $0x112] sm:$0xff]
    %v762 = vpack.c.bf16 %v747, %v746
    %v763 = vpack.c.bf16 %v749, %v748
    %v764 = vpack.c.bf16 %v751, %v750
    %v765 = vpack.c.bf16 %v753, %v752
    %v766 = vpack.c.bf16 %v755, %v754
    %v767 = vpack.c.bf16 %v757, %v756
    %v768 = vpack.c.bf16 %v759, %v758
    %v769 = vpack.c.bf16 %v761, %v760
    %778 = vrot.lane.b32.xlu0 %v762, 32
    %v779 = vpop.permute.xlu0 %778
    %780 = vrot.lane.b32.xlu0 %v763, 32
    %v781 = vpop.permute.xlu0 %780
    %782 = vrot.lane.b32.xlu0 %v764, 32
    %v783 = vpop.permute.xlu0 %782
    %784 = vrot.lane.b32.xlu0 %v765, 32
    %v785 = vpop.permute.xlu0 %784
    %786 = vrot.lane.b32.xlu0 %v766, 32
    %v787 = vpop.permute.xlu0 %786
    %788 = vrot.lane.b32.xlu0 %v767, 32
    %v789 = vpop.permute.xlu0 %788
    %790 = vrot.lane.b32.xlu0 %v768, 32
    %v791 = vpop.permute.xlu0 %790
    %792 = vrot.lane.b32.xlu0 %v769, 32
    %v793 = vpop.permute.xlu0 %792
    %802 = vst.msk [vmem:[#allocation3 + $0x8] sm:$0xff] %vm575, %v779
    %803 = vst.msk [vmem:[#allocation3 + $0x20] sm:$0xff] %vm575, %v781
    %804 = vst.msk [vmem:[#allocation3 + $0x38] sm:$0xff] %vm575, %v783
    %805 = vst.msk [vmem:[#allocation3 + $0x50] sm:$0xff] %vm575, %v785
    %806 = vst.msk [vmem:[#allocation3 + $0x68] sm:$0xff] %vm575, %v787
    %807 = vst.msk [vmem:[#allocation3 + $0x80] sm:$0xff] %vm575, %v789
    %808 = vst.msk [vmem:[#allocation3 + $0x98] sm:$0xff] %vm575, %v791
    %809 = vst.msk [vmem:[#allocation3 + $0xb0] sm:$0xff] %vm575, %v793
    %s810 = scalar_lea.vmem [#allocation2], 32
    %v811 = vld [vmem:[%s810] sm:$0xff]
    %v812 = vld [vmem:[%s810 + $0x10] sm:$0xff]
    %v813 = vld [vmem:[%s810 + $0x20] sm:$0xff]
    %v814 = vld [vmem:[%s810 + $0x30] sm:$0xff]
    %v815 = vld [vmem:[%s810 + $0x40] sm:$0xff]
    %v816 = vld [vmem:[%s810 + $0x50] sm:$0xff]
    %v817 = vld [vmem:[%s810 + $0x60] sm:$0xff]
    %v818 = vld [vmem:[%s810 + $0x70] sm:$0xff]
    %v819 = vld [vmem:[%s810 + $0xa0] sm:$0xff]
    %v820 = vld [vmem:[%s810 + $0xb0] sm:$0xff]
    %v821 = vld [vmem:[%s810 + $0xc0] sm:$0xff]
    %v822 = vld [vmem:[%s810 + $0xd0] sm:$0xff]
    %v823 = vld [vmem:[%s810 + $0xe0] sm:$0xff]
    %v824 = vld [vmem:[%s810 + $0xf0] sm:$0xff]
    %v825 = vld [vmem:[%s810 + $0x100] sm:$0xff]
    %v826 = vld [vmem:[%s810 + $0x110] sm:$0xff]
    %v827 = vpack.c.bf16 %v812, %v811
    %v828 = vpack.c.bf16 %v814, %v813
    %v829 = vpack.c.bf16 %v816, %v815
    %v830 = vpack.c.bf16 %v818, %v817
    %v831 = vpack.c.bf16 %v820, %v819
    %v832 = vpack.c.bf16 %v822, %v821
    %v833 = vpack.c.bf16 %v824, %v823
    %v834 = vpack.c.bf16 %v826, %v825
    %843 = vrot.lane.b32.xlu0 %v827, 64
    %v844 = vpop.permute.xlu0 %843
    %845 = vrot.lane.b32.xlu0 %v828, 64
    %v846 = vpop.permute.xlu0 %845
    %847 = vrot.lane.b32.xlu0 %v829, 64
    %v848 = vpop.permute.xlu0 %847
    %849 = vrot.lane.b32.xlu0 %v830, 64
    %v850 = vpop.permute.xlu0 %849
    %851 = vrot.lane.b32.xlu0 %v831, 64
    %v852 = vpop.permute.xlu0 %851
    %853 = vrot.lane.b32.xlu0 %v832, 64
    %v854 = vpop.permute.xlu0 %853
    %855 = vrot.lane.b32.xlu0 %v833, 64
    %v856 = vpop.permute.xlu0 %855
    %857 = vrot.lane.b32.xlu0 %v834, 64
    %v858 = vpop.permute.xlu0 %857
    %867 = vst.msk [vmem:[#allocation3 + $0x8] sm:$0xff] %vm640, %v844
    %868 = vst.msk [vmem:[#allocation3 + $0x20] sm:$0xff] %vm640, %v846
    %869 = vst.msk [vmem:[#allocation3 + $0x38] sm:$0xff] %vm640, %v848
    %870 = vst.msk [vmem:[#allocation3 + $0x50] sm:$0xff] %vm640, %v850
    %871 = vst.msk [vmem:[#allocation3 + $0x68] sm:$0xff] %vm640, %v852
    %872 = vst.msk [vmem:[#allocation3 + $0x80] sm:$0xff] %vm640, %v854
    %873 = vst.msk [vmem:[#allocation3 + $0x98] sm:$0xff] %vm640, %v856
    %874 = vst.msk [vmem:[#allocation3 + $0xb0] sm:$0xff] %vm640, %v858
    %v875 = vld [vmem:[%s810 + $0x1] sm:$0xff]
    %v876 = vld [vmem:[%s810 + $0x11] sm:$0xff]
    %v877 = vld [vmem:[%s810 + $0x21] sm:$0xff]
    %v878 = vld [vmem:[%s810 + $0x31] sm:$0xff]
    %v879 = vld [vmem:[%s810 + $0x41] sm:$0xff]
    %v880 = vld [vmem:[%s810 + $0x51] sm:$0xff]
    %v881 = vld [vmem:[%s810 + $0x61] sm:$0xff]
    %v882 = vld [vmem:[%s810 + $0x71] sm:$0xff]
    %v883 = vld [vmem:[%s810 + $0xa1] sm:$0xff]
    %v884 = vld [vmem:[%s810 + $0xb1] sm:$0xff]
    %v885 = vld [vmem:[%s810 + $0xc1] sm:$0xff]
    %v886 = vld [vmem:[%s810 + $0xd1] sm:$0xff]
    %v887 = vld [vmem:[%s810 + $0xe1] sm:$0xff]
    %v888 = vld [vmem:[%s810 + $0xf1] sm:$0xff]
    %v889 = vld [vmem:[%s810 + $0x101] sm:$0xff]
    %v890 = vld [vmem:[%s810 + $0x111] sm:$0xff]
    %v891 = vpack.c.bf16 %v876, %v875
    %v892 = vpack.c.bf16 %v878, %v877
    %v893 = vpack.c.bf16 %v880, %v879
    %v894 = vpack.c.bf16 %v882, %v881
    %v895 = vpack.c.bf16 %v884, %v883
    %v896 = vpack.c.bf16 %v886, %v885
    %v897 = vpack.c.bf16 %v888, %v887
    %v898 = vpack.c.bf16 %v890, %v889
    %907 = vrot.lane.b32.xlu0 %v891, 96
    %v908 = vpop.permute.xlu0 %907
    %909 = vrot.lane.b32.xlu0 %v892, 96
    %v910 = vpop.permute.xlu0 %909
    %911 = vrot.lane.b32.xlu0 %v893, 96
    %v912 = vpop.permute.xlu0 %911
    %913 = vrot.lane.b32.xlu0 %v894, 96
    %v914 = vpop.permute.xlu0 %913
    %915 = vrot.lane.b32.xlu0 %v895, 96
    %v916 = vpop.permute.xlu0 %915
    %917 = vrot.lane.b32.xlu0 %v896, 96
    %v918 = vpop.permute.xlu0 %917
    %919 = vrot.lane.b32.xlu0 %v897, 96
    %v920 = vpop.permute.xlu0 %919
    %921 = vrot.lane.b32.xlu0 %v898, 96
    %v922 = vpop.permute.xlu0 %921
    %931 = vst.msk [vmem:[#allocation3 + $0x8] sm:$0xff] %vm705, %v908
    %932 = vst.msk [vmem:[#allocation3 + $0x20] sm:$0xff] %vm705, %v910
    %933 = vst.msk [vmem:[#allocation3 + $0x38] sm:$0xff] %vm705, %v912
    %934 = vst.msk [vmem:[#allocation3 + $0x50] sm:$0xff] %vm705, %v914
    %935 = vst.msk [vmem:[#allocation3 + $0x68] sm:$0xff] %vm705, %v916
    %936 = vst.msk [vmem:[#allocation3 + $0x80] sm:$0xff] %vm705, %v918
    %937 = vst.msk [vmem:[#allocation3 + $0x98] sm:$0xff] %vm705, %v920
    %938 = vst.msk [vmem:[#allocation3 + $0xb0] sm:$0xff] %vm705, %v922
    %v939 = vld [vmem:[%s810 + $0x2] sm:$0xff]
    %v940 = vld [vmem:[%s810 + $0x12] sm:$0xff]
    %v941 = vld [vmem:[%s810 + $0x22] sm:$0xff]
    %v942 = vld [vmem:[%s810 + $0x32] sm:$0xff]
    %v943 = vld [vmem:[%s810 + $0x42] sm:$0xff]
    %v944 = vld [vmem:[%s810 + $0x52] sm:$0xff]
    %v945 = vld [vmem:[%s810 + $0x62] sm:$0xff]
    %v946 = vld [vmem:[%s810 + $0x72] sm:$0xff]
    %v947 = vld [vmem:[%s810 + $0xa2] sm:$0xff]
    %v948 = vld [vmem:[%s810 + $0xb2] sm:$0xff]
    %v949 = vld [vmem:[%s810 + $0xc2] sm:$0xff]
    %v950 = vld [vmem:[%s810 + $0xd2] sm:$0xff]
    %v951 = vld [vmem:[%s810 + $0xe2] sm:$0xff]
    %v952 = vld [vmem:[%s810 + $0xf2] sm:$0xff]
    %v953 = vld [vmem:[%s810 + $0x102] sm:$0xff]
    %v954 = vld [vmem:[%s810 + $0x112] sm:$0xff]
    %v955 = vpack.c.bf16 %v940, %v939
    %v956 = vpack.c.bf16 %v942, %v941
    %v957 = vpack.c.bf16 %v944, %v943
    %v958 = vpack.c.bf16 %v946, %v945
    %v959 = vpack.c.bf16 %v948, %v947
    %v960 = vpack.c.bf16 %v950, %v949
    %v961 = vpack.c.bf16 %v952, %v951
    %v962 = vpack.c.bf16 %v954, %v953
    %963 = vst.msk [vmem:[#allocation3 + $0x10] sm:$0xff] %vm66, %v955
    %964 = vst.msk [vmem:[#allocation3 + $0x28] sm:$0xff] %vm66, %v956
    %965 = vst.msk [vmem:[#allocation3 + $0x40] sm:$0xff] %vm66, %v957
    %966 = vst.msk [vmem:[#allocation3 + $0x58] sm:$0xff] %vm66, %v958
    %967 = vst.msk [vmem:[#allocation3 + $0x70] sm:$0xff] %vm66, %v959
    %968 = vst.msk [vmem:[#allocation3 + $0x88] sm:$0xff] %vm66, %v960
    %969 = vst.msk [vmem:[#allocation3 + $0xa0] sm:$0xff] %vm66, %v961
    %970 = vst.msk [vmem:[#allocation3 + $0xb8] sm:$0xff] %vm66, %v962
    %v971 = vld [vmem:[#allocation3] sm:$0xff]
    %v972 = vld [vmem:[#allocation3 + $0x8] sm:$0xff]
    %v973 = vld [vmem:[#allocation3 + $0x10] sm:$0xff]
    %v974 = vld [vmem:[#allocation3 + $0x18] sm:$0xff]
    %v975 = vld [vmem:[#allocation3 + $0x20] sm:$0xff]
    %v976 = vld [vmem:[#allocation3 + $0x28] sm:$0xff]
    %v977 = vld [vmem:[#allocation3 + $0x30] sm:$0xff]
    %v978 = vld [vmem:[#allocation3 + $0x38] sm:$0xff]
    %v979 = vld [vmem:[#allocation3 + $0x40] sm:$0xff]
    %v980 = vld [vmem:[#allocation3 + $0x48] sm:$0xff]
    %v981 = vld [vmem:[#allocation3 + $0x50] sm:$0xff]
    %v982 = vld [vmem:[#allocation3 + $0x58] sm:$0xff]
    %v983 = vld [vmem:[#allocation3 + $0x60] sm:$0xff]
    %v984 = vld [vmem:[#allocation3 + $0x68] sm:$0xff]
    %v985 = vld [vmem:[#allocation3 + $0x70] sm:$0xff]
    %v986 = vld [vmem:[#allocation3 + $0x78] sm:$0xff]
    %v987 = vld [vmem:[#allocation3 + $0x80] sm:$0xff]
    %v988 = vld [vmem:[#allocation3 + $0x88] sm:$0xff]
    %v989 = vld [vmem:[#allocation3 + $0x90] sm:$0xff]
    %v990 = vld [vmem:[#allocation3 + $0x98] sm:$0xff]
    %v991 = vld [vmem:[#allocation3 + $0xa0] sm:$0xff]
    %v992 = vld [vmem:[#allocation3 + $0xa8] sm:$0xff]
    %v993 = vld [vmem:[#allocation3 + $0xb0] sm:$0xff]
    %v994 = vld [vmem:[#allocation3 + $0xb8] sm:$0xff]
    %v995 = vld [vmem:[%s4] sm:$0xf]
    %v996 = vld [vmem:[%s4 + $0x4] sm:$0xf]
    %v997 = vld [vmem:[%s4 + $0x8] sm:$0xf]
    %v998 = vld [vmem:[%s4 + $0xc] sm:$0xf]
    %v999 = vld [vmem:[%s4 + $0x10] sm:$0xf]
    %v1000 = vld [vmem:[%s4 + $0x14] sm:$0xf]
    %v1001 = vld [vmem:[%s4 + $0x18] sm:$0xf]
    %v1002 = vld [vmem:[%s4 + $0x1c] sm:$0xf]
    %v1003 = vld [vmem:[%s4 + $0x20] sm:$0xf]
    %v1004 = vld [vmem:[%s4 + $0x24] sm:$0xf]
    %v1005 = vld [vmem:[%s4 + $0x28] sm:$0xf]
    %v1006 = vld [vmem:[%s4 + $0x2c] sm:$0xf]
    %v1007 = vld [vmem:[%s4 + $0x30] sm:$0xf]
    %v1008 = vld [vmem:[%s4 + $0x34] sm:$0xf]
    %v1009 = vld [vmem:[%s4 + $0x38] sm:$0xf]
    %v1010 = vld [vmem:[%s4 + $0x3c] sm:$0xf]
    %v1011 = vld [vmem:[%s4 + $0x40] sm:$0xf]
    %v1012 = vld [vmem:[%s4 + $0x44] sm:$0xf]
    %v1013 = vld [vmem:[%s4 + $0x48] sm:$0xf]
    %v1014 = vld [vmem:[%s4 + $0x4c] sm:$0xf]
    %v1015 = vld [vmem:[%s4 + $0x50] sm:$0xf]
    %v1016 = vld [vmem:[%s4 + $0x54] sm:$0xf]
    %v1017 = vld [vmem:[%s4 + $0x58] sm:$0xf]
    %v1018 = vld [vmem:[%s4 + $0x5c] sm:$0xf]
    %v1019 = vld [vmem:[%s4 + $0x60] sm:$0xf]
    %v1020 = vld [vmem:[%s4 + $0x64] sm:$0xf]
    %v1021 = vld [vmem:[%s4 + $0x68] sm:$0xf]
    %v1022 = vld [vmem:[%s4 + $0x6c] sm:$0xf]
    %v1023 = vld [vmem:[%s4 + $0x70] sm:$0xf]
    %v1024 = vld [vmem:[%s4 + $0x74] sm:$0xf]
    %v1025 = vld [vmem:[%s4 + $0x78] sm:$0xf]
    %v1026 = vld [vmem:[%s4 + $0x7c] sm:$0xf]
    %v1027 = vld [vmem:[%s4 + $0x80] sm:$0xf]
    %v1028 = vld [vmem:[%s4 + $0x84] sm:$0xf]
    %v1029 = vld [vmem:[%s4 + $0x88] sm:$0xf]
    %v1030 = vld [vmem:[%s4 + $0x8c] sm:$0xf]
    %v1067 = vunpack.c.l.b16 %v995
    %v1068 = vunpack.c.l.b16 %v996
    %v1069 = vunpack.c.l.b16 %v997
    %v1070 = vunpack.c.l.b16 %v998
    %v1071 = vunpack.c.l.b16 %v999
    %v1072 = vunpack.c.l.b16 %v1000
    %v1073 = vunpack.c.l.b16 %v1001
    %v1074 = vunpack.c.l.b16 %v1002
    %v1075 = vunpack.c.l.b16 %v1003
    %v1076 = vunpack.c.l.b16 %v1004
    %v1077 = vunpack.c.l.b16 %v1005
    %v1078 = vunpack.c.l.b16 %v1006
    %v1079 = vunpack.c.l.b16 %v1007
    %v1080 = vunpack.c.l.b16 %v1008
    %v1081 = vunpack.c.l.b16 %v1009
    %v1082 = vunpack.c.l.b16 %v1010
    %v1083 = vunpack.c.l.b16 %v1011
    %v1084 = vunpack.c.l.b16 %v1012
    %v1085 = vunpack.c.l.b16 %v1013
    %v1086 = vunpack.c.l.b16 %v1014
    %v1087 = vunpack.c.l.b16 %v1015
    %v1088 = vunpack.c.l.b16 %v1016
    %v1089 = vunpack.c.l.b16 %v1017
    %v1090 = vunpack.c.l.b16 %v1018
    %v1091 = vunpack.c.l.b16 %v1019
    %v1092 = vunpack.c.l.b16 %v1020
    %v1093 = vunpack.c.l.b16 %v1021
    %v1094 = vunpack.c.l.b16 %v1022
    %v1095 = vunpack.c.l.b16 %v1023
    %v1096 = vunpack.c.l.b16 %v1024
    %v1097 = vunpack.c.l.b16 %v1025
    %v1098 = vunpack.c.l.b16 %v1026
    %v1099 = vunpack.c.l.b16 %v1027
    %v1100 = vunpack.c.l.b16 %v1028
    %v1101 = vunpack.c.l.b16 %v1029
    %v1102 = vunpack.c.l.b16 %v1030
    %v1103 = vpack.c.b16 %v1068, %v1067
    %v1104 = vpack.c.b16 %v1070, %v1069
    %v1105 = vpack.c.b16 %v1072, %v1071
    %v1106 = vpack.c.b16 %v1074, %v1073
    %v1107 = vpack.c.b16 %v1076, %v1075
    %v1108 = vpack.c.b16 %v1078, %v1077
    %v1109 = vpack.c.b16 %v1080, %v1079
    %v1110 = vpack.c.b16 %v1082, %v1081
    %v1111 = vpack.c.b16 %v1084, %v1083
    %v1112 = vpack.c.b16 %v1086, %v1085
    %v1113 = vpack.c.b16 %v1088, %v1087
    %v1114 = vpack.c.b16 %v1090, %v1089
    %v1115 = vpack.c.b16 %v1092, %v1091
    %v1116 = vpack.c.b16 %v1094, %v1093
    %v1117 = vpack.c.b16 %v1096, %v1095
    %v1118 = vpack.c.b16 %v1098, %v1097
    %v1119 = vpack.c.b16 %v1100, %v1099
    %v1120 = vpack.c.b16 %v1102, %v1101
    %v1140 = vsel %vm66, %v973, 0
    %v1143 = vsel %vm66, %v976, 0
    %v1146 = vsel %vm66, %v979, 0
    %v1149 = vsel %vm66, %v982, 0
    %v1152 = vsel %vm66, %v985, 0
    %v1155 = vsel %vm66, %v988, 0
    %v1158 = vsel %vm66, %v991, 0
    %v1161 = vsel %vm66, %v994, 0
    %1163 = vmatprep.subr.bf16.mxu0 0
    %1164 = vmatpush1.bf16.msra.mxu0 %v1103
    %1165 = vmatprep.subr.bf16.mxu0 0
    %1166 = vmatpush1.bf16.msra.mxu0 %v1104
    %1167 = vmatprep.subr.bf16.mxu0 0
    %1168 = vmatpush1.bf16.msra.mxu0 %v1105
    %1169 = vmatprep.subr.bf16.mxu0 0
    %1170 = vmatpush1.bf16.msra.mxu0 %v1106
    %1171 = vmatprep.subr.bf16.mxu0 0
    %1172 = vmatpush1.bf16.msra.mxu0 %v1107
    %1173 = vmatprep.subr.bf16.mxu0 0
    %1174 = vmatpush1.bf16.msra.mxu0 %v1108
    %1175 = vmatprep.subr.bf16.mxu0 0
    %1176 = vmatpush1.bf16.msra.mxu0 %v1109
    %1177 = vmatprep.subr.bf16.mxu0 0
    %1178 = vmatpush1.bf16.msra.mxu0 %v1110
    %1179 = vmatprep.subr.bf16.mxu0 0
    %1180 = vmatpush1.bf16.msra.mxu0 %v1111
    %1181 = vmatprep.subr.bf16.mxu0 0
    %1182 = vmatpush1.bf16.msra.mxu0 %v1112
    %1183 = vmatprep.subr.bf16.mxu0 0
    %1184 = vmatpush1.bf16.msra.mxu0 %v1113
    %1185 = vmatprep.subr.bf16.mxu0 0
    %1186 = vmatpush1.bf16.msra.mxu0 %v1114
    %1187 = vmatprep.subr.bf16.mxu0 0
    %1188 = vmatpush1.bf16.msra.mxu0 %v1115
    %1189 = vmatprep.subr.bf16.mxu0 0
    %1190 = vmatpush1.bf16.msra.mxu0 %v1116
    %1191 = vmatprep.subr.bf16.mxu0 0
    %1192 = vmatpush1.bf16.msra.mxu0 %v1117
    %1193 = vmatprep.subr.bf16.mxu0 0
    %1194 = vmatpush1.bf16.msra.mxu0 %v1118
    %1195 = vmatprep.mubr.bf16.mxu0 %v972
    %1196 = vmatmul.mubr.bf16.gmra.mrb[0].mxu0 %v971
    %v1197 = vpop.f32.mrb[0].mxu0
    %v1198 = vadd.f32 0.0, %v1197
    %v1199 = vpop.f32.mrb[0].mxu0
    %v1200 = vpop.f32.mrb[0].mxu0
    %v1201 = vadd.f32 0.0, %v1200
    %v1202 = vpop.f32.mrb[0].mxu0
    %1203 = vmatprep.mubr.bf16.mxu0 %v975
    %1204 = vmatmul.mubr.bf16.gmra.mrb[0].mxu0 %v974
    %v1205 = vpop.f32.mrb[0].mxu0
    %v1206 = vadd.f32 0.0, %v1205
    %v1207 = vpop.f32.mrb[0].mxu0
    %v1208 = vpop.f32.mrb[0].mxu0
    %v1209 = vadd.f32 0.0, %v1208
    %v1210 = vpop.f32.mrb[0].mxu0
    %1211 = vmatprep.mubr.bf16.mxu0 %v978
    %1212 = vmatmul.mubr.bf16.gmra.mrb[0].mxu0 %v977
    %v1213 = vpop.f32.mrb[0].mxu0
    %v1214 = vadd.f32 0.0, %v1213
    %v1215 = vpop.f32.mrb[0].mxu0
    %v1216 = vpop.f32.mrb[0].mxu0
    %v1217 = vadd.f32 0.0, %v1216
    %v1218 = vpop.f32.mrb[0].mxu0
    %1219 = vmatprep.mubr.bf16.mxu0 %v981
    %1220 = vmatmul.mubr.bf16.gmra.mrb[0].mxu0 %v980
    %v1221 = vpop.f32.mrb[0].mxu0
    %v1222 = vadd.f32 0.0, %v1221
    %v1223 = vpop.f32.mrb[0].mxu0
    %v1224 = vpop.f32.mrb[0].mxu0
    %v1225 = vadd.f32 0.0, %v1224
    %v1226 = vpop.f32.mrb[0].mxu0
    %1227 = vmatprep.mubr.bf16.mxu0 %v984
    %1228 = vmatmul.mubr.bf16.gmra.mrb[0].mxu0 %v983
    %v1229 = vpop.f32.mrb[0].mxu0
    %v1230 = vadd.f32 0.0, %v1229
    %v1231 = vpop.f32.mrb[0].mxu0
    %v1232 = vpop.f32.mrb[0].mxu0
    %v1233 = vadd.f32 0.0, %v1232
    %v1234 = vpop.f32.mrb[0].mxu0
    %1235 = vmatprep.mubr.bf16.mxu0 %v987
    %1236 = vmatmul.mubr.bf16.gmra.mrb[0].mxu0 %v986
    %v1237 = vpop.f32.mrb[0].mxu0
    %v1238 = vadd.f32 0.0, %v1237
    %v1239 = vpop.f32.mrb[0].mxu0
    %v1240 = vpop.f32.mrb[0].mxu0
    %v1241 = vadd.f32 0.0, %v1240
    %v1242 = vpop.f32.mrb[0].mxu0
    %1243 = vmatprep.mubr.bf16.mxu0 %v990
    %1244 = vmatmul.mubr.bf16.gmra.mrb[0].mxu0 %v989
    %v1245 = vpop.f32.mrb[0].mxu0
    %v1246 = vadd.f32 0.0, %v1245
    %v1247 = vpop.f32.mrb[0].mxu0
    %v1248 = vpop.f32.mrb[0].mxu0
    %v1249 = vadd.f32 0.0, %v1248
    %v1250 = vpop.f32.mrb[0].mxu0
    %1251 = vmatprep.mubr.bf16.mxu0 %v993
    %1252 = vmatmul.mubr.bf16.gmra.mrb[0].mxu0 %v992
    %v1253 = vpop.f32.mrb[0].mxu0
    %v1254 = vadd.f32 0.0, %v1253
    %v1255 = vpop.f32.mrb[0].mxu0
    %v1256 = vpop.f32.mrb[0].mxu0
    %v1257 = vadd.f32 0.0, %v1256
    %v1258 = vpop.f32.mrb[0].mxu0
    %1259 = vdwg.mxu0
    %1260 = vmatprep.subr.bf16.mxu0 0
    %1261 = vmatpush1.bf16.msra.mxu0 %v1119
    %1262 = vmatprep.subr.bf16.mxu0 0
    %1263 = vmatpush1.bf16.msra.mxu0 %v1120
    %1264 = vmatprep.subr.bf16.mxu0 0
    %1265 = vmatpush1.bf16.msra.mxu0 0
    %1266 = vmatprep.subr.bf16.mxu0 0
    %1267 = vmatpush1.bf16.msra.mxu0 0
    %1268 = vmatprep.subr.bf16.mxu0 0
    %1269 = vmatpush1.bf16.msra.mxu0 0
    %1270 = vmatprep.subr.bf16.mxu0 0
    %1271 = vmatpush1.bf16.msra.mxu0 0
    %1272 = vmatprep.subr.bf16.mxu0 0
    %1273 = vmatpush1.bf16.msra.mxu0 0
    %1274 = vmatprep.subr.bf16.mxu0 0
    %1275 = vmatpush1.bf16.msra.mxu0 0
    %1276 = vmatprep.subr.bf16.mxu0 0
    %1277 = vmatpush1.bf16.msra.mxu0 0
    %1278 = vmatprep.subr.bf16.mxu0 0
    %1279 = vmatpush1.bf16.msra.mxu0 0
    %1280 = vmatprep.subr.bf16.mxu0 0
    %1281 = vmatpush1.bf16.msra.mxu0 0
    %1282 = vmatprep.subr.bf16.mxu0 0
    %1283 = vmatpush1.bf16.msra.mxu0 0
    %1284 = vmatprep.subr.bf16.mxu0 0
    %1285 = vmatpush1.bf16.msra.mxu0 0
    %1286 = vmatprep.subr.bf16.mxu0 0
    %1287 = vmatpush1.bf16.msra.mxu0 0
    %1288 = vmatprep.subr.bf16.mxu0 0
    %1289 = vmatpush1.bf16.msra.mxu0 0
    %1290 = vmatprep.subr.bf16.mxu0 0
    %1291 = vmatpush1.bf16.msra.mxu0 0
    %1292 = vmatprep.mubr.bf16.mxu0 0
    %1293 = vmatmul.mubr.bf16.gmra.mrb[0].mxu0 %v1140
    %v1294 = vpop.f32.mrb[0].mxu0
    %v1295 = vadd.f32 %v1198, %v1294
    %v1296 = vpop.f32.mrb[0].mxu0
    %v1297 = vpop.f32.mrb[0].mxu0
    %v1298 = vadd.f32 %v1201, %v1297
    %v1299 = vpop.f32.mrb[0].mxu0
    %1300 = vmatprep.mubr.bf16.mxu0 0
    %1301 = vmatmul.mubr.bf16.gmra.mrb[0].mxu0 %v1143
    %v1302 = vpop.f32.mrb[0].mxu0
    %v1303 = vadd.f32 %v1206, %v1302
    %v1304 = vpop.f32.mrb[0].mxu0
    %v1305 = vpop.f32.mrb[0].mxu0
    %v1306 = vadd.f32 %v1209, %v1305
    %v1307 = vpop.f32.mrb[0].mxu0
    %1308 = vmatprep.mubr.bf16.mxu0 0
    %1309 = vmatmul.mubr.bf16.gmra.mrb[0].mxu0 %v1146
    %v1310 = vpop.f32.mrb[0].mxu0
    %v1311 = vadd.f32 %v1214, %v1310
    %v1312 = vpop.f32.mrb[0].mxu0
    %v1313 = vpop.f32.mrb[0].mxu0
    %v1314 = vadd.f32 %v1217, %v1313
    %v1315 = vpop.f32.mrb[0].mxu0
    %1316 = vmatprep.mubr.bf16.mxu0 0
    %1317 = vmatmul.mubr.bf16.gmra.mrb[0].mxu0 %v1149
    %v1318 = vpop.f32.mrb[0].mxu0
    %v1319 = vadd.f32 %v1222, %v1318
    %v1320 = vpop.f32.mrb[0].mxu0
    %v1321 = vpop.f32.mrb[0].mxu0
    %v1322 = vadd.f32 %v1225, %v1321
    %v1323 = vpop.f32.mrb[0].mxu0
    %1324 = vmatprep.mubr.bf16.mxu0 0
    %1325 = vmatmul.mubr.bf16.gmra.mrb[0].mxu0 %v1152
    %v1326 = vpop.f32.mrb[0].mxu0
    %v1327 = vadd.f32 %v1230, %v1326
    %v1328 = vpop.f32.mrb[0].mxu0
    %v1329 = vpop.f32.mrb[0].mxu0
    %v1330 = vadd.f32 %v1233, %v1329
    %v1331 = vpop.f32.mrb[0].mxu0
    %1332 = vmatprep.mubr.bf16.mxu0 0
    %1333 = vmatmul.mubr.bf16.gmra.mrb[0].mxu0 %v1155
    %v1334 = vpop.f32.mrb[0].mxu0
    %v1335 = vadd.f32 %v1238, %v1334
    %v1336 = vpop.f32.mrb[0].mxu0
    %v1337 = vpop.f32.mrb[0].mxu0
    %v1338 = vadd.f32 %v1241, %v1337
    %v1339 = vpop.f32.mrb[0].mxu0
    %1340 = vmatprep.mubr.bf16.mxu0 0
    %1341 = vmatmul.mubr.bf16.gmra.mrb[0].mxu0 %v1158
    %v1342 = vpop.f32.mrb[0].mxu0
    %v1343 = vadd.f32 %v1246, %v1342
    %v1344 = vpop.f32.mrb[0].mxu0
    %v1345 = vpop.f32.mrb[0].mxu0
    %v1346 = vadd.f32 %v1249, %v1345
    %v1347 = vpop.f32.mrb[0].mxu0
    %1348 = vmatprep.mubr.bf16.mxu0 0
    %1349 = vmatmul.mubr.bf16.gmra.mrb[0].mxu0 %v1161
    %v1350 = vpop.f32.mrb[0].mxu0
    %v1351 = vadd.f32 %v1254, %v1350
    %v1352 = vpop.f32.mrb[0].mxu0
    %v1353 = vpop.f32.mrb[0].mxu0
    %v1354 = vadd.f32 %v1257, %v1353
    %v1355 = vpop.f32.mrb[0].mxu0
    %1356 = vdwg.mxu0
    %v1357 = vld [vmem:[%s5] sm:$0x1]
    %v1358 = vld [vmem:[%s6] sm:$0x1]
    %v1359 = vsel %vm66, %v1295, 0.0
    %v1360 = vsel %vm66, %v1298, 0.0
    %v1361 = vadd.f32 %v1359, %v1360
    %v1362 = vsel %vm66, %v1303, 0.0
    %v1363 = vadd.f32 %v1361, %v1362
    %v1364 = vsel %vm66, %v1306, 0.0
    %v1365 = vadd.f32 %v1363, %v1364
    %v1366 = vsel %vm66, %v1311, 0.0
    %v1367 = vadd.f32 %v1365, %v1366
    %v1368 = vsel %vm66, %v1314, 0.0
    %v1369 = vadd.f32 %v1367, %v1368
    %v1370 = vsel %vm66, %v1319, 0.0
    %v1371 = vadd.f32 %v1369, %v1370
    %v1372 = vsel %vm66, %v1322, 0.0
    %v1373 = vadd.f32 %v1371, %v1372
    %v1374 = vsel %vm66, %v1327, 0.0
    %v1375 = vadd.f32 %v1373, %v1374
    %v1376 = vsel %vm66, %v1330, 0.0
    %v1377 = vadd.f32 %v1375, %v1376
    %v1378 = vsel %vm66, %v1335, 0.0
    %v1379 = vadd.f32 %v1377, %v1378
    %v1380 = vsel %vm66, %v1338, 0.0
    %v1381 = vadd.f32 %v1379, %v1380
    %v1382 = vsel %vm66, %v1343, 0.0
    %v1383 = vadd.f32 %v1381, %v1382
    %v1384 = vsel %vm66, %v1346, 0.0
    %v1385 = vadd.f32 %v1383, %v1384
    %v1386 = vsel %vm66, %v1351, 0.0
    %v1387 = vadd.f32 %v1385, %v1386
    %v1388 = vsel %vm66, %v1354, 0.0
    %v1389 = vadd.f32 %v1387, %v1388
    %v1390 = vrot.slane %v1389, 4
    %v1391 = vadd.f32 %v1389, %v1390
    %v1392 = vrot.slane %v1391, 2
    %v1393 = vadd.f32 %v1391, %v1392
    %v1394 = vrot.slane %v1393, 1
    %v1395 = vadd.f32 %v1393, %v1394
    %v1396 = vmul.f32 %v1295, %v1295
    %v1397 = vmul.f32 %v1298, %v1298
    %v1398 = vmul.f32 %v1303, %v1303
    %v1399 = vmul.f32 %v1306, %v1306
    %v1400 = vmul.f32 %v1311, %v1311
    %v1401 = vmul.f32 %v1314, %v1314
    %v1402 = vmul.f32 %v1319, %v1319
    %v1403 = vmul.f32 %v1322, %v1322
    %v1404 = vmul.f32 %v1327, %v1327
    %v1405 = vmul.f32 %v1330, %v1330
    %v1406 = vmul.f32 %v1335, %v1335
    %v1407 = vmul.f32 %v1338, %v1338
    %v1408 = vmul.f32 %v1343, %v1343
    %v1409 = vmul.f32 %v1346, %v1346
    %v1410 = vmul.f32 %v1351, %v1351
    %v1411 = vmul.f32 %v1354, %v1354
    %v1412 = vsel %vm66, %v1396, 0.0
    %v1413 = vsel %vm66, %v1397, 0.0
    %v1414 = vadd.f32 %v1412, %v1413
    %v1415 = vsel %vm66, %v1398, 0.0
    %v1416 = vadd.f32 %v1414, %v1415
    %v1417 = vsel %vm66, %v1399, 0.0
    %v1418 = vadd.f32 %v1416, %v1417
    %v1419 = vsel %vm66, %v1400, 0.0
    %v1420 = vadd.f32 %v1418, %v1419
    %v1421 = vsel %vm66, %v1401, 0.0
    %v1422 = vadd.f32 %v1420, %v1421
    %v1423 = vsel %vm66, %v1402, 0.0
    %v1424 = vadd.f32 %v1422, %v1423
    %v1425 = vsel %vm66, %v1403, 0.0
    %v1426 = vadd.f32 %v1424, %v1425
    %v1427 = vsel %vm66, %v1404, 0.0
    %v1428 = vadd.f32 %v1426, %v1427
    %v1429 = vsel %vm66, %v1405, 0.0
    %v1430 = vadd.f32 %v1428, %v1429
    %v1431 = vsel %vm66, %v1406, 0.0
    %v1432 = vadd.f32 %v1430, %v1431
    %v1433 = vsel %vm66, %v1407, 0.0
    %v1434 = vadd.f32 %v1432, %v1433
    %v1435 = vsel %vm66, %v1408, 0.0
    %v1436 = vadd.f32 %v1434, %v1435
    %v1437 = vsel %vm66, %v1409, 0.0
    %v1438 = vadd.f32 %v1436, %v1437
    %v1439 = vsel %vm66, %v1410, 0.0
    %v1440 = vadd.f32 %v1438, %v1439
    %v1441 = vsel %vm66, %v1411, 0.0
    %v1442 = vadd.f32 %v1440, %v1441
    %v1443 = vrot.slane %v1442, 4
    %v1444 = vadd.f32 %v1442, %v1443
    %v1445 = vrot.slane %v1444, 2
    %v1446 = vadd.f32 %v1444, %v1445
    %v1447 = vrot.slane %v1446, 1
    %v1448 = vadd.f32 %v1446, %v1447
    %v1449 = vmul.f32 %v1395, 0.0078125
    %v1450 = vmul.f32 %v1448, 0.0078125
    %v1451 = vmul.f32 %v1449, %v1449
    %v1452 = vsub.f32 %v1450, %v1451
    %v1453 = vmax.f32 %v1452, 0.0
    %v1454 = vadd.f32 %v1453, 1e-05
    %v1455 = vrsqrt.pop %v1454
    %v1456 = vmul.f32 %v1357, %v1455
    %v1458 = vlaneseq
    %v1459 = vshrl.u32 %v1458, 7
    %v1460 = vsub.s32 0, %v1459
    %v1461 = vrot.slane %v1456, %v1460
    %v1463 = vmul.f32 %v1295, %v1461
    %v1464 = vmul.f32 %v1298, %v1461
    %v1465 = vmul.f32 %v1303, %v1461
    %v1466 = vmul.f32 %v1306, %v1461
    %v1467 = vmul.f32 %v1311, %v1461
    %v1468 = vmul.f32 %v1314, %v1461
    %v1469 = vmul.f32 %v1319, %v1461
    %v1470 = vmul.f32 %v1322, %v1461
    %v1471 = vmul.f32 %v1327, %v1461
    %v1472 = vmul.f32 %v1330, %v1461
    %v1473 = vmul.f32 %v1335, %v1461
    %v1474 = vmul.f32 %v1338, %v1461
    %v1475 = vmul.f32 %v1343, %v1461
    %v1476 = vmul.f32 %v1346, %v1461
    %v1477 = vmul.f32 %v1351, %v1461
    %v1478 = vmul.f32 %v1354, %v1461
    %v1479 = vmul.f32 %v1449, %v1456
    %v1480 = vsub.f32 %v1358, %v1479
    %v1482 = vlaneseq
    %v1483 = vshrl.u32 %v1482, 7
    %v1484 = vsub.s32 0, %v1483
    %v1485 = vrot.slane %v1480, %v1484
    %v1487 = vadd.f32 %v1463, %v1485
    %v1488 = vadd.f32 %v1464, %v1485
    %v1489 = vadd.f32 %v1465, %v1485
    %v1490 = vadd.f32 %v1466, %v1485
    %v1491 = vadd.f32 %v1467, %v1485
    %v1492 = vadd.f32 %v1468, %v1485
    %v1493 = vadd.f32 %v1469, %v1485
    %v1494 = vadd.f32 %v1470, %v1485
    %v1495 = vadd.f32 %v1471, %v1485
    %v1496 = vadd.f32 %v1472, %v1485
    %v1497 = vadd.f32 %v1473, %v1485
    %v1498 = vadd.f32 %v1474, %v1485
    %v1499 = vadd.f32 %v1475, %v1485
    %v1500 = vadd.f32 %v1476, %v1485
    %v1501 = vadd.f32 %v1477, %v1485
    %v1502 = vadd.f32 %v1478, %v1485
    %v1503 = vmax.f32 %v1487, 0.0
    %v1504 = vmax.f32 %v1488, 0.0
    %v1505 = vmax.f32 %v1489, 0.0
    %v1506 = vmax.f32 %v1490, 0.0
    %v1507 = vmax.f32 %v1491, 0.0
    %v1508 = vmax.f32 %v1492, 0.0
    %v1509 = vmax.f32 %v1493, 0.0
    %v1510 = vmax.f32 %v1494, 0.0
    %v1511 = vmax.f32 %v1495, 0.0
    %v1512 = vmax.f32 %v1496, 0.0
    %v1513 = vmax.f32 %v1497, 0.0
    %v1514 = vmax.f32 %v1498, 0.0
    %v1515 = vmax.f32 %v1499, 0.0
    %v1516 = vmax.f32 %v1500, 0.0
    %v1517 = vmax.f32 %v1501, 0.0
    %v1518 = vmax.f32 %v1502, 0.0
    %1519 = vst.msk [vmem:[%s470 + $0x1] sm:$0xff] %vm66, %v1503
    %1520 = vst.msk [vmem:[%s470 + $0x11] sm:$0xff] %vm66, %v1504
    %1521 = vst.msk [vmem:[%s470 + $0x21] sm:$0xff] %vm66, %v1505
    %1522 = vst.msk [vmem:[%s470 + $0x31] sm:$0xff] %vm66, %v1506
    %1523 = vst.msk [vmem:[%s470 + $0x41] sm:$0xff] %vm66, %v1507
    %1524 = vst.msk [vmem:[%s470 + $0x51] sm:$0xff] %vm66, %v1508
    %1525 = vst.msk [vmem:[%s470 + $0x61] sm:$0xff] %vm66, %v1509
    %1526 = vst.msk [vmem:[%s470 + $0x71] sm:$0xff] %vm66, %v1510
    %1527 = vst.msk [vmem:[%s470 + $0xa1] sm:$0xff] %vm66, %v1511
    %1528 = vst.msk [vmem:[%s470 + $0xb1] sm:$0xff] %vm66, %v1512
    %1529 = vst.msk [vmem:[%s470 + $0xc1] sm:$0xff] %vm66, %v1513
    %1530 = vst.msk [vmem:[%s470 + $0xd1] sm:$0xff] %vm66, %v1514
    %1531 = vst.msk [vmem:[%s470 + $0xe1] sm:$0xff] %vm66, %v1515
    %1532 = vst.msk [vmem:[%s470 + $0xf1] sm:$0xff] %vm66, %v1516
    %1533 = vst.msk [vmem:[%s470 + $0x101] sm:$0xff] %vm66, %v1517
    %1534 = vst.msk [vmem:[%s470 + $0x111] sm:$0xff] %vm66, %v1518
    %v1535 = vld [vmem:[#allocation2] sm:$0xff]
    %v1536 = vld [vmem:[#allocation2 + $0x10] sm:$0xff]
    %v1537 = vld [vmem:[#allocation2 + $0x20] sm:$0xff]
    %v1538 = vld [vmem:[#allocation2 + $0x30] sm:$0xff]
    %v1539 = vld [vmem:[#allocation2 + $0x40] sm:$0xff]
    %v1540 = vld [vmem:[#allocation2 + $0x50] sm:$0xff]
    %v1541 = vld [vmem:[#allocation2 + $0x60] sm:$0xff]
    %v1542 = vld [vmem:[#allocation2 + $0x70] sm:$0xff]
    %v1543 = vld [vmem:[#allocation2 + $0xa0] sm:$0xff]
    %v1544 = vld [vmem:[#allocation2 + $0xb0] sm:$0xff]
    %v1545 = vld [vmem:[#allocation2 + $0xc0] sm:$0xff]
    %v1546 = vld [vmem:[#allocation2 + $0xd0] sm:$0xff]
    %v1547 = vld [vmem:[#allocation2 + $0xe0] sm:$0xff]
    %v1548 = vld [vmem:[#allocation2 + $0xf0] sm:$0xff]
    %v1549 = vld [vmem:[#allocation2 + $0x100] sm:$0xff]
    %v1550 = vld [vmem:[#allocation2 + $0x110] sm:$0xff]
    %v1551 = vpack.c.bf16 %v1536, %v1535
    %v1552 = vpack.c.bf16 %v1538, %v1537
    %v1553 = vpack.c.bf16 %v1540, %v1539
    %v1554 = vpack.c.bf16 %v1542, %v1541
    %v1555 = vpack.c.bf16 %v1544, %v1543
    %v1556 = vpack.c.bf16 %v1546, %v1545
    %v1557 = vpack.c.bf16 %v1548, %v1547
    %v1558 = vpack.c.bf16 %v1550, %v1549
    %1559 = vst.msk [vmem:[#allocation3] sm:$0xff] %vm66, %v1551
    %1560 = vst.msk [vmem:[#allocation3 + $0x18] sm:$0xff] %vm66, %v1552
    %1561 = vst.msk [vmem:[#allocation3 + $0x30] sm:$0xff] %vm66, %v1553
    %1562 = vst.msk [vmem:[#allocation3 + $0x48] sm:$0xff] %vm66, %v1554
    %1563 = vst.msk [vmem:[#allocation3 + $0x60] sm:$0xff] %vm66, %v1555
    %1564 = vst.msk [vmem:[#allocation3 + $0x78] sm:$0xff] %vm66, %v1556
    %1565 = vst.msk [vmem:[#allocation3 + $0x90] sm:$0xff] %vm66, %v1557
    %1566 = vst.msk [vmem:[#allocation3 + $0xa8] sm:$0xff] %vm66, %v1558
    %v1567 = vld [vmem:[#allocation2 + $0x1] sm:$0xff]
    %v1568 = vld [vmem:[#allocation2 + $0x11] sm:$0xff]
    %v1569 = vld [vmem:[#allocation2 + $0x21] sm:$0xff]
    %v1570 = vld [vmem:[#allocation2 + $0x31] sm:$0xff]
    %v1571 = vld [vmem:[#allocation2 + $0x41] sm:$0xff]
    %v1572 = vld [vmem:[#allocation2 + $0x51] sm:$0xff]
    %v1573 = vld [vmem:[#allocation2 + $0x61] sm:$0xff]
    %v1574 = vld [vmem:[#allocation2 + $0x71] sm:$0xff]
    %v1575 = vld [vmem:[#allocation2 + $0xa1] sm:$0xff]
    %v1576 = vld [vmem:[#allocation2 + $0xb1] sm:$0xff]
    %v1577 = vld [vmem:[#allocation2 + $0xc1] sm:$0xff]
    %v1578 = vld [vmem:[#allocation2 + $0xd1] sm:$0xff]
    %v1579 = vld [vmem:[#allocation2 + $0xe1] sm:$0xff]
    %v1580 = vld [vmem:[#allocation2 + $0xf1] sm:$0xff]
    %v1581 = vld [vmem:[#allocation2 + $0x101] sm:$0xff]
    %v1582 = vld [vmem:[#allocation2 + $0x111] sm:$0xff]
    %v1583 = vpack.c.bf16 %v1568, %v1567
    %v1584 = vpack.c.bf16 %v1570, %v1569
    %v1585 = vpack.c.bf16 %v1572, %v1571
    %v1586 = vpack.c.bf16 %v1574, %v1573
    %v1587 = vpack.c.bf16 %v1576, %v1575
    %v1588 = vpack.c.bf16 %v1578, %v1577
    %v1589 = vpack.c.bf16 %v1580, %v1579
    %v1590 = vpack.c.bf16 %v1582, %v1581
    %1599 = vrot.lane.b32.xlu0 %v1583, 32
    %v1600 = vpop.permute.xlu0 %1599
    %1601 = vrot.lane.b32.xlu0 %v1584, 32
    %v1602 = vpop.permute.xlu0 %1601
    %1603 = vrot.lane.b32.xlu0 %v1585, 32
    %v1604 = vpop.permute.xlu0 %1603
    %1605 = vrot.lane.b32.xlu0 %v1586, 32
    %v1606 = vpop.permute.xlu0 %1605
    %1607 = vrot.lane.b32.xlu0 %v1587, 32
    %v1608 = vpop.permute.xlu0 %1607
    %1609 = vrot.lane.b32.xlu0 %v1588, 32
    %v1610 = vpop.permute.xlu0 %1609
    %1611 = vrot.lane.b32.xlu0 %v1589, 32
    %v1612 = vpop.permute.xlu0 %1611
    %1613 = vrot.lane.b32.xlu0 %v1590, 32
    %v1614 = vpop.permute.xlu0 %1613
    %1623 = vst.msk [vmem:[#allocation3] sm:$0xff] %vm575, %v1600
    %1624 = vst.msk [vmem:[#allocation3 + $0x18] sm:$0xff] %vm575, %v1602
    %1625 = vst.msk [vmem:[#allocation3 + $0x30] sm:$0xff] %vm575, %v1604
    %1626 = vst.msk [vmem:[#allocation3 + $0x48] sm:$0xff] %vm575, %v1606
    %1627 = vst.msk [vmem:[#allocation3 + $0x60] sm:$0xff] %vm575, %v1608
    %1628 = vst.msk [vmem:[#allocation3 + $0x78] sm:$0xff] %vm575, %v1610
    %1629 = vst.msk [vmem:[#allocation3 + $0x90] sm:$0xff] %vm575, %v1612
    %1630 = vst.msk [vmem:[#allocation3 + $0xa8] sm:$0xff] %vm575, %v1614
    %v1631 = vld [vmem:[#allocation2 + $0x2] sm:$0xff]
    %v1632 = vld [vmem:[#allocation2 + $0x12] sm:$0xff]
    %v1633 = vld [vmem:[#allocation2 + $0x22] sm:$0xff]
    %v1634 = vld [vmem:[#allocation2 + $0x32] sm:$0xff]
    %v1635 = vld [vmem:[#allocation2 + $0x42] sm:$0xff]
    %v1636 = vld [vmem:[#allocation2 + $0x52] sm:$0xff]
    %v1637 = vld [vmem:[#allocation2 + $0x62] sm:$0xff]
    %v1638 = vld [vmem:[#allocation2 + $0x72] sm:$0xff]
    %v1639 = vld [vmem:[#allocation2 + $0xa2] sm:$0xff]
    %v1640 = vld [vmem:[#allocation2 + $0xb2] sm:$0xff]
    %v1641 = vld [vmem:[#allocation2 + $0xc2] sm:$0xff]
    %v1642 = vld [vmem:[#allocation2 + $0xd2] sm:$0xff]
    %v1643 = vld [vmem:[#allocation2 + $0xe2] sm:$0xff]
    %v1644 = vld [vmem:[#allocation2 + $0xf2] sm:$0xff]
    %v1645 = vld [vmem:[#allocation2 + $0x102] sm:$0xff]
    %v1646 = vld [vmem:[#allocation2 + $0x112] sm:$0xff]
    %v1647 = vpack.c.bf16 %v1632, %v1631
    %v1648 = vpack.c.bf16 %v1634, %v1633
    %v1649 = vpack.c.bf16 %v1636, %v1635
    %v1650 = vpack.c.bf16 %v1638, %v1637
    %v1651 = vpack.c.bf16 %v1640, %v1639
    %v1652 = vpack.c.bf16 %v1642, %v1641
    %v1653 = vpack.c.bf16 %v1644, %v1643
    %v1654 = vpack.c.bf16 %v1646, %v1645
    %1663 = vrot.lane.b32.xlu0 %v1647, 64
    %v1664 = vpop.permute.xlu0 %1663
    %1665 = vrot.lane.b32.xlu0 %v1648, 64
    %v1666 = vpop.permute.xlu0 %1665
    %1667 = vrot.lane.b32.xlu0 %v1649, 64
    %v1668 = vpop.permute.xlu0 %1667
    %1669 = vrot.lane.b32.xlu0 %v1650, 64
    %v1670 = vpop.permute.xlu0 %1669
    %1671 = vrot.lane.b32.xlu0 %v1651, 64
    %v1672 = vpop.permute.xlu0 %1671
    %1673 = vrot.lane.b32.xlu0 %v1652, 64
    %v1674 = vpop.permute.xlu0 %1673
    %1675 = vrot.lane.b32.xlu0 %v1653, 64
    %v1676 = vpop.permute.xlu0 %1675
    %1677 = vrot.lane.b32.xlu0 %v1654, 64
    %v1678 = vpop.permute.xlu0 %1677
    %1687 = vst.msk [vmem:[#allocation3] sm:$0xff] %vm640, %v1664
    %1688 = vst.msk [vmem:[#allocation3 + $0x18] sm:$0xff] %vm640, %v1666
    %1689 = vst.msk [vmem:[#allocation3 + $0x30] sm:$0xff] %vm640, %v1668
    %1690 = vst.msk [vmem:[#allocation3 + $0x48] sm:$0xff] %vm640, %v1670
    %1691 = vst.msk [vmem:[#allocation3 + $0x60] sm:$0xff] %vm640, %v1672
    %1692 = vst.msk [vmem:[#allocation3 + $0x78] sm:$0xff] %vm640, %v1674
    %1693 = vst.msk [vmem:[#allocation3 + $0x90] sm:$0xff] %vm640, %v1676
    %1694 = vst.msk [vmem:[#allocation3 + $0xa8] sm:$0xff] %vm640, %v1678
    %v1695 = vld [vmem:[%s470] sm:$0xff]
    %v1696 = vld [vmem:[%s470 + $0x10] sm:$0xff]
    %v1697 = vld [vmem:[%s470 + $0x20] sm:$0xff]
    %v1698 = vld [vmem:[%s470 + $0x30] sm:$0xff]
    %v1699 = vld [vmem:[%s470 + $0x40] sm:$0xff]
    %v1700 = vld [vmem:[%s470 + $0x50] sm:$0xff]
    %v1701 = vld [vmem:[%s470 + $0x60] sm:$0xff]
    %v1702 = vld [vmem:[%s470 + $0x70] sm:$0xff]
    %v1703 = vld [vmem:[%s470 + $0xa0] sm:$0xff]
    %v1704 = vld [vmem:[%s470 + $0xb0] sm:$0xff]
    %v1705 = vld [vmem:[%s470 + $0xc0] sm:$0xff]
    %v1706 = vld [vmem:[%s470 + $0xd0] sm:$0xff]
    %v1707 = vld [vmem:[%s470 + $0xe0] sm:$0xff]
    %v1708 = vld [vmem:[%s470 + $0xf0] sm:$0xff]
    %v1709 = vld [vmem:[%s470 + $0x100] sm:$0xff]
    %v1710 = vld [vmem:[%s470 + $0x110] sm:$0xff]
    %v1711 = vpack.c.bf16 %v1696, %v1695
    %v1712 = vpack.c.bf16 %v1698, %v1697
    %v1713 = vpack.c.bf16 %v1700, %v1699
    %v1714 = vpack.c.bf16 %v1702, %v1701
    %v1715 = vpack.c.bf16 %v1704, %v1703
    %v1716 = vpack.c.bf16 %v1706, %v1705
    %v1717 = vpack.c.bf16 %v1708, %v1707
    %v1718 = vpack.c.bf16 %v1710, %v1709
    %1727 = vrot.lane.b32.xlu0 %v1711, 96
    %v1728 = vpop.permute.xlu0 %1727
    %1729 = vrot.lane.b32.xlu0 %v1712, 96
    %v1730 = vpop.permute.xlu0 %1729
    %1731 = vrot.lane.b32.xlu0 %v1713, 96
    %v1732 = vpop.permute.xlu0 %1731
    %1733 = vrot.lane.b32.xlu0 %v1714, 96
    %v1734 = vpop.permute.xlu0 %1733
    %1735 = vrot.lane.b32.xlu0 %v1715, 96
    %v1736 = vpop.permute.xlu0 %1735
    %1737 = vrot.lane.b32.xlu0 %v1716, 96
    %v1738 = vpop.permute.xlu0 %1737
    %1739 = vrot.lane.b32.xlu0 %v1717, 96
    %v1740 = vpop.permute.xlu0 %1739
    %1741 = vrot.lane.b32.xlu0 %v1718, 96
    %v1742 = vpop.permute.xlu0 %1741
    %1751 = vst.msk [vmem:[#allocation3] sm:$0xff] %vm705, %v1728
    %1752 = vst.msk [vmem:[#allocation3 + $0x18] sm:$0xff] %vm705, %v1730
    %1753 = vst.msk [vmem:[#allocation3 + $0x30] sm:$0xff] %vm705, %v1732
    %1754 = vst.msk [vmem:[#allocation3 + $0x48] sm:$0xff] %vm705, %v1734
    %1755 = vst.msk [vmem:[#allocation3 + $0x60] sm:$0xff] %vm705, %v1736
    %1756 = vst.msk [vmem:[#allocation3 + $0x78] sm:$0xff] %vm705, %v1738
    %1757 = vst.msk [vmem:[#allocation3 + $0x90] sm:$0xff] %vm705, %v1740
    %1758 = vst.msk [vmem:[#allocation3 + $0xa8] sm:$0xff] %vm705, %v1742
    %v1759 = vld [vmem:[%s470 + $0x1] sm:$0xff]
    %v1760 = vld [vmem:[%s470 + $0x11] sm:$0xff]
    %v1761 = vld [vmem:[%s470 + $0x21] sm:$0xff]
    %v1762 = vld [vmem:[%s470 + $0x31] sm:$0xff]
    %v1763 = vld [vmem:[%s470 + $0x41] sm:$0xff]
    %v1764 = vld [vmem:[%s470 + $0x51] sm:$0xff]
    %v1765 = vld [vmem:[%s470 + $0x61] sm:$0xff]
    %v1766 = vld [vmem:[%s470 + $0x71] sm:$0xff]
    %v1767 = vld [vmem:[%s470 + $0xa1] sm:$0xff]
    %v1768 = vld [vmem:[%s470 + $0xb1] sm:$0xff]
    %v1769 = vld [vmem:[%s470 + $0xc1] sm:$0xff]
    %v1770 = vld [vmem:[%s470 + $0xd1] sm:$0xff]
    %v1771 = vld [vmem:[%s470 + $0xe1] sm:$0xff]
    %v1772 = vld [vmem:[%s470 + $0xf1] sm:$0xff]
    %v1773 = vld [vmem:[%s470 + $0x101] sm:$0xff]
    %v1774 = vld [vmem:[%s470 + $0x111] sm:$0xff]
    %v1775 = vpack.c.bf16 %v1760, %v1759
    %v1776 = vpack.c.bf16 %v1762, %v1761
    %v1777 = vpack.c.bf16 %v1764, %v1763
    %v1778 = vpack.c.bf16 %v1766, %v1765
    %v1779 = vpack.c.bf16 %v1768, %v1767
    %v1780 = vpack.c.bf16 %v1770, %v1769
    %v1781 = vpack.c.bf16 %v1772, %v1771
    %v1782 = vpack.c.bf16 %v1774, %v1773
    %1783 = vst.msk [vmem:[#allocation3 + $0x8] sm:$0xff] %vm66, %v1775
    %1784 = vst.msk [vmem:[#allocation3 + $0x20] sm:$0xff] %vm66, %v1776
    %1785 = vst.msk [vmem:[#allocation3 + $0x38] sm:$0xff] %vm66, %v1777
    %1786 = vst.msk [vmem:[#allocation3 + $0x50] sm:$0xff] %vm66, %v1778
    %1787 = vst.msk [vmem:[#allocation3 + $0x68] sm:$0xff] %vm66, %v1779
    %1788 = vst.msk [vmem:[#allocation3 + $0x80] sm:$0xff] %vm66, %v1780
    %1789 = vst.msk [vmem:[#allocation3 + $0x98] sm:$0xff] %vm66, %v1781
    %1790 = vst.msk [vmem:[#allocation3 + $0xb0] sm:$0xff] %vm66, %v1782
    %v1791 = vld [vmem:[%s470 + $0x2] sm:$0xff]
    %v1792 = vld [vmem:[%s470 + $0x12] sm:$0xff]
    %v1793 = vld [vmem:[%s470 + $0x22] sm:$0xff]
    %v1794 = vld [vmem:[%s470 + $0x32] sm:$0xff]
    %v1795 = vld [vmem:[%s470 + $0x42] sm:$0xff]
    %v1796 = vld [vmem:[%s470 + $0x52] sm:$0xff]
    %v1797 = vld [vmem:[%s470 + $0x62] sm:$0xff]
    %v1798 = vld [vmem:[%s470 + $0x72] sm:$0xff]
    %v1799 = vld [vmem:[%s470 + $0xa2] sm:$0xff]
    %v1800 = vld [vmem:[%s470 + $0xb2] sm:$0xff]
    %v1801 = vld [vmem:[%s470 + $0xc2] sm:$0xff]
    %v1802 = vld [vmem:[%s470 + $0xd2] sm:$0xff]
    %v1803 = vld [vmem:[%s470 + $0xe2] sm:$0xff]
    %v1804 = vld [vmem:[%s470 + $0xf2] sm:$0xff]
    %v1805 = vld [vmem:[%s470 + $0x102] sm:$0xff]
    %v1806 = vld [vmem:[%s470 + $0x112] sm:$0xff]
    %v1807 = vpack.c.bf16 %v1792, %v1791
    %v1808 = vpack.c.bf16 %v1794, %v1793
    %v1809 = vpack.c.bf16 %v1796, %v1795
    %v1810 = vpack.c.bf16 %v1798, %v1797
    %v1811 = vpack.c.bf16 %v1800, %v1799
    %v1812 = vpack.c.bf16 %v1802, %v1801
    %v1813 = vpack.c.bf16 %v1804, %v1803
    %v1814 = vpack.c.bf16 %v1806, %v1805
    %1823 = vrot.lane.b32.xlu0 %v1807, 32
    %v1824 = vpop.permute.xlu0 %1823
    %1825 = vrot.lane.b32.xlu0 %v1808, 32
    %v1826 = vpop.permute.xlu0 %1825
    %1827 = vrot.lane.b32.xlu0 %v1809, 32
    %v1828 = vpop.permute.xlu0 %1827
    %1829 = vrot.lane.b32.xlu0 %v1810, 32
    %v1830 = vpop.permute.xlu0 %1829
    %1831 = vrot.lane.b32.xlu0 %v1811, 32
    %v1832 = vpop.permute.xlu0 %1831
    %1833 = vrot.lane.b32.xlu0 %v1812, 32
    %v1834 = vpop.permute.xlu0 %1833
    %1835 = vrot.lane.b32.xlu0 %v1813, 32
    %v1836 = vpop.permute.xlu0 %1835
    %1837 = vrot.lane.b32.xlu0 %v1814, 32
    %v1838 = vpop.permute.xlu0 %1837
    %1847 = vst.msk [vmem:[#allocation3 + $0x8] sm:$0xff] %vm575, %v1824
    %1848 = vst.msk [vmem:[#allocation3 + $0x20] sm:$0xff] %vm575, %v1826
    %1849 = vst.msk [vmem:[#allocation3 + $0x38] sm:$0xff] %vm575, %v1828
    %1850 = vst.msk [vmem:[#allocation3 + $0x50] sm:$0xff] %vm575, %v1830
    %1851 = vst.msk [vmem:[#allocation3 + $0x68] sm:$0xff] %vm575, %v1832
    %1852 = vst.msk [vmem:[#allocation3 + $0x80] sm:$0xff] %vm575, %v1834
    %1853 = vst.msk [vmem:[#allocation3 + $0x98] sm:$0xff] %vm575, %v1836
    %1854 = vst.msk [vmem:[#allocation3 + $0xb0] sm:$0xff] %vm575, %v1838
    %v1855 = vld [vmem:[%s810] sm:$0xff]
    %v1856 = vld [vmem:[%s810 + $0x10] sm:$0xff]
    %v1857 = vld [vmem:[%s810 + $0x20] sm:$0xff]
    %v1858 = vld [vmem:[%s810 + $0x30] sm:$0xff]
    %v1859 = vld [vmem:[%s810 + $0x40] sm:$0xff]
    %v1860 = vld [vmem:[%s810 + $0x50] sm:$0xff]
    %v1861 = vld [vmem:[%s810 + $0x60] sm:$0xff]
    %v1862 = vld [vmem:[%s810 + $0x70] sm:$0xff]
    %v1863 = vld [vmem:[%s810 + $0xa0] sm:$0xff]
    %v1864 = vld [vmem:[%s810 + $0xb0] sm:$0xff]
    %v1865 = vld [vmem:[%s810 + $0xc0] sm:$0xff]
    %v1866 = vld [vmem:[%s810 + $0xd0] sm:$0xff]
    %v1867 = vld [vmem:[%s810 + $0xe0] sm:$0xff]
    %v1868 = vld [vmem:[%s810 + $0xf0] sm:$0xff]
    %v1869 = vld [vmem:[%s810 + $0x100] sm:$0xff]
    %v1870 = vld [vmem:[%s810 + $0x110] sm:$0xff]
    %v1871 = vpack.c.bf16 %v1856, %v1855
    %v1872 = vpack.c.bf16 %v1858, %v1857
    %v1873 = vpack.c.bf16 %v1860, %v1859
    %v1874 = vpack.c.bf16 %v1862, %v1861
    %v1875 = vpack.c.bf16 %v1864, %v1863
    %v1876 = vpack.c.bf16 %v1866, %v1865
    %v1877 = vpack.c.bf16 %v1868, %v1867
    %v1878 = vpack.c.bf16 %v1870, %v1869
    %1887 = vrot.lane.b32.xlu0 %v1871, 64
    %v1888 = vpop.permute.xlu0 %1887
    %1889 = vrot.lane.b32.xlu0 %v1872, 64
    %v1890 = vpop.permute.xlu0 %1889
    %1891 = vrot.lane.b32.xlu0 %v1873, 64
    %v1892 = vpop.permute.xlu0 %1891
    %1893 = vrot.lane.b32.xlu0 %v1874, 64
    %v1894 = vpop.permute.xlu0 %1893
    %1895 = vrot.lane.b32.xlu0 %v1875, 64
    %v1896 = vpop.permute.xlu0 %1895
    %1897 = vrot.lane.b32.xlu0 %v1876, 64
    %v1898 = vpop.permute.xlu0 %1897
    %1899 = vrot.lane.b32.xlu0 %v1877, 64
    %v1900 = vpop.permute.xlu0 %1899
    %1901 = vrot.lane.b32.xlu0 %v1878, 64
    %v1902 = vpop.permute.xlu0 %1901
    %1911 = vst.msk [vmem:[#allocation3 + $0x8] sm:$0xff] %vm640, %v1888
    %1912 = vst.msk [vmem:[#allocation3 + $0x20] sm:$0xff] %vm640, %v1890
    %1913 = vst.msk [vmem:[#allocation3 + $0x38] sm:$0xff] %vm640, %v1892
    %1914 = vst.msk [vmem:[#allocation3 + $0x50] sm:$0xff] %vm640, %v1894
    %1915 = vst.msk [vmem:[#allocation3 + $0x68] sm:$0xff] %vm640, %v1896
    %1916 = vst.msk [vmem:[#allocation3 + $0x80] sm:$0xff] %vm640, %v1898
    %1917 = vst.msk [vmem:[#allocation3 + $0x98] sm:$0xff] %vm640, %v1900
    %1918 = vst.msk [vmem:[#allocation3 + $0xb0] sm:$0xff] %vm640, %v1902
    %v1919 = vld [vmem:[%s810 + $0x1] sm:$0xff]
    %v1920 = vld [vmem:[%s810 + $0x11] sm:$0xff]
    %v1921 = vld [vmem:[%s810 + $0x21] sm:$0xff]
    %v1922 = vld [vmem:[%s810 + $0x31] sm:$0xff]
    %v1923 = vld [vmem:[%s810 + $0x41] sm:$0xff]
    %v1924 = vld [vmem:[%s810 + $0x51] sm:$0xff]
    %v1925 = vld [vmem:[%s810 + $0x61] sm:$0xff]
    %v1926 = vld [vmem:[%s810 + $0x71] sm:$0xff]
    %v1927 = vld [vmem:[%s810 + $0xa1] sm:$0xff]
    %v1928 = vld [vmem:[%s810 + $0xb1] sm:$0xff]
    %v1929 = vld [vmem:[%s810 + $0xc1] sm:$0xff]
    %v1930 = vld [vmem:[%s810 + $0xd1] sm:$0xff]
    %v1931 = vld [vmem:[%s810 + $0xe1] sm:$0xff]
    %v1932 = vld [vmem:[%s810 + $0xf1] sm:$0xff]
    %v1933 = vld [vmem:[%s810 + $0x101] sm:$0xff]
    %v1934 = vld [vmem:[%s810 + $0x111] sm:$0xff]
    %v1935 = vpack.c.bf16 %v1920, %v1919
    %v1936 = vpack.c.bf16 %v1922, %v1921
    %v1937 = vpack.c.bf16 %v1924, %v1923
    %v1938 = vpack.c.bf16 %v1926, %v1925
    %v1939 = vpack.c.bf16 %v1928, %v1927
    %v1940 = vpack.c.bf16 %v1930, %v1929
    %v1941 = vpack.c.bf16 %v1932, %v1931
    %v1942 = vpack.c.bf16 %v1934, %v1933
    %1951 = vrot.lane.b32.xlu0 %v1935, 96
    %v1952 = vpop.permute.xlu0 %1951
    %1953 = vrot.lane.b32.xlu0 %v1936, 96
    %v1954 = vpop.permute.xlu0 %1953
    %1955 = vrot.lane.b32.xlu0 %v1937, 96
    %v1956 = vpop.permute.xlu0 %1955
    %1957 = vrot.lane.b32.xlu0 %v1938, 96
    %v1958 = vpop.permute.xlu0 %1957
    %1959 = vrot.lane.b32.xlu0 %v1939, 96
    %v1960 = vpop.permute.xlu0 %1959
    %1961 = vrot.lane.b32.xlu0 %v1940, 96
    %v1962 = vpop.permute.xlu0 %1961
    %1963 = vrot.lane.b32.xlu0 %v1941, 96
    %v1964 = vpop.permute.xlu0 %1963
    %1965 = vrot.lane.b32.xlu0 %v1942, 96
    %v1966 = vpop.permute.xlu0 %1965
    %1975 = vst.msk [vmem:[#allocation3 + $0x8] sm:$0xff] %vm705, %v1952
    %1976 = vst.msk [vmem:[#allocation3 + $0x20] sm:$0xff] %vm705, %v1954
    %1977 = vst.msk [vmem:[#allocation3 + $0x38] sm:$0xff] %vm705, %v1956
    %1978 = vst.msk [vmem:[#allocation3 + $0x50] sm:$0xff] %vm705, %v1958
    %1979 = vst.msk [vmem:[#allocation3 + $0x68] sm:$0xff] %vm705, %v1960
    %1980 = vst.msk [vmem:[#allocation3 + $0x80] sm:$0xff] %vm705, %v1962
    %1981 = vst.msk [vmem:[#allocation3 + $0x98] sm:$0xff] %vm705, %v1964
    %1982 = vst.msk [vmem:[#allocation3 + $0xb0] sm:$0xff] %vm705, %v1966
    %v1983 = vld [vmem:[%s810 + $0x2] sm:$0xff]
    %v1984 = vld [vmem:[%s810 + $0x12] sm:$0xff]
    %v1985 = vld [vmem:[%s810 + $0x22] sm:$0xff]
    %v1986 = vld [vmem:[%s810 + $0x32] sm:$0xff]
    %v1987 = vld [vmem:[%s810 + $0x42] sm:$0xff]
    %v1988 = vld [vmem:[%s810 + $0x52] sm:$0xff]
    %v1989 = vld [vmem:[%s810 + $0x62] sm:$0xff]
    %v1990 = vld [vmem:[%s810 + $0x72] sm:$0xff]
    %v1991 = vld [vmem:[%s810 + $0xa2] sm:$0xff]
    %v1992 = vld [vmem:[%s810 + $0xb2] sm:$0xff]
    %v1993 = vld [vmem:[%s810 + $0xc2] sm:$0xff]
    %v1994 = vld [vmem:[%s810 + $0xd2] sm:$0xff]
    %v1995 = vld [vmem:[%s810 + $0xe2] sm:$0xff]
    %v1996 = vld [vmem:[%s810 + $0xf2] sm:$0xff]
    %v1997 = vld [vmem:[%s810 + $0x102] sm:$0xff]
    %v1998 = vld [vmem:[%s810 + $0x112] sm:$0xff]
    %v1999 = vpack.c.bf16 %v1984, %v1983
    %v2000 = vpack.c.bf16 %v1986, %v1985
    %v2001 = vpack.c.bf16 %v1988, %v1987
    %v2002 = vpack.c.bf16 %v1990, %v1989
    %v2003 = vpack.c.bf16 %v1992, %v1991
    %v2004 = vpack.c.bf16 %v1994, %v1993
    %v2005 = vpack.c.bf16 %v1996, %v1995
    %v2006 = vpack.c.bf16 %v1998, %v1997
    %2007 = vst.msk [vmem:[#allocation3 + $0x10] sm:$0xff] %vm66, %v1999
    %2008 = vst.msk [vmem:[#allocation3 + $0x28] sm:$0xff] %vm66, %v2000
    %2009 = vst.msk [vmem:[#allocation3 + $0x40] sm:$0xff] %vm66, %v2001
    %2010 = vst.msk [vmem:[#allocation3 + $0x58] sm:$0xff] %vm66, %v2002
    %2011 = vst.msk [vmem:[#allocation3 + $0x70] sm:$0xff] %vm66, %v2003
    %2012 = vst.msk [vmem:[#allocation3 + $0x88] sm:$0xff] %vm66, %v2004
    %2013 = vst.msk [vmem:[#allocation3 + $0xa0] sm:$0xff] %vm66, %v2005
    %2014 = vst.msk [vmem:[#allocation3 + $0xb8] sm:$0xff] %vm66, %v2006
    %v2015 = vld [vmem:[#allocation3] sm:$0xff]
    %v2016 = vld [vmem:[#allocation3 + $0x8] sm:$0xff]
    %v2017 = vld [vmem:[#allocation3 + $0x10] sm:$0xff]
    %v2018 = vld [vmem:[#allocation3 + $0x18] sm:$0xff]
    %v2019 = vld [vmem:[#allocation3 + $0x20] sm:$0xff]
    %v2020 = vld [vmem:[#allocation3 + $0x28] sm:$0xff]
    %v2021 = vld [vmem:[#allocation3 + $0x30] sm:$0xff]
    %v2022 = vld [vmem:[#allocation3 + $0x38] sm:$0xff]
    %v2023 = vld [vmem:[#allocation3 + $0x40] sm:$0xff]
    %v2024 = vld [vmem:[#allocation3 + $0x48] sm:$0xff]
    %v2025 = vld [vmem:[#allocation3 + $0x50] sm:$0xff]
    %v2026 = vld [vmem:[#allocation3 + $0x58] sm:$0xff]
    %v2027 = vld [vmem:[#allocation3 + $0x60] sm:$0xff]
    %v2028 = vld [vmem:[#allocation3 + $0x68] sm:$0xff]
    %v2029 = vld [vmem:[#allocation3 + $0x70] sm:$0xff]
    %v2030 = vld [vmem:[#allocation3 + $0x78] sm:$0xff]
    %v2031 = vld [vmem:[#allocation3 + $0x80] sm:$0xff]
    %v2032 = vld [vmem:[#allocation3 + $0x88] sm:$0xff]
    %v2033 = vld [vmem:[#allocation3 + $0x90] sm:$0xff]
    %v2034 = vld [vmem:[#allocation3 + $0x98] sm:$0xff]
    %v2035 = vld [vmem:[#allocation3 + $0xa0] sm:$0xff]
    %v2036 = vld [vmem:[#allocation3 + $0xa8] sm:$0xff]
    %v2037 = vld [vmem:[#allocation3 + $0xb0] sm:$0xff]
    %v2038 = vld [vmem:[#allocation3 + $0xb8] sm:$0xff]
    %v2039 = vld [vmem:[%s7] sm:$0xf]
    %v2040 = vld [vmem:[%s7 + $0x4] sm:$0xf]
    %v2041 = vld [vmem:[%s7 + $0x8] sm:$0xf]
    %v2042 = vld [vmem:[%s7 + $0xc] sm:$0xf]
    %v2043 = vld [vmem:[%s7 + $0x10] sm:$0xf]
    %v2044 = vld [vmem:[%s7 + $0x14] sm:$0xf]
    %v2045 = vld [vmem:[%s7 + $0x18] sm:$0xf]
    %v2046 = vld [vmem:[%s7 + $0x1c] sm:$0xf]
    %v2047 = vld [vmem:[%s7 + $0x20] sm:$0xf]
    %v2048 = vld [vmem:[%s7 + $0x24] sm:$0xf]
    %v2049 = vld [vmem:[%s7 + $0x28] sm:$0xf]
    %v2050 = vld [vmem:[%s7 + $0x2c] sm:$0xf]
    %v2051 = vld [vmem:[%s7 + $0x30] sm:$0xf]
    %v2052 = vld [vmem:[%s7 + $0x34] sm:$0xf]
    %v2053 = vld [vmem:[%s7 + $0x38] sm:$0xf]
    %v2054 = vld [vmem:[%s7 + $0x3c] sm:$0xf]
    %v2055 = vld [vmem:[%s7 + $0x40] sm:$0xf]
    %v2056 = vld [vmem:[%s7 + $0x44] sm:$0xf]
    %v2057 = vld [vmem:[%s7 + $0x48] sm:$0xf]
    %v2058 = vld [vmem:[%s7 + $0x4c] sm:$0xf]
    %v2059 = vld [vmem:[%s7 + $0x50] sm:$0xf]
    %v2060 = vld [vmem:[%s7 + $0x54] sm:$0xf]
    %v2061 = vld [vmem:[%s7 + $0x58] sm:$0xf]
    %v2062 = vld [vmem:[%s7 + $0x5c] sm:$0xf]
    %v2063 = vld [vmem:[%s7 + $0x60] sm:$0xf]
    %v2064 = vld [vmem:[%s7 + $0x64] sm:$0xf]
    %v2065 = vld [vmem:[%s7 + $0x68] sm:$0xf]
    %v2066 = vld [vmem:[%s7 + $0x6c] sm:$0xf]
    %v2067 = vld [vmem:[%s7 + $0x70] sm:$0xf]
    %v2068 = vld [vmem:[%s7 + $0x74] sm:$0xf]
    %v2069 = vld [vmem:[%s7 + $0x78] sm:$0xf]
    %v2070 = vld [vmem:[%s7 + $0x7c] sm:$0xf]
    %v2071 = vld [vmem:[%s7 + $0x80] sm:$0xf]
    %v2072 = vld [vmem:[%s7 + $0x84] sm:$0xf]
    %v2073 = vld [vmem:[%s7 + $0x88] sm:$0xf]
    %v2074 = vld [vmem:[%s7 + $0x8c] sm:$0xf]
    %v2111 = vunpack.c.l.b16 %v2039
    %v2112 = vunpack.c.l.b16 %v2040
    %v2113 = vunpack.c.l.b16 %v2041
    %v2114 = vunpack.c.l.b16 %v2042
    %v2115 = vunpack.c.l.b16 %v2043
    %v2116 = vunpack.c.l.b16 %v2044
    %v2117 = vunpack.c.l.b16 %v2045
    %v2118 = vunpack.c.l.b16 %v2046
    %v2119 = vunpack.c.l.b16 %v2047
    %v2120 = vunpack.c.l.b16 %v2048
    %v2121 = vunpack.c.l.b16 %v2049
    %v2122 = vunpack.c.l.b16 %v2050
    %v2123 = vunpack.c.l.b16 %v2051
    %v2124 = vunpack.c.l.b16 %v2052
    %v2125 = vunpack.c.l.b16 %v2053
    %v2126 = vunpack.c.l.b16 %v2054
    %v2127 = vunpack.c.l.b16 %v2055
    %v2128 = vunpack.c.l.b16 %v2056
    %v2129 = vunpack.c.l.b16 %v2057
    %v2130 = vunpack.c.l.b16 %v2058
    %v2131 = vunpack.c.l.b16 %v2059
    %v2132 = vunpack.c.l.b16 %v2060
    %v2133 = vunpack.c.l.b16 %v2061
    %v2134 = vunpack.c.l.b16 %v2062
    %v2135 = vunpack.c.l.b16 %v2063
    %v2136 = vunpack.c.l.b16 %v2064
    %v2137 = vunpack.c.l.b16 %v2065
    %v2138 = vunpack.c.l.b16 %v2066
    %v2139 = vunpack.c.l.b16 %v2067
    %v2140 = vunpack.c.l.b16 %v2068
    %v2141 = vunpack.c.l.b16 %v2069
    %v2142 = vunpack.c.l.b16 %v2070
    %v2143 = vunpack.c.l.b16 %v2071
    %v2144 = vunpack.c.l.b16 %v2072
    %v2145 = vunpack.c.l.b16 %v2073
    %v2146 = vunpack.c.l.b16 %v2074
    %v2147 = vpack.c.b16 %v2112, %v2111
    %v2148 = vpack.c.b16 %v2114, %v2113
    %v2149 = vpack.c.b16 %v2116, %v2115
    %v2150 = vpack.c.b16 %v2118, %v2117
    %v2151 = vpack.c.b16 %v2120, %v2119
    %v2152 = vpack.c.b16 %v2122, %v2121
    %v2153 = vpack.c.b16 %v2124, %v2123
    %v2154 = vpack.c.b16 %v2126, %v2125
    %v2155 = vpack.c.b16 %v2128, %v2127
    %v2156 = vpack.c.b16 %v2130, %v2129
    %v2157 = vpack.c.b16 %v2132, %v2131
    %v2158 = vpack.c.b16 %v2134, %v2133
    %v2159 = vpack.c.b16 %v2136, %v2135
    %v2160 = vpack.c.b16 %v2138, %v2137
    %v2161 = vpack.c.b16 %v2140, %v2139
    %v2162 = vpack.c.b16 %v2142, %v2141
    %v2163 = vpack.c.b16 %v2144, %v2143
    %v2164 = vpack.c.b16 %v2146, %v2145
    %v2184 = vsel %vm66, %v2017, 0
    %v2187 = vsel %vm66, %v2020, 0
    %v2190 = vsel %vm66, %v2023, 0
    %v2193 = vsel %vm66, %v2026, 0
    %v2196 = vsel %vm66, %v2029, 0
    %v2199 = vsel %vm66, %v2032, 0
    %v2202 = vsel %vm66, %v2035, 0
    %v2205 = vsel %vm66, %v2038, 0
    %2207 = vmatprep.subr.bf16.mxu0 0
    %2208 = vmatpush1.bf16.msra.mxu0 %v2147
    %2209 = vmatprep.subr.bf16.mxu0 0
    %2210 = vmatpush1.bf16.msra.mxu0 %v2148
    %2211 = vmatprep.subr.bf16.mxu0 0
    %2212 = vmatpush1.bf16.msra.mxu0 %v2149
    %2213 = vmatprep.subr.bf16.mxu0 0
    %2214 = vmatpush1.bf16.msra.mxu0 %v2150
    %2215 = vmatprep.subr.bf16.mxu0 0
    %2216 = vmatpush1.bf16.msra.mxu0 %v2151
    %2217 = vmatprep.subr.bf16.mxu0 0
    %2218 = vmatpush1.bf16.msra.mxu0 %v2152
    %2219 = vmatprep.subr.bf16.mxu0 0
    %2220 = vmatpush1.bf16.msra.mxu0 %v2153
    %2221 = vmatprep.subr.bf16.mxu0 0
    %2222 = vmatpush1.bf16.msra.mxu0 %v2154
    %2223 = vmatprep.subr.bf16.mxu0 0
    %2224 = vmatpush1.bf16.msra.mxu0 %v2155
    %2225 = vmatprep.subr.bf16.mxu0 0
    %2226 = vmatpush1.bf16.msra.mxu0 %v2156
    %2227 = vmatprep.subr.bf16.mxu0 0
    %2228 = vmatpush1.bf16.msra.mxu0 %v2157
    %2229 = vmatprep.subr.bf16.mxu0 0
    %2230 = vmatpush1.bf16.msra.mxu0 %v2158
    %2231 = vmatprep.subr.bf16.mxu0 0
    %2232 = vmatpush1.bf16.msra.mxu0 %v2159
    %2233 = vmatprep.subr.bf16.mxu0 0
    %2234 = vmatpush1.bf16.msra.mxu0 %v2160
    %2235 = vmatprep.subr.bf16.mxu0 0
    %2236 = vmatpush1.bf16.msra.mxu0 %v2161
    %2237 = vmatprep.subr.bf16.mxu0 0
    %2238 = vmatpush1.bf16.msra.mxu0 %v2162
    %2239 = vmatprep.mubr.bf16.mxu0 %v2016
    %2240 = vmatmul.mubr.bf16.gmra.mrb[0].mxu0 %v2015
    %v2241 = vpop.f32.mrb[0].mxu0
    %v2242 = vadd.f32 0.0, %v2241
    %v2243 = vpop.f32.mrb[0].mxu0
    %v2244 = vpop.f32.mrb[0].mxu0
    %v2245 = vadd.f32 0.0, %v2244
    %v2246 = vpop.f32.mrb[0].mxu0
    %2247 = vmatprep.mubr.bf16.mxu0 %v2019
    %2248 = vmatmul.mubr.bf16.gmra.mrb[0].mxu0 %v2018
    %v2249 = vpop.f32.mrb[0].mxu0
    %v2250 = vadd.f32 0.0, %v2249
    %v2251 = vpop.f32.mrb[0].mxu0
    %v2252 = vpop.f32.mrb[0].mxu0
    %v2253 = vadd.f32 0.0, %v2252
    %v2254 = vpop.f32.mrb[0].mxu0
    %2255 = vmatprep.mubr.bf16.mxu0 %v2022
    %2256 = vmatmul.mubr.bf16.gmra.mrb[0].mxu0 %v2021
    %v2257 = vpop.f32.mrb[0].mxu0
    %v2258 = vadd.f32 0.0, %v2257
    %v2259 = vpop.f32.mrb[0].mxu0
    %v2260 = vpop.f32.mrb[0].mxu0
    %v2261 = vadd.f32 0.0, %v2260
    %v2262 = vpop.f32.mrb[0].mxu0
    %2263 = vmatprep.mubr.bf16.mxu0 %v2025
    %2264 = vmatmul.mubr.bf16.gmra.mrb[0].mxu0 %v2024
    %v2265 = vpop.f32.mrb[0].mxu0
    %v2266 = vadd.f32 0.0, %v2265
    %v2267 = vpop.f32.mrb[0].mxu0
    %v2268 = vpop.f32.mrb[0].mxu0
    %v2269 = vadd.f32 0.0, %v2268
    %v2270 = vpop.f32.mrb[0].mxu0
    %2271 = vmatprep.mubr.bf16.mxu0 %v2028
    %2272 = vmatmul.mubr.bf16.gmra.mrb[0].mxu0 %v2027
    %v2273 = vpop.f32.mrb[0].mxu0
    %v2274 = vadd.f32 0.0, %v2273
    %v2275 = vpop.f32.mrb[0].mxu0
    %v2276 = vpop.f32.mrb[0].mxu0
    %v2277 = vadd.f32 0.0, %v2276
    %v2278 = vpop.f32.mrb[0].mxu0
    %2279 = vmatprep.mubr.bf16.mxu0 %v2031
    %2280 = vmatmul.mubr.bf16.gmra.mrb[0].mxu0 %v2030
    %v2281 = vpop.f32.mrb[0].mxu0
    %v2282 = vadd.f32 0.0, %v2281
    %v2283 = vpop.f32.mrb[0].mxu0
    %v2284 = vpop.f32.mrb[0].mxu0
    %v2285 = vadd.f32 0.0, %v2284
    %v2286 = vpop.f32.mrb[0].mxu0
    %2287 = vmatprep.mubr.bf16.mxu0 %v2034
    %2288 = vmatmul.mubr.bf16.gmra.mrb[0].mxu0 %v2033
    %v2289 = vpop.f32.mrb[0].mxu0
    %v2290 = vadd.f32 0.0, %v2289
    %v2291 = vpop.f32.mrb[0].mxu0
    %v2292 = vpop.f32.mrb[0].mxu0
    %v2293 = vadd.f32 0.0, %v2292
    %v2294 = vpop.f32.mrb[0].mxu0
    %2295 = vmatprep.mubr.bf16.mxu0 %v2037
    %2296 = vmatmul.mubr.bf16.gmra.mrb[0].mxu0 %v2036
    %v2297 = vpop.f32.mrb[0].mxu0
    %v2298 = vadd.f32 0.0, %v2297
    %v2299 = vpop.f32.mrb[0].mxu0
    %v2300 = vpop.f32.mrb[0].mxu0
    %v2301 = vadd.f32 0.0, %v2300
    %v2302 = vpop.f32.mrb[0].mxu0
    %2303 = vdwg.mxu0
    %2304 = vmatprep.subr.bf16.mxu0 0
    %2305 = vmatpush1.bf16.msra.mxu0 %v2163
    %2306 = vmatprep.subr.bf16.mxu0 0
    %2307 = vmatpush1.bf16.msra.mxu0 %v2164
    %2308 = vmatprep.subr.bf16.mxu0 0
    %2309 = vmatpush1.bf16.msra.mxu0 0
    %2310 = vmatprep.subr.bf16.mxu0 0
    %2311 = vmatpush1.bf16.msra.mxu0 0
    %2312 = vmatprep.subr.bf16.mxu0 0
    %2313 = vmatpush1.bf16.msra.mxu0 0
    %2314 = vmatprep.subr.bf16.mxu0 0
    %2315 = vmatpush1.bf16.msra.mxu0 0
    %2316 = vmatprep.subr.bf16.mxu0 0
    %2317 = vmatpush1.bf16.msra.mxu0 0
    %2318 = vmatprep.subr.bf16.mxu0 0
    %2319 = vmatpush1.bf16.msra.mxu0 0
    %2320 = vmatprep.subr.bf16.mxu0 0
    %2321 = vmatpush1.bf16.msra.mxu0 0
    %2322 = vmatprep.subr.bf16.mxu0 0
    %2323 = vmatpush1.bf16.msra.mxu0 0
    %2324 = vmatprep.subr.bf16.mxu0 0
    %2325 = vmatpush1.bf16.msra.mxu0 0
    %2326 = vmatprep.subr.bf16.mxu0 0
    %2327 = vmatpush1.bf16.msra.mxu0 0
    %2328 = vmatprep.subr.bf16.mxu0 0
    %2329 = vmatpush1.bf16.msra.mxu0 0
    %2330 = vmatprep.subr.bf16.mxu0 0
    %2331 = vmatpush1.bf16.msra.mxu0 0
    %2332 = vmatprep.subr.bf16.mxu0 0
    %2333 = vmatpush1.bf16.msra.mxu0 0
    %2334 = vmatprep.subr.bf16.mxu0 0
    %2335 = vmatpush1.bf16.msra.mxu0 0
    %2336 = vmatprep.mubr.bf16.mxu0 0
    %2337 = vmatmul.mubr.bf16.gmra.mrb[0].mxu0 %v2184
    %v2338 = vpop.f32.mrb[0].mxu0
    %v2339 = vadd.f32 %v2242, %v2338
    %v2340 = vpop.f32.mrb[0].mxu0
    %v2341 = vpop.f32.mrb[0].mxu0
    %v2342 = vadd.f32 %v2245, %v2341
    %v2343 = vpop.f32.mrb[0].mxu0
    %2344 = vmatprep.mubr.bf16.mxu0 0
    %2345 = vmatmul.mubr.bf16.gmra.mrb[0].mxu0 %v2187
    %v2346 = vpop.f32.mrb[0].mxu0
    %v2347 = vadd.f32 %v2250, %v2346
    %v2348 = vpop.f32.mrb[0].mxu0
    %v2349 = vpop.f32.mrb[0].mxu0
    %v2350 = vadd.f32 %v2253, %v2349
    %v2351 = vpop.f32.mrb[0].mxu0
    %2352 = vmatprep.mubr.bf16.mxu0 0
    %2353 = vmatmul.mubr.bf16.gmra.mrb[0].mxu0 %v2190
    %v2354 = vpop.f32.mrb[0].mxu0
    %v2355 = vadd.f32 %v2258, %v2354
    %v2356 = vpop.f32.mrb[0].mxu0
    %v2357 = vpop.f32.mrb[0].mxu0
    %v2358 = vadd.f32 %v2261, %v2357
    %v2359 = vpop.f32.mrb[0].mxu0
    %2360 = vmatprep.mubr.bf16.mxu0 0
    %2361 = vmatmul.mubr.bf16.gmra.mrb[0].mxu0 %v2193
    %v2362 = vpop.f32.mrb[0].mxu0
    %v2363 = vadd.f32 %v2266, %v2362
    %v2364 = vpop.f32.mrb[0].mxu0
    %v2365 = vpop.f32.mrb[0].mxu0
    %v2366 = vadd.f32 %v2269, %v2365
    %v2367 = vpop.f32.mrb[0].mxu0
    %2368 = vmatprep.mubr.bf16.mxu0 0
    %2369 = vmatmul.mubr.bf16.gmra.mrb[0].mxu0 %v2196
    %v2370 = vpop.f32.mrb[0].mxu0
    %v2371 = vadd.f32 %v2274, %v2370
    %v2372 = vpop.f32.mrb[0].mxu0
    %v2373 = vpop.f32.mrb[0].mxu0
    %v2374 = vadd.f32 %v2277, %v2373
    %v2375 = vpop.f32.mrb[0].mxu0
    %2376 = vmatprep.mubr.bf16.mxu0 0
    %2377 = vmatmul.mubr.bf16.gmra.mrb[0].mxu0 %v2199
    %v2378 = vpop.f32.mrb[0].mxu0
    %v2379 = vadd.f32 %v2282, %v2378
    %v2380 = vpop.f32.mrb[0].mxu0
    %v2381 = vpop.f32.mrb[0].mxu0
    %v2382 = vadd.f32 %v2285, %v2381
    %v2383 = vpop.f32.mrb[0].mxu0
    %2384 = vmatprep.mubr.bf16.mxu0 0
    %2385 = vmatmul.mubr.bf16.gmra.mrb[0].mxu0 %v2202
    %v2386 = vpop.f32.mrb[0].mxu0
    %v2387 = vadd.f32 %v2290, %v2386
    %v2388 = vpop.f32.mrb[0].mxu0
    %v2389 = vpop.f32.mrb[0].mxu0
    %v2390 = vadd.f32 %v2293, %v2389
    %v2391 = vpop.f32.mrb[0].mxu0
    %2392 = vmatprep.mubr.bf16.mxu0 0
    %2393 = vmatmul.mubr.bf16.gmra.mrb[0].mxu0 %v2205
    %v2394 = vpop.f32.mrb[0].mxu0
    %v2395 = vadd.f32 %v2298, %v2394
    %v2396 = vpop.f32.mrb[0].mxu0
    %v2397 = vpop.f32.mrb[0].mxu0
    %v2398 = vadd.f32 %v2301, %v2397
    %v2399 = vpop.f32.mrb[0].mxu0
    %2400 = vdwg.mxu0
    %v2401 = vld [vmem:[%s8] sm:$0x1]
    %v2402 = vld [vmem:[%s9] sm:$0x1]
    %v2403 = vsel %vm66, %v2339, 0.0
    %v2404 = vsel %vm66, %v2342, 0.0
    %v2405 = vadd.f32 %v2403, %v2404
    %v2406 = vsel %vm66, %v2347, 0.0
    %v2407 = vadd.f32 %v2405, %v2406
    %v2408 = vsel %vm66, %v2350, 0.0
    %v2409 = vadd.f32 %v2407, %v2408
    %v2410 = vsel %vm66, %v2355, 0.0
    %v2411 = vadd.f32 %v2409, %v2410
    %v2412 = vsel %vm66, %v2358, 0.0
    %v2413 = vadd.f32 %v2411, %v2412
    %v2414 = vsel %vm66, %v2363, 0.0
    %v2415 = vadd.f32 %v2413, %v2414
    %v2416 = vsel %vm66, %v2366, 0.0
    %v2417 = vadd.f32 %v2415, %v2416
    %v2418 = vsel %vm66, %v2371, 0.0
    %v2419 = vadd.f32 %v2417, %v2418
    %v2420 = vsel %vm66, %v2374, 0.0
    %v2421 = vadd.f32 %v2419, %v2420
    %v2422 = vsel %vm66, %v2379, 0.0
    %v2423 = vadd.f32 %v2421, %v2422
    %v2424 = vsel %vm66, %v2382, 0.0
    %v2425 = vadd.f32 %v2423, %v2424
    %v2426 = vsel %vm66, %v2387, 0.0
    %v2427 = vadd.f32 %v2425, %v2426
    %v2428 = vsel %vm66, %v2390, 0.0
    %v2429 = vadd.f32 %v2427, %v2428
    %v2430 = vsel %vm66, %v2395, 0.0
    %v2431 = vadd.f32 %v2429, %v2430
    %v2432 = vsel %vm66, %v2398, 0.0
    %v2433 = vadd.f32 %v2431, %v2432
    %v2434 = vrot.slane %v2433, 4
    %v2435 = vadd.f32 %v2433, %v2434
    %v2436 = vrot.slane %v2435, 2
    %v2437 = vadd.f32 %v2435, %v2436
    %v2438 = vrot.slane %v2437, 1
    %v2439 = vadd.f32 %v2437, %v2438
    %v2440 = vmul.f32 %v2339, %v2339
    %v2441 = vmul.f32 %v2342, %v2342
    %v2442 = vmul.f32 %v2347, %v2347
    %v2443 = vmul.f32 %v2350, %v2350
    %v2444 = vmul.f32 %v2355, %v2355
    %v2445 = vmul.f32 %v2358, %v2358
    %v2446 = vmul.f32 %v2363, %v2363
    %v2447 = vmul.f32 %v2366, %v2366
    %v2448 = vmul.f32 %v2371, %v2371
    %v2449 = vmul.f32 %v2374, %v2374
    %v2450 = vmul.f32 %v2379, %v2379
    %v2451 = vmul.f32 %v2382, %v2382
    %v2452 = vmul.f32 %v2387, %v2387
    %v2453 = vmul.f32 %v2390, %v2390
    %v2454 = vmul.f32 %v2395, %v2395
    %v2455 = vmul.f32 %v2398, %v2398
    %v2456 = vsel %vm66, %v2440, 0.0
    %v2457 = vsel %vm66, %v2441, 0.0
    %v2458 = vadd.f32 %v2456, %v2457
    %v2459 = vsel %vm66, %v2442, 0.0
    %v2460 = vadd.f32 %v2458, %v2459
    %v2461 = vsel %vm66, %v2443, 0.0
    %v2462 = vadd.f32 %v2460, %v2461
    %v2463 = vsel %vm66, %v2444, 0.0
    %v2464 = vadd.f32 %v2462, %v2463
    %v2465 = vsel %vm66, %v2445, 0.0
    %v2466 = vadd.f32 %v2464, %v2465
    %v2467 = vsel %vm66, %v2446, 0.0
    %v2468 = vadd.f32 %v2466, %v2467
    %v2469 = vsel %vm66, %v2447, 0.0
    %v2470 = vadd.f32 %v2468, %v2469
    %v2471 = vsel %vm66, %v2448, 0.0
    %v2472 = vadd.f32 %v2470, %v2471
    %v2473 = vsel %vm66, %v2449, 0.0
    %v2474 = vadd.f32 %v2472, %v2473
    %v2475 = vsel %vm66, %v2450, 0.0
    %v2476 = vadd.f32 %v2474, %v2475
    %v2477 = vsel %vm66, %v2451, 0.0
    %v2478 = vadd.f32 %v2476, %v2477
    %v2479 = vsel %vm66, %v2452, 0.0
    %v2480 = vadd.f32 %v2478, %v2479
    %v2481 = vsel %vm66, %v2453, 0.0
    %v2482 = vadd.f32 %v2480, %v2481
    %v2483 = vsel %vm66, %v2454, 0.0
    %v2484 = vadd.f32 %v2482, %v2483
    %v2485 = vsel %vm66, %v2455, 0.0
    %v2486 = vadd.f32 %v2484, %v2485
    %v2487 = vrot.slane %v2486, 4
    %v2488 = vadd.f32 %v2486, %v2487
    %v2489 = vrot.slane %v2488, 2
    %v2490 = vadd.f32 %v2488, %v2489
    %v2491 = vrot.slane %v2490, 1
    %v2492 = vadd.f32 %v2490, %v2491
    %v2493 = vmul.f32 %v2439, 0.0078125
    %v2494 = vmul.f32 %v2492, 0.0078125
    %v2495 = vmul.f32 %v2493, %v2493
    %v2496 = vsub.f32 %v2494, %v2495
    %v2497 = vmax.f32 %v2496, 0.0
    %v2498 = vadd.f32 %v2497, 1e-05
    %v2499 = vrsqrt.pop %v2498
    %v2500 = vmul.f32 %v2401, %v2499
    %v2502 = vlaneseq
    %v2503 = vshrl.u32 %v2502, 7
    %v2504 = vsub.s32 0, %v2503
    %v2505 = vrot.slane %v2500, %v2504
    %v2507 = vmul.f32 %v2339, %v2505
    %v2508 = vmul.f32 %v2342, %v2505
    %v2509 = vmul.f32 %v2347, %v2505
    %v2510 = vmul.f32 %v2350, %v2505
    %v2511 = vmul.f32 %v2355, %v2505
    %v2512 = vmul.f32 %v2358, %v2505
    %v2513 = vmul.f32 %v2363, %v2505
    %v2514 = vmul.f32 %v2366, %v2505
    %v2515 = vmul.f32 %v2371, %v2505
    %v2516 = vmul.f32 %v2374, %v2505
    %v2517 = vmul.f32 %v2379, %v2505
    %v2518 = vmul.f32 %v2382, %v2505
    %v2519 = vmul.f32 %v2387, %v2505
    %v2520 = vmul.f32 %v2390, %v2505
    %v2521 = vmul.f32 %v2395, %v2505
    %v2522 = vmul.f32 %v2398, %v2505
    %v2523 = vmul.f32 %v2493, %v2500
    %v2524 = vsub.f32 %v2402, %v2523
    %v2526 = vlaneseq
    %v2527 = vshrl.u32 %v2526, 7
    %v2528 = vsub.s32 0, %v2527
    %v2529 = vrot.slane %v2524, %v2528
    %v2531 = vadd.f32 %v2507, %v2529
    %v2532 = vadd.f32 %v2508, %v2529
    %v2533 = vadd.f32 %v2509, %v2529
    %v2534 = vadd.f32 %v2510, %v2529
    %v2535 = vadd.f32 %v2511, %v2529
    %v2536 = vadd.f32 %v2512, %v2529
    %v2537 = vadd.f32 %v2513, %v2529
    %v2538 = vadd.f32 %v2514, %v2529
    %v2539 = vadd.f32 %v2515, %v2529
    %v2540 = vadd.f32 %v2516, %v2529
    %v2541 = vadd.f32 %v2517, %v2529
    %v2542 = vadd.f32 %v2518, %v2529
    %v2543 = vadd.f32 %v2519, %v2529
    %v2544 = vadd.f32 %v2520, %v2529
    %v2545 = vadd.f32 %v2521, %v2529
    %v2546 = vadd.f32 %v2522, %v2529
    %v2547 = vadd.f32 %v2531, %v454
    %v2548 = vadd.f32 %v2532, %v455
    %v2549 = vadd.f32 %v2533, %v456
    %v2550 = vadd.f32 %v2534, %v457
    %v2551 = vadd.f32 %v2535, %v458
    %v2552 = vadd.f32 %v2536, %v459
    %v2553 = vadd.f32 %v2537, %v460
    %v2554 = vadd.f32 %v2538, %v461
    %v2555 = vadd.f32 %v2539, %v462
    %v2556 = vadd.f32 %v2540, %v463
    %v2557 = vadd.f32 %v2541, %v464
    %v2558 = vadd.f32 %v2542, %v465
    %v2559 = vadd.f32 %v2543, %v466
    %v2560 = vadd.f32 %v2544, %v467
    %v2561 = vadd.f32 %v2545, %v468
    %v2562 = vadd.f32 %v2546, %v469
    %v2563 = vmax.f32 %v2547, 0.0
    %v2564 = vmax.f32 %v2548, 0.0
    %v2565 = vmax.f32 %v2549, 0.0
    %v2566 = vmax.f32 %v2550, 0.0
    %v2567 = vmax.f32 %v2551, 0.0
    %v2568 = vmax.f32 %v2552, 0.0
    %v2569 = vmax.f32 %v2553, 0.0
    %v2570 = vmax.f32 %v2554, 0.0
    %v2571 = vmax.f32 %v2555, 0.0
    %v2572 = vmax.f32 %v2556, 0.0
    %v2573 = vmax.f32 %v2557, 0.0
    %v2574 = vmax.f32 %v2558, 0.0
    %v2575 = vmax.f32 %v2559, 0.0
    %v2576 = vmax.f32 %v2560, 0.0
    %v2577 = vmax.f32 %v2561, 0.0
    %v2578 = vmax.f32 %v2562, 0.0
    %2579 = vst.msk [vmem:[%s470 + $0x1] sm:$0xff] %vm66, %v2563
    %2580 = vst.msk [vmem:[%s470 + $0x11] sm:$0xff] %vm66, %v2564
    %2581 = vst.msk [vmem:[%s470 + $0x21] sm:$0xff] %vm66, %v2565
    %2582 = vst.msk [vmem:[%s470 + $0x31] sm:$0xff] %vm66, %v2566
    %2583 = vst.msk [vmem:[%s470 + $0x41] sm:$0xff] %vm66, %v2567
    %2584 = vst.msk [vmem:[%s470 + $0x51] sm:$0xff] %vm66, %v2568
    %2585 = vst.msk [vmem:[%s470 + $0x61] sm:$0xff] %vm66, %v2569
    %2586 = vst.msk [vmem:[%s470 + $0x71] sm:$0xff] %vm66, %v2570
    %2587 = vst.msk [vmem:[%s470 + $0xa1] sm:$0xff] %vm66, %v2571
    %2588 = vst.msk [vmem:[%s470 + $0xb1] sm:$0xff] %vm66, %v2572
    %2589 = vst.msk [vmem:[%s470 + $0xc1] sm:$0xff] %vm66, %v2573
    %2590 = vst.msk [vmem:[%s470 + $0xd1] sm:$0xff] %vm66, %v2574
    %2591 = vst.msk [vmem:[%s470 + $0xe1] sm:$0xff] %vm66, %v2575
    %2592 = vst.msk [vmem:[%s470 + $0xf1] sm:$0xff] %vm66, %v2576
    %2593 = vst.msk [vmem:[%s470 + $0x101] sm:$0xff] %vm66, %v2577
    %2594 = vst.msk [vmem:[%s470 + $0x111] sm:$0xff] %vm66, %v2578
    %v2595 = vld [vmem:[#allocation2] sm:$0xff]
    %v2596 = vld [vmem:[#allocation2 + $0x10] sm:$0xff]
    %v2597 = vld [vmem:[#allocation2 + $0x20] sm:$0xff]
    %v2598 = vld [vmem:[#allocation2 + $0x30] sm:$0xff]
    %v2599 = vld [vmem:[#allocation2 + $0x40] sm:$0xff]
    %v2600 = vld [vmem:[#allocation2 + $0x50] sm:$0xff]
    %v2601 = vld [vmem:[#allocation2 + $0x60] sm:$0xff]
    %v2602 = vld [vmem:[#allocation2 + $0x70] sm:$0xff]
    %v2603 = vld [vmem:[#allocation2 + $0xa0] sm:$0xff]
    %v2604 = vld [vmem:[#allocation2 + $0xb0] sm:$0xff]
    %v2605 = vld [vmem:[#allocation2 + $0xc0] sm:$0xff]
    %v2606 = vld [vmem:[#allocation2 + $0xd0] sm:$0xff]
    %v2607 = vld [vmem:[#allocation2 + $0xe0] sm:$0xff]
    %v2608 = vld [vmem:[#allocation2 + $0xf0] sm:$0xff]
    %v2609 = vld [vmem:[#allocation2 + $0x100] sm:$0xff]
    %v2610 = vld [vmem:[#allocation2 + $0x110] sm:$0xff]
    %v2611 = vpack.c.bf16 %v2596, %v2595
    %v2612 = vpack.c.bf16 %v2598, %v2597
    %v2613 = vpack.c.bf16 %v2600, %v2599
    %v2614 = vpack.c.bf16 %v2602, %v2601
    %v2615 = vpack.c.bf16 %v2604, %v2603
    %v2616 = vpack.c.bf16 %v2606, %v2605
    %v2617 = vpack.c.bf16 %v2608, %v2607
    %v2618 = vpack.c.bf16 %v2610, %v2609
    %2619 = vst.msk [vmem:[#allocation3] sm:$0xff] %vm66, %v2611
    %2620 = vst.msk [vmem:[#allocation3 + $0x18] sm:$0xff] %vm66, %v2612
    %2621 = vst.msk [vmem:[#allocation3 + $0x30] sm:$0xff] %vm66, %v2613
    %2622 = vst.msk [vmem:[#allocation3 + $0x48] sm:$0xff] %vm66, %v2614
    %2623 = vst.msk [vmem:[#allocation3 + $0x60] sm:$0xff] %vm66, %v2615
    %2624 = vst.msk [vmem:[#allocation3 + $0x78] sm:$0xff] %vm66, %v2616
    %2625 = vst.msk [vmem:[#allocation3 + $0x90] sm:$0xff] %vm66, %v2617
    %2626 = vst.msk [vmem:[#allocation3 + $0xa8] sm:$0xff] %vm66, %v2618
    %v2627 = vld [vmem:[#allocation2 + $0x1] sm:$0xff]
    %v2628 = vld [vmem:[#allocation2 + $0x11] sm:$0xff]
    %v2629 = vld [vmem:[#allocation2 + $0x21] sm:$0xff]
    %v2630 = vld [vmem:[#allocation2 + $0x31] sm:$0xff]
    %v2631 = vld [vmem:[#allocation2 + $0x41] sm:$0xff]
    %v2632 = vld [vmem:[#allocation2 + $0x51] sm:$0xff]
    %v2633 = vld [vmem:[#allocation2 + $0x61] sm:$0xff]
    %v2634 = vld [vmem:[#allocation2 + $0x71] sm:$0xff]
    %v2635 = vld [vmem:[#allocation2 + $0xa1] sm:$0xff]
    %v2636 = vld [vmem:[#allocation2 + $0xb1] sm:$0xff]
    %v2637 = vld [vmem:[#allocation2 + $0xc1] sm:$0xff]
    %v2638 = vld [vmem:[#allocation2 + $0xd1] sm:$0xff]
    %v2639 = vld [vmem:[#allocation2 + $0xe1] sm:$0xff]
    %v2640 = vld [vmem:[#allocation2 + $0xf1] sm:$0xff]
    %v2641 = vld [vmem:[#allocation2 + $0x101] sm:$0xff]
    %v2642 = vld [vmem:[#allocation2 + $0x111] sm:$0xff]
    %v2643 = vpack.c.bf16 %v2628, %v2627
    %v2644 = vpack.c.bf16 %v2630, %v2629
    %v2645 = vpack.c.bf16 %v2632, %v2631
    %v2646 = vpack.c.bf16 %v2634, %v2633
    %v2647 = vpack.c.bf16 %v2636, %v2635
    %v2648 = vpack.c.bf16 %v2638, %v2637
    %v2649 = vpack.c.bf16 %v2640, %v2639
    %v2650 = vpack.c.bf16 %v2642, %v2641
    %2659 = vrot.lane.b32.xlu0 %v2643, 32
    %v2660 = vpop.permute.xlu0 %2659
    %2661 = vrot.lane.b32.xlu0 %v2644, 32
    %v2662 = vpop.permute.xlu0 %2661
    %2663 = vrot.lane.b32.xlu0 %v2645, 32
    %v2664 = vpop.permute.xlu0 %2663
    %2665 = vrot.lane.b32.xlu0 %v2646, 32
    %v2666 = vpop.permute.xlu0 %2665
    %2667 = vrot.lane.b32.xlu0 %v2647, 32
    %v2668 = vpop.permute.xlu0 %2667
    %2669 = vrot.lane.b32.xlu0 %v2648, 32
    %v2670 = vpop.permute.xlu0 %2669
    %2671 = vrot.lane.b32.xlu0 %v2649, 32
    %v2672 = vpop.permute.xlu0 %2671
    %2673 = vrot.lane.b32.xlu0 %v2650, 32
    %v2674 = vpop.permute.xlu0 %2673
    %2683 = vst.msk [vmem:[#allocation3] sm:$0xff] %vm575, %v2660
    %2684 = vst.msk [vmem:[#allocation3 + $0x18] sm:$0xff] %vm575, %v2662
    %2685 = vst.msk [vmem:[#allocation3 + $0x30] sm:$0xff] %vm575, %v2664
    %2686 = vst.msk [vmem:[#allocation3 + $0x48] sm:$0xff] %vm575, %v2666
    %2687 = vst.msk [vmem:[#allocation3 + $0x60] sm:$0xff] %vm575, %v2668
    %2688 = vst.msk [vmem:[#allocation3 + $0x78] sm:$0xff] %vm575, %v2670
    %2689 = vst.msk [vmem:[#allocation3 + $0x90] sm:$0xff] %vm575, %v2672
    %2690 = vst.msk [vmem:[#allocation3 + $0xa8] sm:$0xff] %vm575, %v2674
    %v2691 = vld [vmem:[#allocation2 + $0x2] sm:$0xff]
    %v2692 = vld [vmem:[#allocation2 + $0x12] sm:$0xff]
    %v2693 = vld [vmem:[#allocation2 + $0x22] sm:$0xff]
    %v2694 = vld [vmem:[#allocation2 + $0x32] sm:$0xff]
    %v2695 = vld [vmem:[#allocation2 + $0x42] sm:$0xff]
    %v2696 = vld [vmem:[#allocation2 + $0x52] sm:$0xff]
    %v2697 = vld [vmem:[#allocation2 + $0x62] sm:$0xff]
    %v2698 = vld [vmem:[#allocation2 + $0x72] sm:$0xff]
    %v2699 = vld [vmem:[#allocation2 + $0xa2] sm:$0xff]
    %v2700 = vld [vmem:[#allocation2 + $0xb2] sm:$0xff]
    %v2701 = vld [vmem:[#allocation2 + $0xc2] sm:$0xff]
    %v2702 = vld [vmem:[#allocation2 + $0xd2] sm:$0xff]
    %v2703 = vld [vmem:[#allocation2 + $0xe2] sm:$0xff]
    %v2704 = vld [vmem:[#allocation2 + $0xf2] sm:$0xff]
    %v2705 = vld [vmem:[#allocation2 + $0x102] sm:$0xff]
    %v2706 = vld [vmem:[#allocation2 + $0x112] sm:$0xff]
    %v2707 = vpack.c.bf16 %v2692, %v2691
    %v2708 = vpack.c.bf16 %v2694, %v2693
    %v2709 = vpack.c.bf16 %v2696, %v2695
    %v2710 = vpack.c.bf16 %v2698, %v2697
    %v2711 = vpack.c.bf16 %v2700, %v2699
    %v2712 = vpack.c.bf16 %v2702, %v2701
    %v2713 = vpack.c.bf16 %v2704, %v2703
    %v2714 = vpack.c.bf16 %v2706, %v2705
    %2723 = vrot.lane.b32.xlu0 %v2707, 64
    %v2724 = vpop.permute.xlu0 %2723
    %2725 = vrot.lane.b32.xlu0 %v2708, 64
    %v2726 = vpop.permute.xlu0 %2725
    %2727 = vrot.lane.b32.xlu0 %v2709, 64
    %v2728 = vpop.permute.xlu0 %2727
    %2729 = vrot.lane.b32.xlu0 %v2710, 64
    %v2730 = vpop.permute.xlu0 %2729
    %2731 = vrot.lane.b32.xlu0 %v2711, 64
    %v2732 = vpop.permute.xlu0 %2731
    %2733 = vrot.lane.b32.xlu0 %v2712, 64
    %v2734 = vpop.permute.xlu0 %2733
    %2735 = vrot.lane.b32.xlu0 %v2713, 64
    %v2736 = vpop.permute.xlu0 %2735
    %2737 = vrot.lane.b32.xlu0 %v2714, 64
    %v2738 = vpop.permute.xlu0 %2737
    %2747 = vst.msk [vmem:[#allocation3] sm:$0xff] %vm640, %v2724
    %2748 = vst.msk [vmem:[#allocation3 + $0x18] sm:$0xff] %vm640, %v2726
    %2749 = vst.msk [vmem:[#allocation3 + $0x30] sm:$0xff] %vm640, %v2728
    %2750 = vst.msk [vmem:[#allocation3 + $0x48] sm:$0xff] %vm640, %v2730
    %2751 = vst.msk [vmem:[#allocation3 + $0x60] sm:$0xff] %vm640, %v2732
    %2752 = vst.msk [vmem:[#allocation3 + $0x78] sm:$0xff] %vm640, %v2734
    %2753 = vst.msk [vmem:[#allocation3 + $0x90] sm:$0xff] %vm640, %v2736
    %2754 = vst.msk [vmem:[#allocation3 + $0xa8] sm:$0xff] %vm640, %v2738
    %v2755 = vld [vmem:[%s470] sm:$0xff]
    %v2756 = vld [vmem:[%s470 + $0x10] sm:$0xff]
    %v2757 = vld [vmem:[%s470 + $0x20] sm:$0xff]
    %v2758 = vld [vmem:[%s470 + $0x30] sm:$0xff]
    %v2759 = vld [vmem:[%s470 + $0x40] sm:$0xff]
    %v2760 = vld [vmem:[%s470 + $0x50] sm:$0xff]
    %v2761 = vld [vmem:[%s470 + $0x60] sm:$0xff]
    %v2762 = vld [vmem:[%s470 + $0x70] sm:$0xff]
    %v2763 = vld [vmem:[%s470 + $0xa0] sm:$0xff]
    %v2764 = vld [vmem:[%s470 + $0xb0] sm:$0xff]
    %v2765 = vld [vmem:[%s470 + $0xc0] sm:$0xff]
    %v2766 = vld [vmem:[%s470 + $0xd0] sm:$0xff]
    %v2767 = vld [vmem:[%s470 + $0xe0] sm:$0xff]
    %v2768 = vld [vmem:[%s470 + $0xf0] sm:$0xff]
    %v2769 = vld [vmem:[%s470 + $0x100] sm:$0xff]
    %v2770 = vld [vmem:[%s470 + $0x110] sm:$0xff]
    %v2771 = vpack.c.bf16 %v2756, %v2755
    %v2772 = vpack.c.bf16 %v2758, %v2757
    %v2773 = vpack.c.bf16 %v2760, %v2759
    %v2774 = vpack.c.bf16 %v2762, %v2761
    %v2775 = vpack.c.bf16 %v2764, %v2763
    %v2776 = vpack.c.bf16 %v2766, %v2765
    %v2777 = vpack.c.bf16 %v2768, %v2767
    %v2778 = vpack.c.bf16 %v2770, %v2769
    %2787 = vrot.lane.b32.xlu0 %v2771, 96
    %v2788 = vpop.permute.xlu0 %2787
    %2789 = vrot.lane.b32.xlu0 %v2772, 96
    %v2790 = vpop.permute.xlu0 %2789
    %2791 = vrot.lane.b32.xlu0 %v2773, 96
    %v2792 = vpop.permute.xlu0 %2791
    %2793 = vrot.lane.b32.xlu0 %v2774, 96
    %v2794 = vpop.permute.xlu0 %2793
    %2795 = vrot.lane.b32.xlu0 %v2775, 96
    %v2796 = vpop.permute.xlu0 %2795
    %2797 = vrot.lane.b32.xlu0 %v2776, 96
    %v2798 = vpop.permute.xlu0 %2797
    %2799 = vrot.lane.b32.xlu0 %v2777, 96
    %v2800 = vpop.permute.xlu0 %2799
    %2801 = vrot.lane.b32.xlu0 %v2778, 96
    %v2802 = vpop.permute.xlu0 %2801
    %2811 = vst.msk [vmem:[#allocation3] sm:$0xff] %vm705, %v2788
    %2812 = vst.msk [vmem:[#allocation3 + $0x18] sm:$0xff] %vm705, %v2790
    %2813 = vst.msk [vmem:[#allocation3 + $0x30] sm:$0xff] %vm705, %v2792
    %2814 = vst.msk [vmem:[#allocation3 + $0x48] sm:$0xff] %vm705, %v2794
    %2815 = vst.msk [vmem:[#allocation3 + $0x60] sm:$0xff] %vm705, %v2796
    %2816 = vst.msk [vmem:[#allocation3 + $0x78] sm:$0xff] %vm705, %v2798
    %2817 = vst.msk [vmem:[#allocation3 + $0x90] sm:$0xff] %vm705, %v2800
    %2818 = vst.msk [vmem:[#allocation3 + $0xa8] sm:$0xff] %vm705, %v2802
    %v2819 = vld [vmem:[%s470 + $0x1] sm:$0xff]
    %v2820 = vld [vmem:[%s470 + $0x11] sm:$0xff]
    %v2821 = vld [vmem:[%s470 + $0x21] sm:$0xff]
    %v2822 = vld [vmem:[%s470 + $0x31] sm:$0xff]
    %v2823 = vld [vmem:[%s470 + $0x41] sm:$0xff]
    %v2824 = vld [vmem:[%s470 + $0x51] sm:$0xff]
    %v2825 = vld [vmem:[%s470 + $0x61] sm:$0xff]
    %v2826 = vld [vmem:[%s470 + $0x71] sm:$0xff]
    %v2827 = vld [vmem:[%s470 + $0xa1] sm:$0xff]
    %v2828 = vld [vmem:[%s470 + $0xb1] sm:$0xff]
    %v2829 = vld [vmem:[%s470 + $0xc1] sm:$0xff]
    %v2830 = vld [vmem:[%s470 + $0xd1] sm:$0xff]
    %v2831 = vld [vmem:[%s470 + $0xe1] sm:$0xff]
    %v2832 = vld [vmem:[%s470 + $0xf1] sm:$0xff]
    %v2833 = vld [vmem:[%s470 + $0x101] sm:$0xff]
    %v2834 = vld [vmem:[%s470 + $0x111] sm:$0xff]
    %v2835 = vpack.c.bf16 %v2820, %v2819
    %v2836 = vpack.c.bf16 %v2822, %v2821
    %v2837 = vpack.c.bf16 %v2824, %v2823
    %v2838 = vpack.c.bf16 %v2826, %v2825
    %v2839 = vpack.c.bf16 %v2828, %v2827
    %v2840 = vpack.c.bf16 %v2830, %v2829
    %v2841 = vpack.c.bf16 %v2832, %v2831
    %v2842 = vpack.c.bf16 %v2834, %v2833
    %2843 = vst.msk [vmem:[#allocation3 + $0x8] sm:$0xff] %vm66, %v2835
    %2844 = vst.msk [vmem:[#allocation3 + $0x20] sm:$0xff] %vm66, %v2836
    %2845 = vst.msk [vmem:[#allocation3 + $0x38] sm:$0xff] %vm66, %v2837
    %2846 = vst.msk [vmem:[#allocation3 + $0x50] sm:$0xff] %vm66, %v2838
    %2847 = vst.msk [vmem:[#allocation3 + $0x68] sm:$0xff] %vm66, %v2839
    %2848 = vst.msk [vmem:[#allocation3 + $0x80] sm:$0xff] %vm66, %v2840
    %2849 = vst.msk [vmem:[#allocation3 + $0x98] sm:$0xff] %vm66, %v2841
    %2850 = vst.msk [vmem:[#allocation3 + $0xb0] sm:$0xff] %vm66, %v2842
    %v2851 = vld [vmem:[%s470 + $0x2] sm:$0xff]
    %v2852 = vld [vmem:[%s470 + $0x12] sm:$0xff]
    %v2853 = vld [vmem:[%s470 + $0x22] sm:$0xff]
    %v2854 = vld [vmem:[%s470 + $0x32] sm:$0xff]
    %v2855 = vld [vmem:[%s470 + $0x42] sm:$0xff]
    %v2856 = vld [vmem:[%s470 + $0x52] sm:$0xff]
    %v2857 = vld [vmem:[%s470 + $0x62] sm:$0xff]
    %v2858 = vld [vmem:[%s470 + $0x72] sm:$0xff]
    %v2859 = vld [vmem:[%s470 + $0xa2] sm:$0xff]
    %v2860 = vld [vmem:[%s470 + $0xb2] sm:$0xff]
    %v2861 = vld [vmem:[%s470 + $0xc2] sm:$0xff]
    %v2862 = vld [vmem:[%s470 + $0xd2] sm:$0xff]
    %v2863 = vld [vmem:[%s470 + $0xe2] sm:$0xff]
    %v2864 = vld [vmem:[%s470 + $0xf2] sm:$0xff]
    %v2865 = vld [vmem:[%s470 + $0x102] sm:$0xff]
    %v2866 = vld [vmem:[%s470 + $0x112] sm:$0xff]
    %v2867 = vpack.c.bf16 %v2852, %v2851
    %v2868 = vpack.c.bf16 %v2854, %v2853
    %v2869 = vpack.c.bf16 %v2856, %v2855
    %v2870 = vpack.c.bf16 %v2858, %v2857
    %v2871 = vpack.c.bf16 %v2860, %v2859
    %v2872 = vpack.c.bf16 %v2862, %v2861
    %v2873 = vpack.c.bf16 %v2864, %v2863
    %v2874 = vpack.c.bf16 %v2866, %v2865
    %2883 = vrot.lane.b32.xlu0 %v2867, 32
    %v2884 = vpop.permute.xlu0 %2883
    %2885 = vrot.lane.b32.xlu0 %v2868, 32
    %v2886 = vpop.permute.xlu0 %2885
    %2887 = vrot.lane.b32.xlu0 %v2869, 32
    %v2888 = vpop.permute.xlu0 %2887
    %2889 = vrot.lane.b32.xlu0 %v2870, 32
    %v2890 = vpop.permute.xlu0 %2889
    %2891 = vrot.lane.b32.xlu0 %v2871, 32
    %v2892 = vpop.permute.xlu0 %2891
    %2893 = vrot.lane.b32.xlu0 %v2872, 32
    %v2894 = vpop.permute.xlu0 %2893
    %2895 = vrot.lane.b32.xlu0 %v2873, 32
    %v2896 = vpop.permute.xlu0 %2895
    %2897 = vrot.lane.b32.xlu0 %v2874, 32
    %v2898 = vpop.permute.xlu0 %2897
    %2907 = vst.msk [vmem:[#allocation3 + $0x8] sm:$0xff] %vm575, %v2884
    %2908 = vst.msk [vmem:[#allocation3 + $0x20] sm:$0xff] %vm575, %v2886
    %2909 = vst.msk [vmem:[#allocation3 + $0x38] sm:$0xff] %vm575, %v2888
    %2910 = vst.msk [vmem:[#allocation3 + $0x50] sm:$0xff] %vm575, %v2890
    %2911 = vst.msk [vmem:[#allocation3 + $0x68] sm:$0xff] %vm575, %v2892
    %2912 = vst.msk [vmem:[#allocation3 + $0x80] sm:$0xff] %vm575, %v2894
    %2913 = vst.msk [vmem:[#allocation3 + $0x98] sm:$0xff] %vm575, %v2896
    %2914 = vst.msk [vmem:[#allocation3 + $0xb0] sm:$0xff] %vm575, %v2898
    %v2915 = vld [vmem:[%s810] sm:$0xff]
    %v2916 = vld [vmem:[%s810 + $0x10] sm:$0xff]
    %v2917 = vld [vmem:[%s810 + $0x20] sm:$0xff]
    %v2918 = vld [vmem:[%s810 + $0x30] sm:$0xff]
    %v2919 = vld [vmem:[%s810 + $0x40] sm:$0xff]
    %v2920 = vld [vmem:[%s810 + $0x50] sm:$0xff]
    %v2921 = vld [vmem:[%s810 + $0x60] sm:$0xff]
    %v2922 = vld [vmem:[%s810 + $0x70] sm:$0xff]
    %v2923 = vld [vmem:[%s810 + $0xa0] sm:$0xff]
    %v2924 = vld [vmem:[%s810 + $0xb0] sm:$0xff]
    %v2925 = vld [vmem:[%s810 + $0xc0] sm:$0xff]
    %v2926 = vld [vmem:[%s810 + $0xd0] sm:$0xff]
    %v2927 = vld [vmem:[%s810 + $0xe0] sm:$0xff]
    %v2928 = vld [vmem:[%s810 + $0xf0] sm:$0xff]
    %v2929 = vld [vmem:[%s810 + $0x100] sm:$0xff]
    %v2930 = vld [vmem:[%s810 + $0x110] sm:$0xff]
    %v2931 = vpack.c.bf16 %v2916, %v2915
    %v2932 = vpack.c.bf16 %v2918, %v2917
    %v2933 = vpack.c.bf16 %v2920, %v2919
    %v2934 = vpack.c.bf16 %v2922, %v2921
    %v2935 = vpack.c.bf16 %v2924, %v2923
    %v2936 = vpack.c.bf16 %v2926, %v2925
    %v2937 = vpack.c.bf16 %v2928, %v2927
    %v2938 = vpack.c.bf16 %v2930, %v2929
    %2947 = vrot.lane.b32.xlu0 %v2931, 64
    %v2948 = vpop.permute.xlu0 %2947
    %2949 = vrot.lane.b32.xlu0 %v2932, 64
    %v2950 = vpop.permute.xlu0 %2949
    %2951 = vrot.lane.b32.xlu0 %v2933, 64
    %v2952 = vpop.permute.xlu0 %2951
    %2953 = vrot.lane.b32.xlu0 %v2934, 64
    %v2954 = vpop.permute.xlu0 %2953
    %2955 = vrot.lane.b32.xlu0 %v2935, 64
    %v2956 = vpop.permute.xlu0 %2955
    %2957 = vrot.lane.b32.xlu0 %v2936, 64
    %v2958 = vpop.permute.xlu0 %2957
    %2959 = vrot.lane.b32.xlu0 %v2937, 64
    %v2960 = vpop.permute.xlu0 %2959
    %2961 = vrot.lane.b32.xlu0 %v2938, 64
    %v2962 = vpop.permute.xlu0 %2961
    %2971 = vst.msk [vmem:[#allocation3 + $0x8] sm:$0xff] %vm640, %v2948
    %2972 = vst.msk [vmem:[#allocation3 + $0x20] sm:$0xff] %vm640, %v2950
    %2973 = vst.msk [vmem:[#allocation3 + $0x38] sm:$0xff] %vm640, %v2952
    %2974 = vst.msk [vmem:[#allocation3 + $0x50] sm:$0xff] %vm640, %v2954
    %2975 = vst.msk [vmem:[#allocation3 + $0x68] sm:$0xff] %vm640, %v2956
    %2976 = vst.msk [vmem:[#allocation3 + $0x80] sm:$0xff] %vm640, %v2958
    %2977 = vst.msk [vmem:[#allocation3 + $0x98] sm:$0xff] %vm640, %v2960
    %2978 = vst.msk [vmem:[#allocation3 + $0xb0] sm:$0xff] %vm640, %v2962
    %v2979 = vld [vmem:[%s810 + $0x1] sm:$0xff]
    %v2980 = vld [vmem:[%s810 + $0x11] sm:$0xff]
    %v2981 = vld [vmem:[%s810 + $0x21] sm:$0xff]
    %v2982 = vld [vmem:[%s810 + $0x31] sm:$0xff]
    %v2983 = vld [vmem:[%s810 + $0x41] sm:$0xff]
    %v2984 = vld [vmem:[%s810 + $0x51] sm:$0xff]
    %v2985 = vld [vmem:[%s810 + $0x61] sm:$0xff]
    %v2986 = vld [vmem:[%s810 + $0x71] sm:$0xff]
    %v2987 = vld [vmem:[%s810 + $0xa1] sm:$0xff]
    %v2988 = vld [vmem:[%s810 + $0xb1] sm:$0xff]
    %v2989 = vld [vmem:[%s810 + $0xc1] sm:$0xff]
    %v2990 = vld [vmem:[%s810 + $0xd1] sm:$0xff]
    %v2991 = vld [vmem:[%s810 + $0xe1] sm:$0xff]
    %v2992 = vld [vmem:[%s810 + $0xf1] sm:$0xff]
    %v2993 = vld [vmem:[%s810 + $0x101] sm:$0xff]
    %v2994 = vld [vmem:[%s810 + $0x111] sm:$0xff]
    %v2995 = vpack.c.bf16 %v2980, %v2979
    %v2996 = vpack.c.bf16 %v2982, %v2981
    %v2997 = vpack.c.bf16 %v2984, %v2983
    %v2998 = vpack.c.bf16 %v2986, %v2985
    %v2999 = vpack.c.bf16 %v2988, %v2987
    %v3000 = vpack.c.bf16 %v2990, %v2989
    %v3001 = vpack.c.bf16 %v2992, %v2991
    %v3002 = vpack.c.bf16 %v2994, %v2993
    %3011 = vrot.lane.b32.xlu0 %v2995, 96
    %v3012 = vpop.permute.xlu0 %3011
    %3013 = vrot.lane.b32.xlu0 %v2996, 96
    %v3014 = vpop.permute.xlu0 %3013
    %3015 = vrot.lane.b32.xlu0 %v2997, 96
    %v3016 = vpop.permute.xlu0 %3015
    %3017 = vrot.lane.b32.xlu0 %v2998, 96
    %v3018 = vpop.permute.xlu0 %3017
    %3019 = vrot.lane.b32.xlu0 %v2999, 96
    %v3020 = vpop.permute.xlu0 %3019
    %3021 = vrot.lane.b32.xlu0 %v3000, 96
    %v3022 = vpop.permute.xlu0 %3021
    %3023 = vrot.lane.b32.xlu0 %v3001, 96
    %v3024 = vpop.permute.xlu0 %3023
    %3025 = vrot.lane.b32.xlu0 %v3002, 96
    %v3026 = vpop.permute.xlu0 %3025
    %3035 = vst.msk [vmem:[#allocation3 + $0x8] sm:$0xff] %vm705, %v3012
    %3036 = vst.msk [vmem:[#allocation3 + $0x20] sm:$0xff] %vm705, %v3014
    %3037 = vst.msk [vmem:[#allocation3 + $0x38] sm:$0xff] %vm705, %v3016
    %3038 = vst.msk [vmem:[#allocation3 + $0x50] sm:$0xff] %vm705, %v3018
    %3039 = vst.msk [vmem:[#allocation3 + $0x68] sm:$0xff] %vm705, %v3020
    %3040 = vst.msk [vmem:[#allocation3 + $0x80] sm:$0xff] %vm705, %v3022
    %3041 = vst.msk [vmem:[#allocation3 + $0x98] sm:$0xff] %vm705, %v3024
    %3042 = vst.msk [vmem:[#allocation3 + $0xb0] sm:$0xff] %vm705, %v3026
    %v3043 = vld [vmem:[%s810 + $0x2] sm:$0xff]
    %v3044 = vld [vmem:[%s810 + $0x12] sm:$0xff]
    %v3045 = vld [vmem:[%s810 + $0x22] sm:$0xff]
    %v3046 = vld [vmem:[%s810 + $0x32] sm:$0xff]
    %v3047 = vld [vmem:[%s810 + $0x42] sm:$0xff]
    %v3048 = vld [vmem:[%s810 + $0x52] sm:$0xff]
    %v3049 = vld [vmem:[%s810 + $0x62] sm:$0xff]
    %v3050 = vld [vmem:[%s810 + $0x72] sm:$0xff]
    %v3051 = vld [vmem:[%s810 + $0xa2] sm:$0xff]
    %v3052 = vld [vmem:[%s810 + $0xb2] sm:$0xff]
    %v3053 = vld [vmem:[%s810 + $0xc2] sm:$0xff]
    %v3054 = vld [vmem:[%s810 + $0xd2] sm:$0xff]
    %v3055 = vld [vmem:[%s810 + $0xe2] sm:$0xff]
    %v3056 = vld [vmem:[%s810 + $0xf2] sm:$0xff]
    %v3057 = vld [vmem:[%s810 + $0x102] sm:$0xff]
    %v3058 = vld [vmem:[%s810 + $0x112] sm:$0xff]
    %v3059 = vpack.c.bf16 %v3044, %v3043
    %v3060 = vpack.c.bf16 %v3046, %v3045
    %v3061 = vpack.c.bf16 %v3048, %v3047
    %v3062 = vpack.c.bf16 %v3050, %v3049
    %v3063 = vpack.c.bf16 %v3052, %v3051
    %v3064 = vpack.c.bf16 %v3054, %v3053
    %v3065 = vpack.c.bf16 %v3056, %v3055
    %v3066 = vpack.c.bf16 %v3058, %v3057
    %3067 = vst.msk [vmem:[#allocation3 + $0x10] sm:$0xff] %vm66, %v3059
    %3068 = vst.msk [vmem:[#allocation3 + $0x28] sm:$0xff] %vm66, %v3060
    %3069 = vst.msk [vmem:[#allocation3 + $0x40] sm:$0xff] %vm66, %v3061
    %3070 = vst.msk [vmem:[#allocation3 + $0x58] sm:$0xff] %vm66, %v3062
    %3071 = vst.msk [vmem:[#allocation3 + $0x70] sm:$0xff] %vm66, %v3063
    %3072 = vst.msk [vmem:[#allocation3 + $0x88] sm:$0xff] %vm66, %v3064
    %3073 = vst.msk [vmem:[#allocation3 + $0xa0] sm:$0xff] %vm66, %v3065
    %3074 = vst.msk [vmem:[#allocation3 + $0xb8] sm:$0xff] %vm66, %v3066
    %v3075 = vld [vmem:[#allocation3] sm:$0xff]
    %v3076 = vld [vmem:[#allocation3 + $0x8] sm:$0xff]
    %v3077 = vld [vmem:[#allocation3 + $0x10] sm:$0xff]
    %v3078 = vld [vmem:[#allocation3 + $0x18] sm:$0xff]
    %v3079 = vld [vmem:[#allocation3 + $0x20] sm:$0xff]
    %v3080 = vld [vmem:[#allocation3 + $0x28] sm:$0xff]
    %v3081 = vld [vmem:[#allocation3 + $0x30] sm:$0xff]
    %v3082 = vld [vmem:[#allocation3 + $0x38] sm:$0xff]
    %v3083 = vld [vmem:[#allocation3 + $0x40] sm:$0xff]
    %v3084 = vld [vmem:[#allocation3 + $0x48] sm:$0xff]
    %v3085 = vld [vmem:[#allocation3 + $0x50] sm:$0xff]
    %v3086 = vld [vmem:[#allocation3 + $0x58] sm:$0xff]
    %v3087 = vld [vmem:[#allocation3 + $0x60] sm:$0xff]
    %v3088 = vld [vmem:[#allocation3 + $0x68] sm:$0xff]
    %v3089 = vld [vmem:[#allocation3 + $0x70] sm:$0xff]
    %v3090 = vld [vmem:[#allocation3 + $0x78] sm:$0xff]
    %v3091 = vld [vmem:[#allocation3 + $0x80] sm:$0xff]
    %v3092 = vld [vmem:[#allocation3 + $0x88] sm:$0xff]
    %v3093 = vld [vmem:[#allocation3 + $0x90] sm:$0xff]
    %v3094 = vld [vmem:[#allocation3 + $0x98] sm:$0xff]
    %v3095 = vld [vmem:[#allocation3 + $0xa0] sm:$0xff]
    %v3096 = vld [vmem:[#allocation3 + $0xa8] sm:$0xff]
    %v3097 = vld [vmem:[#allocation3 + $0xb0] sm:$0xff]
    %v3098 = vld [vmem:[#allocation3 + $0xb8] sm:$0xff]
    %v3099 = vld [vmem:[%s10] sm:$0xf]
    %v3100 = vld [vmem:[%s10 + $0x4] sm:$0xf]
    %v3101 = vld [vmem:[%s10 + $0x8] sm:$0xf]
    %v3102 = vld [vmem:[%s10 + $0xc] sm:$0xf]
    %v3103 = vld [vmem:[%s10 + $0x10] sm:$0xf]
    %v3104 = vld [vmem:[%s10 + $0x14] sm:$0xf]
    %v3105 = vld [vmem:[%s10 + $0x18] sm:$0xf]
    %v3106 = vld [vmem:[%s10 + $0x1c] sm:$0xf]
    %v3107 = vld [vmem:[%s10 + $0x20] sm:$0xf]
    %v3108 = vld [vmem:[%s10 + $0x24] sm:$0xf]
    %v3109 = vld [vmem:[%s10 + $0x28] sm:$0xf]
    %v3110 = vld [vmem:[%s10 + $0x2c] sm:$0xf]
    %v3111 = vld [vmem:[%s10 + $0x30] sm:$0xf]
    %v3112 = vld [vmem:[%s10 + $0x34] sm:$0xf]
    %v3113 = vld [vmem:[%s10 + $0x38] sm:$0xf]
    %v3114 = vld [vmem:[%s10 + $0x3c] sm:$0xf]
    %v3115 = vld [vmem:[%s10 + $0x40] sm:$0xf]
    %v3116 = vld [vmem:[%s10 + $0x44] sm:$0xf]
    %v3117 = vld [vmem:[%s10 + $0x48] sm:$0xf]
    %v3118 = vld [vmem:[%s10 + $0x4c] sm:$0xf]
    %v3119 = vld [vmem:[%s10 + $0x50] sm:$0xf]
    %v3120 = vld [vmem:[%s10 + $0x54] sm:$0xf]
    %v3121 = vld [vmem:[%s10 + $0x58] sm:$0xf]
    %v3122 = vld [vmem:[%s10 + $0x5c] sm:$0xf]
    %v3123 = vld [vmem:[%s10 + $0x60] sm:$0xf]
    %v3124 = vld [vmem:[%s10 + $0x64] sm:$0xf]
    %v3125 = vld [vmem:[%s10 + $0x68] sm:$0xf]
    %v3126 = vld [vmem:[%s10 + $0x6c] sm:$0xf]
    %v3127 = vld [vmem:[%s10 + $0x70] sm:$0xf]
    %v3128 = vld [vmem:[%s10 + $0x74] sm:$0xf]
    %v3129 = vld [vmem:[%s10 + $0x78] sm:$0xf]
    %v3130 = vld [vmem:[%s10 + $0x7c] sm:$0xf]
    %v3131 = vld [vmem:[%s10 + $0x80] sm:$0xf]
    %v3132 = vld [vmem:[%s10 + $0x84] sm:$0xf]
    %v3133 = vld [vmem:[%s10 + $0x88] sm:$0xf]
    %v3134 = vld [vmem:[%s10 + $0x8c] sm:$0xf]
    %v3171 = vunpack.c.l.b16 %v3099
    %v3172 = vunpack.c.l.b16 %v3100
    %v3173 = vunpack.c.l.b16 %v3101
    %v3174 = vunpack.c.l.b16 %v3102
    %v3175 = vunpack.c.l.b16 %v3103
    %v3176 = vunpack.c.l.b16 %v3104
    %v3177 = vunpack.c.l.b16 %v3105
    %v3178 = vunpack.c.l.b16 %v3106
    %v3179 = vunpack.c.l.b16 %v3107
    %v3180 = vunpack.c.l.b16 %v3108
    %v3181 = vunpack.c.l.b16 %v3109
    %v3182 = vunpack.c.l.b16 %v3110
    %v3183 = vunpack.c.l.b16 %v3111
    %v3184 = vunpack.c.l.b16 %v3112
    %v3185 = vunpack.c.l.b16 %v3113
    %v3186 = vunpack.c.l.b16 %v3114
    %v3187 = vunpack.c.l.b16 %v3115
    %v3188 = vunpack.c.l.b16 %v3116
    %v3189 = vunpack.c.l.b16 %v3117
    %v3190 = vunpack.c.l.b16 %v3118
    %v3191 = vunpack.c.l.b16 %v3119
    %v3192 = vunpack.c.l.b16 %v3120
    %v3193 = vunpack.c.l.b16 %v3121
    %v3194 = vunpack.c.l.b16 %v3122
    %v3195 = vunpack.c.l.b16 %v3123
    %v3196 = vunpack.c.l.b16 %v3124
    %v3197 = vunpack.c.l.b16 %v3125
    %v3198 = vunpack.c.l.b16 %v3126
    %v3199 = vunpack.c.l.b16 %v3127
    %v3200 = vunpack.c.l.b16 %v3128
    %v3201 = vunpack.c.l.b16 %v3129
    %v3202 = vunpack.c.l.b16 %v3130
    %v3203 = vunpack.c.l.b16 %v3131
    %v3204 = vunpack.c.l.b16 %v3132
    %v3205 = vunpack.c.l.b16 %v3133
    %v3206 = vunpack.c.l.b16 %v3134
    %v3207 = vpack.c.b16 %v3172, %v3171
    %v3208 = vpack.c.b16 %v3174, %v3173
    %v3209 = vpack.c.b16 %v3176, %v3175
    %v3210 = vpack.c.b16 %v3178, %v3177
    %v3211 = vpack.c.b16 %v3180, %v3179
    %v3212 = vpack.c.b16 %v3182, %v3181
    %v3213 = vpack.c.b16 %v3184, %v3183
    %v3214 = vpack.c.b16 %v3186, %v3185
    %v3215 = vpack.c.b16 %v3188, %v3187
    %v3216 = vpack.c.b16 %v3190, %v3189
    %v3217 = vpack.c.b16 %v3192, %v3191
    %v3218 = vpack.c.b16 %v3194, %v3193
    %v3219 = vpack.c.b16 %v3196, %v3195
    %v3220 = vpack.c.b16 %v3198, %v3197
    %v3221 = vpack.c.b16 %v3200, %v3199
    %v3222 = vpack.c.b16 %v3202, %v3201
    %v3223 = vpack.c.b16 %v3204, %v3203
    %v3224 = vpack.c.b16 %v3206, %v3205
    %v3244 = vsel %vm66, %v3077, 0
    %v3247 = vsel %vm66, %v3080, 0
    %v3250 = vsel %vm66, %v3083, 0
    %v3253 = vsel %vm66, %v3086, 0
    %v3256 = vsel %vm66, %v3089, 0
    %v3259 = vsel %vm66, %v3092, 0
    %v3262 = vsel %vm66, %v3095, 0
    %v3265 = vsel %vm66, %v3098, 0
    %3267 = vmatprep.subr.bf16.mxu0 0
    %3268 = vmatpush1.bf16.msra.mxu0 %v3207
    %3269 = vmatprep.subr.bf16.mxu0 0
    %3270 = vmatpush1.bf16.msra.mxu0 %v3208
    %3271 = vmatprep.subr.bf16.mxu0 0
    %3272 = vmatpush1.bf16.msra.mxu0 %v3209
    %3273 = vmatprep.subr.bf16.mxu0 0
    %3274 = vmatpush1.bf16.msra.mxu0 %v3210
    %3275 = vmatprep.subr.bf16.mxu0 0
    %3276 = vmatpush1.bf16.msra.mxu0 %v3211
    %3277 = vmatprep.subr.bf16.mxu0 0
    %3278 = vmatpush1.bf16.msra.mxu0 %v3212
    %3279 = vmatprep.subr.bf16.mxu0 0
    %3280 = vmatpush1.bf16.msra.mxu0 %v3213
    %3281 = vmatprep.subr.bf16.mxu0 0
    %3282 = vmatpush1.bf16.msra.mxu0 %v3214
    %3283 = vmatprep.subr.bf16.mxu0 0
    %3284 = vmatpush1.bf16.msra.mxu0 %v3215
    %3285 = vmatprep.subr.bf16.mxu0 0
    %3286 = vmatpush1.bf16.msra.mxu0 %v3216
    %3287 = vmatprep.subr.bf16.mxu0 0
    %3288 = vmatpush1.bf16.msra.mxu0 %v3217
    %3289 = vmatprep.subr.bf16.mxu0 0
    %3290 = vmatpush1.bf16.msra.mxu0 %v3218
    %3291 = vmatprep.subr.bf16.mxu0 0
    %3292 = vmatpush1.bf16.msra.mxu0 %v3219
    %3293 = vmatprep.subr.bf16.mxu0 0
    %3294 = vmatpush1.bf16.msra.mxu0 %v3220
    %3295 = vmatprep.subr.bf16.mxu0 0
    %3296 = vmatpush1.bf16.msra.mxu0 %v3221
    %3297 = vmatprep.subr.bf16.mxu0 0
    %3298 = vmatpush1.bf16.msra.mxu0 %v3222
    %3299 = vmatprep.mubr.bf16.mxu0 %v3076
    %3300 = vmatmul.mubr.bf16.gmra.mrb[0].mxu0 %v3075
    %v3301 = vpop.f32.mrb[0].mxu0
    %v3302 = vadd.f32 0.0, %v3301
    %v3303 = vpop.f32.mrb[0].mxu0
    %v3304 = vpop.f32.mrb[0].mxu0
    %v3305 = vadd.f32 0.0, %v3304
    %v3306 = vpop.f32.mrb[0].mxu0
    %3307 = vmatprep.mubr.bf16.mxu0 %v3079
    %3308 = vmatmul.mubr.bf16.gmra.mrb[0].mxu0 %v3078
    %v3309 = vpop.f32.mrb[0].mxu0
    %v3310 = vadd.f32 0.0, %v3309
    %v3311 = vpop.f32.mrb[0].mxu0
    %v3312 = vpop.f32.mrb[0].mxu0
    %v3313 = vadd.f32 0.0, %v3312
    %v3314 = vpop.f32.mrb[0].mxu0
    %3315 = vmatprep.mubr.bf16.mxu0 %v3082
    %3316 = vmatmul.mubr.bf16.gmra.mrb[0].mxu0 %v3081
    %v3317 = vpop.f32.mrb[0].mxu0
    %v3318 = vadd.f32 0.0, %v3317
    %v3319 = vpop.f32.mrb[0].mxu0
    %v3320 = vpop.f32.mrb[0].mxu0
    %v3321 = vadd.f32 0.0, %v3320
    %v3322 = vpop.f32.mrb[0].mxu0
    %3323 = vmatprep.mubr.bf16.mxu0 %v3085
    %3324 = vmatmul.mubr.bf16.gmra.mrb[0].mxu0 %v3084
    %v3325 = vpop.f32.mrb[0].mxu0
    %v3326 = vadd.f32 0.0, %v3325
    %v3327 = vpop.f32.mrb[0].mxu0
    %v3328 = vpop.f32.mrb[0].mxu0
    %v3329 = vadd.f32 0.0, %v3328
    %v3330 = vpop.f32.mrb[0].mxu0
    %3331 = vmatprep.mubr.bf16.mxu0 %v3088
    %3332 = vmatmul.mubr.bf16.gmra.mrb[0].mxu0 %v3087
    %v3333 = vpop.f32.mrb[0].mxu0
    %v3334 = vadd.f32 0.0, %v3333
    %v3335 = vpop.f32.mrb[0].mxu0
    %v3336 = vpop.f32.mrb[0].mxu0
    %v3337 = vadd.f32 0.0, %v3336
    %v3338 = vpop.f32.mrb[0].mxu0
    %3339 = vmatprep.mubr.bf16.mxu0 %v3091
    %3340 = vmatmul.mubr.bf16.gmra.mrb[0].mxu0 %v3090
    %v3341 = vpop.f32.mrb[0].mxu0
    %v3342 = vadd.f32 0.0, %v3341
    %v3343 = vpop.f32.mrb[0].mxu0
    %v3344 = vpop.f32.mrb[0].mxu0
    %v3345 = vadd.f32 0.0, %v3344
    %v3346 = vpop.f32.mrb[0].mxu0
    %3347 = vmatprep.mubr.bf16.mxu0 %v3094
    %3348 = vmatmul.mubr.bf16.gmra.mrb[0].mxu0 %v3093
    %v3349 = vpop.f32.mrb[0].mxu0
    %v3350 = vadd.f32 0.0, %v3349
    %v3351 = vpop.f32.mrb[0].mxu0
    %v3352 = vpop.f32.mrb[0].mxu0
    %v3353 = vadd.f32 0.0, %v3352
    %v3354 = vpop.f32.mrb[0].mxu0
    %3355 = vmatprep.mubr.bf16.mxu0 %v3097
    %3356 = vmatmul.mubr.bf16.gmra.mrb[0].mxu0 %v3096
    %v3357 = vpop.f32.mrb[0].mxu0
    %v3358 = vadd.f32 0.0, %v3357
    %v3359 = vpop.f32.mrb[0].mxu0
    %v3360 = vpop.f32.mrb[0].mxu0
    %v3361 = vadd.f32 0.0, %v3360
    %v3362 = vpop.f32.mrb[0].mxu0
    %3363 = vdwg.mxu0
    %3364 = vmatprep.subr.bf16.mxu0 0
    %3365 = vmatpush1.bf16.msra.mxu0 %v3223
    %3366 = vmatprep.subr.bf16.mxu0 0
    %3367 = vmatpush1.bf16.msra.mxu0 %v3224
    %3368 = vmatprep.subr.bf16.mxu0 0
    %3369 = vmatpush1.bf16.msra.mxu0 0
    %3370 = vmatprep.subr.bf16.mxu0 0
    %3371 = vmatpush1.bf16.msra.mxu0 0
    %3372 = vmatprep.subr.bf16.mxu0 0
    %3373 = vmatpush1.bf16.msra.mxu0 0
    %3374 = vmatprep.subr.bf16.mxu0 0
    %3375 = vmatpush1.bf16.msra.mxu0 0
    %3376 = vmatprep.subr.bf16.mxu0 0
    %3377 = vmatpush1.bf16.msra.mxu0 0
    %3378 = vmatprep.subr.bf16.mxu0 0
    %3379 = vmatpush1.bf16.msra.mxu0 0
    %3380 = vmatprep.subr.bf16.mxu0 0
    %3381 = vmatpush1.bf16.msra.mxu0 0
    %3382 = vmatprep.subr.bf16.mxu0 0
    %3383 = vmatpush1.bf16.msra.mxu0 0
    %3384 = vmatprep.subr.bf16.mxu0 0
    %3385 = vmatpush1.bf16.msra.mxu0 0
    %3386 = vmatprep.subr.bf16.mxu0 0
    %3387 = vmatpush1.bf16.msra.mxu0 0
    %3388 = vmatprep.subr.bf16.mxu0 0
    %3389 = vmatpush1.bf16.msra.mxu0 0
    %3390 = vmatprep.subr.bf16.mxu0 0
    %3391 = vmatpush1.bf16.msra.mxu0 0
    %3392 = vmatprep.subr.bf16.mxu0 0
    %3393 = vmatpush1.bf16.msra.mxu0 0
    %3394 = vmatprep.subr.bf16.mxu0 0
    %3395 = vmatpush1.bf16.msra.mxu0 0
    %3396 = vmatprep.mubr.bf16.mxu0 0
    %3397 = vmatmul.mubr.bf16.gmra.mrb[0].mxu0 %v3244
    %v3398 = vpop.f32.mrb[0].mxu0
    %v3399 = vadd.f32 %v3302, %v3398
    %v3400 = vpop.f32.mrb[0].mxu0
    %v3401 = vpop.f32.mrb[0].mxu0
    %v3402 = vadd.f32 %v3305, %v3401
    %v3403 = vpop.f32.mrb[0].mxu0
    %3404 = vmatprep.mubr.bf16.mxu0 0
    %3405 = vmatmul.mubr.bf16.gmra.mrb[0].mxu0 %v3247
    %v3406 = vpop.f32.mrb[0].mxu0
    %v3407 = vadd.f32 %v3310, %v3406
    %v3408 = vpop.f32.mrb[0].mxu0
    %v3409 = vpop.f32.mrb[0].mxu0
    %v3410 = vadd.f32 %v3313, %v3409
    %v3411 = vpop.f32.mrb[0].mxu0
    %3412 = vmatprep.mubr.bf16.mxu0 0
    %3413 = vmatmul.mubr.bf16.gmra.mrb[0].mxu0 %v3250
    %v3414 = vpop.f32.mrb[0].mxu0
    %v3415 = vadd.f32 %v3318, %v3414
    %v3416 = vpop.f32.mrb[0].mxu0
    %v3417 = vpop.f32.mrb[0].mxu0
    %v3418 = vadd.f32 %v3321, %v3417
    %v3419 = vpop.f32.mrb[0].mxu0
    %3420 = vmatprep.mubr.bf16.mxu0 0
    %3421 = vmatmul.mubr.bf16.gmra.mrb[0].mxu0 %v3253
    %v3422 = vpop.f32.mrb[0].mxu0
    %v3423 = vadd.f32 %v3326, %v3422
    %v3424 = vpop.f32.mrb[0].mxu0
    %v3425 = vpop.f32.mrb[0].mxu0
    %v3426 = vadd.f32 %v3329, %v3425
    %v3427 = vpop.f32.mrb[0].mxu0
    %3428 = vmatprep.mubr.bf16.mxu0 0
    %3429 = vmatmul.mubr.bf16.gmra.mrb[0].mxu0 %v3256
    %v3430 = vpop.f32.mrb[0].mxu0
    %v3431 = vadd.f32 %v3334, %v3430
    %v3432 = vpop.f32.mrb[0].mxu0
    %v3433 = vpop.f32.mrb[0].mxu0
    %v3434 = vadd.f32 %v3337, %v3433
    %v3435 = vpop.f32.mrb[0].mxu0
    %3436 = vmatprep.mubr.bf16.mxu0 0
    %3437 = vmatmul.mubr.bf16.gmra.mrb[0].mxu0 %v3259
    %v3438 = vpop.f32.mrb[0].mxu0
    %v3439 = vadd.f32 %v3342, %v3438
    %v3440 = vpop.f32.mrb[0].mxu0
    %v3441 = vpop.f32.mrb[0].mxu0
    %v3442 = vadd.f32 %v3345, %v3441
    %v3443 = vpop.f32.mrb[0].mxu0
    %3444 = vmatprep.mubr.bf16.mxu0 0
    %3445 = vmatmul.mubr.bf16.gmra.mrb[0].mxu0 %v3262
    %v3446 = vpop.f32.mrb[0].mxu0
    %v3447 = vadd.f32 %v3350, %v3446
    %v3448 = vpop.f32.mrb[0].mxu0
    %v3449 = vpop.f32.mrb[0].mxu0
    %v3450 = vadd.f32 %v3353, %v3449
    %v3451 = vpop.f32.mrb[0].mxu0
    %3452 = vmatprep.mubr.bf16.mxu0 0
    %3453 = vmatmul.mubr.bf16.gmra.mrb[0].mxu0 %v3265
    %v3454 = vpop.f32.mrb[0].mxu0
    %v3455 = vadd.f32 %v3358, %v3454
    %v3456 = vpop.f32.mrb[0].mxu0
    %v3457 = vpop.f32.mrb[0].mxu0
    %v3458 = vadd.f32 %v3361, %v3457
    %v3459 = vpop.f32.mrb[0].mxu0
    %3460 = vdwg.mxu0
    %v3461 = vld [vmem:[%s11] sm:$0x1]
    %v3462 = vld [vmem:[%s12] sm:$0x1]
    %v3463 = vsel %vm66, %v3399, 0.0
    %v3464 = vsel %vm66, %v3402, 0.0
    %v3465 = vadd.f32 %v3463, %v3464
    %v3466 = vsel %vm66, %v3407, 0.0
    %v3467 = vadd.f32 %v3465, %v3466
    %v3468 = vsel %vm66, %v3410, 0.0
    %v3469 = vadd.f32 %v3467, %v3468
    %v3470 = vsel %vm66, %v3415, 0.0
    %v3471 = vadd.f32 %v3469, %v3470
    %v3472 = vsel %vm66, %v3418, 0.0
    %v3473 = vadd.f32 %v3471, %v3472
    %v3474 = vsel %vm66, %v3423, 0.0
    %v3475 = vadd.f32 %v3473, %v3474
    %v3476 = vsel %vm66, %v3426, 0.0
    %v3477 = vadd.f32 %v3475, %v3476
    %v3478 = vsel %vm66, %v3431, 0.0
    %v3479 = vadd.f32 %v3477, %v3478
    %v3480 = vsel %vm66, %v3434, 0.0
    %v3481 = vadd.f32 %v3479, %v3480
    %v3482 = vsel %vm66, %v3439, 0.0
    %v3483 = vadd.f32 %v3481, %v3482
    %v3484 = vsel %vm66, %v3442, 0.0
    %v3485 = vadd.f32 %v3483, %v3484
    %v3486 = vsel %vm66, %v3447, 0.0
    %v3487 = vadd.f32 %v3485, %v3486
    %v3488 = vsel %vm66, %v3450, 0.0
    %v3489 = vadd.f32 %v3487, %v3488
    %v3490 = vsel %vm66, %v3455, 0.0
    %v3491 = vadd.f32 %v3489, %v3490
    %v3492 = vsel %vm66, %v3458, 0.0
    %v3493 = vadd.f32 %v3491, %v3492
    %v3494 = vrot.slane %v3493, 4
    %v3495 = vadd.f32 %v3493, %v3494
    %v3496 = vrot.slane %v3495, 2
    %v3497 = vadd.f32 %v3495, %v3496
    %v3498 = vrot.slane %v3497, 1
    %v3499 = vadd.f32 %v3497, %v3498
    %v3500 = vmul.f32 %v3399, %v3399
    %v3501 = vmul.f32 %v3402, %v3402
    %v3502 = vmul.f32 %v3407, %v3407
    %v3503 = vmul.f32 %v3410, %v3410
    %v3504 = vmul.f32 %v3415, %v3415
    %v3505 = vmul.f32 %v3418, %v3418
    %v3506 = vmul.f32 %v3423, %v3423
    %v3507 = vmul.f32 %v3426, %v3426
    %v3508 = vmul.f32 %v3431, %v3431
    %v3509 = vmul.f32 %v3434, %v3434
    %v3510 = vmul.f32 %v3439, %v3439
    %v3511 = vmul.f32 %v3442, %v3442
    %v3512 = vmul.f32 %v3447, %v3447
    %v3513 = vmul.f32 %v3450, %v3450
    %v3514 = vmul.f32 %v3455, %v3455
    %v3515 = vmul.f32 %v3458, %v3458
    %v3516 = vsel %vm66, %v3500, 0.0
    %v3517 = vsel %vm66, %v3501, 0.0
    %v3518 = vadd.f32 %v3516, %v3517
    %v3519 = vsel %vm66, %v3502, 0.0
    %v3520 = vadd.f32 %v3518, %v3519
    %v3521 = vsel %vm66, %v3503, 0.0
    %v3522 = vadd.f32 %v3520, %v3521
    %v3523 = vsel %vm66, %v3504, 0.0
    %v3524 = vadd.f32 %v3522, %v3523
    %v3525 = vsel %vm66, %v3505, 0.0
    %v3526 = vadd.f32 %v3524, %v3525
    %v3527 = vsel %vm66, %v3506, 0.0
    %v3528 = vadd.f32 %v3526, %v3527
    %v3529 = vsel %vm66, %v3507, 0.0
    %v3530 = vadd.f32 %v3528, %v3529
    %v3531 = vsel %vm66, %v3508, 0.0
    %v3532 = vadd.f32 %v3530, %v3531
    %v3533 = vsel %vm66, %v3509, 0.0
    %v3534 = vadd.f32 %v3532, %v3533
    %v3535 = vsel %vm66, %v3510, 0.0
    %v3536 = vadd.f32 %v3534, %v3535
    %v3537 = vsel %vm66, %v3511, 0.0
    %v3538 = vadd.f32 %v3536, %v3537
    %v3539 = vsel %vm66, %v3512, 0.0
    %v3540 = vadd.f32 %v3538, %v3539
    %v3541 = vsel %vm66, %v3513, 0.0
    %v3542 = vadd.f32 %v3540, %v3541
    %v3543 = vsel %vm66, %v3514, 0.0
    %v3544 = vadd.f32 %v3542, %v3543
    %v3545 = vsel %vm66, %v3515, 0.0
    %v3546 = vadd.f32 %v3544, %v3545
    %v3547 = vrot.slane %v3546, 4
    %v3548 = vadd.f32 %v3546, %v3547
    %v3549 = vrot.slane %v3548, 2
    %v3550 = vadd.f32 %v3548, %v3549
    %v3551 = vrot.slane %v3550, 1
    %v3552 = vadd.f32 %v3550, %v3551
    %v3553 = vmul.f32 %v3499, 0.0078125
    %v3554 = vmul.f32 %v3552, 0.0078125
    %v3555 = vmul.f32 %v3553, %v3553
    %v3556 = vsub.f32 %v3554, %v3555
    %v3557 = vmax.f32 %v3556, 0.0
    %v3558 = vadd.f32 %v3557, 1e-05
    %v3559 = vrsqrt.pop %v3558
    %v3560 = vmul.f32 %v3461, %v3559
    %v3562 = vlaneseq
    %v3563 = vshrl.u32 %v3562, 7
    %v3564 = vsub.s32 0, %v3563
    %v3565 = vrot.slane %v3560, %v3564
    %v3567 = vmul.f32 %v3399, %v3565
    %v3568 = vmul.f32 %v3402, %v3565
    %v3569 = vmul.f32 %v3407, %v3565
    %v3570 = vmul.f32 %v3410, %v3565
    %v3571 = vmul.f32 %v3415, %v3565
    %v3572 = vmul.f32 %v3418, %v3565
    %v3573 = vmul.f32 %v3423, %v3565
    %v3574 = vmul.f32 %v3426, %v3565
    %v3575 = vmul.f32 %v3431, %v3565
    %v3576 = vmul.f32 %v3434, %v3565
    %v3577 = vmul.f32 %v3439, %v3565
    %v3578 = vmul.f32 %v3442, %v3565
    %v3579 = vmul.f32 %v3447, %v3565
    %v3580 = vmul.f32 %v3450, %v3565
    %v3581 = vmul.f32 %v3455, %v3565
    %v3582 = vmul.f32 %v3458, %v3565
    %v3583 = vmul.f32 %v3553, %v3560
    %v3584 = vsub.f32 %v3462, %v3583
    %v3586 = vlaneseq
    %v3587 = vshrl.u32 %v3586, 7
    %v3588 = vsub.s32 0, %v3587
    %v3589 = vrot.slane %v3584, %v3588
    %v3591 = vadd.f32 %v3567, %v3589
    %v3592 = vadd.f32 %v3568, %v3589
    %v3593 = vadd.f32 %v3569, %v3589
    %v3594 = vadd.f32 %v3570, %v3589
    %v3595 = vadd.f32 %v3571, %v3589
    %v3596 = vadd.f32 %v3572, %v3589
    %v3597 = vadd.f32 %v3573, %v3589
    %v3598 = vadd.f32 %v3574, %v3589
    %v3599 = vadd.f32 %v3575, %v3589
    %v3600 = vadd.f32 %v3576, %v3589
    %v3601 = vadd.f32 %v3577, %v3589
    %v3602 = vadd.f32 %v3578, %v3589
    %v3603 = vadd.f32 %v3579, %v3589
    %v3604 = vadd.f32 %v3580, %v3589
    %v3605 = vadd.f32 %v3581, %v3589
    %v3606 = vadd.f32 %v3582, %v3589
    %v3607 = vmax.f32 %v3591, 0.0
    %v3608 = vmax.f32 %v3592, 0.0
    %v3609 = vmax.f32 %v3593, 0.0
    %v3610 = vmax.f32 %v3594, 0.0
    %v3611 = vmax.f32 %v3595, 0.0
    %v3612 = vmax.f32 %v3596, 0.0
    %v3613 = vmax.f32 %v3597, 0.0
    %v3614 = vmax.f32 %v3598, 0.0
    %v3615 = vmax.f32 %v3599, 0.0
    %v3616 = vmax.f32 %v3600, 0.0
    %v3617 = vmax.f32 %v3601, 0.0
    %v3618 = vmax.f32 %v3602, 0.0
    %v3619 = vmax.f32 %v3603, 0.0
    %v3620 = vmax.f32 %v3604, 0.0
    %v3621 = vmax.f32 %v3605, 0.0
    %v3622 = vmax.f32 %v3606, 0.0
    %3623 = vst.msk [vmem:[%s470 + $0x1] sm:$0xff] %vm66, %v3607
    %3624 = vst.msk [vmem:[%s470 + $0x11] sm:$0xff] %vm66, %v3608
    %3625 = vst.msk [vmem:[%s470 + $0x21] sm:$0xff] %vm66, %v3609
    %3626 = vst.msk [vmem:[%s470 + $0x31] sm:$0xff] %vm66, %v3610
    %3627 = vst.msk [vmem:[%s470 + $0x41] sm:$0xff] %vm66, %v3611
    %3628 = vst.msk [vmem:[%s470 + $0x51] sm:$0xff] %vm66, %v3612
    %3629 = vst.msk [vmem:[%s470 + $0x61] sm:$0xff] %vm66, %v3613
    %3630 = vst.msk [vmem:[%s470 + $0x71] sm:$0xff] %vm66, %v3614
    %3631 = vst.msk [vmem:[%s470 + $0xa1] sm:$0xff] %vm66, %v3615
    %3632 = vst.msk [vmem:[%s470 + $0xb1] sm:$0xff] %vm66, %v3616
    %3633 = vst.msk [vmem:[%s470 + $0xc1] sm:$0xff] %vm66, %v3617
    %3634 = vst.msk [vmem:[%s470 + $0xd1] sm:$0xff] %vm66, %v3618
    %3635 = vst.msk [vmem:[%s470 + $0xe1] sm:$0xff] %vm66, %v3619
    %3636 = vst.msk [vmem:[%s470 + $0xf1] sm:$0xff] %vm66, %v3620
    %3637 = vst.msk [vmem:[%s470 + $0x101] sm:$0xff] %vm66, %v3621
    %3638 = vst.msk [vmem:[%s470 + $0x111] sm:$0xff] %vm66, %v3622
    %v3639 = vld [vmem:[#allocation2] sm:$0xff]
    %v3640 = vld [vmem:[#allocation2 + $0x10] sm:$0xff]
    %v3641 = vld [vmem:[#allocation2 + $0x20] sm:$0xff]
    %v3642 = vld [vmem:[#allocation2 + $0x30] sm:$0xff]
    %v3643 = vld [vmem:[#allocation2 + $0x40] sm:$0xff]
    %v3644 = vld [vmem:[#allocation2 + $0x50] sm:$0xff]
    %v3645 = vld [vmem:[#allocation2 + $0x60] sm:$0xff]
    %v3646 = vld [vmem:[#allocation2 + $0x70] sm:$0xff]
    %v3647 = vld [vmem:[#allocation2 + $0xa0] sm:$0xff]
    %v3648 = vld [vmem:[#allocation2 + $0xb0] sm:$0xff]
    %v3649 = vld [vmem:[#allocation2 + $0xc0] sm:$0xff]
    %v3650 = vld [vmem:[#allocation2 + $0xd0] sm:$0xff]
    %v3651 = vld [vmem:[#allocation2 + $0xe0] sm:$0xff]
    %v3652 = vld [vmem:[#allocation2 + $0xf0] sm:$0xff]
    %v3653 = vld [vmem:[#allocation2 + $0x100] sm:$0xff]
    %v3654 = vld [vmem:[#allocation2 + $0x110] sm:$0xff]
    %v3655 = vpack.c.bf16 %v3640, %v3639
    %v3656 = vpack.c.bf16 %v3642, %v3641
    %v3657 = vpack.c.bf16 %v3644, %v3643
    %v3658 = vpack.c.bf16 %v3646, %v3645
    %v3659 = vpack.c.bf16 %v3648, %v3647
    %v3660 = vpack.c.bf16 %v3650, %v3649
    %v3661 = vpack.c.bf16 %v3652, %v3651
    %v3662 = vpack.c.bf16 %v3654, %v3653
    %3663 = vst.msk [vmem:[#allocation3] sm:$0xff] %vm66, %v3655
    %3664 = vst.msk [vmem:[#allocation3 + $0x18] sm:$0xff] %vm66, %v3656
    %3665 = vst.msk [vmem:[#allocation3 + $0x30] sm:$0xff] %vm66, %v3657
    %3666 = vst.msk [vmem:[#allocation3 + $0x48] sm:$0xff] %vm66, %v3658
    %3667 = vst.msk [vmem:[#allocation3 + $0x60] sm:$0xff] %vm66, %v3659
    %3668 = vst.msk [vmem:[#allocation3 + $0x78] sm:$0xff] %vm66, %v3660
    %3669 = vst.msk [vmem:[#allocation3 + $0x90] sm:$0xff] %vm66, %v3661
    %3670 = vst.msk [vmem:[#allocation3 + $0xa8] sm:$0xff] %vm66, %v3662
    %v3671 = vld [vmem:[#allocation2 + $0x1] sm:$0xff]
    %v3672 = vld [vmem:[#allocation2 + $0x11] sm:$0xff]
    %v3673 = vld [vmem:[#allocation2 + $0x21] sm:$0xff]
    %v3674 = vld [vmem:[#allocation2 + $0x31] sm:$0xff]
    %v3675 = vld [vmem:[#allocation2 + $0x41] sm:$0xff]
    %v3676 = vld [vmem:[#allocation2 + $0x51] sm:$0xff]
    %v3677 = vld [vmem:[#allocation2 + $0x61] sm:$0xff]
    %v3678 = vld [vmem:[#allocation2 + $0x71] sm:$0xff]
    %v3679 = vld [vmem:[#allocation2 + $0xa1] sm:$0xff]
    %v3680 = vld [vmem:[#allocation2 + $0xb1] sm:$0xff]
    %v3681 = vld [vmem:[#allocation2 + $0xc1] sm:$0xff]
    %v3682 = vld [vmem:[#allocation2 + $0xd1] sm:$0xff]
    %v3683 = vld [vmem:[#allocation2 + $0xe1] sm:$0xff]
    %v3684 = vld [vmem:[#allocation2 + $0xf1] sm:$0xff]
    %v3685 = vld [vmem:[#allocation2 + $0x101] sm:$0xff]
    %v3686 = vld [vmem:[#allocation2 + $0x111] sm:$0xff]
    %v3687 = vpack.c.bf16 %v3672, %v3671
    %v3688 = vpack.c.bf16 %v3674, %v3673
    %v3689 = vpack.c.bf16 %v3676, %v3675
    %v3690 = vpack.c.bf16 %v3678, %v3677
    %v3691 = vpack.c.bf16 %v3680, %v3679
    %v3692 = vpack.c.bf16 %v3682, %v3681
    %v3693 = vpack.c.bf16 %v3684, %v3683
    %v3694 = vpack.c.bf16 %v3686, %v3685
    %3703 = vrot.lane.b32.xlu0 %v3687, 32
    %v3704 = vpop.permute.xlu0 %3703
    %3705 = vrot.lane.b32.xlu0 %v3688, 32
    %v3706 = vpop.permute.xlu0 %3705
    %3707 = vrot.lane.b32.xlu0 %v3689, 32
    %v3708 = vpop.permute.xlu0 %3707
    %3709 = vrot.lane.b32.xlu0 %v3690, 32
    %v3710 = vpop.permute.xlu0 %3709
    %3711 = vrot.lane.b32.xlu0 %v3691, 32
    %v3712 = vpop.permute.xlu0 %3711
    %3713 = vrot.lane.b32.xlu0 %v3692, 32
    %v3714 = vpop.permute.xlu0 %3713
    %3715 = vrot.lane.b32.xlu0 %v3693, 32
    %v3716 = vpop.permute.xlu0 %3715
    %3717 = vrot.lane.b32.xlu0 %v3694, 32
    %v3718 = vpop.permute.xlu0 %3717
    %3727 = vst.msk [vmem:[#allocation3] sm:$0xff] %vm575, %v3704
    %3728 = vst.msk [vmem:[#allocation3 + $0x18] sm:$0xff] %vm575, %v3706
    %3729 = vst.msk [vmem:[#allocation3 + $0x30] sm:$0xff] %vm575, %v3708
    %3730 = vst.msk [vmem:[#allocation3 + $0x48] sm:$0xff] %vm575, %v3710
    %3731 = vst.msk [vmem:[#allocation3 + $0x60] sm:$0xff] %vm575, %v3712
    %3732 = vst.msk [vmem:[#allocation3 + $0x78] sm:$0xff] %vm575, %v3714
    %3733 = vst.msk [vmem:[#allocation3 + $0x90] sm:$0xff] %vm575, %v3716
    %3734 = vst.msk [vmem:[#allocation3 + $0xa8] sm:$0xff] %vm575, %v3718
    %v3735 = vld [vmem:[#allocation2 + $0x2] sm:$0xff]
    %v3736 = vld [vmem:[#allocation2 + $0x12] sm:$0xff]
    %v3737 = vld [vmem:[#allocation2 + $0x22] sm:$0xff]
    %v3738 = vld [vmem:[#allocation2 + $0x32] sm:$0xff]
    %v3739 = vld [vmem:[#allocation2 + $0x42] sm:$0xff]
    %v3740 = vld [vmem:[#allocation2 + $0x52] sm:$0xff]
    %v3741 = vld [vmem:[#allocation2 + $0x62] sm:$0xff]
    %v3742 = vld [vmem:[#allocation2 + $0x72] sm:$0xff]
    %v3743 = vld [vmem:[#allocation2 + $0xa2] sm:$0xff]
    %v3744 = vld [vmem:[#allocation2 + $0xb2] sm:$0xff]
    %v3745 = vld [vmem:[#allocation2 + $0xc2] sm:$0xff]
    %v3746 = vld [vmem:[#allocation2 + $0xd2] sm:$0xff]
    %v3747 = vld [vmem:[#allocation2 + $0xe2] sm:$0xff]
    %v3748 = vld [vmem:[#allocation2 + $0xf2] sm:$0xff]
    %v3749 = vld [vmem:[#allocation2 + $0x102] sm:$0xff]
    %v3750 = vld [vmem:[#allocation2 + $0x112] sm:$0xff]
    %v3751 = vpack.c.bf16 %v3736, %v3735
    %v3752 = vpack.c.bf16 %v3738, %v3737
    %v3753 = vpack.c.bf16 %v3740, %v3739
    %v3754 = vpack.c.bf16 %v3742, %v3741
    %v3755 = vpack.c.bf16 %v3744, %v3743
    %v3756 = vpack.c.bf16 %v3746, %v3745
    %v3757 = vpack.c.bf16 %v3748, %v3747
    %v3758 = vpack.c.bf16 %v3750, %v3749
    %3767 = vrot.lane.b32.xlu0 %v3751, 64
    %v3768 = vpop.permute.xlu0 %3767
    %3769 = vrot.lane.b32.xlu0 %v3752, 64
    %v3770 = vpop.permute.xlu0 %3769
    %3771 = vrot.lane.b32.xlu0 %v3753, 64
    %v3772 = vpop.permute.xlu0 %3771
    %3773 = vrot.lane.b32.xlu0 %v3754, 64
    %v3774 = vpop.permute.xlu0 %3773
    %3775 = vrot.lane.b32.xlu0 %v3755, 64
    %v3776 = vpop.permute.xlu0 %3775
    %3777 = vrot.lane.b32.xlu0 %v3756, 64
    %v3778 = vpop.permute.xlu0 %3777
    %3779 = vrot.lane.b32.xlu0 %v3757, 64
    %v3780 = vpop.permute.xlu0 %3779
    %3781 = vrot.lane.b32.xlu0 %v3758, 64
    %v3782 = vpop.permute.xlu0 %3781
    %3791 = vst.msk [vmem:[#allocation3] sm:$0xff] %vm640, %v3768
    %3792 = vst.msk [vmem:[#allocation3 + $0x18] sm:$0xff] %vm640, %v3770
    %3793 = vst.msk [vmem:[#allocation3 + $0x30] sm:$0xff] %vm640, %v3772
    %3794 = vst.msk [vmem:[#allocation3 + $0x48] sm:$0xff] %vm640, %v3774
    %3795 = vst.msk [vmem:[#allocation3 + $0x60] sm:$0xff] %vm640, %v3776
    %3796 = vst.msk [vmem:[#allocation3 + $0x78] sm:$0xff] %vm640, %v3778
    %3797 = vst.msk [vmem:[#allocation3 + $0x90] sm:$0xff] %vm640, %v3780
    %3798 = vst.msk [vmem:[#allocation3 + $0xa8] sm:$0xff] %vm640, %v3782
    %v3799 = vld [vmem:[%s470] sm:$0xff]
    %v3800 = vld [vmem:[%s470 + $0x10] sm:$0xff]
    %v3801 = vld [vmem:[%s470 + $0x20] sm:$0xff]
    %v3802 = vld [vmem:[%s470 + $0x30] sm:$0xff]
    %v3803 = vld [vmem:[%s470 + $0x40] sm:$0xff]
    %v3804 = vld [vmem:[%s470 + $0x50] sm:$0xff]
    %v3805 = vld [vmem:[%s470 + $0x60] sm:$0xff]
    %v3806 = vld [vmem:[%s470 + $0x70] sm:$0xff]
    %v3807 = vld [vmem:[%s470 + $0xa0] sm:$0xff]
    %v3808 = vld [vmem:[%s470 + $0xb0] sm:$0xff]
    %v3809 = vld [vmem:[%s470 + $0xc0] sm:$0xff]
    %v3810 = vld [vmem:[%s470 + $0xd0] sm:$0xff]
    %v3811 = vld [vmem:[%s470 + $0xe0] sm:$0xff]
    %v3812 = vld [vmem:[%s470 + $0xf0] sm:$0xff]
    %v3813 = vld [vmem:[%s470 + $0x100] sm:$0xff]
    %v3814 = vld [vmem:[%s470 + $0x110] sm:$0xff]
    %v3815 = vpack.c.bf16 %v3800, %v3799
    %v3816 = vpack.c.bf16 %v3802, %v3801
    %v3817 = vpack.c.bf16 %v3804, %v3803
    %v3818 = vpack.c.bf16 %v3806, %v3805
    %v3819 = vpack.c.bf16 %v3808, %v3807
    %v3820 = vpack.c.bf16 %v3810, %v3809
    %v3821 = vpack.c.bf16 %v3812, %v3811
    %v3822 = vpack.c.bf16 %v3814, %v3813
    %3831 = vrot.lane.b32.xlu0 %v3815, 96
    %v3832 = vpop.permute.xlu0 %3831
    %3833 = vrot.lane.b32.xlu0 %v3816, 96
    %v3834 = vpop.permute.xlu0 %3833
    %3835 = vrot.lane.b32.xlu0 %v3817, 96
    %v3836 = vpop.permute.xlu0 %3835
    %3837 = vrot.lane.b32.xlu0 %v3818, 96
    %v3838 = vpop.permute.xlu0 %3837
    %3839 = vrot.lane.b32.xlu0 %v3819, 96
    %v3840 = vpop.permute.xlu0 %3839
    %3841 = vrot.lane.b32.xlu0 %v3820, 96
    %v3842 = vpop.permute.xlu0 %3841
    %3843 = vrot.lane.b32.xlu0 %v3821, 96
    %v3844 = vpop.permute.xlu0 %3843
    %3845 = vrot.lane.b32.xlu0 %v3822, 96
    %v3846 = vpop.permute.xlu0 %3845
    %3855 = vst.msk [vmem:[#allocation3] sm:$0xff] %vm705, %v3832
    %3856 = vst.msk [vmem:[#allocation3 + $0x18] sm:$0xff] %vm705, %v3834
    %3857 = vst.msk [vmem:[#allocation3 + $0x30] sm:$0xff] %vm705, %v3836
    %3858 = vst.msk [vmem:[#allocation3 + $0x48] sm:$0xff] %vm705, %v3838
    %3859 = vst.msk [vmem:[#allocation3 + $0x60] sm:$0xff] %vm705, %v3840
    %3860 = vst.msk [vmem:[#allocation3 + $0x78] sm:$0xff] %vm705, %v3842
    %3861 = vst.msk [vmem:[#allocation3 + $0x90] sm:$0xff] %vm705, %v3844
    %3862 = vst.msk [vmem:[#allocation3 + $0xa8] sm:$0xff] %vm705, %v3846
    %v3863 = vld [vmem:[%s470 + $0x1] sm:$0xff]
    %v3864 = vld [vmem:[%s470 + $0x11] sm:$0xff]
    %v3865 = vld [vmem:[%s470 + $0x21] sm:$0xff]
    %v3866 = vld [vmem:[%s470 + $0x31] sm:$0xff]
    %v3867 = vld [vmem:[%s470 + $0x41] sm:$0xff]
    %v3868 = vld [vmem:[%s470 + $0x51] sm:$0xff]
    %v3869 = vld [vmem:[%s470 + $0x61] sm:$0xff]
    %v3870 = vld [vmem:[%s470 + $0x71] sm:$0xff]
    %v3871 = vld [vmem:[%s470 + $0xa1] sm:$0xff]
    %v3872 = vld [vmem:[%s470 + $0xb1] sm:$0xff]
    %v3873 = vld [vmem:[%s470 + $0xc1] sm:$0xff]
    %v3874 = vld [vmem:[%s470 + $0xd1] sm:$0xff]
    %v3875 = vld [vmem:[%s470 + $0xe1] sm:$0xff]
    %v3876 = vld [vmem:[%s470 + $0xf1] sm:$0xff]
    %v3877 = vld [vmem:[%s470 + $0x101] sm:$0xff]
    %v3878 = vld [vmem:[%s470 + $0x111] sm:$0xff]
    %v3879 = vpack.c.bf16 %v3864, %v3863
    %v3880 = vpack.c.bf16 %v3866, %v3865
    %v3881 = vpack.c.bf16 %v3868, %v3867
    %v3882 = vpack.c.bf16 %v3870, %v3869
    %v3883 = vpack.c.bf16 %v3872, %v3871
    %v3884 = vpack.c.bf16 %v3874, %v3873
    %v3885 = vpack.c.bf16 %v3876, %v3875
    %v3886 = vpack.c.bf16 %v3878, %v3877
    %3887 = vst.msk [vmem:[#allocation3 + $0x8] sm:$0xff] %vm66, %v3879
    %3888 = vst.msk [vmem:[#allocation3 + $0x20] sm:$0xff] %vm66, %v3880
    %3889 = vst.msk [vmem:[#allocation3 + $0x38] sm:$0xff] %vm66, %v3881
    %3890 = vst.msk [vmem:[#allocation3 + $0x50] sm:$0xff] %vm66, %v3882
    %3891 = vst.msk [vmem:[#allocation3 + $0x68] sm:$0xff] %vm66, %v3883
    %3892 = vst.msk [vmem:[#allocation3 + $0x80] sm:$0xff] %vm66, %v3884
    %3893 = vst.msk [vmem:[#allocation3 + $0x98] sm:$0xff] %vm66, %v3885
    %3894 = vst.msk [vmem:[#allocation3 + $0xb0] sm:$0xff] %vm66, %v3886
    %v3895 = vld [vmem:[%s470 + $0x2] sm:$0xff]
    %v3896 = vld [vmem:[%s470 + $0x12] sm:$0xff]
    %v3897 = vld [vmem:[%s470 + $0x22] sm:$0xff]
    %v3898 = vld [vmem:[%s470 + $0x32] sm:$0xff]
    %v3899 = vld [vmem:[%s470 + $0x42] sm:$0xff]
    %v3900 = vld [vmem:[%s470 + $0x52] sm:$0xff]
    %v3901 = vld [vmem:[%s470 + $0x62] sm:$0xff]
    %v3902 = vld [vmem:[%s470 + $0x72] sm:$0xff]
    %v3903 = vld [vmem:[%s470 + $0xa2] sm:$0xff]
    %v3904 = vld [vmem:[%s470 + $0xb2] sm:$0xff]
    %v3905 = vld [vmem:[%s470 + $0xc2] sm:$0xff]
    %v3906 = vld [vmem:[%s470 + $0xd2] sm:$0xff]
    %v3907 = vld [vmem:[%s470 + $0xe2] sm:$0xff]
    %v3908 = vld [vmem:[%s470 + $0xf2] sm:$0xff]
    %v3909 = vld [vmem:[%s470 + $0x102] sm:$0xff]
    %v3910 = vld [vmem:[%s470 + $0x112] sm:$0xff]
    %v3911 = vpack.c.bf16 %v3896, %v3895
    %v3912 = vpack.c.bf16 %v3898, %v3897
    %v3913 = vpack.c.bf16 %v3900, %v3899
    %v3914 = vpack.c.bf16 %v3902, %v3901
    %v3915 = vpack.c.bf16 %v3904, %v3903
    %v3916 = vpack.c.bf16 %v3906, %v3905
    %v3917 = vpack.c.bf16 %v3908, %v3907
    %v3918 = vpack.c.bf16 %v3910, %v3909
    %3927 = vrot.lane.b32.xlu0 %v3911, 32
    %v3928 = vpop.permute.xlu0 %3927
    %3929 = vrot.lane.b32.xlu0 %v3912, 32
    %v3930 = vpop.permute.xlu0 %3929
    %3931 = vrot.lane.b32.xlu0 %v3913, 32
    %v3932 = vpop.permute.xlu0 %3931
    %3933 = vrot.lane.b32.xlu0 %v3914, 32
    %v3934 = vpop.permute.xlu0 %3933
    %3935 = vrot.lane.b32.xlu0 %v3915, 32
    %v3936 = vpop.permute.xlu0 %3935
    %3937 = vrot.lane.b32.xlu0 %v3916, 32
    %v3938 = vpop.permute.xlu0 %3937
    %3939 = vrot.lane.b32.xlu0 %v3917, 32
    %v3940 = vpop.permute.xlu0 %3939
    %3941 = vrot.lane.b32.xlu0 %v3918, 32
    %v3942 = vpop.permute.xlu0 %3941
    %3951 = vst.msk [vmem:[#allocation3 + $0x8] sm:$0xff] %vm575, %v3928
    %3952 = vst.msk [vmem:[#allocation3 + $0x20] sm:$0xff] %vm575, %v3930
    %3953 = vst.msk [vmem:[#allocation3 + $0x38] sm:$0xff] %vm575, %v3932
    %3954 = vst.msk [vmem:[#allocation3 + $0x50] sm:$0xff] %vm575, %v3934
    %3955 = vst.msk [vmem:[#allocation3 + $0x68] sm:$0xff] %vm575, %v3936
    %3956 = vst.msk [vmem:[#allocation3 + $0x80] sm:$0xff] %vm575, %v3938
    %3957 = vst.msk [vmem:[#allocation3 + $0x98] sm:$0xff] %vm575, %v3940
    %3958 = vst.msk [vmem:[#allocation3 + $0xb0] sm:$0xff] %vm575, %v3942
    %v3959 = vld [vmem:[%s810] sm:$0xff]
    %v3960 = vld [vmem:[%s810 + $0x10] sm:$0xff]
    %v3961 = vld [vmem:[%s810 + $0x20] sm:$0xff]
    %v3962 = vld [vmem:[%s810 + $0x30] sm:$0xff]
    %v3963 = vld [vmem:[%s810 + $0x40] sm:$0xff]
    %v3964 = vld [vmem:[%s810 + $0x50] sm:$0xff]
    %v3965 = vld [vmem:[%s810 + $0x60] sm:$0xff]
    %v3966 = vld [vmem:[%s810 + $0x70] sm:$0xff]
    %v3967 = vld [vmem:[%s810 + $0xa0] sm:$0xff]
    %v3968 = vld [vmem:[%s810 + $0xb0] sm:$0xff]
    %v3969 = vld [vmem:[%s810 + $0xc0] sm:$0xff]
    %v3970 = vld [vmem:[%s810 + $0xd0] sm:$0xff]
    %v3971 = vld [vmem:[%s810 + $0xe0] sm:$0xff]
    %v3972 = vld [vmem:[%s810 + $0xf0] sm:$0xff]
    %v3973 = vld [vmem:[%s810 + $0x100] sm:$0xff]
    %v3974 = vld [vmem:[%s810 + $0x110] sm:$0xff]
    %v3975 = vpack.c.bf16 %v3960, %v3959
    %v3976 = vpack.c.bf16 %v3962, %v3961
    %v3977 = vpack.c.bf16 %v3964, %v3963
    %v3978 = vpack.c.bf16 %v3966, %v3965
    %v3979 = vpack.c.bf16 %v3968, %v3967
    %v3980 = vpack.c.bf16 %v3970, %v3969
    %v3981 = vpack.c.bf16 %v3972, %v3971
    %v3982 = vpack.c.bf16 %v3974, %v3973
    %3991 = vrot.lane.b32.xlu0 %v3975, 64
    %v3992 = vpop.permute.xlu0 %3991
    %3993 = vrot.lane.b32.xlu0 %v3976, 64
    %v3994 = vpop.permute.xlu0 %3993
    %3995 = vrot.lane.b32.xlu0 %v3977, 64
    %v3996 = vpop.permute.xlu0 %3995
    %3997 = vrot.lane.b32.xlu0 %v3978, 64
    %v3998 = vpop.permute.xlu0 %3997
    %3999 = vrot.lane.b32.xlu0 %v3979, 64
    %v4000 = vpop.permute.xlu0 %3999
    %4001 = vrot.lane.b32.xlu0 %v3980, 64
    %v4002 = vpop.permute.xlu0 %4001
    %4003 = vrot.lane.b32.xlu0 %v3981, 64
    %v4004 = vpop.permute.xlu0 %4003
    %4005 = vrot.lane.b32.xlu0 %v3982, 64
    %v4006 = vpop.permute.xlu0 %4005
    %4015 = vst.msk [vmem:[#allocation3 + $0x8] sm:$0xff] %vm640, %v3992
    %4016 = vst.msk [vmem:[#allocation3 + $0x20] sm:$0xff] %vm640, %v3994
    %4017 = vst.msk [vmem:[#allocation3 + $0x38] sm:$0xff] %vm640, %v3996
    %4018 = vst.msk [vmem:[#allocation3 + $0x50] sm:$0xff] %vm640, %v3998
    %4019 = vst.msk [vmem:[#allocation3 + $0x68] sm:$0xff] %vm640, %v4000
    %4020 = vst.msk [vmem:[#allocation3 + $0x80] sm:$0xff] %vm640, %v4002
    %4021 = vst.msk [vmem:[#allocation3 + $0x98] sm:$0xff] %vm640, %v4004
    %4022 = vst.msk [vmem:[#allocation3 + $0xb0] sm:$0xff] %vm640, %v4006
    %v4023 = vld [vmem:[%s810 + $0x1] sm:$0xff]
    %v4024 = vld [vmem:[%s810 + $0x11] sm:$0xff]
    %v4025 = vld [vmem:[%s810 + $0x21] sm:$0xff]
    %v4026 = vld [vmem:[%s810 + $0x31] sm:$0xff]
    %v4027 = vld [vmem:[%s810 + $0x41] sm:$0xff]
    %v4028 = vld [vmem:[%s810 + $0x51] sm:$0xff]
    %v4029 = vld [vmem:[%s810 + $0x61] sm:$0xff]
    %v4030 = vld [vmem:[%s810 + $0x71] sm:$0xff]
    %v4031 = vld [vmem:[%s810 + $0xa1] sm:$0xff]
    %v4032 = vld [vmem:[%s810 + $0xb1] sm:$0xff]
    %v4033 = vld [vmem:[%s810 + $0xc1] sm:$0xff]
    %v4034 = vld [vmem:[%s810 + $0xd1] sm:$0xff]
    %v4035 = vld [vmem:[%s810 + $0xe1] sm:$0xff]
    %v4036 = vld [vmem:[%s810 + $0xf1] sm:$0xff]
    %v4037 = vld [vmem:[%s810 + $0x101] sm:$0xff]
    %v4038 = vld [vmem:[%s810 + $0x111] sm:$0xff]
    %v4039 = vpack.c.bf16 %v4024, %v4023
    %v4040 = vpack.c.bf16 %v4026, %v4025
    %v4041 = vpack.c.bf16 %v4028, %v4027
    %v4042 = vpack.c.bf16 %v4030, %v4029
    %v4043 = vpack.c.bf16 %v4032, %v4031
    %v4044 = vpack.c.bf16 %v4034, %v4033
    %v4045 = vpack.c.bf16 %v4036, %v4035
    %v4046 = vpack.c.bf16 %v4038, %v4037
    %4055 = vrot.lane.b32.xlu0 %v4039, 96
    %v4056 = vpop.permute.xlu0 %4055
    %4057 = vrot.lane.b32.xlu0 %v4040, 96
    %v4058 = vpop.permute.xlu0 %4057
    %4059 = vrot.lane.b32.xlu0 %v4041, 96
    %v4060 = vpop.permute.xlu0 %4059
    %4061 = vrot.lane.b32.xlu0 %v4042, 96
    %v4062 = vpop.permute.xlu0 %4061
    %4063 = vrot.lane.b32.xlu0 %v4043, 96
    %v4064 = vpop.permute.xlu0 %4063
    %4065 = vrot.lane.b32.xlu0 %v4044, 96
    %v4066 = vpop.permute.xlu0 %4065
    %4067 = vrot.lane.b32.xlu0 %v4045, 96
    %v4068 = vpop.permute.xlu0 %4067
    %4069 = vrot.lane.b32.xlu0 %v4046, 96
    %v4070 = vpop.permute.xlu0 %4069
    %4079 = vst.msk [vmem:[#allocation3 + $0x8] sm:$0xff] %vm705, %v4056
    %4080 = vst.msk [vmem:[#allocation3 + $0x20] sm:$0xff] %vm705, %v4058
    %4081 = vst.msk [vmem:[#allocation3 + $0x38] sm:$0xff] %vm705, %v4060
    %4082 = vst.msk [vmem:[#allocation3 + $0x50] sm:$0xff] %vm705, %v4062
    %4083 = vst.msk [vmem:[#allocation3 + $0x68] sm:$0xff] %vm705, %v4064
    %4084 = vst.msk [vmem:[#allocation3 + $0x80] sm:$0xff] %vm705, %v4066
    %4085 = vst.msk [vmem:[#allocation3 + $0x98] sm:$0xff] %vm705, %v4068
    %4086 = vst.msk [vmem:[#allocation3 + $0xb0] sm:$0xff] %vm705, %v4070
    %v4087 = vld [vmem:[%s810 + $0x2] sm:$0xff]
    %v4088 = vld [vmem:[%s810 + $0x12] sm:$0xff]
    %v4089 = vld [vmem:[%s810 + $0x22] sm:$0xff]
    %v4090 = vld [vmem:[%s810 + $0x32] sm:$0xff]
    %v4091 = vld [vmem:[%s810 + $0x42] sm:$0xff]
    %v4092 = vld [vmem:[%s810 + $0x52] sm:$0xff]
    %v4093 = vld [vmem:[%s810 + $0x62] sm:$0xff]
    %v4094 = vld [vmem:[%s810 + $0x72] sm:$0xff]
    %v4095 = vld [vmem:[%s810 + $0xa2] sm:$0xff]
    %v4096 = vld [vmem:[%s810 + $0xb2] sm:$0xff]
    %v4097 = vld [vmem:[%s810 + $0xc2] sm:$0xff]
    %v4098 = vld [vmem:[%s810 + $0xd2] sm:$0xff]
    %v4099 = vld [vmem:[%s810 + $0xe2] sm:$0xff]
    %v4100 = vld [vmem:[%s810 + $0xf2] sm:$0xff]
    %v4101 = vld [vmem:[%s810 + $0x102] sm:$0xff]
    %v4102 = vld [vmem:[%s810 + $0x112] sm:$0xff]
    %v4103 = vpack.c.bf16 %v4088, %v4087
    %v4104 = vpack.c.bf16 %v4090, %v4089
    %v4105 = vpack.c.bf16 %v4092, %v4091
    %v4106 = vpack.c.bf16 %v4094, %v4093
    %v4107 = vpack.c.bf16 %v4096, %v4095
    %v4108 = vpack.c.bf16 %v4098, %v4097
    %v4109 = vpack.c.bf16 %v4100, %v4099
    %v4110 = vpack.c.bf16 %v4102, %v4101
    %4111 = vst.msk [vmem:[#allocation3 + $0x10] sm:$0xff] %vm66, %v4103
    %4112 = vst.msk [vmem:[#allocation3 + $0x28] sm:$0xff] %vm66, %v4104
    %4113 = vst.msk [vmem:[#allocation3 + $0x40] sm:$0xff] %vm66, %v4105
    %4114 = vst.msk [vmem:[#allocation3 + $0x58] sm:$0xff] %vm66, %v4106
    %4115 = vst.msk [vmem:[#allocation3 + $0x70] sm:$0xff] %vm66, %v4107
    %4116 = vst.msk [vmem:[#allocation3 + $0x88] sm:$0xff] %vm66, %v4108
    %4117 = vst.msk [vmem:[#allocation3 + $0xa0] sm:$0xff] %vm66, %v4109
    %4118 = vst.msk [vmem:[#allocation3 + $0xb8] sm:$0xff] %vm66, %v4110
    %v4119 = vld [vmem:[#allocation3] sm:$0xff]
    %v4120 = vld [vmem:[#allocation3 + $0x8] sm:$0xff]
    %v4121 = vld [vmem:[#allocation3 + $0x10] sm:$0xff]
    %v4122 = vld [vmem:[#allocation3 + $0x18] sm:$0xff]
    %v4123 = vld [vmem:[#allocation3 + $0x20] sm:$0xff]
    %v4124 = vld [vmem:[#allocation3 + $0x28] sm:$0xff]
    %v4125 = vld [vmem:[#allocation3 + $0x30] sm:$0xff]
    %v4126 = vld [vmem:[#allocation3 + $0x38] sm:$0xff]
    %v4127 = vld [vmem:[#allocation3 + $0x40] sm:$0xff]
    %v4128 = vld [vmem:[#allocation3 + $0x48] sm:$0xff]
    %v4129 = vld [vmem:[#allocation3 + $0x50] sm:$0xff]
    %v4130 = vld [vmem:[#allocation3 + $0x58] sm:$0xff]
    %v4131 = vld [vmem:[#allocation3 + $0x60] sm:$0xff]
    %v4132 = vld [vmem:[#allocation3 + $0x68] sm:$0xff]
    %v4133 = vld [vmem:[#allocation3 + $0x70] sm:$0xff]
    %v4134 = vld [vmem:[#allocation3 + $0x78] sm:$0xff]
    %v4135 = vld [vmem:[#allocation3 + $0x80] sm:$0xff]
    %v4136 = vld [vmem:[#allocation3 + $0x88] sm:$0xff]
    %v4137 = vld [vmem:[#allocation3 + $0x90] sm:$0xff]
    %v4138 = vld [vmem:[#allocation3 + $0x98] sm:$0xff]
    %v4139 = vld [vmem:[#allocation3 + $0xa0] sm:$0xff]
    %v4140 = vld [vmem:[#allocation3 + $0xa8] sm:$0xff]
    %v4141 = vld [vmem:[#allocation3 + $0xb0] sm:$0xff]
    %v4142 = vld [vmem:[#allocation3 + $0xb8] sm:$0xff]
    %v4143 = vld [vmem:[%s13] sm:$0xf]
    %v4144 = vld [vmem:[%s13 + $0x4] sm:$0xf]
    %v4145 = vld [vmem:[%s13 + $0x8] sm:$0xf]
    %v4146 = vld [vmem:[%s13 + $0xc] sm:$0xf]
    %v4147 = vld [vmem:[%s13 + $0x10] sm:$0xf]
    %v4148 = vld [vmem:[%s13 + $0x14] sm:$0xf]
    %v4149 = vld [vmem:[%s13 + $0x18] sm:$0xf]
    %v4150 = vld [vmem:[%s13 + $0x1c] sm:$0xf]
    %v4151 = vld [vmem:[%s13 + $0x20] sm:$0xf]
    %v4152 = vld [vmem:[%s13 + $0x24] sm:$0xf]
    %v4153 = vld [vmem:[%s13 + $0x28] sm:$0xf]
    %v4154 = vld [vmem:[%s13 + $0x2c] sm:$0xf]
    %v4155 = vld [vmem:[%s13 + $0x30] sm:$0xf]
    %v4156 = vld [vmem:[%s13 + $0x34] sm:$0xf]
    %v4157 = vld [vmem:[%s13 + $0x38] sm:$0xf]
    %v4158 = vld [vmem:[%s13 + $0x3c] sm:$0xf]
    %v4159 = vld [vmem:[%s13 + $0x40] sm:$0xf]
    %v4160 = vld [vmem:[%s13 + $0x44] sm:$0xf]
    %v4161 = vld [vmem:[%s13 + $0x48] sm:$0xf]
    %v4162 = vld [vmem:[%s13 + $0x4c] sm:$0xf]
    %v4163 = vld [vmem:[%s13 + $0x50] sm:$0xf]
    %v4164 = vld [vmem:[%s13 + $0x54] sm:$0xf]
    %v4165 = vld [vmem:[%s13 + $0x58] sm:$0xf]
    %v4166 = vld [vmem:[%s13 + $0x5c] sm:$0xf]
    %v4167 = vld [vmem:[%s13 + $0x60] sm:$0xf]
    %v4168 = vld [vmem:[%s13 + $0x64] sm:$0xf]
    %v4169 = vld [vmem:[%s13 + $0x68] sm:$0xf]
    %v4170 = vld [vmem:[%s13 + $0x6c] sm:$0xf]
    %v4171 = vld [vmem:[%s13 + $0x70] sm:$0xf]
    %v4172 = vld [vmem:[%s13 + $0x74] sm:$0xf]
    %v4173 = vld [vmem:[%s13 + $0x78] sm:$0xf]
    %v4174 = vld [vmem:[%s13 + $0x7c] sm:$0xf]
    %v4175 = vld [vmem:[%s13 + $0x80] sm:$0xf]
    %v4176 = vld [vmem:[%s13 + $0x84] sm:$0xf]
    %v4177 = vld [vmem:[%s13 + $0x88] sm:$0xf]
    %v4178 = vld [vmem:[%s13 + $0x8c] sm:$0xf]
    %v4215 = vunpack.c.l.b16 %v4143
    %v4216 = vunpack.c.l.b16 %v4144
    %v4217 = vunpack.c.l.b16 %v4145
    %v4218 = vunpack.c.l.b16 %v4146
    %v4219 = vunpack.c.l.b16 %v4147
    %v4220 = vunpack.c.l.b16 %v4148
    %v4221 = vunpack.c.l.b16 %v4149
    %v4222 = vunpack.c.l.b16 %v4150
    %v4223 = vunpack.c.l.b16 %v4151
    %v4224 = vunpack.c.l.b16 %v4152
    %v4225 = vunpack.c.l.b16 %v4153
    %v4226 = vunpack.c.l.b16 %v4154
    %v4227 = vunpack.c.l.b16 %v4155
    %v4228 = vunpack.c.l.b16 %v4156
    %v4229 = vunpack.c.l.b16 %v4157
    %v4230 = vunpack.c.l.b16 %v4158
    %v4231 = vunpack.c.l.b16 %v4159
    %v4232 = vunpack.c.l.b16 %v4160
    %v4233 = vunpack.c.l.b16 %v4161
    %v4234 = vunpack.c.l.b16 %v4162
    %v4235 = vunpack.c.l.b16 %v4163
    %v4236 = vunpack.c.l.b16 %v4164
    %v4237 = vunpack.c.l.b16 %v4165
    %v4238 = vunpack.c.l.b16 %v4166
    %v4239 = vunpack.c.l.b16 %v4167
    %v4240 = vunpack.c.l.b16 %v4168
    %v4241 = vunpack.c.l.b16 %v4169
    %v4242 = vunpack.c.l.b16 %v4170
    %v4243 = vunpack.c.l.b16 %v4171
    %v4244 = vunpack.c.l.b16 %v4172
    %v4245 = vunpack.c.l.b16 %v4173
    %v4246 = vunpack.c.l.b16 %v4174
    %v4247 = vunpack.c.l.b16 %v4175
    %v4248 = vunpack.c.l.b16 %v4176
    %v4249 = vunpack.c.l.b16 %v4177
    %v4250 = vunpack.c.l.b16 %v4178
    %v4251 = vpack.c.b16 %v4216, %v4215
    %v4252 = vpack.c.b16 %v4218, %v4217
    %v4253 = vpack.c.b16 %v4220, %v4219
    %v4254 = vpack.c.b16 %v4222, %v4221
    %v4255 = vpack.c.b16 %v4224, %v4223
    %v4256 = vpack.c.b16 %v4226, %v4225
    %v4257 = vpack.c.b16 %v4228, %v4227
    %v4258 = vpack.c.b16 %v4230, %v4229
    %v4259 = vpack.c.b16 %v4232, %v4231
    %v4260 = vpack.c.b16 %v4234, %v4233
    %v4261 = vpack.c.b16 %v4236, %v4235
    %v4262 = vpack.c.b16 %v4238, %v4237
    %v4263 = vpack.c.b16 %v4240, %v4239
    %v4264 = vpack.c.b16 %v4242, %v4241
    %v4265 = vpack.c.b16 %v4244, %v4243
    %v4266 = vpack.c.b16 %v4246, %v4245
    %v4267 = vpack.c.b16 %v4248, %v4247
    %v4268 = vpack.c.b16 %v4250, %v4249
    %v4288 = vsel %vm66, %v4121, 0
    %v4291 = vsel %vm66, %v4124, 0
    %v4294 = vsel %vm66, %v4127, 0
    %v4297 = vsel %vm66, %v4130, 0
    %v4300 = vsel %vm66, %v4133, 0
    %v4303 = vsel %vm66, %v4136, 0
    %v4306 = vsel %vm66, %v4139, 0
    %v4309 = vsel %vm66, %v4142, 0
    %4311 = vmatprep.subr.bf16.mxu0 0
    %4312 = vmatpush1.bf16.msra.mxu0 %v4251
    %4313 = vmatprep.subr.bf16.mxu0 0
    %4314 = vmatpush1.bf16.msra.mxu0 %v4252
    %4315 = vmatprep.subr.bf16.mxu0 0
    %4316 = vmatpush1.bf16.msra.mxu0 %v4253
    %4317 = vmatprep.subr.bf16.mxu0 0
    %4318 = vmatpush1.bf16.msra.mxu0 %v4254
    %4319 = vmatprep.subr.bf16.mxu0 0
    %4320 = vmatpush1.bf16.msra.mxu0 %v4255
    %4321 = vmatprep.subr.bf16.mxu0 0
    %4322 = vmatpush1.bf16.msra.mxu0 %v4256
    %4323 = vmatprep.subr.bf16.mxu0 0
    %4324 = vmatpush1.bf16.msra.mxu0 %v4257
    %4325 = vmatprep.subr.bf16.mxu0 0
    %4326 = vmatpush1.bf16.msra.mxu0 %v4258
    %4327 = vmatprep.subr.bf16.mxu0 0
    %4328 = vmatpush1.bf16.msra.mxu0 %v4259
    %4329 = vmatprep.subr.bf16.mxu0 0
    %4330 = vmatpush1.bf16.msra.mxu0 %v4260
    %4331 = vmatprep.subr.bf16.mxu0 0
    %4332 = vmatpush1.bf16.msra.mxu0 %v4261
    %4333 = vmatprep.subr.bf16.mxu0 0
    %4334 = vmatpush1.bf16.msra.mxu0 %v4262
    %4335 = vmatprep.subr.bf16.mxu0 0
    %4336 = vmatpush1.bf16.msra.mxu0 %v4263
    %4337 = vmatprep.subr.bf16.mxu0 0
    %4338 = vmatpush1.bf16.msra.mxu0 %v4264
    %4339 = vmatprep.subr.bf16.mxu0 0
    %4340 = vmatpush1.bf16.msra.mxu0 %v4265
    %4341 = vmatprep.subr.bf16.mxu0 0
    %4342 = vmatpush1.bf16.msra.mxu0 %v4266
    %4343 = vmatprep.mubr.bf16.mxu0 %v4120
    %4344 = vmatmul.mubr.bf16.gmra.mrb[0].mxu0 %v4119
    %v4345 = vpop.f32.mrb[0].mxu0
    %v4346 = vadd.f32 0.0, %v4345
    %v4347 = vpop.f32.mrb[0].mxu0
    %v4348 = vpop.f32.mrb[0].mxu0
    %v4349 = vadd.f32 0.0, %v4348
    %v4350 = vpop.f32.mrb[0].mxu0
    %4351 = vmatprep.mubr.bf16.mxu0 %v4123
    %4352 = vmatmul.mubr.bf16.gmra.mrb[0].mxu0 %v4122
    %v4353 = vpop.f32.mrb[0].mxu0
    %v4354 = vadd.f32 0.0, %v4353
    %v4355 = vpop.f32.mrb[0].mxu0
    %v4356 = vpop.f32.mrb[0].mxu0
    %v4357 = vadd.f32 0.0, %v4356
    %v4358 = vpop.f32.mrb[0].mxu0
    %4359 = vmatprep.mubr.bf16.mxu0 %v4126
    %4360 = vmatmul.mubr.bf16.gmra.mrb[0].mxu0 %v4125
    %v4361 = vpop.f32.mrb[0].mxu0
    %v4362 = vadd.f32 0.0, %v4361
    %v4363 = vpop.f32.mrb[0].mxu0
    %v4364 = vpop.f32.mrb[0].mxu0
    %v4365 = vadd.f32 0.0, %v4364
    %v4366 = vpop.f32.mrb[0].mxu0
    %4367 = vmatprep.mubr.bf16.mxu0 %v4129
    %4368 = vmatmul.mubr.bf16.gmra.mrb[0].mxu0 %v4128
    %v4369 = vpop.f32.mrb[0].mxu0
    %v4370 = vadd.f32 0.0, %v4369
    %v4371 = vpop.f32.mrb[0].mxu0
    %v4372 = vpop.f32.mrb[0].mxu0
    %v4373 = vadd.f32 0.0, %v4372
    %v4374 = vpop.f32.mrb[0].mxu0
    %4375 = vmatprep.mubr.bf16.mxu0 %v4132
    %4376 = vmatmul.mubr.bf16.gmra.mrb[0].mxu0 %v4131
    %v4377 = vpop.f32.mrb[0].mxu0
    %v4378 = vadd.f32 0.0, %v4377
    %v4379 = vpop.f32.mrb[0].mxu0
    %v4380 = vpop.f32.mrb[0].mxu0
    %v4381 = vadd.f32 0.0, %v4380
    %v4382 = vpop.f32.mrb[0].mxu0
    %4383 = vmatprep.mubr.bf16.mxu0 %v4135
    %4384 = vmatmul.mubr.bf16.gmra.mrb[0].mxu0 %v4134
    %v4385 = vpop.f32.mrb[0].mxu0
    %v4386 = vadd.f32 0.0, %v4385
    %v4387 = vpop.f32.mrb[0].mxu0
    %v4388 = vpop.f32.mrb[0].mxu0
    %v4389 = vadd.f32 0.0, %v4388
    %v4390 = vpop.f32.mrb[0].mxu0
    %4391 = vmatprep.mubr.bf16.mxu0 %v4138
    %4392 = vmatmul.mubr.bf16.gmra.mrb[0].mxu0 %v4137
    %v4393 = vpop.f32.mrb[0].mxu0
    %v4394 = vadd.f32 0.0, %v4393
    %v4395 = vpop.f32.mrb[0].mxu0
    %v4396 = vpop.f32.mrb[0].mxu0
    %v4397 = vadd.f32 0.0, %v4396
    %v4398 = vpop.f32.mrb[0].mxu0
    %4399 = vmatprep.mubr.bf16.mxu0 %v4141
    %4400 = vmatmul.mubr.bf16.gmra.mrb[0].mxu0 %v4140
    %v4401 = vpop.f32.mrb[0].mxu0
    %v4402 = vadd.f32 0.0, %v4401
    %v4403 = vpop.f32.mrb[0].mxu0
    %v4404 = vpop.f32.mrb[0].mxu0
    %v4405 = vadd.f32 0.0, %v4404
    %v4406 = vpop.f32.mrb[0].mxu0
    %4407 = vdwg.mxu0
    %4408 = vmatprep.subr.bf16.mxu0 0
    %4409 = vmatpush1.bf16.msra.mxu0 %v4267
    %4410 = vmatprep.subr.bf16.mxu0 0
    %4411 = vmatpush1.bf16.msra.mxu0 %v4268
    %4412 = vmatprep.subr.bf16.mxu0 0
    %4413 = vmatpush1.bf16.msra.mxu0 0
    %4414 = vmatprep.subr.bf16.mxu0 0
    %4415 = vmatpush1.bf16.msra.mxu0 0
    %4416 = vmatprep.subr.bf16.mxu0 0
    %4417 = vmatpush1.bf16.msra.mxu0 0
    %4418 = vmatprep.subr.bf16.mxu0 0
    %4419 = vmatpush1.bf16.msra.mxu0 0
    %4420 = vmatprep.subr.bf16.mxu0 0
    %4421 = vmatpush1.bf16.msra.mxu0 0
    %4422 = vmatprep.subr.bf16.mxu0 0
    %4423 = vmatpush1.bf16.msra.mxu0 0
    %4424 = vmatprep.subr.bf16.mxu0 0
    %4425 = vmatpush1.bf16.msra.mxu0 0
    %4426 = vmatprep.subr.bf16.mxu0 0
    %4427 = vmatpush1.bf16.msra.mxu0 0
    %4428 = vmatprep.subr.bf16.mxu0 0
    %4429 = vmatpush1.bf16.msra.mxu0 0
    %4430 = vmatprep.subr.bf16.mxu0 0
    %4431 = vmatpush1.bf16.msra.mxu0 0
    %4432 = vmatprep.subr.bf16.mxu0 0
    %4433 = vmatpush1.bf16.msra.mxu0 0
    %4434 = vmatprep.subr.bf16.mxu0 0
    %4435 = vmatpush1.bf16.msra.mxu0 0
    %4436 = vmatprep.subr.bf16.mxu0 0
    %4437 = vmatpush1.bf16.msra.mxu0 0
    %4438 = vmatprep.subr.bf16.mxu0 0
    %4439 = vmatpush1.bf16.msra.mxu0 0
    %4440 = vmatprep.mubr.bf16.mxu0 0
    %4441 = vmatmul.mubr.bf16.gmra.mrb[0].mxu0 %v4288
    %v4442 = vpop.f32.mrb[0].mxu0
    %v4443 = vadd.f32 %v4346, %v4442
    %v4444 = vpop.f32.mrb[0].mxu0
    %v4445 = vpop.f32.mrb[0].mxu0
    %v4446 = vadd.f32 %v4349, %v4445
    %v4447 = vpop.f32.mrb[0].mxu0
    %4448 = vmatprep.mubr.bf16.mxu0 0
    %4449 = vmatmul.mubr.bf16.gmra.mrb[0].mxu0 %v4291
    %v4450 = vpop.f32.mrb[0].mxu0
    %v4451 = vadd.f32 %v4354, %v4450
    %v4452 = vpop.f32.mrb[0].mxu0
    %v4453 = vpop.f32.mrb[0].mxu0
    %v4454 = vadd.f32 %v4357, %v4453
    %v4455 = vpop.f32.mrb[0].mxu0
    %4456 = vmatprep.mubr.bf16.mxu0 0
    %4457 = vmatmul.mubr.bf16.gmra.mrb[0].mxu0 %v4294
    %v4458 = vpop.f32.mrb[0].mxu0
    %v4459 = vadd.f32 %v4362, %v4458
    %v4460 = vpop.f32.mrb[0].mxu0
    %v4461 = vpop.f32.mrb[0].mxu0
    %v4462 = vadd.f32 %v4365, %v4461
    %v4463 = vpop.f32.mrb[0].mxu0
    %4464 = vmatprep.mubr.bf16.mxu0 0
    %4465 = vmatmul.mubr.bf16.gmra.mrb[0].mxu0 %v4297
    %v4466 = vpop.f32.mrb[0].mxu0
    %v4467 = vadd.f32 %v4370, %v4466
    %v4468 = vpop.f32.mrb[0].mxu0
    %v4469 = vpop.f32.mrb[0].mxu0
    %v4470 = vadd.f32 %v4373, %v4469
    %v4471 = vpop.f32.mrb[0].mxu0
    %4472 = vmatprep.mubr.bf16.mxu0 0
    %4473 = vmatmul.mubr.bf16.gmra.mrb[0].mxu0 %v4300
    %v4474 = vpop.f32.mrb[0].mxu0
    %v4475 = vadd.f32 %v4378, %v4474
    %v4476 = vpop.f32.mrb[0].mxu0
    %v4477 = vpop.f32.mrb[0].mxu0
    %v4478 = vadd.f32 %v4381, %v4477
    %v4479 = vpop.f32.mrb[0].mxu0
    %4480 = vmatprep.mubr.bf16.mxu0 0
    %4481 = vmatmul.mubr.bf16.gmra.mrb[0].mxu0 %v4303
    %v4482 = vpop.f32.mrb[0].mxu0
    %v4483 = vadd.f32 %v4386, %v4482
    %v4484 = vpop.f32.mrb[0].mxu0
    %v4485 = vpop.f32.mrb[0].mxu0
    %v4486 = vadd.f32 %v4389, %v4485
    %v4487 = vpop.f32.mrb[0].mxu0
    %4488 = vmatprep.mubr.bf16.mxu0 0
    %4489 = vmatmul.mubr.bf16.gmra.mrb[0].mxu0 %v4306
    %v4490 = vpop.f32.mrb[0].mxu0
    %v4491 = vadd.f32 %v4394, %v4490
    %v4492 = vpop.f32.mrb[0].mxu0
    %v4493 = vpop.f32.mrb[0].mxu0
    %v4494 = vadd.f32 %v4397, %v4493
    %v4495 = vpop.f32.mrb[0].mxu0
    %4496 = vmatprep.mubr.bf16.mxu0 0
    %4497 = vmatmul.mubr.bf16.gmra.mrb[0].mxu0 %v4309
    %v4498 = vpop.f32.mrb[0].mxu0
    %v4499 = vadd.f32 %v4402, %v4498
    %v4500 = vpop.f32.mrb[0].mxu0
    %v4501 = vpop.f32.mrb[0].mxu0
    %v4502 = vadd.f32 %v4405, %v4501
    %v4503 = vpop.f32.mrb[0].mxu0
    %4504 = vdwg.mxu0
    %v4505 = vld [vmem:[%s14] sm:$0x1]
    %v4506 = vld [vmem:[%s15] sm:$0x1]
    %v4507 = vsel %vm66, %v4443, 0.0
    %v4508 = vsel %vm66, %v4446, 0.0
    %v4509 = vadd.f32 %v4507, %v4508
    %v4510 = vsel %vm66, %v4451, 0.0
    %v4511 = vadd.f32 %v4509, %v4510
    %v4512 = vsel %vm66, %v4454, 0.0
    %v4513 = vadd.f32 %v4511, %v4512
    %v4514 = vsel %vm66, %v4459, 0.0
    %v4515 = vadd.f32 %v4513, %v4514
    %v4516 = vsel %vm66, %v4462, 0.0
    %v4517 = vadd.f32 %v4515, %v4516
    %v4518 = vsel %vm66, %v4467, 0.0
    %v4519 = vadd.f32 %v4517, %v4518
    %v4520 = vsel %vm66, %v4470, 0.0
    %v4521 = vadd.f32 %v4519, %v4520
    %v4522 = vsel %vm66, %v4475, 0.0
    %v4523 = vadd.f32 %v4521, %v4522
    %v4524 = vsel %vm66, %v4478, 0.0
    %v4525 = vadd.f32 %v4523, %v4524
    %v4526 = vsel %vm66, %v4483, 0.0
    %v4527 = vadd.f32 %v4525, %v4526
    %v4528 = vsel %vm66, %v4486, 0.0
    %v4529 = vadd.f32 %v4527, %v4528
    %v4530 = vsel %vm66, %v4491, 0.0
    %v4531 = vadd.f32 %v4529, %v4530
    %v4532 = vsel %vm66, %v4494, 0.0
    %v4533 = vadd.f32 %v4531, %v4532
    %v4534 = vsel %vm66, %v4499, 0.0
    %v4535 = vadd.f32 %v4533, %v4534
    %v4536 = vsel %vm66, %v4502, 0.0
    %v4537 = vadd.f32 %v4535, %v4536
    %v4538 = vrot.slane %v4537, 4
    %v4539 = vadd.f32 %v4537, %v4538
    %v4540 = vrot.slane %v4539, 2
    %v4541 = vadd.f32 %v4539, %v4540
    %v4542 = vrot.slane %v4541, 1
    %v4543 = vadd.f32 %v4541, %v4542
    %v4544 = vmul.f32 %v4443, %v4443
    %v4545 = vmul.f32 %v4446, %v4446
    %v4546 = vmul.f32 %v4451, %v4451
    %v4547 = vmul.f32 %v4454, %v4454
    %v4548 = vmul.f32 %v4459, %v4459
    %v4549 = vmul.f32 %v4462, %v4462
    %v4550 = vmul.f32 %v4467, %v4467
    %v4551 = vmul.f32 %v4470, %v4470
    %v4552 = vmul.f32 %v4475, %v4475
    %v4553 = vmul.f32 %v4478, %v4478
    %v4554 = vmul.f32 %v4483, %v4483
    %v4555 = vmul.f32 %v4486, %v4486
    %v4556 = vmul.f32 %v4491, %v4491
    %v4557 = vmul.f32 %v4494, %v4494
    %v4558 = vmul.f32 %v4499, %v4499
    %v4559 = vmul.f32 %v4502, %v4502
    %v4560 = vsel %vm66, %v4544, 0.0
    %v4561 = vsel %vm66, %v4545, 0.0
    %v4562 = vadd.f32 %v4560, %v4561
    %v4563 = vsel %vm66, %v4546, 0.0
    %v4564 = vadd.f32 %v4562, %v4563
    %v4565 = vsel %vm66, %v4547, 0.0
    %v4566 = vadd.f32 %v4564, %v4565
    %v4567 = vsel %vm66, %v4548, 0.0
    %v4568 = vadd.f32 %v4566, %v4567
    %v4569 = vsel %vm66, %v4549, 0.0
    %v4570 = vadd.f32 %v4568, %v4569
    %v4571 = vsel %vm66, %v4550, 0.0
    %v4572 = vadd.f32 %v4570, %v4571
    %v4573 = vsel %vm66, %v4551, 0.0
    %v4574 = vadd.f32 %v4572, %v4573
    %v4575 = vsel %vm66, %v4552, 0.0
    %v4576 = vadd.f32 %v4574, %v4575
    %v4577 = vsel %vm66, %v4553, 0.0
    %v4578 = vadd.f32 %v4576, %v4577
    %v4579 = vsel %vm66, %v4554, 0.0
    %v4580 = vadd.f32 %v4578, %v4579
    %v4581 = vsel %vm66, %v4555, 0.0
    %v4582 = vadd.f32 %v4580, %v4581
    %v4583 = vsel %vm66, %v4556, 0.0
    %v4584 = vadd.f32 %v4582, %v4583
    %v4585 = vsel %vm66, %v4557, 0.0
    %v4586 = vadd.f32 %v4584, %v4585
    %v4587 = vsel %vm66, %v4558, 0.0
    %v4588 = vadd.f32 %v4586, %v4587
    %v4589 = vsel %vm66, %v4559, 0.0
    %v4590 = vadd.f32 %v4588, %v4589
    %v4591 = vrot.slane %v4590, 4
    %v4592 = vadd.f32 %v4590, %v4591
    %v4593 = vrot.slane %v4592, 2
    %v4594 = vadd.f32 %v4592, %v4593
    %v4595 = vrot.slane %v4594, 1
    %v4596 = vadd.f32 %v4594, %v4595
    %v4597 = vmul.f32 %v4543, 0.0078125
    %v4598 = vmul.f32 %v4596, 0.0078125
    %v4599 = vmul.f32 %v4597, %v4597
    %v4600 = vsub.f32 %v4598, %v4599
    %v4601 = vmax.f32 %v4600, 0.0
    %v4602 = vadd.f32 %v4601, 1e-05
    %v4603 = vrsqrt.pop %v4602
    %v4604 = vmul.f32 %v4505, %v4603
    %v4606 = vlaneseq
    %v4607 = vshrl.u32 %v4606, 7
    %v4608 = vsub.s32 0, %v4607
    %v4609 = vrot.slane %v4604, %v4608
    %v4611 = vmul.f32 %v4443, %v4609
    %v4612 = vmul.f32 %v4446, %v4609
    %v4613 = vmul.f32 %v4451, %v4609
    %v4614 = vmul.f32 %v4454, %v4609
    %v4615 = vmul.f32 %v4459, %v4609
    %v4616 = vmul.f32 %v4462, %v4609
    %v4617 = vmul.f32 %v4467, %v4609
    %v4618 = vmul.f32 %v4470, %v4609
    %v4619 = vmul.f32 %v4475, %v4609
    %v4620 = vmul.f32 %v4478, %v4609
    %v4621 = vmul.f32 %v4483, %v4609
    %v4622 = vmul.f32 %v4486, %v4609
    %v4623 = vmul.f32 %v4491, %v4609
    %v4624 = vmul.f32 %v4494, %v4609
    %v4625 = vmul.f32 %v4499, %v4609
    %v4626 = vmul.f32 %v4502, %v4609
    %v4627 = vmul.f32 %v4597, %v4604
    %v4628 = vsub.f32 %v4506, %v4627
    %v4630 = vlaneseq
    %v4631 = vshrl.u32 %v4630, 7
    %v4632 = vsub.s32 0, %v4631
    %v4633 = vrot.slane %v4628, %v4632
    %v4635 = vadd.f32 %v4611, %v4633
    %v4636 = vadd.f32 %v4612, %v4633
    %v4637 = vadd.f32 %v4613, %v4633
    %v4638 = vadd.f32 %v4614, %v4633
    %v4639 = vadd.f32 %v4615, %v4633
    %v4640 = vadd.f32 %v4616, %v4633
    %v4641 = vadd.f32 %v4617, %v4633
    %v4642 = vadd.f32 %v4618, %v4633
    %v4643 = vadd.f32 %v4619, %v4633
    %v4644 = vadd.f32 %v4620, %v4633
    %v4645 = vadd.f32 %v4621, %v4633
    %v4646 = vadd.f32 %v4622, %v4633
    %v4647 = vadd.f32 %v4623, %v4633
    %v4648 = vadd.f32 %v4624, %v4633
    %v4649 = vadd.f32 %v4625, %v4633
    %v4650 = vadd.f32 %v4626, %v4633
    %v4651 = vadd.f32 %v4635, %v2563
    %v4652 = vadd.f32 %v4636, %v2564
    %v4653 = vadd.f32 %v4637, %v2565
    %v4654 = vadd.f32 %v4638, %v2566
    %v4655 = vadd.f32 %v4639, %v2567
    %v4656 = vadd.f32 %v4640, %v2568
    %v4657 = vadd.f32 %v4641, %v2569
    %v4658 = vadd.f32 %v4642, %v2570
    %v4659 = vadd.f32 %v4643, %v2571
    %v4660 = vadd.f32 %v4644, %v2572
    %v4661 = vadd.f32 %v4645, %v2573
    %v4662 = vadd.f32 %v4646, %v2574
    %v4663 = vadd.f32 %v4647, %v2575
    %v4664 = vadd.f32 %v4648, %v2576
    %v4665 = vadd.f32 %v4649, %v2577
    %v4666 = vadd.f32 %v4650, %v2578
    %v4667 = vmax.f32 %v4651, 0.0
    %v4668 = vmax.f32 %v4652, 0.0
    %v4669 = vmax.f32 %v4653, 0.0
    %v4670 = vmax.f32 %v4654, 0.0
    %v4671 = vmax.f32 %v4655, 0.0
    %v4672 = vmax.f32 %v4656, 0.0
    %v4673 = vmax.f32 %v4657, 0.0
    %v4674 = vmax.f32 %v4658, 0.0
    %v4675 = vmax.f32 %v4659, 0.0
    %v4676 = vmax.f32 %v4660, 0.0
    %v4677 = vmax.f32 %v4661, 0.0
    %v4678 = vmax.f32 %v4662, 0.0
    %v4679 = vmax.f32 %v4663, 0.0
    %v4680 = vmax.f32 %v4664, 0.0
    %v4681 = vmax.f32 %v4665, 0.0
    %v4682 = vmax.f32 %v4666, 0.0
    %4683 = vst.msk [vmem:[%s470 + $0x1] sm:$0xff] %vm66, %v4667
    %4684 = vst.msk [vmem:[%s470 + $0x11] sm:$0xff] %vm66, %v4668
    %4685 = vst.msk [vmem:[%s470 + $0x21] sm:$0xff] %vm66, %v4669
    %4686 = vst.msk [vmem:[%s470 + $0x31] sm:$0xff] %vm66, %v4670
    %4687 = vst.msk [vmem:[%s470 + $0x41] sm:$0xff] %vm66, %v4671
    %4688 = vst.msk [vmem:[%s470 + $0x51] sm:$0xff] %vm66, %v4672
    %4689 = vst.msk [vmem:[%s470 + $0x61] sm:$0xff] %vm66, %v4673
    %4690 = vst.msk [vmem:[%s470 + $0x71] sm:$0xff] %vm66, %v4674
    %4691 = vst.msk [vmem:[%s470 + $0xa1] sm:$0xff] %vm66, %v4675
    %4692 = vst.msk [vmem:[%s470 + $0xb1] sm:$0xff] %vm66, %v4676
    %4693 = vst.msk [vmem:[%s470 + $0xc1] sm:$0xff] %vm66, %v4677
    %4694 = vst.msk [vmem:[%s470 + $0xd1] sm:$0xff] %vm66, %v4678
    %4695 = vst.msk [vmem:[%s470 + $0xe1] sm:$0xff] %vm66, %v4679
    %4696 = vst.msk [vmem:[%s470 + $0xf1] sm:$0xff] %vm66, %v4680
    %4697 = vst.msk [vmem:[%s470 + $0x101] sm:$0xff] %vm66, %v4681
    %4698 = vst.msk [vmem:[%s470 + $0x111] sm:$0xff] %vm66, %v4682
    %v4699 = vld [vmem:[#allocation2] sm:$0xff]
    %v4700 = vld [vmem:[#allocation2 + $0x10] sm:$0xff]
    %v4701 = vld [vmem:[#allocation2 + $0x20] sm:$0xff]
    %v4702 = vld [vmem:[#allocation2 + $0x30] sm:$0xff]
    %v4703 = vld [vmem:[#allocation2 + $0x40] sm:$0xff]
    %v4704 = vld [vmem:[#allocation2 + $0x50] sm:$0xff]
    %v4705 = vld [vmem:[#allocation2 + $0x60] sm:$0xff]
    %v4706 = vld [vmem:[#allocation2 + $0x70] sm:$0xff]
    %v4707 = vld [vmem:[#allocation2 + $0xa0] sm:$0xff]
    %v4708 = vld [vmem:[#allocation2 + $0xb0] sm:$0xff]
    %v4709 = vld [vmem:[#allocation2 + $0xc0] sm:$0xff]
    %v4710 = vld [vmem:[#allocation2 + $0xd0] sm:$0xff]
    %v4711 = vld [vmem:[#allocation2 + $0xe0] sm:$0xff]
    %v4712 = vld [vmem:[#allocation2 + $0xf0] sm:$0xff]
    %v4713 = vld [vmem:[#allocation2 + $0x100] sm:$0xff]
    %v4714 = vld [vmem:[#allocation2 + $0x110] sm:$0xff]
    %v4715 = vpack.c.bf16 %v4700, %v4699
    %v4716 = vpack.c.bf16 %v4702, %v4701
    %v4717 = vpack.c.bf16 %v4704, %v4703
    %v4718 = vpack.c.bf16 %v4706, %v4705
    %v4719 = vpack.c.bf16 %v4708, %v4707
    %v4720 = vpack.c.bf16 %v4710, %v4709
    %v4721 = vpack.c.bf16 %v4712, %v4711
    %v4722 = vpack.c.bf16 %v4714, %v4713
    %4723 = vst.msk [vmem:[#allocation3] sm:$0xff] %vm66, %v4715
    %4724 = vst.msk [vmem:[#allocation3 + $0x18] sm:$0xff] %vm66, %v4716
    %4725 = vst.msk [vmem:[#allocation3 + $0x30] sm:$0xff] %vm66, %v4717
    %4726 = vst.msk [vmem:[#allocation3 + $0x48] sm:$0xff] %vm66, %v4718
    %4727 = vst.msk [vmem:[#allocation3 + $0x60] sm:$0xff] %vm66, %v4719
    %4728 = vst.msk [vmem:[#allocation3 + $0x78] sm:$0xff] %vm66, %v4720
    %4729 = vst.msk [vmem:[#allocation3 + $0x90] sm:$0xff] %vm66, %v4721
    %4730 = vst.msk [vmem:[#allocation3 + $0xa8] sm:$0xff] %vm66, %v4722
    %v4731 = vld [vmem:[#allocation2 + $0x1] sm:$0xff]
    %v4732 = vld [vmem:[#allocation2 + $0x11] sm:$0xff]
    %v4733 = vld [vmem:[#allocation2 + $0x21] sm:$0xff]
    %v4734 = vld [vmem:[#allocation2 + $0x31] sm:$0xff]
    %v4735 = vld [vmem:[#allocation2 + $0x41] sm:$0xff]
    %v4736 = vld [vmem:[#allocation2 + $0x51] sm:$0xff]
    %v4737 = vld [vmem:[#allocation2 + $0x61] sm:$0xff]
    %v4738 = vld [vmem:[#allocation2 + $0x71] sm:$0xff]
    %v4739 = vld [vmem:[#allocation2 + $0xa1] sm:$0xff]
    %v4740 = vld [vmem:[#allocation2 + $0xb1] sm:$0xff]
    %v4741 = vld [vmem:[#allocation2 + $0xc1] sm:$0xff]
    %v4742 = vld [vmem:[#allocation2 + $0xd1] sm:$0xff]
    %v4743 = vld [vmem:[#allocation2 + $0xe1] sm:$0xff]
    %v4744 = vld [vmem:[#allocation2 + $0xf1] sm:$0xff]
    %v4745 = vld [vmem:[#allocation2 + $0x101] sm:$0xff]
    %v4746 = vld [vmem:[#allocation2 + $0x111] sm:$0xff]
    %v4747 = vpack.c.bf16 %v4732, %v4731
    %v4748 = vpack.c.bf16 %v4734, %v4733
    %v4749 = vpack.c.bf16 %v4736, %v4735
    %v4750 = vpack.c.bf16 %v4738, %v4737
    %v4751 = vpack.c.bf16 %v4740, %v4739
    %v4752 = vpack.c.bf16 %v4742, %v4741
    %v4753 = vpack.c.bf16 %v4744, %v4743
    %v4754 = vpack.c.bf16 %v4746, %v4745
    %4763 = vrot.lane.b32.xlu0 %v4747, 32
    %v4764 = vpop.permute.xlu0 %4763
    %4765 = vrot.lane.b32.xlu0 %v4748, 32
    %v4766 = vpop.permute.xlu0 %4765
    %4767 = vrot.lane.b32.xlu0 %v4749, 32
    %v4768 = vpop.permute.xlu0 %4767
    %4769 = vrot.lane.b32.xlu0 %v4750, 32
    %v4770 = vpop.permute.xlu0 %4769
    %4771 = vrot.lane.b32.xlu0 %v4751, 32
    %v4772 = vpop.permute.xlu0 %4771
    %4773 = vrot.lane.b32.xlu0 %v4752, 32
    %v4774 = vpop.permute.xlu0 %4773
    %4775 = vrot.lane.b32.xlu0 %v4753, 32
    %v4776 = vpop.permute.xlu0 %4775
    %4777 = vrot.lane.b32.xlu0 %v4754, 32
    %v4778 = vpop.permute.xlu0 %4777
    %4787 = vst.msk [vmem:[#allocation3] sm:$0xff] %vm575, %v4764
    %4788 = vst.msk [vmem:[#allocation3 + $0x18] sm:$0xff] %vm575, %v4766
    %4789 = vst.msk [vmem:[#allocation3 + $0x30] sm:$0xff] %vm575, %v4768
    %4790 = vst.msk [vmem:[#allocation3 + $0x48] sm:$0xff] %vm575, %v4770
    %4791 = vst.msk [vmem:[#allocation3 + $0x60] sm:$0xff] %vm575, %v4772
    %4792 = vst.msk [vmem:[#allocation3 + $0x78] sm:$0xff] %vm575, %v4774
    %4793 = vst.msk [vmem:[#allocation3 + $0x90] sm:$0xff] %vm575, %v4776
    %4794 = vst.msk [vmem:[#allocation3 + $0xa8] sm:$0xff] %vm575, %v4778
    %v4795 = vld [vmem:[#allocation2 + $0x2] sm:$0xff]
    %v4796 = vld [vmem:[#allocation2 + $0x12] sm:$0xff]
    %v4797 = vld [vmem:[#allocation2 + $0x22] sm:$0xff]
    %v4798 = vld [vmem:[#allocation2 + $0x32] sm:$0xff]
    %v4799 = vld [vmem:[#allocation2 + $0x42] sm:$0xff]
    %v4800 = vld [vmem:[#allocation2 + $0x52] sm:$0xff]
    %v4801 = vld [vmem:[#allocation2 + $0x62] sm:$0xff]
    %v4802 = vld [vmem:[#allocation2 + $0x72] sm:$0xff]
    %v4803 = vld [vmem:[#allocation2 + $0xa2] sm:$0xff]
    %v4804 = vld [vmem:[#allocation2 + $0xb2] sm:$0xff]
    %v4805 = vld [vmem:[#allocation2 + $0xc2] sm:$0xff]
    %v4806 = vld [vmem:[#allocation2 + $0xd2] sm:$0xff]
    %v4807 = vld [vmem:[#allocation2 + $0xe2] sm:$0xff]
    %v4808 = vld [vmem:[#allocation2 + $0xf2] sm:$0xff]
    %v4809 = vld [vmem:[#allocation2 + $0x102] sm:$0xff]
    %v4810 = vld [vmem:[#allocation2 + $0x112] sm:$0xff]
    %v4811 = vpack.c.bf16 %v4796, %v4795
    %v4812 = vpack.c.bf16 %v4798, %v4797
    %v4813 = vpack.c.bf16 %v4800, %v4799
    %v4814 = vpack.c.bf16 %v4802, %v4801
    %v4815 = vpack.c.bf16 %v4804, %v4803
    %v4816 = vpack.c.bf16 %v4806, %v4805
    %v4817 = vpack.c.bf16 %v4808, %v4807
    %v4818 = vpack.c.bf16 %v4810, %v4809
    %4827 = vrot.lane.b32.xlu0 %v4811, 64
    %v4828 = vpop.permute.xlu0 %4827
    %4829 = vrot.lane.b32.xlu0 %v4812, 64
    %v4830 = vpop.permute.xlu0 %4829
    %4831 = vrot.lane.b32.xlu0 %v4813, 64
    %v4832 = vpop.permute.xlu0 %4831
    %4833 = vrot.lane.b32.xlu0 %v4814, 64
    %v4834 = vpop.permute.xlu0 %4833
    %4835 = vrot.lane.b32.xlu0 %v4815, 64
    %v4836 = vpop.permute.xlu0 %4835
    %4837 = vrot.lane.b32.xlu0 %v4816, 64
    %v4838 = vpop.permute.xlu0 %4837
    %4839 = vrot.lane.b32.xlu0 %v4817, 64
    %v4840 = vpop.permute.xlu0 %4839
    %4841 = vrot.lane.b32.xlu0 %v4818, 64
    %v4842 = vpop.permute.xlu0 %4841
    %4851 = vst.msk [vmem:[#allocation3] sm:$0xff] %vm640, %v4828
    %4852 = vst.msk [vmem:[#allocation3 + $0x18] sm:$0xff] %vm640, %v4830
    %4853 = vst.msk [vmem:[#allocation3 + $0x30] sm:$0xff] %vm640, %v4832
    %4854 = vst.msk [vmem:[#allocation3 + $0x48] sm:$0xff] %vm640, %v4834
    %4855 = vst.msk [vmem:[#allocation3 + $0x60] sm:$0xff] %vm640, %v4836
    %4856 = vst.msk [vmem:[#allocation3 + $0x78] sm:$0xff] %vm640, %v4838
    %4857 = vst.msk [vmem:[#allocation3 + $0x90] sm:$0xff] %vm640, %v4840
    %4858 = vst.msk [vmem:[#allocation3 + $0xa8] sm:$0xff] %vm640, %v4842
    %v4859 = vld [vmem:[%s470] sm:$0xff]
    %v4860 = vld [vmem:[%s470 + $0x10] sm:$0xff]
    %v4861 = vld [vmem:[%s470 + $0x20] sm:$0xff]
    %v4862 = vld [vmem:[%s470 + $0x30] sm:$0xff]
    %v4863 = vld [vmem:[%s470 + $0x40] sm:$0xff]
    %v4864 = vld [vmem:[%s470 + $0x50] sm:$0xff]
    %v4865 = vld [vmem:[%s470 + $0x60] sm:$0xff]
    %v4866 = vld [vmem:[%s470 + $0x70] sm:$0xff]
    %v4867 = vld [vmem:[%s470 + $0xa0] sm:$0xff]
    %v4868 = vld [vmem:[%s470 + $0xb0] sm:$0xff]
    %v4869 = vld [vmem:[%s470 + $0xc0] sm:$0xff]
    %v4870 = vld [vmem:[%s470 + $0xd0] sm:$0xff]
    %v4871 = vld [vmem:[%s470 + $0xe0] sm:$0xff]
    %v4872 = vld [vmem:[%s470 + $0xf0] sm:$0xff]
    %v4873 = vld [vmem:[%s470 + $0x100] sm:$0xff]
    %v4874 = vld [vmem:[%s470 + $0x110] sm:$0xff]
    %v4875 = vpack.c.bf16 %v4860, %v4859
    %v4876 = vpack.c.bf16 %v4862, %v4861
    %v4877 = vpack.c.bf16 %v4864, %v4863
    %v4878 = vpack.c.bf16 %v4866, %v4865
    %v4879 = vpack.c.bf16 %v4868, %v4867
    %v4880 = vpack.c.bf16 %v4870, %v4869
    %v4881 = vpack.c.bf16 %v4872, %v4871
    %v4882 = vpack.c.bf16 %v4874, %v4873
    %4891 = vrot.lane.b32.xlu0 %v4875, 96
    %v4892 = vpop.permute.xlu0 %4891
    %4893 = vrot.lane.b32.xlu0 %v4876, 96
    %v4894 = vpop.permute.xlu0 %4893
    %4895 = vrot.lane.b32.xlu0 %v4877, 96
    %v4896 = vpop.permute.xlu0 %4895
    %4897 = vrot.lane.b32.xlu0 %v4878, 96
    %v4898 = vpop.permute.xlu0 %4897
    %4899 = vrot.lane.b32.xlu0 %v4879, 96
    %v4900 = vpop.permute.xlu0 %4899
    %4901 = vrot.lane.b32.xlu0 %v4880, 96
    %v4902 = vpop.permute.xlu0 %4901
    %4903 = vrot.lane.b32.xlu0 %v4881, 96
    %v4904 = vpop.permute.xlu0 %4903
    %4905 = vrot.lane.b32.xlu0 %v4882, 96
    %v4906 = vpop.permute.xlu0 %4905
    %4915 = vst.msk [vmem:[#allocation3] sm:$0xff] %vm705, %v4892
    %4916 = vst.msk [vmem:[#allocation3 + $0x18] sm:$0xff] %vm705, %v4894
    %4917 = vst.msk [vmem:[#allocation3 + $0x30] sm:$0xff] %vm705, %v4896
    %4918 = vst.msk [vmem:[#allocation3 + $0x48] sm:$0xff] %vm705, %v4898
    %4919 = vst.msk [vmem:[#allocation3 + $0x60] sm:$0xff] %vm705, %v4900
    %4920 = vst.msk [vmem:[#allocation3 + $0x78] sm:$0xff] %vm705, %v4902
    %4921 = vst.msk [vmem:[#allocation3 + $0x90] sm:$0xff] %vm705, %v4904
    %4922 = vst.msk [vmem:[#allocation3 + $0xa8] sm:$0xff] %vm705, %v4906
    %v4923 = vld [vmem:[%s470 + $0x1] sm:$0xff]
    %v4924 = vld [vmem:[%s470 + $0x11] sm:$0xff]
    %v4925 = vld [vmem:[%s470 + $0x21] sm:$0xff]
    %v4926 = vld [vmem:[%s470 + $0x31] sm:$0xff]
    %v4927 = vld [vmem:[%s470 + $0x41] sm:$0xff]
    %v4928 = vld [vmem:[%s470 + $0x51] sm:$0xff]
    %v4929 = vld [vmem:[%s470 + $0x61] sm:$0xff]
    %v4930 = vld [vmem:[%s470 + $0x71] sm:$0xff]
    %v4931 = vld [vmem:[%s470 + $0xa1] sm:$0xff]
    %v4932 = vld [vmem:[%s470 + $0xb1] sm:$0xff]
    %v4933 = vld [vmem:[%s470 + $0xc1] sm:$0xff]
    %v4934 = vld [vmem:[%s470 + $0xd1] sm:$0xff]
    %v4935 = vld [vmem:[%s470 + $0xe1] sm:$0xff]
    %v4936 = vld [vmem:[%s470 + $0xf1] sm:$0xff]
    %v4937 = vld [vmem:[%s470 + $0x101] sm:$0xff]
    %v4938 = vld [vmem:[%s470 + $0x111] sm:$0xff]
    %v4939 = vpack.c.bf16 %v4924, %v4923
    %v4940 = vpack.c.bf16 %v4926, %v4925
    %v4941 = vpack.c.bf16 %v4928, %v4927
    %v4942 = vpack.c.bf16 %v4930, %v4929
    %v4943 = vpack.c.bf16 %v4932, %v4931
    %v4944 = vpack.c.bf16 %v4934, %v4933
    %v4945 = vpack.c.bf16 %v4936, %v4935
    %v4946 = vpack.c.bf16 %v4938, %v4937
    %4947 = vst.msk [vmem:[#allocation3 + $0x8] sm:$0xff] %vm66, %v4939
    %4948 = vst.msk [vmem:[#allocation3 + $0x20] sm:$0xff] %vm66, %v4940
    %4949 = vst.msk [vmem:[#allocation3 + $0x38] sm:$0xff] %vm66, %v4941
    %4950 = vst.msk [vmem:[#allocation3 + $0x50] sm:$0xff] %vm66, %v4942
    %4951 = vst.msk [vmem:[#allocation3 + $0x68] sm:$0xff] %vm66, %v4943
    %4952 = vst.msk [vmem:[#allocation3 + $0x80] sm:$0xff] %vm66, %v4944
    %4953 = vst.msk [vmem:[#allocation3 + $0x98] sm:$0xff] %vm66, %v4945
    %4954 = vst.msk [vmem:[#allocation3 + $0xb0] sm:$0xff] %vm66, %v4946
    %v4955 = vld [vmem:[%s470 + $0x2] sm:$0xff]
    %v4956 = vld [vmem:[%s470 + $0x12] sm:$0xff]
    %v4957 = vld [vmem:[%s470 + $0x22] sm:$0xff]
    %v4958 = vld [vmem:[%s470 + $0x32] sm:$0xff]
    %v4959 = vld [vmem:[%s470 + $0x42] sm:$0xff]
    %v4960 = vld [vmem:[%s470 + $0x52] sm:$0xff]
    %v4961 = vld [vmem:[%s470 + $0x62] sm:$0xff]
    %v4962 = vld [vmem:[%s470 + $0x72] sm:$0xff]
    %v4963 = vld [vmem:[%s470 + $0xa2] sm:$0xff]
    %v4964 = vld [vmem:[%s470 + $0xb2] sm:$0xff]
    %v4965 = vld [vmem:[%s470 + $0xc2] sm:$0xff]
    %v4966 = vld [vmem:[%s470 + $0xd2] sm:$0xff]
    %v4967 = vld [vmem:[%s470 + $0xe2] sm:$0xff]
    %v4968 = vld [vmem:[%s470 + $0xf2] sm:$0xff]
    %v4969 = vld [vmem:[%s470 + $0x102] sm:$0xff]
    %v4970 = vld [vmem:[%s470 + $0x112] sm:$0xff]
    %v4971 = vpack.c.bf16 %v4956, %v4955
    %v4972 = vpack.c.bf16 %v4958, %v4957
    %v4973 = vpack.c.bf16 %v4960, %v4959
    %v4974 = vpack.c.bf16 %v4962, %v4961
    %v4975 = vpack.c.bf16 %v4964, %v4963
    %v4976 = vpack.c.bf16 %v4966, %v4965
    %v4977 = vpack.c.bf16 %v4968, %v4967
    %v4978 = vpack.c.bf16 %v4970, %v4969
    %4987 = vrot.lane.b32.xlu0 %v4971, 32
    %v4988 = vpop.permute.xlu0 %4987
    %4989 = vrot.lane.b32.xlu0 %v4972, 32
    %v4990 = vpop.permute.xlu0 %4989
    %4991 = vrot.lane.b32.xlu0 %v4973, 32
    %v4992 = vpop.permute.xlu0 %4991
    %4993 = vrot.lane.b32.xlu0 %v4974, 32
    %v4994 = vpop.permute.xlu0 %4993
    %4995 = vrot.lane.b32.xlu0 %v4975, 32
    %v4996 = vpop.permute.xlu0 %4995
    %4997 = vrot.lane.b32.xlu0 %v4976, 32
    %v4998 = vpop.permute.xlu0 %4997
    %4999 = vrot.lane.b32.xlu0 %v4977, 32
    %v5000 = vpop.permute.xlu0 %4999
    %5001 = vrot.lane.b32.xlu0 %v4978, 32
    %v5002 = vpop.permute.xlu0 %5001
    %5011 = vst.msk [vmem:[#allocation3 + $0x8] sm:$0xff] %vm575, %v4988
    %5012 = vst.msk [vmem:[#allocation3 + $0x20] sm:$0xff] %vm575, %v4990
    %5013 = vst.msk [vmem:[#allocation3 + $0x38] sm:$0xff] %vm575, %v4992
    %5014 = vst.msk [vmem:[#allocation3 + $0x50] sm:$0xff] %vm575, %v4994
    %5015 = vst.msk [vmem:[#allocation3 + $0x68] sm:$0xff] %vm575, %v4996
    %5016 = vst.msk [vmem:[#allocation3 + $0x80] sm:$0xff] %vm575, %v4998
    %5017 = vst.msk [vmem:[#allocation3 + $0x98] sm:$0xff] %vm575, %v5000
    %5018 = vst.msk [vmem:[#allocation3 + $0xb0] sm:$0xff] %vm575, %v5002
    %v5019 = vld [vmem:[%s810] sm:$0xff]
    %v5020 = vld [vmem:[%s810 + $0x10] sm:$0xff]
    %v5021 = vld [vmem:[%s810 + $0x20] sm:$0xff]
    %v5022 = vld [vmem:[%s810 + $0x30] sm:$0xff]
    %v5023 = vld [vmem:[%s810 + $0x40] sm:$0xff]
    %v5024 = vld [vmem:[%s810 + $0x50] sm:$0xff]
    %v5025 = vld [vmem:[%s810 + $0x60] sm:$0xff]
    %v5026 = vld [vmem:[%s810 + $0x70] sm:$0xff]
    %v5027 = vld [vmem:[%s810 + $0xa0] sm:$0xff]
    %v5028 = vld [vmem:[%s810 + $0xb0] sm:$0xff]
    %v5029 = vld [vmem:[%s810 + $0xc0] sm:$0xff]
    %v5030 = vld [vmem:[%s810 + $0xd0] sm:$0xff]
    %v5031 = vld [vmem:[%s810 + $0xe0] sm:$0xff]
    %v5032 = vld [vmem:[%s810 + $0xf0] sm:$0xff]
    %v5033 = vld [vmem:[%s810 + $0x100] sm:$0xff]
    %v5034 = vld [vmem:[%s810 + $0x110] sm:$0xff]
    %v5035 = vpack.c.bf16 %v5020, %v5019
    %v5036 = vpack.c.bf16 %v5022, %v5021
    %v5037 = vpack.c.bf16 %v5024, %v5023
    %v5038 = vpack.c.bf16 %v5026, %v5025
    %v5039 = vpack.c.bf16 %v5028, %v5027
    %v5040 = vpack.c.bf16 %v5030, %v5029
    %v5041 = vpack.c.bf16 %v5032, %v5031
    %v5042 = vpack.c.bf16 %v5034, %v5033
    %5051 = vrot.lane.b32.xlu0 %v5035, 64
    %v5052 = vpop.permute.xlu0 %5051
    %5053 = vrot.lane.b32.xlu0 %v5036, 64
    %v5054 = vpop.permute.xlu0 %5053
    %5055 = vrot.lane.b32.xlu0 %v5037, 64
    %v5056 = vpop.permute.xlu0 %5055
    %5057 = vrot.lane.b32.xlu0 %v5038, 64
    %v5058 = vpop.permute.xlu0 %5057
    %5059 = vrot.lane.b32.xlu0 %v5039, 64
    %v5060 = vpop.permute.xlu0 %5059
    %5061 = vrot.lane.b32.xlu0 %v5040, 64
    %v5062 = vpop.permute.xlu0 %5061
    %5063 = vrot.lane.b32.xlu0 %v5041, 64
    %v5064 = vpop.permute.xlu0 %5063
    %5065 = vrot.lane.b32.xlu0 %v5042, 64
    %v5066 = vpop.permute.xlu0 %5065
    %5075 = vst.msk [vmem:[#allocation3 + $0x8] sm:$0xff] %vm640, %v5052
    %5076 = vst.msk [vmem:[#allocation3 + $0x20] sm:$0xff] %vm640, %v5054
    %5077 = vst.msk [vmem:[#allocation3 + $0x38] sm:$0xff] %vm640, %v5056
    %5078 = vst.msk [vmem:[#allocation3 + $0x50] sm:$0xff] %vm640, %v5058
    %5079 = vst.msk [vmem:[#allocation3 + $0x68] sm:$0xff] %vm640, %v5060
    %5080 = vst.msk [vmem:[#allocation3 + $0x80] sm:$0xff] %vm640, %v5062
    %5081 = vst.msk [vmem:[#allocation3 + $0x98] sm:$0xff] %vm640, %v5064
    %5082 = vst.msk [vmem:[#allocation3 + $0xb0] sm:$0xff] %vm640, %v5066
    %v5083 = vld [vmem:[%s810 + $0x1] sm:$0xff]
    %v5084 = vld [vmem:[%s810 + $0x11] sm:$0xff]
    %v5085 = vld [vmem:[%s810 + $0x21] sm:$0xff]
    %v5086 = vld [vmem:[%s810 + $0x31] sm:$0xff]
    %v5087 = vld [vmem:[%s810 + $0x41] sm:$0xff]
    %v5088 = vld [vmem:[%s810 + $0x51] sm:$0xff]
    %v5089 = vld [vmem:[%s810 + $0x61] sm:$0xff]
    %v5090 = vld [vmem:[%s810 + $0x71] sm:$0xff]
    %v5091 = vld [vmem:[%s810 + $0xa1] sm:$0xff]
    %v5092 = vld [vmem:[%s810 + $0xb1] sm:$0xff]
    %v5093 = vld [vmem:[%s810 + $0xc1] sm:$0xff]
    %v5094 = vld [vmem:[%s810 + $0xd1] sm:$0xff]
    %v5095 = vld [vmem:[%s810 + $0xe1] sm:$0xff]
    %v5096 = vld [vmem:[%s810 + $0xf1] sm:$0xff]
    %v5097 = vld [vmem:[%s810 + $0x101] sm:$0xff]
    %v5098 = vld [vmem:[%s810 + $0x111] sm:$0xff]
    %v5099 = vpack.c.bf16 %v5084, %v5083
    %v5100 = vpack.c.bf16 %v5086, %v5085
    %v5101 = vpack.c.bf16 %v5088, %v5087
    %v5102 = vpack.c.bf16 %v5090, %v5089
    %v5103 = vpack.c.bf16 %v5092, %v5091
    %v5104 = vpack.c.bf16 %v5094, %v5093
    %v5105 = vpack.c.bf16 %v5096, %v5095
    %v5106 = vpack.c.bf16 %v5098, %v5097
    %5115 = vrot.lane.b32.xlu0 %v5099, 96
    %v5116 = vpop.permute.xlu0 %5115
    %5117 = vrot.lane.b32.xlu0 %v5100, 96
    %v5118 = vpop.permute.xlu0 %5117
    %5119 = vrot.lane.b32.xlu0 %v5101, 96
    %v5120 = vpop.permute.xlu0 %5119
    %5121 = vrot.lane.b32.xlu0 %v5102, 96
    %v5122 = vpop.permute.xlu0 %5121
    %5123 = vrot.lane.b32.xlu0 %v5103, 96
    %v5124 = vpop.permute.xlu0 %5123
    %5125 = vrot.lane.b32.xlu0 %v5104, 96
    %v5126 = vpop.permute.xlu0 %5125
    %5127 = vrot.lane.b32.xlu0 %v5105, 96
    %v5128 = vpop.permute.xlu0 %5127
    %5129 = vrot.lane.b32.xlu0 %v5106, 96
    %v5130 = vpop.permute.xlu0 %5129
    %5139 = vst.msk [vmem:[#allocation3 + $0x8] sm:$0xff] %vm705, %v5116
    %5140 = vst.msk [vmem:[#allocation3 + $0x20] sm:$0xff] %vm705, %v5118
    %5141 = vst.msk [vmem:[#allocation3 + $0x38] sm:$0xff] %vm705, %v5120
    %5142 = vst.msk [vmem:[#allocation3 + $0x50] sm:$0xff] %vm705, %v5122
    %5143 = vst.msk [vmem:[#allocation3 + $0x68] sm:$0xff] %vm705, %v5124
    %5144 = vst.msk [vmem:[#allocation3 + $0x80] sm:$0xff] %vm705, %v5126
    %5145 = vst.msk [vmem:[#allocation3 + $0x98] sm:$0xff] %vm705, %v5128
    %5146 = vst.msk [vmem:[#allocation3 + $0xb0] sm:$0xff] %vm705, %v5130
    %v5147 = vld [vmem:[%s810 + $0x2] sm:$0xff]
    %v5148 = vld [vmem:[%s810 + $0x12] sm:$0xff]
    %v5149 = vld [vmem:[%s810 + $0x22] sm:$0xff]
    %v5150 = vld [vmem:[%s810 + $0x32] sm:$0xff]
    %v5151 = vld [vmem:[%s810 + $0x42] sm:$0xff]
    %v5152 = vld [vmem:[%s810 + $0x52] sm:$0xff]
    %v5153 = vld [vmem:[%s810 + $0x62] sm:$0xff]
    %v5154 = vld [vmem:[%s810 + $0x72] sm:$0xff]
    %v5155 = vld [vmem:[%s810 + $0xa2] sm:$0xff]
    %v5156 = vld [vmem:[%s810 + $0xb2] sm:$0xff]
    %v5157 = vld [vmem:[%s810 + $0xc2] sm:$0xff]
    %v5158 = vld [vmem:[%s810 + $0xd2] sm:$0xff]
    %v5159 = vld [vmem:[%s810 + $0xe2] sm:$0xff]
    %v5160 = vld [vmem:[%s810 + $0xf2] sm:$0xff]
    %v5161 = vld [vmem:[%s810 + $0x102] sm:$0xff]
    %v5162 = vld [vmem:[%s810 + $0x112] sm:$0xff]
    %v5163 = vpack.c.bf16 %v5148, %v5147
    %v5164 = vpack.c.bf16 %v5150, %v5149
    %v5165 = vpack.c.bf16 %v5152, %v5151
    %v5166 = vpack.c.bf16 %v5154, %v5153
    %v5167 = vpack.c.bf16 %v5156, %v5155
    %v5168 = vpack.c.bf16 %v5158, %v5157
    %v5169 = vpack.c.bf16 %v5160, %v5159
    %v5170 = vpack.c.bf16 %v5162, %v5161
    %5171 = vst.msk [vmem:[#allocation3 + $0x10] sm:$0xff] %vm66, %v5163
    %5172 = vst.msk [vmem:[#allocation3 + $0x28] sm:$0xff] %vm66, %v5164
    %5173 = vst.msk [vmem:[#allocation3 + $0x40] sm:$0xff] %vm66, %v5165
    %5174 = vst.msk [vmem:[#allocation3 + $0x58] sm:$0xff] %vm66, %v5166
    %5175 = vst.msk [vmem:[#allocation3 + $0x70] sm:$0xff] %vm66, %v5167
    %5176 = vst.msk [vmem:[#allocation3 + $0x88] sm:$0xff] %vm66, %v5168
    %5177 = vst.msk [vmem:[#allocation3 + $0xa0] sm:$0xff] %vm66, %v5169
    %5178 = vst.msk [vmem:[#allocation3 + $0xb8] sm:$0xff] %vm66, %v5170
    %v5179 = vld [vmem:[#allocation3] sm:$0xff]
    %v5180 = vld [vmem:[#allocation3 + $0x8] sm:$0xff]
    %v5181 = vld [vmem:[#allocation3 + $0x10] sm:$0xff]
    %v5182 = vld [vmem:[#allocation3 + $0x18] sm:$0xff]
    %v5183 = vld [vmem:[#allocation3 + $0x20] sm:$0xff]
    %v5184 = vld [vmem:[#allocation3 + $0x28] sm:$0xff]
    %v5185 = vld [vmem:[#allocation3 + $0x30] sm:$0xff]
    %v5186 = vld [vmem:[#allocation3 + $0x38] sm:$0xff]
    %v5187 = vld [vmem:[#allocation3 + $0x40] sm:$0xff]
    %v5188 = vld [vmem:[#allocation3 + $0x48] sm:$0xff]
    %v5189 = vld [vmem:[#allocation3 + $0x50] sm:$0xff]
    %v5190 = vld [vmem:[#allocation3 + $0x58] sm:$0xff]
    %v5191 = vld [vmem:[#allocation3 + $0x60] sm:$0xff]
    %v5192 = vld [vmem:[#allocation3 + $0x68] sm:$0xff]
    %v5193 = vld [vmem:[#allocation3 + $0x70] sm:$0xff]
    %v5194 = vld [vmem:[#allocation3 + $0x78] sm:$0xff]
    %v5195 = vld [vmem:[#allocation3 + $0x80] sm:$0xff]
    %v5196 = vld [vmem:[#allocation3 + $0x88] sm:$0xff]
    %v5197 = vld [vmem:[#allocation3 + $0x90] sm:$0xff]
    %v5198 = vld [vmem:[#allocation3 + $0x98] sm:$0xff]
    %v5199 = vld [vmem:[#allocation3 + $0xa0] sm:$0xff]
    %v5200 = vld [vmem:[#allocation3 + $0xa8] sm:$0xff]
    %v5201 = vld [vmem:[#allocation3 + $0xb0] sm:$0xff]
    %v5202 = vld [vmem:[#allocation3 + $0xb8] sm:$0xff]
    %v5203 = vld [vmem:[%s16] sm:$0xf]
    %v5204 = vld [vmem:[%s16 + $0x4] sm:$0xf]
    %v5205 = vld [vmem:[%s16 + $0x8] sm:$0xf]
    %v5206 = vld [vmem:[%s16 + $0xc] sm:$0xf]
    %v5207 = vld [vmem:[%s16 + $0x10] sm:$0xf]
    %v5208 = vld [vmem:[%s16 + $0x14] sm:$0xf]
    %v5209 = vld [vmem:[%s16 + $0x18] sm:$0xf]
    %v5210 = vld [vmem:[%s16 + $0x1c] sm:$0xf]
    %v5211 = vld [vmem:[%s16 + $0x20] sm:$0xf]
    %v5212 = vld [vmem:[%s16 + $0x24] sm:$0xf]
    %v5213 = vld [vmem:[%s16 + $0x28] sm:$0xf]
    %v5214 = vld [vmem:[%s16 + $0x2c] sm:$0xf]
    %v5215 = vld [vmem:[%s16 + $0x30] sm:$0xf]
    %v5216 = vld [vmem:[%s16 + $0x34] sm:$0xf]
    %v5217 = vld [vmem:[%s16 + $0x38] sm:$0xf]
    %v5218 = vld [vmem:[%s16 + $0x3c] sm:$0xf]
    %v5219 = vld [vmem:[%s16 + $0x40] sm:$0xf]
    %v5220 = vld [vmem:[%s16 + $0x44] sm:$0xf]
    %v5221 = vld [vmem:[%s16 + $0x48] sm:$0xf]
    %v5222 = vld [vmem:[%s16 + $0x4c] sm:$0xf]
    %v5223 = vld [vmem:[%s16 + $0x50] sm:$0xf]
    %v5224 = vld [vmem:[%s16 + $0x54] sm:$0xf]
    %v5225 = vld [vmem:[%s16 + $0x58] sm:$0xf]
    %v5226 = vld [vmem:[%s16 + $0x5c] sm:$0xf]
    %v5227 = vld [vmem:[%s16 + $0x60] sm:$0xf]
    %v5228 = vld [vmem:[%s16 + $0x64] sm:$0xf]
    %v5229 = vld [vmem:[%s16 + $0x68] sm:$0xf]
    %v5230 = vld [vmem:[%s16 + $0x6c] sm:$0xf]
    %v5231 = vld [vmem:[%s16 + $0x70] sm:$0xf]
    %v5232 = vld [vmem:[%s16 + $0x74] sm:$0xf]
    %v5233 = vld [vmem:[%s16 + $0x78] sm:$0xf]
    %v5234 = vld [vmem:[%s16 + $0x7c] sm:$0xf]
    %v5235 = vld [vmem:[%s16 + $0x80] sm:$0xf]
    %v5236 = vld [vmem:[%s16 + $0x84] sm:$0xf]
    %v5237 = vld [vmem:[%s16 + $0x88] sm:$0xf]
    %v5238 = vld [vmem:[%s16 + $0x8c] sm:$0xf]
    %v5275 = vunpack.c.l.b16 %v5203
    %v5276 = vunpack.c.l.b16 %v5204
    %v5277 = vunpack.c.l.b16 %v5205
    %v5278 = vunpack.c.l.b16 %v5206
    %v5279 = vunpack.c.l.b16 %v5207
    %v5280 = vunpack.c.l.b16 %v5208
    %v5281 = vunpack.c.l.b16 %v5209
    %v5282 = vunpack.c.l.b16 %v5210
    %v5283 = vunpack.c.l.b16 %v5211
    %v5284 = vunpack.c.l.b16 %v5212
    %v5285 = vunpack.c.l.b16 %v5213
    %v5286 = vunpack.c.l.b16 %v5214
    %v5287 = vunpack.c.l.b16 %v5215
    %v5288 = vunpack.c.l.b16 %v5216
    %v5289 = vunpack.c.l.b16 %v5217
    %v5290 = vunpack.c.l.b16 %v5218
    %v5291 = vunpack.c.l.b16 %v5219
    %v5292 = vunpack.c.l.b16 %v5220
    %v5293 = vunpack.c.l.b16 %v5221
    %v5294 = vunpack.c.l.b16 %v5222
    %v5295 = vunpack.c.l.b16 %v5223
    %v5296 = vunpack.c.l.b16 %v5224
    %v5297 = vunpack.c.l.b16 %v5225
    %v5298 = vunpack.c.l.b16 %v5226
    %v5299 = vunpack.c.l.b16 %v5227
    %v5300 = vunpack.c.l.b16 %v5228
    %v5301 = vunpack.c.l.b16 %v5229
    %v5302 = vunpack.c.l.b16 %v5230
    %v5303 = vunpack.c.l.b16 %v5231
    %v5304 = vunpack.c.l.b16 %v5232
    %v5305 = vunpack.c.l.b16 %v5233
    %v5306 = vunpack.c.l.b16 %v5234
    %v5307 = vunpack.c.l.b16 %v5235
    %v5308 = vunpack.c.l.b16 %v5236
    %v5309 = vunpack.c.l.b16 %v5237
    %v5310 = vunpack.c.l.b16 %v5238
    %v5311 = vpack.c.b16 %v5276, %v5275
    %v5312 = vpack.c.b16 %v5278, %v5277
    %v5313 = vpack.c.b16 %v5280, %v5279
    %v5314 = vpack.c.b16 %v5282, %v5281
    %v5315 = vpack.c.b16 %v5284, %v5283
    %v5316 = vpack.c.b16 %v5286, %v5285
    %v5317 = vpack.c.b16 %v5288, %v5287
    %v5318 = vpack.c.b16 %v5290, %v5289
    %v5319 = vpack.c.b16 %v5292, %v5291
    %v5320 = vpack.c.b16 %v5294, %v5293
    %v5321 = vpack.c.b16 %v5296, %v5295
    %v5322 = vpack.c.b16 %v5298, %v5297
    %v5323 = vpack.c.b16 %v5300, %v5299
    %v5324 = vpack.c.b16 %v5302, %v5301
    %v5325 = vpack.c.b16 %v5304, %v5303
    %v5326 = vpack.c.b16 %v5306, %v5305
    %v5327 = vpack.c.b16 %v5308, %v5307
    %v5328 = vpack.c.b16 %v5310, %v5309
    %v5348 = vsel %vm66, %v5181, 0
    %v5351 = vsel %vm66, %v5184, 0
    %v5354 = vsel %vm66, %v5187, 0
    %v5357 = vsel %vm66, %v5190, 0
    %v5360 = vsel %vm66, %v5193, 0
    %v5363 = vsel %vm66, %v5196, 0
    %v5366 = vsel %vm66, %v5199, 0
    %v5369 = vsel %vm66, %v5202, 0
    %5371 = vmatprep.subr.bf16.mxu0 0
    %5372 = vmatpush1.bf16.msra.mxu0 %v5311
    %5373 = vmatprep.subr.bf16.mxu0 0
    %5374 = vmatpush1.bf16.msra.mxu0 %v5312
    %5375 = vmatprep.subr.bf16.mxu0 0
    %5376 = vmatpush1.bf16.msra.mxu0 %v5313
    %5377 = vmatprep.subr.bf16.mxu0 0
    %5378 = vmatpush1.bf16.msra.mxu0 %v5314
    %5379 = vmatprep.subr.bf16.mxu0 0
    %5380 = vmatpush1.bf16.msra.mxu0 %v5315
    %5381 = vmatprep.subr.bf16.mxu0 0
    %5382 = vmatpush1.bf16.msra.mxu0 %v5316
    %5383 = vmatprep.subr.bf16.mxu0 0
    %5384 = vmatpush1.bf16.msra.mxu0 %v5317
    %5385 = vmatprep.subr.bf16.mxu0 0
    %5386 = vmatpush1.bf16.msra.mxu0 %v5318
    %5387 = vmatprep.subr.bf16.mxu0 0
    %5388 = vmatpush1.bf16.msra.mxu0 %v5319
    %5389 = vmatprep.subr.bf16.mxu0 0
    %5390 = vmatpush1.bf16.msra.mxu0 %v5320
    %5391 = vmatprep.subr.bf16.mxu0 0
    %5392 = vmatpush1.bf16.msra.mxu0 %v5321
    %5393 = vmatprep.subr.bf16.mxu0 0
    %5394 = vmatpush1.bf16.msra.mxu0 %v5322
    %5395 = vmatprep.subr.bf16.mxu0 0
    %5396 = vmatpush1.bf16.msra.mxu0 %v5323
    %5397 = vmatprep.subr.bf16.mxu0 0
    %5398 = vmatpush1.bf16.msra.mxu0 %v5324
    %5399 = vmatprep.subr.bf16.mxu0 0
    %5400 = vmatpush1.bf16.msra.mxu0 %v5325
    %5401 = vmatprep.subr.bf16.mxu0 0
    %5402 = vmatpush1.bf16.msra.mxu0 %v5326
    %5403 = vmatprep.mubr.bf16.mxu0 %v5180
    %5404 = vmatmul.mubr.bf16.gmra.mrb[0].mxu0 %v5179
    %v5405 = vpop.f32.mrb[0].mxu0
    %v5406 = vadd.f32 0.0, %v5405
    %v5407 = vpop.f32.mrb[0].mxu0
    %v5408 = vpop.f32.mrb[0].mxu0
    %v5409 = vadd.f32 0.0, %v5408
    %v5410 = vpop.f32.mrb[0].mxu0
    %5411 = vmatprep.mubr.bf16.mxu0 %v5183
    %5412 = vmatmul.mubr.bf16.gmra.mrb[0].mxu0 %v5182
    %v5413 = vpop.f32.mrb[0].mxu0
    %v5414 = vadd.f32 0.0, %v5413
    %v5415 = vpop.f32.mrb[0].mxu0
    %v5416 = vpop.f32.mrb[0].mxu0
    %v5417 = vadd.f32 0.0, %v5416
    %v5418 = vpop.f32.mrb[0].mxu0
    %5419 = vmatprep.mubr.bf16.mxu0 %v5186
    %5420 = vmatmul.mubr.bf16.gmra.mrb[0].mxu0 %v5185
    %v5421 = vpop.f32.mrb[0].mxu0
    %v5422 = vadd.f32 0.0, %v5421
    %v5423 = vpop.f32.mrb[0].mxu0
    %v5424 = vpop.f32.mrb[0].mxu0
    %v5425 = vadd.f32 0.0, %v5424
    %v5426 = vpop.f32.mrb[0].mxu0
    %5427 = vmatprep.mubr.bf16.mxu0 %v5189
    %5428 = vmatmul.mubr.bf16.gmra.mrb[0].mxu0 %v5188
    %v5429 = vpop.f32.mrb[0].mxu0
    %v5430 = vadd.f32 0.0, %v5429
    %v5431 = vpop.f32.mrb[0].mxu0
    %v5432 = vpop.f32.mrb[0].mxu0
    %v5433 = vadd.f32 0.0, %v5432
    %v5434 = vpop.f32.mrb[0].mxu0
    %5435 = vmatprep.mubr.bf16.mxu0 %v5192
    %5436 = vmatmul.mubr.bf16.gmra.mrb[0].mxu0 %v5191
    %v5437 = vpop.f32.mrb[0].mxu0
    %v5438 = vadd.f32 0.0, %v5437
    %v5439 = vpop.f32.mrb[0].mxu0
    %v5440 = vpop.f32.mrb[0].mxu0
    %v5441 = vadd.f32 0.0, %v5440
    %v5442 = vpop.f32.mrb[0].mxu0
    %5443 = vmatprep.mubr.bf16.mxu0 %v5195
    %5444 = vmatmul.mubr.bf16.gmra.mrb[0].mxu0 %v5194
    %v5445 = vpop.f32.mrb[0].mxu0
    %v5446 = vadd.f32 0.0, %v5445
    %v5447 = vpop.f32.mrb[0].mxu0
    %v5448 = vpop.f32.mrb[0].mxu0
    %v5449 = vadd.f32 0.0, %v5448
    %v5450 = vpop.f32.mrb[0].mxu0
    %5451 = vmatprep.mubr.bf16.mxu0 %v5198
    %5452 = vmatmul.mubr.bf16.gmra.mrb[0].mxu0 %v5197
    %v5453 = vpop.f32.mrb[0].mxu0
    %v5454 = vadd.f32 0.0, %v5453
    %v5455 = vpop.f32.mrb[0].mxu0
    %v5456 = vpop.f32.mrb[0].mxu0
    %v5457 = vadd.f32 0.0, %v5456
    %v5458 = vpop.f32.mrb[0].mxu0
    %5459 = vmatprep.mubr.bf16.mxu0 %v5201
    %5460 = vmatmul.mubr.bf16.gmra.mrb[0].mxu0 %v5200
    %v5461 = vpop.f32.mrb[0].mxu0
    %v5462 = vadd.f32 0.0, %v5461
    %v5463 = vpop.f32.mrb[0].mxu0
    %v5464 = vpop.f32.mrb[0].mxu0
    %v5465 = vadd.f32 0.0, %v5464
    %v5466 = vpop.f32.mrb[0].mxu0
    %5467 = vdwg.mxu0
    %5468 = vmatprep.subr.bf16.mxu0 0
    %5469 = vmatpush1.bf16.msra.mxu0 %v5327
    %5470 = vmatprep.subr.bf16.mxu0 0
    %5471 = vmatpush1.bf16.msra.mxu0 %v5328
    %5472 = vmatprep.subr.bf16.mxu0 0
    %5473 = vmatpush1.bf16.msra.mxu0 0
    %5474 = vmatprep.subr.bf16.mxu0 0
    %5475 = vmatpush1.bf16.msra.mxu0 0
    %5476 = vmatprep.subr.bf16.mxu0 0
    %5477 = vmatpush1.bf16.msra.mxu0 0
    %5478 = vmatprep.subr.bf16.mxu0 0
    %5479 = vmatpush1.bf16.msra.mxu0 0
    %5480 = vmatprep.subr.bf16.mxu0 0
    %5481 = vmatpush1.bf16.msra.mxu0 0
    %5482 = vmatprep.subr.bf16.mxu0 0
    %5483 = vmatpush1.bf16.msra.mxu0 0
    %5484 = vmatprep.subr.bf16.mxu0 0
    %5485 = vmatpush1.bf16.msra.mxu0 0
    %5486 = vmatprep.subr.bf16.mxu0 0
    %5487 = vmatpush1.bf16.msra.mxu0 0
    %5488 = vmatprep.subr.bf16.mxu0 0
    %5489 = vmatpush1.bf16.msra.mxu0 0
    %5490 = vmatprep.subr.bf16.mxu0 0
    %5491 = vmatpush1.bf16.msra.mxu0 0
    %5492 = vmatprep.subr.bf16.mxu0 0
    %5493 = vmatpush1.bf16.msra.mxu0 0
    %5494 = vmatprep.subr.bf16.mxu0 0
    %5495 = vmatpush1.bf16.msra.mxu0 0
    %5496 = vmatprep.subr.bf16.mxu0 0
    %5497 = vmatpush1.bf16.msra.mxu0 0
    %5498 = vmatprep.subr.bf16.mxu0 0
    %5499 = vmatpush1.bf16.msra.mxu0 0
    %5500 = vmatprep.mubr.bf16.mxu0 0
    %5501 = vmatmul.mubr.bf16.gmra.mrb[0].mxu0 %v5348
    %v5502 = vpop.f32.mrb[0].mxu0
    %v5503 = vadd.f32 %v5406, %v5502
    %v5504 = vpop.f32.mrb[0].mxu0
    %v5505 = vpop.f32.mrb[0].mxu0
    %v5506 = vadd.f32 %v5409, %v5505
    %v5507 = vpop.f32.mrb[0].mxu0
    %5508 = vmatprep.mubr.bf16.mxu0 0
    %5509 = vmatmul.mubr.bf16.gmra.mrb[0].mxu0 %v5351
    %v5510 = vpop.f32.mrb[0].mxu0
    %v5511 = vadd.f32 %v5414, %v5510
    %v5512 = vpop.f32.mrb[0].mxu0
    %v5513 = vpop.f32.mrb[0].mxu0
    %v5514 = vadd.f32 %v5417, %v5513
    %v5515 = vpop.f32.mrb[0].mxu0
    %5516 = vmatprep.mubr.bf16.mxu0 0
    %5517 = vmatmul.mubr.bf16.gmra.mrb[0].mxu0 %v5354
    %v5518 = vpop.f32.mrb[0].mxu0
    %v5519 = vadd.f32 %v5422, %v5518
    %v5520 = vpop.f32.mrb[0].mxu0
    %v5521 = vpop.f32.mrb[0].mxu0
    %v5522 = vadd.f32 %v5425, %v5521
    %v5523 = vpop.f32.mrb[0].mxu0
    %5524 = vmatprep.mubr.bf16.mxu0 0
    %5525 = vmatmul.mubr.bf16.gmra.mrb[0].mxu0 %v5357
    %v5526 = vpop.f32.mrb[0].mxu0
    %v5527 = vadd.f32 %v5430, %v5526
    %v5528 = vpop.f32.mrb[0].mxu0
    %v5529 = vpop.f32.mrb[0].mxu0
    %v5530 = vadd.f32 %v5433, %v5529
    %v5531 = vpop.f32.mrb[0].mxu0
    %5532 = vmatprep.mubr.bf16.mxu0 0
    %5533 = vmatmul.mubr.bf16.gmra.mrb[0].mxu0 %v5360
    %v5534 = vpop.f32.mrb[0].mxu0
    %v5535 = vadd.f32 %v5438, %v5534
    %v5536 = vpop.f32.mrb[0].mxu0
    %v5537 = vpop.f32.mrb[0].mxu0
    %v5538 = vadd.f32 %v5441, %v5537
    %v5539 = vpop.f32.mrb[0].mxu0
    %5540 = vmatprep.mubr.bf16.mxu0 0
    %5541 = vmatmul.mubr.bf16.gmra.mrb[0].mxu0 %v5363
    %v5542 = vpop.f32.mrb[0].mxu0
    %v5543 = vadd.f32 %v5446, %v5542
    %v5544 = vpop.f32.mrb[0].mxu0
    %v5545 = vpop.f32.mrb[0].mxu0
    %v5546 = vadd.f32 %v5449, %v5545
    %v5547 = vpop.f32.mrb[0].mxu0
    %5548 = vmatprep.mubr.bf16.mxu0 0
    %5549 = vmatmul.mubr.bf16.gmra.mrb[0].mxu0 %v5366
    %v5550 = vpop.f32.mrb[0].mxu0
    %v5551 = vadd.f32 %v5454, %v5550
    %v5552 = vpop.f32.mrb[0].mxu0
    %v5553 = vpop.f32.mrb[0].mxu0
    %v5554 = vadd.f32 %v5457, %v5553
    %v5555 = vpop.f32.mrb[0].mxu0
    %5556 = vmatprep.mubr.bf16.mxu0 0
    %5557 = vmatmul.mubr.bf16.gmra.mrb[0].mxu0 %v5369
    %v5558 = vpop.f32.mrb[0].mxu0
    %v5559 = vadd.f32 %v5462, %v5558
    %v5560 = vpop.f32.mrb[0].mxu0
    %v5561 = vpop.f32.mrb[0].mxu0
    %v5562 = vadd.f32 %v5465, %v5561
    %v5563 = vpop.f32.mrb[0].mxu0
    %5564 = vdwg.mxu0
    %v5565 = vld [vmem:[%s17] sm:$0x1]
    %v5566 = vld [vmem:[%s18] sm:$0x1]
    %vm5567 = vcmask 285696
    %v5568 = vsel %vm5567, %v5503, 0.0
    %v5569 = vsel %vm5567, %v5506, 0.0
    %v5570 = vadd.f32 %v5568, %v5569
    %v5571 = vsel %vm5567, %v5511, 0.0
    %v5572 = vadd.f32 %v5570, %v5571
    %v5573 = vsel %vm5567, %v5514, 0.0
    %v5574 = vadd.f32 %v5572, %v5573
    %v5575 = vsel %vm5567, %v5519, 0.0
    %v5576 = vadd.f32 %v5574, %v5575
    %v5577 = vsel %vm5567, %v5522, 0.0
    %v5578 = vadd.f32 %v5576, %v5577
    %v5579 = vsel %vm5567, %v5527, 0.0
    %v5580 = vadd.f32 %v5578, %v5579
    %v5581 = vsel %vm5567, %v5530, 0.0
    %v5582 = vadd.f32 %v5580, %v5581
    %v5583 = vsel %vm5567, %v5535, 0.0
    %v5584 = vadd.f32 %v5582, %v5583
    %v5585 = vsel %vm5567, %v5538, 0.0
    %v5586 = vadd.f32 %v5584, %v5585
    %v5587 = vsel %vm5567, %v5543, 0.0
    %v5588 = vadd.f32 %v5586, %v5587
    %v5589 = vsel %vm5567, %v5546, 0.0
    %v5590 = vadd.f32 %v5588, %v5589
    %v5591 = vsel %vm5567, %v5551, 0.0
    %v5592 = vadd.f32 %v5590, %v5591
    %v5593 = vsel %vm5567, %v5554, 0.0
    %v5594 = vadd.f32 %v5592, %v5593
    %v5595 = vsel %vm5567, %v5559, 0.0
    %v5596 = vadd.f32 %v5594, %v5595
    %v5597 = vsel %vm5567, %v5562, 0.0
    %v5598 = vadd.f32 %v5596, %v5597
    %v5599 = vrot.slane %v5598, 4
    %v5600 = vadd.f32 %v5598, %v5599
    %v5601 = vrot.slane %v5600, 2
    %v5602 = vadd.f32 %v5600, %v5601
    %v5603 = vrot.slane %v5602, 1
    %v5604 = vadd.f32 %v5602, %v5603
    %v5605 = vmul.f32 %v5503, %v5503
    %v5606 = vmul.f32 %v5506, %v5506
    %v5607 = vmul.f32 %v5511, %v5511
    %v5608 = vmul.f32 %v5514, %v5514
    %v5609 = vmul.f32 %v5519, %v5519
    %v5610 = vmul.f32 %v5522, %v5522
    %v5611 = vmul.f32 %v5527, %v5527
    %v5612 = vmul.f32 %v5530, %v5530
    %v5613 = vmul.f32 %v5535, %v5535
    %v5614 = vmul.f32 %v5538, %v5538
    %v5615 = vmul.f32 %v5543, %v5543
    %v5616 = vmul.f32 %v5546, %v5546
    %v5617 = vmul.f32 %v5551, %v5551
    %v5618 = vmul.f32 %v5554, %v5554
    %v5619 = vmul.f32 %v5559, %v5559
    %v5620 = vmul.f32 %v5562, %v5562
    %v5621 = vsel %vm5567, %v5605, 0.0
    %v5622 = vsel %vm5567, %v5606, 0.0
    %v5623 = vadd.f32 %v5621, %v5622
    %v5624 = vsel %vm5567, %v5607, 0.0
    %v5625 = vadd.f32 %v5623, %v5624
    %v5626 = vsel %vm5567, %v5608, 0.0
    %v5627 = vadd.f32 %v5625, %v5626
    %v5628 = vsel %vm5567, %v5609, 0.0
    %v5629 = vadd.f32 %v5627, %v5628
    %v5630 = vsel %vm5567, %v5610, 0.0
    %v5631 = vadd.f32 %v5629, %v5630
    %v5632 = vsel %vm5567, %v5611, 0.0
    %v5633 = vadd.f32 %v5631, %v5632
    %v5634 = vsel %vm5567, %v5612, 0.0
    %v5635 = vadd.f32 %v5633, %v5634
    %v5636 = vsel %vm5567, %v5613, 0.0
    %v5637 = vadd.f32 %v5635, %v5636
    %v5638 = vsel %vm5567, %v5614, 0.0
    %v5639 = vadd.f32 %v5637, %v5638
    %v5640 = vsel %vm5567, %v5615, 0.0
    %v5641 = vadd.f32 %v5639, %v5640
    %v5642 = vsel %vm5567, %v5616, 0.0
    %v5643 = vadd.f32 %v5641, %v5642
    %v5644 = vsel %vm5567, %v5617, 0.0
    %v5645 = vadd.f32 %v5643, %v5644
    %v5646 = vsel %vm5567, %v5618, 0.0
    %v5647 = vadd.f32 %v5645, %v5646
    %v5648 = vsel %vm5567, %v5619, 0.0
    %v5649 = vadd.f32 %v5647, %v5648
    %v5650 = vsel %vm5567, %v5620, 0.0
    %v5651 = vadd.f32 %v5649, %v5650
    %v5652 = vrot.slane %v5651, 4
    %v5653 = vadd.f32 %v5651, %v5652
    %v5654 = vrot.slane %v5653, 2
    %v5655 = vadd.f32 %v5653, %v5654
    %v5656 = vrot.slane %v5655, 1
    %v5657 = vadd.f32 %v5655, %v5656
    %v5658 = vmul.f32 %v5604, 0.0078125
    %v5659 = vmul.f32 %v5657, 0.0078125
    %v5660 = vmul.f32 %v5658, %v5658
    %v5661 = vsub.f32 %v5659, %v5660
    %v5662 = vmax.f32 %v5661, 0.0
    %v5663 = vadd.f32 %v5662, 1e-05
    %v5664 = vrsqrt.pop %v5663
    %v5665 = vmul.f32 %v5565, %v5664
    %v5667 = vlaneseq
    %v5668 = vshrl.u32 %v5667, 7
    %v5669 = vsub.s32 0, %v5668
    %v5670 = vrot.slane %v5665, %v5669
    %v5672 = vmul.f32 %v5503, %v5670
    %v5673 = vmul.f32 %v5506, %v5670
    %v5674 = vmul.f32 %v5511, %v5670
    %v5675 = vmul.f32 %v5514, %v5670
    %v5676 = vmul.f32 %v5519, %v5670
    %v5677 = vmul.f32 %v5522, %v5670
    %v5678 = vmul.f32 %v5527, %v5670
    %v5679 = vmul.f32 %v5530, %v5670
    %v5680 = vmul.f32 %v5535, %v5670
    %v5681 = vmul.f32 %v5538, %v5670
    %v5682 = vmul.f32 %v5543, %v5670
    %v5683 = vmul.f32 %v5546, %v5670
    %v5684 = vmul.f32 %v5551, %v5670
    %v5685 = vmul.f32 %v5554, %v5670
    %v5686 = vmul.f32 %v5559, %v5670
    %v5687 = vmul.f32 %v5562, %v5670
    %v5688 = vmul.f32 %v5658, %v5665
    %v5689 = vsub.f32 %v5566, %v5688
    %v5691 = vlaneseq
    %v5692 = vshrl.u32 %v5691, 7
    %v5693 = vsub.s32 0, %v5692
    %v5694 = vrot.slane %v5689, %v5693
    %v5696 = vadd.f32 %v5672, %v5694
    %v5697 = vadd.f32 %v5673, %v5694
    %v5698 = vadd.f32 %v5674, %v5694
    %v5699 = vadd.f32 %v5675, %v5694
    %v5700 = vadd.f32 %v5676, %v5694
    %v5701 = vadd.f32 %v5677, %v5694
    %v5702 = vadd.f32 %v5678, %v5694
    %v5703 = vadd.f32 %v5679, %v5694
    %v5704 = vadd.f32 %v5680, %v5694
    %v5705 = vadd.f32 %v5681, %v5694
    %v5706 = vadd.f32 %v5682, %v5694
    %v5707 = vadd.f32 %v5683, %v5694
    %v5708 = vadd.f32 %v5684, %v5694
    %v5709 = vadd.f32 %v5685, %v5694
    %v5710 = vadd.f32 %v5686, %v5694
    %v5711 = vadd.f32 %v5687, %v5694
    %v5712 = vmax.f32 %v5696, 0.0
    %v5713 = vmax.f32 %v5697, 0.0
    %v5714 = vmax.f32 %v5698, 0.0
    %v5715 = vmax.f32 %v5699, 0.0
    %v5716 = vmax.f32 %v5700, 0.0
    %v5717 = vmax.f32 %v5701, 0.0
    %v5718 = vmax.f32 %v5702, 0.0
    %v5719 = vmax.f32 %v5703, 0.0
    %v5720 = vmax.f32 %v5704, 0.0
    %v5721 = vmax.f32 %v5705, 0.0
    %v5722 = vmax.f32 %v5706, 0.0
    %v5723 = vmax.f32 %v5707, 0.0
    %v5724 = vmax.f32 %v5708, 0.0
    %v5725 = vmax.f32 %v5709, 0.0
    %v5726 = vmax.f32 %v5710, 0.0
    %v5727 = vmax.f32 %v5711, 0.0
    %5728 = vst.msk [vmem:[#allocation4] sm:$0xff] %vm66, %v4667
    %5729 = vst.msk [vmem:[#allocation4 + $0x8] sm:$0xff] %vm66, %v4668
    %5730 = vst.msk [vmem:[#allocation4 + $0x10] sm:$0xff] %vm66, %v4669
    %5731 = vst.msk [vmem:[#allocation4 + $0x18] sm:$0xff] %vm66, %v4670
    %5732 = vst.msk [vmem:[#allocation4 + $0x20] sm:$0xff] %vm66, %v4671
    %5733 = vst.msk [vmem:[#allocation4 + $0x28] sm:$0xff] %vm66, %v4672
    %5734 = vst.msk [vmem:[#allocation4 + $0x30] sm:$0xff] %vm66, %v4673
    %5735 = vst.msk [vmem:[#allocation4 + $0x38] sm:$0xff] %vm66, %v4674
    %5736 = vst.msk [vmem:[#allocation4 + $0x40] sm:$0xff] %vm66, %v4675
    %5737 = vst.msk [vmem:[#allocation4 + $0x48] sm:$0xff] %vm66, %v4676
    %5738 = vst.msk [vmem:[#allocation4 + $0x50] sm:$0xff] %vm66, %v4677
    %5739 = vst.msk [vmem:[#allocation4 + $0x58] sm:$0xff] %vm66, %v4678
    %5740 = vst.msk [vmem:[#allocation4 + $0x60] sm:$0xff] %vm66, %v4679
    %5741 = vst.msk [vmem:[#allocation4 + $0x68] sm:$0xff] %vm66, %v4680
    %5742 = vst.msk [vmem:[#allocation4 + $0x70] sm:$0xff] %vm66, %v4681
    %5743 = vst.msk [vmem:[#allocation4 + $0x78] sm:$0xff] %vm66, %v4682
    %v5744 = vpack.c.bf16 %v5713, %v5712
    %v5745 = vpack.c.bf16 %v5715, %v5714
    %v5746 = vpack.c.bf16 %v5717, %v5716
    %v5747 = vpack.c.bf16 %v5719, %v5718
    %v5748 = vpack.c.bf16 %v5721, %v5720
    %v5749 = vpack.c.bf16 %v5723, %v5722
    %v5750 = vpack.c.bf16 %v5725, %v5724
    %v5751 = vpack.c.bf16 %v5727, %v5726
    %v5760 = vunpack.c.l.b16 %v5744
    %v5761 = vunpack.c.h.b16 %v5744
    %v5762 = vunpack.c.l.b16 %v5745
    %v5763 = vunpack.c.h.b16 %v5745
    %v5764 = vunpack.c.l.b16 %v5746
    %v5765 = vunpack.c.h.b16 %v5746
    %v5766 = vunpack.c.l.b16 %v5747
    %v5767 = vunpack.c.h.b16 %v5747
    %v5768 = vunpack.c.l.b16 %v5748
    %v5769 = vunpack.c.h.b16 %v5748
    %v5770 = vunpack.c.l.b16 %v5749
    %v5771 = vunpack.c.h.b16 %v5749
    %v5772 = vunpack.c.l.b16 %v5750
    %v5773 = vunpack.c.h.b16 %v5750
    %v5774 = vunpack.c.l.b16 %v5751
    %v5775 = vunpack.c.h.b16 %v5751
    %v5776 = vpack.c.b16 %v5760, %v5760
    %v5777 = vpack.c.b16 %v5761, %v5761
    %v5778 = vpack.c.b16 %v5762, %v5762
    %v5779 = vpack.c.b16 %v5763, %v5763
    %v5780 = vpack.c.b16 %v5764, %v5764
    %v5781 = vpack.c.b16 %v5765, %v5765
    %v5782 = vpack.c.b16 %v5766, %v5766
    %v5783 = vpack.c.b16 %v5767, %v5767
    %v5784 = vpack.c.b16 %v5768, %v5768
    %v5785 = vpack.c.b16 %v5769, %v5769
    %v5786 = vpack.c.b16 %v5770, %v5770
    %v5787 = vpack.c.b16 %v5771, %v5771
    %v5788 = vpack.c.b16 %v5772, %v5772
    %v5789 = vpack.c.b16 %v5773, %v5773
    %v5790 = vpack.c.b16 %v5774, %v5774
    %v5791 = vpack.c.b16 %v5775, %v5775
    %vm5808 = vcmask 281600
    %5809 = vst.msk [vmem:[%s20] sm:$0xf] %vm5808, %v5776
    %5810 = vst.msk [vmem:[%s20 + $0x4] sm:$0xf] %vm5808, %v5777
    %5811 = vst.msk [vmem:[%s20 + $0x8] sm:$0xf] %vm5808, %v5778
    %5812 = vst.msk [vmem:[%s20 + $0xc] sm:$0xf] %vm5808, %v5779
    %5813 = vst.msk [vmem:[%s20 + $0x10] sm:$0xf] %vm5808, %v5780
    %5814 = vst.msk [vmem:[%s20 + $0x14] sm:$0xf] %vm5808, %v5781
    %5815 = vst.msk [vmem:[%s20 + $0x18] sm:$0xf] %vm5808, %v5782
    %5816 = vst.msk [vmem:[%s20 + $0x1c] sm:$0xf] %vm5808, %v5783
    %5817 = vst.msk [vmem:[%s20 + $0x20] sm:$0xf] %vm5808, %v5784
    %5818 = vst.msk [vmem:[%s20 + $0x24] sm:$0xf] %vm5808, %v5785
    %5819 = vst.msk [vmem:[%s20 + $0x28] sm:$0xf] %vm5808, %v5786
    %5820 = vst.msk [vmem:[%s20 + $0x2c] sm:$0xf] %vm5808, %v5787
    %5821 = vst.msk [vmem:[%s20 + $0x30] sm:$0xf] %vm5808, %v5788
    %5822 = vst.msk [vmem:[%s20 + $0x34] sm:$0xf] %vm5808, %v5789
    %5823 = vst.msk [vmem:[%s20 + $0x38] sm:$0xf] %vm5808, %v5790
    %5824 = vst.msk [vmem:[%s20 + $0x3c] sm:$0xf] %vm5808, %v5791
    // Predicated region
    $region78: #{forward.2} parent=1 // pred_check
      _
    $region79: #{forward.2} parent=1 // pred_check_branch
      %5826 = sbr.rel (0) target = $region81
    $region80: #{forward.2} parent=1 // pred_region
      %s5828 = ssub.s32 2048, 2048
      %5829 = vsyncadd [#allocation5], %s5828
      %s5830 = sshll.u32 [#allocation4], 4
      %s5831 = int_to_ptr.vmem [resolvable:$true] %s5830
      %5836 = dma.vmem_to_hbm [thread:$0]  %s5831, 2048, %s19, [#allocation5], 128, 128, 8
    $region81: #{forward.2} parent=1 // pred_fallthru
      _
    // Predicated region
    $region82: #{forward.2} parent=1 // pred_check
      _
    $region83: #{forward.2} parent=1 // pred_check_branch
      %5838 = sbr.rel (0) target = $region85
    $region84: #{forward.2} parent=1 // pred_region
      _
    $region85: #{forward.2} parent=1 // pred_fallthru
      _
    // Predicated region
    $region86: #{forward.2} parent=1 // pred_check
      _
    $region87: #{forward.2} parent=1 // pred_check_branch
      %5840 = sbr.rel (0) target = $region89
    $region88: #{forward.2} parent=1 // pred_region
      %5841 = dma.done [#allocation5], 2048
    $region89: #{forward.2} parent=1 // pred_fallthru
      _
    // Predicated region
    $region90: #{forward.2} parent=1 // pred_check
      _
    $region91: #{forward.2} parent=1 // pred_check_branch
      %5843 = sbr.rel (0) target = $region93
    $region92: #{forward.2} parent=1 // pred_region
      _
    $region93: #{forward.2} parent=1 // pred_fallthru
      _
    %5844 = vsyncpa [#allocation5], 1

</llo_original>
